<compile_context>
chip_gen: v6e
topology: v6e:2x2x1
jax: 0.10.0
libtpu: 0.0.40
codegen_flags: <defaults>
</compile_context>

<pallas_src>
import functools

import jax
import jax.numpy as jnp
import numpy as np
from jax.experimental import pallas as pl
from jax.experimental.pallas import tpu as pltpu


# ------------------------------ Pallas kernels ------------------------------- #

def _batchnorm(y, eps=1e-5):
    """BatchNorm2d with batch statistics (training mode), gamma=1, beta=0.
    Single-pass stats: sum and sum-of-squares in one traversal of y."""
    inv_m = 1.0 / y.shape[0]
    s = jnp.sum(y, axis=0, keepdims=True)
    ss = jnp.sum(y * y, axis=0, keepdims=True)
    mean = s * inv_m
    var = ss * inv_m - mean * mean            # biased variance (PyTorch training mode)
    return (y - mean) * jax.lax.rsqrt(var + eps)


def _matmul_bn_act_kernel(x_ref, w_ref, o_ref, *, act, bn):
    """bf16 matmul (f32 accumulate) + optional BatchNorm + activation epilogue."""
    y = jnp.dot(x_ref[...], w_ref[...], preferred_element_type=jnp.float32)
    if bn:
        y = _batchnorm(y)
    if act == "relu":
        y = jnp.maximum(y, 0.0)
    elif act == "tanh":
        y = jnp.tanh(y)
    o_ref[...] = y


def _conv2_resblock_kernel(p_ref, w2_ref, w3_ref, s_ref, o_ref):
    """Fused: conv2(k4 s2) + BN + relu, then ResnetBlock (3x3 conv + BN + residual) + relu.

    conv2's activations h2 stay resident in VMEM/vregs.  s_ref[t] is a constant 0/1
    shift+edge-mask selection matrix (prepared once outside the forward), so tap t of
    the 3x3 conv is (S_t @ h2) @ W_t - two tiny MXU matmuls, no in-kernel gather /
    roll, and no HBM round trip for h2 or its im2col patches.
    """
    y2 = jnp.dot(p_ref[...], w2_ref[...], preferred_element_type=jnp.float32)
    h2 = jnp.maximum(_batchnorm(y2), 0.0)       # conv2 output, f32, resident
    h2b = h2.astype(w3_ref.dtype)

    acc = jnp.zeros_like(h2)
    for t in range(9):                          # statically unrolled, trivial MXU work
        shifted = jnp.dot(s_ref[t], h2b,
                          preferred_element_type=jnp.float32).astype(h2b.dtype)
        acc = acc + jnp.dot(shifted, w3_ref[t], preferred_element_type=jnp.float32)

    o_ref[...] = jnp.maximum(h2 + _batchnorm(acc), 0.0)


# ------------------------------ pallas_call wrappers -------------------------- #

def _round_up(x, m):
    return (x + m - 1) // m * m


def fused_layer(patches, w_mat, *, act, bn, n_blocks=1):
    """One pallas_call for a whole matmul layer.  w_mat's N must be a multiple of 128."""
    M, K = patches.shape
    Kw, N = w_mat.shape
    assert Kw == K and N % 128 == 0
    if bn:
        assert n_blocks == 1, "BatchNorm statistics need the whole layer in one block"
    assert M % n_blocks == 0
    tm = M // n_blocks
    assert tm % 8 == 0

    kernel = functools.partial(_matmul_bn_act_kernel, act=act, bn=bn)
    return pl.pallas_call(
        kernel,
        out_shape=jax.ShapeDtypeStruct((M, N), jnp.float32),
        grid_spec=pltpu.PrefetchScalarGridSpec(
            num_scalar_prefetch=0,
            grid=(n_blocks,),
            in_specs=[pl.BlockSpec((tm, K), lambda i: (i, 0)),
                      pl.BlockSpec((K, N), lambda i: (0, 0))],
            out_specs=pl.BlockSpec((tm, N), lambda i: (i, 0))),
        compiler_params=pltpu.CompilerParams(
            dimension_semantics=("parallel",),
            vmem_limit_bytes=32 * 1024 * 1024),
    )(patches, w_mat)


def conv2_resblock_call(patches, w2_mat, w3_taps, s_taps):
    M, K = patches.shape
    N = w2_mat.shape[1]
    assert w3_taps.shape == (9, N, N) and s_taps.shape == (9, M, M)
    return pl.pallas_call(
        _conv2_resblock_kernel,
        out_shape=jax.ShapeDtypeStruct((M, N), jnp.float32),
        grid_spec=pltpu.PrefetchScalarGridSpec(
            num_scalar_prefetch=0,
            grid=(1,),
            in_specs=[pl.BlockSpec((M, K), lambda i: (0, 0)),
                      pl.BlockSpec((K, N), lambda i: (0, 0)),
                      pl.BlockSpec((9, N, N), lambda i: (0, 0, 0)),
                      pl.BlockSpec((9, M, M), lambda i: (0, 0, 0))],
            out_specs=pl.BlockSpec((M, N), lambda i: (0, 0))),
        compiler_params=pltpu.CompilerParams(
            dimension_semantics=("arbitrary",),
            vmem_limit_bytes=32 * 1024 * 1024),
    )(patches, w2_mat, w3_taps, s_taps)


# --------------------------------- hot-path glue ------------------------------ #

def im2col(x_nhwc, K, stride, pad):
    """(B,H,W,C) -> (B*Ho*Wo, K*K*C), tap-major feature order (kh, kw, c).
    No activation-side transpose; the (precomputed) weights carry the permutation."""
    B, H, W, C = x_nhwc.shape
    if pad:
        x_nhwc = jnp.pad(x_nhwc, ((0, 0), (pad, pad), (pad, pad), (0, 0)))
    Hp, Wp = H + 2 * pad, W + 2 * pad
    Ho = (Hp - K) // stride + 1
    Wo = (Wp - K) // stride + 1
    cols = []
    for kh in range(K):
        for kw in range(K):
            cols.append(x_nhwc[:, kh:kh + stride * (Ho - 1) + 1:stride,
                               kw:kw + stride * (Wo - 1) + 1:stride, :])
    p = jnp.stack(cols, axis=3)               # (B, Ho, Wo, K*K, C) -- tap-major
    return p.reshape(B * Ho * Wo, K * K * C), (B, Ho, Wo)


def conv_bn_relu_layer(x_nhwc, w_mat, c_out):
    patches, (B, Ho, Wo) = im2col(x_nhwc, 4, 2, 1)
    out = fused_layer(patches.astype(w_mat.dtype), w_mat, act="relu", bn=True)
    return out[:, :c_out].reshape(B, Ho, Wo, c_out)


def conv2_resblock_layer(x_nhwc, w2_mat, w3_taps, s_taps, c_out):
    patches, (B, Ho, Wo) = im2col(x_nhwc, 4, 2, 1)
    out = conv2_resblock_call(patches.astype(w2_mat.dtype), w2_mat, w3_taps, s_taps)
    return out[:, :c_out].reshape(B, Ho, Wo, c_out)


def deconv_layer(x_nhwc, w_mat, c_out, *, act, n_blocks=1):
    """ConvTranspose2d(k=4, s=2, p=1, bias=False) + activation via stride-parity."""
    B, H, W, _ = x_nhwc.shape
    patches, _ = im2col(x_nhwc, 3, 1, 1)                 # un-dilated 3x3/s1/p1 patches
    out = fused_layer(patches.astype(w_mat.dtype), w_mat, act=act, bn=False,
                      n_blocks=n_blocks)
    out = out[:, :4 * c_out].reshape(B, H, W, 2, 2, c_out)   # (.., ph, pw, co)
    out = jnp.transpose(out, (0, 1, 3, 2, 4, 5)).reshape(B, 2 * H, 2 * W, c_out)
    return out


# ------------------------- one-time weight preparation ------------------------ #

# Stride-parity decomposition of ConvTranspose2d(k=4, s=2, p=1):
#   out[2a+0] = w[kh=1]*x[a] + w[kh=3]*x[a-1];  out[2a+1] = w[kh=2]*x[a] + w[kh=0]*x[a+1]
# (same in width): each output parity is a 2x2 sub-conv of the UN-dilated input.
# Tap map entries: (parity, 3x3 window index = offset+1, original k4 tap).
_PARITY_TAPS = ((0, 0, 3), (0, 1, 1), (1, 1, 2), (1, 2, 0))


def prepare_params(params):
    """One-time weight packing (hoisted out of the per-forward path)."""
    def pad_lanes(w):
        n = _round_up(w.shape[-1], 128)
        return jnp.pad(w, ((0, 0), (0, n - w.shape[-1])))

    def conv_w(w_oihw):                        # OIHW -> (kh*kw*Cin, Cout_pad), tap-major rows
        o, i, k, _ = w_oihw.shape
        w = jnp.transpose(w_oihw, (2, 3, 1, 0)).reshape(k * k * i, o)
        return pad_lanes(w).astype(jnp.bfloat16)

    def resnet_w(w_oihw):                      # OIHW 3x3 -> (9, Cin_pad, Cout_pad)
        o, i = w_oihw.shape[0], w_oihw.shape[1]
        w = jnp.transpose(w_oihw, (2, 3, 1, 0))                 # (3, 3, Cin, Cout)
        w = jnp.pad(w, ((0, 0), (0, 0), (0, 128 - i), (0, 128 - o)))
        return w.reshape(9, 128, 128).astype(jnp.bfloat16)

    def deconv_w(w_iohw):                      # ConvT (Cin,Cout,4,4) -> (9*Cin, 4*Cout pad)
        cin, cout = w_iohw.shape[0], w_iohw.shape[1]
        w = jnp.zeros((3, 3, cin, 2, 2, cout), w_iohw.dtype)
        for ph, rh, kh in _PARITY_TAPS:
            for pw, rw, kw in _PARITY_TAPS:
                w = w.at[rh, rw, :, ph, pw, :].set(w_iohw[:, :, kh, kw])
        w = w.reshape(9 * cin, 4 * cout)       # rows: (rh, rw, cin); cols: (ph, pw, co)
        return pad_lanes(w).astype(jnp.bfloat16)

    return {
        "w1": conv_w(params["w1"]),            # (48, 128)
        "w2": conv_w(params["w2"]),            # (512, 128)
        "w3": resnet_w(params["w3"]),          # (9, 128, 128)
        "wd1": deconv_w(params["wd1"]),        # (576, 128)
        "wd2": deconv_w(params["wd2"]),        # (288, 128)
    }


def make_shift_matrices(B, H, W):
    """0/1 selection matrices implementing the 9 shifted + edge-masked taps of a
    3x3/s1/p1 conv on row-flattened (B*H*W, C) activations.  Built once (static)."""
    M = B * H * W
    r = np.arange(M)
    b, i, j = r // (H * W), (r // W) % H, r % W
    mats = np.zeros((9, M, M), np.float32)
    t = 0
    for di in (-1, 0, 1):
        for dj in (-1, 0, 1):
            ii, jj = i + di, j + dj
            ok = (ii >= 0) & (ii < H) & (jj >= 0) & (jj < W)
            src = (b * H + np.clip(ii, 0, H - 1)) * W + np.clip(jj, 0, W - 1)
            mats[t, r[ok], src[ok]] = 1.0
            t += 1
    return jnp.asarray(mats, dtype=jnp.bfloat16)


def _deconv2_row_blocks():
    """2-way row split only pays off on v7x (2 TensorCores); on single-TC v5e/v6e
    a 2-point grid is pure per-step overhead."""
    try:
        kind = jax.devices()[0].device_kind.lower()
    except Exception:
        return 1
    return 2 if "v7" in kind else 1


# ------------------------------- model forward -------------------------------- #

def init_params(key):
    """Deterministic synthetic weights (shapes from CycleGenerator.__init__)."""
    ks = jax.random.split(key, 5)
    scale = 0.05
    return {
        "w1": scale * jax.random.normal(ks[0], (32, 3, 4, 4), jnp.float32),    # Conv2d OIHW
        "w2": scale * jax.random.normal(ks[1], (64, 32, 4, 4), jnp.float32),
        "w3": scale * jax.random.normal(ks[2], (64, 64, 3, 3), jnp.float32),   # ResnetBlock
        "wd1": scale * jax.random.normal(ks[3], (64, 32, 4, 4), jnp.float32),  # ConvT IOHW
        "wd2": scale * jax.random.normal(ks[4], (32, 3, 4, 4), jnp.float32),
    }


def cycle_generator_forward(x_nchw, prep, *, deconv2_blocks=1):
    x = jnp.transpose(x_nchw, (0, 2, 3, 1))                                 # NCHW -> NHWC
    h = conv_bn_relu_layer(x, prep["w1"], 32)                               # (B,16,16,32)
    h = conv2_resblock_layer(h, prep["w2"], prep["w3"], prep["s3"], 64)     # (B, 8, 8,64)
    h = deconv_layer(h, prep["wd1"], 32, act="relu", n_blocks=1)            # (B,16,16,32)
    h = deconv_layer(h, prep["wd2"], 3, act="tanh", n_blocks=deconv2_blocks)  # (B,32,32,3)
    return jnp.transpose(h, (0, 3, 1, 2))                                   # NHWC -> NCHW


# ----------------------------- pure-JAX reference ------------------------------ #

def reference_forward(x_nchw, params):
    dn = ("NCHW", "OIHW", "NCHW")

    def conv2d(x, w, stride, pad, lhs_dil=1):
        return jax.lax.conv_general_dilated(
            x, w, (stride, stride), [(pad, pad), (pad, pad)],
            lhs_dilation=(lhs_dil, lhs_dil), dimension_numbers=dn)

    def bn(x):
        mean = x.mean(axis=(0, 2, 3), keepdims=True)
        var = x.var(axis=(0, 2, 3), keepdims=True)
        return (x - mean) / jnp.sqrt(var + 1e-5)

    h = jax.nn.relu(bn(conv2d(x_nchw, params["w1"], 2, 1)))
    h = jax.nn.relu(bn(conv2d(h, params["w2"], 2, 1)))
    h = jax.nn.relu(h + bn(conv2d(h, params["w3"], 1, 1)))
    wd1c = jnp.transpose(jnp.flip(params["wd1"], (2, 3)), (1, 0, 2, 3))
    h = jax.nn.relu(conv2d(h, wd1c, 1, 2, lhs_dil=2))
    wd2c = jnp.transpose(jnp.flip(params["wd2"], (2, 3)), (1, 0, 2, 3))
    h = jnp.tanh(conv2d(h, wd2c, 1, 2, lhs_dil=2))
    return h


# ------------------------------------- main ------------------------------------ #

if __name__ == "__main__":
    key = jax.random.PRNGKey(0)
    k_x, k_p = jax.random.split(key)
    x = jax.random.normal(k_x, (2, 3, 32, 32), jnp.float32)          # BS x 3 x 32 x 32

    params = init_params(k_p)
    # Make weights exactly bf16-representable so the f32 reference and the bf16-MXU
    # kernel evaluate the same function of the same weights.
    params = jax.tree.map(lambda w: w.astype(jnp.bfloat16).astype(jnp.float32), params)

    prep = prepare_params(params)               # one-time weight packing (off hot path)
    prep["s3"] = make_shift_matrices(2, 8, 8)   # resnet shift/edge-mask matrices (static)

    nb2 = _deconv2_row_blocks()                 # 2 only on v7x, else 1
    fwd = jax.jit(functools.partial(cycle_generator_forward, deconv2_blocks=nb2))
    out = jax.block_until_ready(fwd(x, prep))
    assert out.shape == (2, 3, 32, 32), out.shape

    ref = jax.block_until_ready(jax.jit(reference_forward)(x, params))
    # bf16 matmul operands (f32 accumulate / f32 epilogue) vs a pure-f32 XLA reference:
    # tolerance loosened accordingly (still catches any structural/indexing bug).
    assert jnp.allclose(out, ref, atol=1e-1, rtol=1e-1), \
        float(jnp.max(jnp.abs(out - ref)))

    print("KERNEL_OK")
</pallas_src>

<mosaic_0001>
module attributes {stable_mosaic.version = 11 : i64} {
  func.func @_matmul_bn_act_kernel(%arg0: i32, %arg1: memref<512x48xbf16, #tpu.memory_space<vmem>>, %arg2: memref<48x128xbf16, #tpu.memory_space<vmem>>, %arg3: memref<512x128xf32, #tpu.memory_space<vmem>>) attributes {dimension_semantics = [#tpu.dimension_semantics<parallel>], iteration_bounds = array<i64: 1>, scalar_prefetch = 0 : i64, scratch_operands = 0 : i64, tpu.core_type = #tpu.core_type<tc>, window_params = [{transform_indices = @transform_0, window_bounds = array<i64: 512, 48>}, {pipeline_mode = #tpu.pipeline_mode<synchronous>, transform_indices = @transform_1, window_bounds = array<i64: 48, 128>}, {transform_indices = @transform_2, window_bounds = array<i64: 512, 128>}]} {
    %c0 = arith.constant 0 : index
    %c0_0 = arith.constant 0 : index
    %0 = vector.load %arg1[%c0, %c0_0] : memref<512x48xbf16, #tpu.memory_space<vmem>>, vector<512x48xbf16>
    %c0_1 = arith.constant 0 : index
    %c0_2 = arith.constant 0 : index
    %1 = vector.load %arg2[%c0_1, %c0_2] : memref<48x128xbf16, #tpu.memory_space<vmem>>, vector<48x128xbf16>
    %cst = arith.constant dense<0.000000e+00> : vector<512x128xf32>
    %2 = tpu.matmul %0, %1, %cst {dimension_numbers = #tpu.dot_dimension_numbers<[1], [0], [0], [1], [0, 0, 1, 1], [], []>} : vector<512x48xbf16>, vector<48x128xbf16>, vector<512x128xf32> -> vector<512x128xf32>
    %cst_3 = arith.constant dense<0.000000e+00> : vector<128xf32>
    %3 = vector.multi_reduction <add>, %2, %cst_3 [0] : vector<512x128xf32> to vector<128xf32>
    %4 = vector.shape_cast %3 : vector<128xf32> to vector<1x128xf32>
    %5 = arith.mulf %2, %2 : vector<512x128xf32>
    %cst_4 = arith.constant dense<0.000000e+00> : vector<128xf32>
    %6 = vector.multi_reduction <add>, %5, %cst_4 [0] : vector<512x128xf32> to vector<128xf32>
    %7 = vector.shape_cast %6 : vector<128xf32> to vector<1x128xf32>
    %cst_5 = arith.constant 0.001953125 : f32
    %8 = vector.broadcast %cst_5 : f32 to vector<1x128xf32>
    %9 = arith.mulf %4, %8 : vector<1x128xf32>
    %cst_6 = arith.constant 0.001953125 : f32
    %10 = vector.broadcast %cst_6 : f32 to vector<1x128xf32>
    %11 = arith.mulf %7, %10 : vector<1x128xf32>
    %12 = arith.mulf %9, %9 : vector<1x128xf32>
    %13 = arith.subf %11, %12 : vector<1x128xf32>
    %14 = vector.broadcast %9 : vector<1x128xf32> to vector<512x128xf32>
    %15 = arith.subf %2, %14 : vector<512x128xf32>
    %cst_7 = arith.constant 9.99999974E-6 : f32
    %16 = vector.broadcast %cst_7 : f32 to vector<1x128xf32>
    %17 = arith.addf %13, %16 : vector<1x128xf32>
    %18 = math.rsqrt %17 : vector<1x128xf32>
    %19 = vector.broadcast %18 : vector<1x128xf32> to vector<512x128xf32>
    %20 = arith.mulf %15, %19 : vector<512x128xf32>
    %cst_8 = arith.constant 0.000000e+00 : f32
    %21 = vector.broadcast %cst_8 : f32 to vector<512x128xf32>
    %22 = arith.maximumf %20, %21 : vector<512x128xf32>
    %c0_9 = arith.constant 0 : index
    %c0_10 = arith.constant 0 : index
    %23 = vector.load %arg3[%c0_9, %c0_10] : memref<512x128xf32, #tpu.memory_space<vmem>>, vector<512x128xf32>
    tpu.vector_store %arg3[%c0_9, %c0_10], %22 {strides = array<i32>} : memref<512x128xf32, #tpu.memory_space<vmem>>, vector<512x128xf32>,
    return
  }
  func.func @transform_0(%arg0: i32) -> (i32, i32) {
    %c0_i32 = arith.constant 0 : i32
    %c0_i32_0 = arith.constant 0 : i32
    return %arg0, %c0_i32 : i32, i32
  }
  func.func @transform_1(%arg0: i32) -> (i32, i32) {
    %c0_i32 = arith.constant 0 : i32
    %c0_i32_0 = arith.constant 0 : i32
    %c0_i32_1 = arith.constant 0 : i32
    return %c0_i32, %c0_i32_0 : i32, i32
  }
  func.func @transform_2(%arg0: i32) -> (i32, i32) {
    %c0_i32 = arith.constant 0 : i32
    %c0_i32_0 = arith.constant 0 : i32
    return %arg0, %c0_i32 : i32, i32
  }
}

module attributes {stable_mosaic.version = 11 : i64} {
  func.func @_conv2_resblock_kernel(%arg0: i32, %arg1: memref<128x512xbf16, #tpu.memory_space<vmem>>, %arg2: memref<512x128xbf16, #tpu.memory_space<vmem>>, %arg3: memref<9x128x128xbf16, #tpu.memory_space<vmem>>, %arg4: memref<9x128x128xbf16, #tpu.memory_space<vmem>>, %arg5: memref<128x128xf32, #tpu.memory_space<vmem>>) attributes {dimension_semantics = [#tpu.dimension_semantics<arbitrary>], iteration_bounds = array<i64: 1>, scalar_prefetch = 0 : i64, scratch_operands = 0 : i64, tpu.core_type = #tpu.core_type<tc>, window_params = [{pipeline_mode = #tpu.pipeline_mode<synchronous>, transform_indices = @transform_0, window_bounds = array<i64: 128, 512>}, {pipeline_mode = #tpu.pipeline_mode<synchronous>, transform_indices = @transform_1, window_bounds = array<i64: 512, 128>}, {pipeline_mode = #tpu.pipeline_mode<synchronous>, transform_indices = @transform_2, window_bounds = array<i64: 9, 128, 128>}, {pipeline_mode = #tpu.pipeline_mode<synchronous>, transform_indices = @transform_3, window_bounds = array<i64: 9, 128, 128>}, {pipeline_mode = #tpu.pipeline_mode<synchronous>, transform_indices = @transform_4, window_bounds = array<i64: 128, 128>}]} {
    %c0 = arith.constant 0 : index
    %c0_0 = arith.constant 0 : index
    %0 = vector.load %arg1[%c0, %c0_0] : memref<128x512xbf16, #tpu.memory_space<vmem>>, vector<128x512xbf16>
    %c0_1 = arith.constant 0 : index
    %c0_2 = arith.constant 0 : index
    %1 = vector.load %arg2[%c0_1, %c0_2] : memref<512x128xbf16, #tpu.memory_space<vmem>>, vector<512x128xbf16>
    %cst = arith.constant dense<0.000000e+00> : vector<128x128xf32>
    %2 = tpu.matmul %0, %1, %cst {dimension_numbers = #tpu.dot_dimension_numbers<[1], [0], [0], [1], [0, 0, 1, 1], [], []>} : vector<128x512xbf16>, vector<512x128xbf16>, vector<128x128xf32> -> vector<128x128xf32>
    %cst_3 = arith.constant dense<0.000000e+00> : vector<128xf32>
    %3 = vector.multi_reduction <add>, %2, %cst_3 [0] : vector<128x128xf32> to vector<128xf32>
    %4 = vector.shape_cast %3 : vector<128xf32> to vector<1x128xf32>
    %5 = arith.mulf %2, %2 : vector<128x128xf32>
    %cst_4 = arith.constant dense<0.000000e+00> : vector<128xf32>
    %6 = vector.multi_reduction <add>, %5, %cst_4 [0] : vector<128x128xf32> to vector<128xf32>
    %7 = vector.shape_cast %6 : vector<128xf32> to vector<1x128xf32>
    %cst_5 = arith.constant 7.812500e-03 : f32
    %8 = vector.broadcast %cst_5 : f32 to vector<1x128xf32>
    %9 = arith.mulf %4, %8 : vector<1x128xf32>
    %cst_6 = arith.constant 7.812500e-03 : f32
    %10 = vector.broadcast %cst_6 : f32 to vector<1x128xf32>
    %11 = arith.mulf %7, %10 : vector<1x128xf32>
    %12 = arith.mulf %9, %9 : vector<1x128xf32>
    %13 = arith.subf %11, %12 : vector<1x128xf32>
    %14 = vector.broadcast %9 : vector<1x128xf32> to vector<128x128xf32>
    %15 = arith.subf %2, %14 : vector<128x128xf32>
    %cst_7 = arith.constant 9.99999974E-6 : f32
    %16 = vector.broadcast %cst_7 : f32 to vector<1x128xf32>
    %17 = arith.addf %13, %16 : vector<1x128xf32>
    %18 = math.rsqrt %17 : vector<1x128xf32>
    %19 = vector.broadcast %18 : vector<1x128xf32> to vector<128x128xf32>
    %20 = arith.mulf %15, %19 : vector<128x128xf32>
    %cst_8 = arith.constant 0.000000e+00 : f32
    %21 = vector.broadcast %cst_8 : f32 to vector<128x128xf32>
    %22 = arith.maximumf %20, %21 : vector<128x128xf32>
    %23 = arith.truncf %22 : vector<128x128xf32> to vector<128x128xbf16>
    %cst_9 = arith.constant 0.000000e+00 : f32
    %24 = vector.broadcast %cst_9 : f32 to vector<128x128xf32>
    %c0_10 = arith.constant 0 : index
    %c0_11 = arith.constant 0 : index
    %c0_12 = arith.constant 0 : index
    %25 = vector.load %arg4[%c0_10, %c0_11, %c0_12] : memref<9x128x128xbf16, #tpu.memory_space<vmem>>, vector<1x128x128xbf16>
    %26 = vector.shape_cast %25 : vector<1x128x128xbf16> to vector<128x128xbf16>
    %cst_13 = arith.constant dense<0.000000e+00> : vector<128x128xf32>
    %27 = tpu.matmul %26, %23, %cst_13 {dimension_numbers = #tpu.dot_dimension_numbers<[1], [0], [0], [1], [0, 0, 1, 1], [], []>} : vector<128x128xbf16>, vector<128x128xbf16>, vector<128x128xf32> -> vector<128x128xf32>
    %28 = arith.truncf %27 : vector<128x128xf32> to vector<128x128xbf16>
    %c0_14 = arith.constant 0 : index
    %c0_15 = arith.constant 0 : index
    %c0_16 = arith.constant 0 : index
    %29 = vector.load %arg3[%c0_14, %c0_15, %c0_16] : memref<9x128x128xbf16, #tpu.memory_space<vmem>>, vector<1x128x128xbf16>
    %30 = vector.shape_cast %29 : vector<1x128x128xbf16> to vector<128x128xbf16>
    %cst_17 = arith.constant dense<0.000000e+00> : vector<128x128xf32>
    %31 = tpu.matmul %28, %30, %cst_17 {dimension_numbers = #tpu.dot_dimension_numbers<[1], [0], [0], [1], [0, 0, 1, 1], [], []>} : vector<128x128xbf16>, vector<128x128xbf16>, vector<128x128xf32> -> vector<128x128xf32>
    %32 = arith.addf %24, %31 : vector<128x128xf32>
    %c1 = arith.constant 1 : index
    %c0_18 = arith.constant 0 : index
    %c0_19 = arith.constant 0 : index
    %33 = vector.load %arg4[%c1, %c0_18, %c0_19] : memref<9x128x128xbf16, #tpu.memory_space<vmem>>, vector<1x128x128xbf16>
    %34 = vector.shape_cast %33 : vector<1x128x128xbf16> to vector<128x128xbf16>
    %cst_20 = arith.constant dense<0.000000e+00> : vector<128x128xf32>
    %35 = tpu.matmul %34, %23, %cst_20 {dimension_numbers = #tpu.dot_dimension_numbers<[1], [0], [0], [1], [0, 0, 1, 1], [], []>} : vector<128x128xbf16>, vector<128x128xbf16>, vector<128x128xf32> -> vector<128x128xf32>
    %36 = arith.truncf %35 : vector<128x128xf32> to vector<128x128xbf16>
    %c1_21 = arith.constant 1 : index
    %c0_22 = arith.constant 0 : index
    %c0_23 = arith.constant 0 : index
    %37 = vector.load %arg3[%c1_21, %c0_22, %c0_23] : memref<9x128x128xbf16, #tpu.memory_space<vmem>>, vector<1x128x128xbf16>
    %38 = vector.shape_cast %37 : vector<1x128x128xbf16> to vector<128x128xbf16>
    %cst_24 = arith.constant dense<0.000000e+00> : vector<128x128xf32>
    %39 = tpu.matmul %36, %38, %cst_24 {dimension_numbers = #tpu.dot_dimension_numbers<[1], [0], [0], [1], [0, 0, 1, 1], [], []>} : vector<128x128xbf16>, vector<128x128xbf16>, vector<128x128xf32> -> vector<128x128xf32>
    %40 = arith.addf %32, %39 : vector<128x128xf32>
    %c2 = arith.constant 2 : index
    %c0_25 = arith.constant 0 : index
    %c0_26 = arith.constant 0 : index
    %41 = vector.load %arg4[%c2, %c0_25, %c0_26] : memref<9x128x128xbf16, #tpu.memory_space<vmem>>, vector<1x128x128xbf16>
    %42 = vector.shape_cast %41 : vector<1x128x128xbf16> to vector<128x128xbf16>
    %cst_27 = arith.constant dense<0.000000e+00> : vector<128x128xf32>
    %43 = tpu.matmul %42, %23, %cst_27 {dimension_numbers = #tpu.dot_dimension_numbers<[1], [0], [0], [1], [0, 0, 1, 1], [], []>} : vector<128x128xbf16>, vector<128x128xbf16>, vector<128x128xf32> -> vector<128x128xf32>
    %44 = arith.truncf %43 : vector<128x128xf32> to vector<128x128xbf16>
    %c2_28 = arith.constant 2 : index
    %c0_29 = arith.constant 0 : index
    %c0_30 = arith.constant 0 : index
    %45 = vector.load %arg3[%c2_28, %c0_29, %c0_30] : memref<9x128x128xbf16, #tpu.memory_space<vmem>>, vector<1x128x128xbf16>
    %46 = vector.shape_cast %45 : vector<1x128x128xbf16> to vector<128x128xbf16>
    %cst_31 = arith.constant dense<0.000000e+00> : vector<128x128xf32>
    %47 = tpu.matmul %44, %46, %cst_31 {dimension_numbers = #tpu.dot_dimension_numbers<[1], [0], [0], [1], [0, 0, 1, 1], [], []>} : vector<128x128xbf16>, vector<128x128xbf16>, vector<128x128xf32> -> vector<128x128xf32>
    %48 = arith.addf %40, %47 : vector<128x128xf32>
    %c3 = arith.constant 3 : index
    %c0_32 = arith.constant 0 : index
    %c0_33 = arith.constant 0 : index
    %49 = vector.load %arg4[%c3, %c0_32, %c0_33] : memref<9x128x128xbf16, #tpu.memory_space<vmem>>, vector<1x128x128xbf16>
    %50 = vector.shape_cast %49 : vector<1x128x128xbf16> to vector<128x128xbf16>
    %cst_34 = arith.constant dense<0.000000e+00> : vector<128x128xf32>
    %51 = tpu.matmul %50, %23, %cst_34 {dimension_numbers = #tpu.dot_dimension_numbers<[1], [0], [0], [1], [0, 0, 1, 1], [], []>} : vector<128x128xbf16>, vector<128x128xbf16>, vector<128x128xf32> -> vector<128x128xf32>
    %52 = arith.truncf %51 : vector<128x128xf32> to vector<128x128xbf16>
    %c3_35 = arith.constant 3 : index
    %c0_36 = arith.constant 0 : index
    %c0_37 = arith.constant 0 : index
    %53 = vector.load %arg3[%c3_35, %c0_36, %c0_37] : memref<9x128x128xbf16, #tpu.memory_space<vmem>>, vector<1x128x128xbf16>
    %54 = vector.shape_cast %53 : vector<1x128x128xbf16> to vector<128x128xbf16>
    %cst_38 = arith.constant dense<0.000000e+00> : vector<128x128xf32>
    %55 = tpu.matmul %52, %54, %cst_38 {dimension_numbers = #tpu.dot_dimension_numbers<[1], [0], [0], [1], [0, 0, 1, 1], [], []>} : vector<128x128xbf16>, vector<128x128xbf16>, vector<128x128xf32> -> vector<128x128xf32>
    %56 = arith.addf %48, %55 : vector<128x128xf32>
    %c4 = arith.constant 4 : index
    %c0_39 = arith.constant 0 : index
    %c0_40 = arith.constant 0 : index
    %57 = vector.load %arg4[%c4, %c0_39, %c0_40] : memref<9x128x128xbf16, #tpu.memory_space<vmem>>, vector<1x128x128xbf16>
    %58 = vector.shape_cast %57 : vector<1x128x128xbf16> to vector<128x128xbf16>
    %cst_41 = arith.constant dense<0.000000e+00> : vector<128x128xf32>
    %59 = tpu.matmul %58, %23, %cst_41 {dimension_numbers = #tpu.dot_dimension_numbers<[1], [0], [0], [1], [0, 0, 1, 1], [], []>} : vector<128x128xbf16>, vector<128x128xbf16>, vector<128x128xf32> -> vector<128x128xf32>
    %60 = arith.truncf %59 : vector<128x128xf32> to vector<128x128xbf16>
    %c4_42 = arith.constant 4 : index
    %c0_43 = arith.constant 0 : index
    %c0_44 = arith.constant 0 : index
    %61 = vector.load %arg3[%c4_42, %c0_43, %c0_44] : memref<9x128x128xbf16, #tpu.memory_space<vmem>>, vector<1x128x128xbf16>
    %62 = vector.shape_cast %61 : vector<1x128x128xbf16> to vector<128x128xbf16>
    %cst_45 = arith.constant dense<0.000000e+00> : vector<128x128xf32>
    %63 = tpu.matmul %60, %62, %cst_45 {dimension_numbers = #tpu.dot_dimension_numbers<[1], [0], [0], [1], [0, 0, 1, 1], [], []>} : vector<128x128xbf16>, vector<128x128xbf16>, vector<128x128xf32> -> vector<128x128xf32>
    %64 = arith.addf %56, %63 : vector<128x128xf32>
    %c5 = arith.constant 5 : index
    %c0_46 = arith.constant 0 : index
    %c0_47 = arith.constant 0 : index
    %65 = vector.load %arg4[%c5, %c0_46, %c0_47] : memref<9x128x128xbf16, #tpu.memory_space<vmem>>, vector<1x128x128xbf16>
    %66 = vector.shape_cast %65 : vector<1x128x128xbf16> to vector<128x128xbf16>
    %cst_48 = arith.constant dense<0.000000e+00> : vector<128x128xf32>
    %67 = tpu.matmul %66, %23, %cst_48 {dimension_numbers = #tpu.dot_dimension_numbers<[1], [0], [0], [1], [0, 0, 1, 1], [], []>} : vector<128x128xbf16>, vector<128x128xbf16>, vector<128x128xf32> -> vector<128x128xf32>
    %68 = arith.truncf %67 : vector<128x128xf32> to vector<128x128xbf16>
    %c5_49 = arith.constant 5 : index
    %c0_50 = arith.constant 0 : index
    %c0_51 = arith.constant 0 : index
    %69 = vector.load %arg3[%c5_49, %c0_50, %c0_51] : memref<9x128x128xbf16, #tpu.memory_space<vmem>>, vector<1x128x128xbf16>
    %70 = vector.shape_cast %69 : vector<1x128x128xbf16> to vector<128x128xbf16>
    %cst_52 = arith.constant dense<0.000000e+00> : vector<128x128xf32>
    %71 = tpu.matmul %68, %70, %cst_52 {dimension_numbers = #tpu.dot_dimension_numbers<[1], [0], [0], [1], [0, 0, 1, 1], [], []>} : vector<128x128xbf16>, vector<128x128xbf16>, vector<128x128xf32> -> vector<128x128xf32>
    %72 = arith.addf %64, %71 : vector<128x128xf32>
    %c6 = arith.constant 6 : index
    %c0_53 = arith.constant 0 : index
    %c0_54 = arith.constant 0 : index
    %73 = vector.load %arg4[%c6, %c0_53, %c0_54] : memref<9x128x128xbf16, #tpu.memory_space<vmem>>, vector<1x128x128xbf16>
    %74 = vector.shape_cast %73 : vector<1x128x128xbf16> to vector<128x128xbf16>
    %cst_55 = arith.constant dense<0.000000e+00> : vector<128x128xf32>
    %75 = tpu.matmul %74, %23, %cst_55 {dimension_numbers = #tpu.dot_dimension_numbers<[1], [0], [0], [1], [0, 0, 1, 1], [], []>} : vector<128x128xbf16>, vector<128x128xbf16>, vector<128x128xf32> -> vector<128x128xf32>
    %76 = arith.truncf %75 : vector<128x128xf32> to vector<128x128xbf16>
    %c6_56 = arith.constant 6 : index
    %c0_57 = arith.constant 0 : index
    %c0_58 = arith.constant 0 : index
    %77 = vector.load %arg3[%c6_56, %c0_57, %c0_58] : memref<9x128x128xbf16, #tpu.memory_space<vmem>>, vector<1x128x128xbf16>
    %78 = vector.shape_cast %77 : vector<1x128x128xbf16> to vector<128x128xbf16>
    %cst_59 = arith.constant dense<0.000000e+00> : vector<128x128xf32>
    %79 = tpu.matmul %76, %78, %cst_59 {dimension_numbers = #tpu.dot_dimension_numbers<[1], [0], [0], [1], [0, 0, 1, 1], [], []>} : vector<128x128xbf16>, vector<128x128xbf16>, vector<128x128xf32> -> vector<128x128xf32>
    %80 = arith.addf %72, %79 : vector<128x128xf32>
    %c7 = arith.constant 7 : index
    %c0_60 = arith.constant 0 : index
    %c0_61 = arith.constant 0 : index
    %81 = vector.load %arg4[%c7, %c0_60, %c0_61] : memref<9x128x128xbf16, #tpu.memory_space<vmem>>, vector<1x128x128xbf16>
    %82 = vector.shape_cast %81 : vector<1x128x128xbf16> to vector<128x128xbf16>
    %cst_62 = arith.constant dense<0.000000e+00> : vector<128x128xf32>
    %83 = tpu.matmul %82, %23, %cst_62 {dimension_numbers = #tpu.dot_dimension_numbers<[1], [0], [0], [1], [0, 0, 1, 1], [], []>} : vector<128x128xbf16>, vector<128x128xbf16>, vector<128x128xf32> -> vector<128x128xf32>
    %84 = arith.truncf %83 : vector<128x128xf32> to vector<128x128xbf16>
    %c7_63 = arith.constant 7 : index
    %c0_64 = arith.constant 0 : index
    %c0_65 = arith.constant 0 : index
    %85 = vector.load %arg3[%c7_63, %c0_64, %c0_65] : memref<9x128x128xbf16, #tpu.memory_space<vmem>>, vector<1x128x128xbf16>
    %86 = vector.shape_cast %85 : vector<1x128x128xbf16> to vector<128x128xbf16>
    %cst_66 = arith.constant dense<0.000000e+00> : vector<128x128xf32>
    %87 = tpu.matmul %84, %86, %cst_66 {dimension_numbers = #tpu.dot_dimension_numbers<[1], [0], [0], [1], [0, 0, 1, 1], [], []>} : vector<128x128xbf16>, vector<128x128xbf16>, vector<128x128xf32> -> vector<128x128xf32>
    %88 = arith.addf %80, %87 : vector<128x128xf32>
    %c8 = arith.constant 8 : index
    %c0_67 = arith.constant 0 : index
    %c0_68 = arith.constant 0 : index
    %89 = vector.load %arg4[%c8, %c0_67, %c0_68] : memref<9x128x128xbf16, #tpu.memory_space<vmem>>, vector<1x128x128xbf16>
    %90 = vector.shape_cast %89 : vector<1x128x128xbf16> to vector<128x128xbf16>
    %cst_69 = arith.constant dense<0.000000e+00> : vector<128x128xf32>
    %91 = tpu.matmul %90, %23, %cst_69 {dimension_numbers = #tpu.dot_dimension_numbers<[1], [0], [0], [1], [0, 0, 1, 1], [], []>} : vector<128x128xbf16>, vector<128x128xbf16>, vector<128x128xf32> -> vector<128x128xf32>
    %92 = arith.truncf %91 : vector<128x128xf32> to vector<128x128xbf16>
    %c8_70 = arith.constant 8 : index
    %c0_71 = arith.constant 0 : index
    %c0_72 = arith.constant 0 : index
    %93 = vector.load %arg3[%c8_70, %c0_71, %c0_72] : memref<9x128x128xbf16, #tpu.memory_space<vmem>>, vector<1x128x128xbf16>
    %94 = vector.shape_cast %93 : vector<1x128x128xbf16> to vector<128x128xbf16>
    %cst_73 = arith.constant dense<0.000000e+00> : vector<128x128xf32>
    %95 = tpu.matmul %92, %94, %cst_73 {dimension_numbers = #tpu.dot_dimension_numbers<[1], [0], [0], [1], [0, 0, 1, 1], [], []>} : vector<128x128xbf16>, vector<128x128xbf16>, vector<128x128xf32> -> vector<128x128xf32>
    %96 = arith.addf %88, %95 : vector<128x128xf32>
    %cst_74 = arith.constant dense<0.000000e+00> : vector<128xf32>
    %97 = vector.multi_reduction <add>, %96, %cst_74 [0] : vector<128x128xf32> to vector<128xf32>
    %98 = vector.shape_cast %97 : vector<128xf32> to vector<1x128xf32>
    %99 = arith.mulf %96, %96 : vector<128x128xf32>
    %cst_75 = arith.constant dense<0.000000e+00> : vector<128xf32>
    %100 = vector.multi_reduction <add>, %99, %cst_75 [0] : vector<128x128xf32> to vector<128xf32>
    %101 = vector.shape_cast %100 : vector<128xf32> to vector<1x128xf32>
    %cst_76 = arith.constant 7.812500e-03 : f32
    %102 = vector.broadcast %cst_76 : f32 to vector<1x128xf32>
    %103 = arith.mulf %98, %102 : vector<1x128xf32>
    %cst_77 = arith.constant 7.812500e-03 : f32
    %104 = vector.broadcast %cst_77 : f32 to vector<1x128xf32>
    %105 = arith.mulf %101, %104 : vector<1x128xf32>
    %106 = arith.mulf %103, %103 : vector<1x128xf32>
    %107 = arith.subf %105, %106 : vector<1x128xf32>
    %108 = vector.broadcast %103 : vector<1x128xf32> to vector<128x128xf32>
    %109 = arith.subf %96, %108 : vector<128x128xf32>
    %cst_78 = arith.constant 9.99999974E-6 : f32
    %110 = vector.broadcast %cst_78 : f32 to vector<1x128xf32>
    %111 = arith.addf %107, %110 : vector<1x128xf32>
    %112 = math.rsqrt %111 : vector<1x128xf32>
    %113 = vector.broadcast %112 : vector<1x128xf32> to vector<128x128xf32>
    %114 = arith.mulf %109, %113 : vector<128x128xf32>
    %115 = arith.addf %22, %114 : vector<128x128xf32>
    %cst_79 = arith.constant 0.000000e+00 : f32
    %116 = vector.broadcast %cst_79 : f32 to vector<128x128xf32>
    %117 = arith.maximumf %115, %116 : vector<128x128xf32>
    %c0_80 = arith.constant 0 : index
    %c0_81 = arith.constant 0 : index
    %118 = vector.load %arg5[%c0_80, %c0_81] : memref<128x128xf32, #tpu.memory_space<vmem>>, vector<128x128xf32>
    tpu.vector_store %arg5[%c0_80, %c0_81], %117 {strides = array<i32>} : memref<128x128xf32, #tpu.memory_space<vmem>>, vector<128x128xf32>,
    return
  }
  func.func @transform_0(%arg0: i32) -> (i32, i32) {
    %c0_i32 = arith.constant 0 : i32
    %c0_i32_0 = arith.constant 0 : i32
    %c0_i32_1 = arith.constant 0 : i32
    return %c0_i32, %c0_i32_0 : i32, i32
  }
  func.func @transform_1(%arg0: i32) -> (i32, i32) {
    %c0_i32 = arith.constant 0 : i32
    %c0_i32_0 = arith.constant 0 : i32
    %c0_i32_1 = arith.constant 0 : i32
    return %c0_i32, %c0_i32_0 : i32, i32
  }
  func.func @transform_2(%arg0: i32) -> (i32, i32, i32) {
    %c0_i32 = arith.constant 0 : i32
    %c0_i32_0 = arith.constant 0 : i32
    %c0_i32_1 = arith.constant 0 : i32
    %c0_i32_2 = arith.constant 0 : i32
    return %c0_i32, %c0_i32_0, %c0_i32_1 : i32, i32, i32
  }
  func.func @transform_3(%arg0: i32) -> (i32, i32, i32) {
    %c0_i32 = arith.constant 0 : i32
    %c0_i32_0 = arith.constant 0 : i32
    %c0_i32_1 = arith.constant 0 : i32
    %c0_i32_2 = arith.constant 0 : i32
    return %c0_i32, %c0_i32_0, %c0_i32_1 : i32, i32, i32
  }
  func.func @transform_4(%arg0: i32) -> (i32, i32) {
    %c0_i32 = arith.constant 0 : i32
    %c0_i32_0 = arith.constant 0 : i32
    %c0_i32_1 = arith.constant 0 : i32
    return %c0_i32, %c0_i32_0 : i32, i32
  }
}

module attributes {stable_mosaic.version = 11 : i64} {
  func.func @_matmul_bn_act_kernel(%arg0: i32, %arg1: memref<128x576xbf16, #tpu.memory_space<vmem>>, %arg2: memref<576x128xbf16, #tpu.memory_space<vmem>>, %arg3: memref<128x128xf32, #tpu.memory_space<vmem>>) attributes {dimension_semantics = [#tpu.dimension_semantics<parallel>], iteration_bounds = array<i64: 1>, scalar_prefetch = 0 : i64, scratch_operands = 0 : i64, tpu.core_type = #tpu.core_type<tc>, window_params = [{transform_indices = @transform_0, window_bounds = array<i64: 128, 576>}, {pipeline_mode = #tpu.pipeline_mode<synchronous>, transform_indices = @transform_1, window_bounds = array<i64: 576, 128>}, {transform_indices = @transform_2, window_bounds = array<i64: 128, 128>}]} {
    %c0 = arith.constant 0 : index
    %c0_0 = arith.constant 0 : index
    %0 = vector.load %arg1[%c0, %c0_0] : memref<128x576xbf16, #tpu.memory_space<vmem>>, vector<128x576xbf16>
    %c0_1 = arith.constant 0 : index
    %c0_2 = arith.constant 0 : index
    %1 = vector.load %arg2[%c0_1, %c0_2] : memref<576x128xbf16, #tpu.memory_space<vmem>>, vector<576x128xbf16>
    %cst = arith.constant dense<0.000000e+00> : vector<128x128xf32>
    %2 = tpu.matmul %0, %1, %cst {dimension_numbers = #tpu.dot_dimension_numbers<[1], [0], [0], [1], [0, 0, 1, 1], [], []>} : vector<128x576xbf16>, vector<576x128xbf16>, vector<128x128xf32> -> vector<128x128xf32>
    %cst_3 = arith.constant 0.000000e+00 : f32
    %3 = vector.broadcast %cst_3 : f32 to vector<128x128xf32>
    %4 = arith.maximumf %2, %3 : vector<128x128xf32>
    %c0_4 = arith.constant 0 : index
    %c0_5 = arith.constant 0 : index
    %5 = vector.load %arg3[%c0_4, %c0_5] : memref<128x128xf32, #tpu.memory_space<vmem>>, vector<128x128xf32>
    tpu.vector_store %arg3[%c0_4, %c0_5], %4 {strides = array<i32>} : memref<128x128xf32, #tpu.memory_space<vmem>>, vector<128x128xf32>,
    return
  }
  func.func @transform_0(%arg0: i32) -> (i32, i32) {
    %c0_i32 = arith.constant 0 : i32
    %c0_i32_0 = arith.constant 0 : i32
    return %arg0, %c0_i32 : i32, i32
  }
  func.func @transform_1(%arg0: i32) -> (i32, i32) {
    %c0_i32 = arith.constant 0 : i32
    %c0_i32_0 = arith.constant 0 : i32
    %c0_i32_1 = arith.constant 0 : i32
    return %c0_i32, %c0_i32_0 : i32, i32
  }
  func.func @transform_2(%arg0: i32) -> (i32, i32) {
    %c0_i32 = arith.constant 0 : i32
    %c0_i32_0 = arith.constant 0 : i32
    return %arg0, %c0_i32 : i32, i32
  }
}

module attributes {stable_mosaic.version = 11 : i64} {
  func.func @_matmul_bn_act_kernel(%arg0: i32, %arg1: memref<512x288xbf16, #tpu.memory_space<vmem>>, %arg2: memref<288x128xbf16, #tpu.memory_space<vmem>>, %arg3: memref<512x128xf32, #tpu.memory_space<vmem>>) attributes {dimension_semantics = [#tpu.dimension_semantics<parallel>], iteration_bounds = array<i64: 1>, scalar_prefetch = 0 : i64, scratch_operands = 0 : i64, tpu.core_type = #tpu.core_type<tc>, window_params = [{transform_indices = @transform_0, window_bounds = array<i64: 512, 288>}, {pipeline_mode = #tpu.pipeline_mode<synchronous>, transform_indices = @transform_1, window_bounds = array<i64: 288, 128>}, {transform_indices = @transform_2, window_bounds = array<i64: 512, 128>}]} {
    %c0 = arith.constant 0 : index
    %c0_0 = arith.constant 0 : index
    %0 = vector.load %arg1[%c0, %c0_0] : memref<512x288xbf16, #tpu.memory_space<vmem>>, vector<512x288xbf16>
    %c0_1 = arith.constant 0 : index
    %c0_2 = arith.constant 0 : index
    %1 = vector.load %arg2[%c0_1, %c0_2] : memref<288x128xbf16, #tpu.memory_space<vmem>>, vector<288x128xbf16>
    %cst = arith.constant dense<0.000000e+00> : vector<512x128xf32>
    %2 = tpu.matmul %0, %1, %cst {dimension_numbers = #tpu.dot_dimension_numbers<[1], [0], [0], [1], [0, 0, 1, 1], [], []>} : vector<512x288xbf16>, vector<288x128xbf16>, vector<512x128xf32> -> vector<512x128xf32>
    %3 = math.tanh %2 : vector<512x128xf32>
    %c0_3 = arith.constant 0 : index
    %c0_4 = arith.constant 0 : index
    %4 = vector.load %arg3[%c0_3, %c0_4] : memref<512x128xf32, #tpu.memory_space<vmem>>, vector<512x128xf32>
    tpu.vector_store %arg3[%c0_3, %c0_4], %3 {strides = array<i32>} : memref<512x128xf32, #tpu.memory_space<vmem>>, vector<512x128xf32>,
    return
  }
  func.func @transform_0(%arg0: i32) -> (i32, i32) {
    %c0_i32 = arith.constant 0 : i32
    %c0_i32_0 = arith.constant 0 : i32
    return %arg0, %c0_i32 : i32, i32
  }
  func.func @transform_1(%arg0: i32) -> (i32, i32) {
    %c0_i32 = arith.constant 0 : i32
    %c0_i32_0 = arith.constant 0 : i32
    %c0_i32_1 = arith.constant 0 : i32
    return %c0_i32, %c0_i32_0 : i32, i32
  }
  func.func @transform_2(%arg0: i32) -> (i32, i32) {
    %c0_i32 = arith.constant 0 : i32
    %c0_i32_0 = arith.constant 0 : i32
    return %arg0, %c0_i32 : i32, i32
  }
}

</mosaic_0001>

<llo_original>
// kernel: cycle_generator_forward.4
$region0: #{cycle_generator_forward.4}
  #allocation0 [shape = 'u32[]', space=smem, size = 0x4, offset = 0x4, fixed_abs, tag = 'smem constant byte address 0x4 - core index']
  #allocation1 [shape = 'u32[144,128]{1,0:T(1,128)}', space=vmem, size = 0x12000, scoped, tag = 'internal scratch']
  %s0 = inlined_call_operand.vmem [shape: bf16[512,48], index: 0, kind: input, shape index: {}]
  %s1 = inlined_call_operand.vmem [shape: bf16[48,128], index: 1, kind: input, shape index: {}]
  %s2 = inlined_call_operand.vmem [shape: f32[512,128], index: 2, kind: output, shape index: {}]
  %s3 = sld [smem:[#allocation0]]
  $region18: #{cycle_generator_forward.4} parent=0
    _
  %s5 = ssub.s32 1, %s3
  %s6 = scalar_select 0, %s5, %s3
  // Predicated region
  $region2: #{cycle_generator_forward.4} parent=0 // pred_check
    _
  $region3: #{cycle_generator_forward.4} parent=0 // pred_check_branch
    %8 = sbr.rel (0) target = $region5
  $region4: #{cycle_generator_forward.4} parent=0 // pred_region
    _
  $region5: #{cycle_generator_forward.4} parent=0 // pred_fallthru
    _
  // Predicated region
  $region6: #{cycle_generator_forward.4} parent=0 // pred_check
    _
  $region7: #{cycle_generator_forward.4} parent=0 // pred_check_branch
    %10 = sbr.rel (0) target = $region9
  $region8: #{cycle_generator_forward.4} parent=0 // pred_region
    _
  $region9: #{cycle_generator_forward.4} parent=0 // pred_fallthru
    _
  %v12 = vld [vmem:[%s0] sm:$0xf]
  %v13 = vld [vmem:[%s0 + $0x4] sm:$0xf]
  %v14 = vld [vmem:[%s0 + $0x8] sm:$0xf]
  %v15 = vld [vmem:[%s0 + $0xc] sm:$0xf]
  %v16 = vld [vmem:[%s0 + $0x10] sm:$0xf]
  %v17 = vld [vmem:[%s0 + $0x14] sm:$0xf]
  %v18 = vld [vmem:[%s0 + $0x18] sm:$0xf]
  %v19 = vld [vmem:[%s0 + $0x1c] sm:$0xf]
  %v20 = vld [vmem:[%s0 + $0x20] sm:$0xf]
  %v21 = vld [vmem:[%s0 + $0x24] sm:$0xf]
  %v22 = vld [vmem:[%s0 + $0x28] sm:$0xf]
  %v23 = vld [vmem:[%s0 + $0x2c] sm:$0xf]
  %v24 = vld [vmem:[%s0 + $0x30] sm:$0xf]
  %v25 = vld [vmem:[%s0 + $0x34] sm:$0xf]
  %v26 = vld [vmem:[%s0 + $0x38] sm:$0xf]
  %v27 = vld [vmem:[%s0 + $0x3c] sm:$0xf]
  %v28 = vld [vmem:[%s0 + $0x40] sm:$0xf]
  %v29 = vld [vmem:[%s0 + $0x44] sm:$0xf]
  %v30 = vld [vmem:[%s0 + $0x48] sm:$0xf]
  %v31 = vld [vmem:[%s0 + $0x4c] sm:$0xf]
  %v32 = vld [vmem:[%s0 + $0x50] sm:$0xf]
  %v33 = vld [vmem:[%s0 + $0x54] sm:$0xf]
  %v34 = vld [vmem:[%s0 + $0x58] sm:$0xf]
  %v35 = vld [vmem:[%s0 + $0x5c] sm:$0xf]
  %v36 = vld [vmem:[%s0 + $0x60] sm:$0xf]
  %v37 = vld [vmem:[%s0 + $0x64] sm:$0xf]
  %v38 = vld [vmem:[%s0 + $0x68] sm:$0xf]
  %v39 = vld [vmem:[%s0 + $0x6c] sm:$0xf]
  %v40 = vld [vmem:[%s0 + $0x70] sm:$0xf]
  %v41 = vld [vmem:[%s0 + $0x74] sm:$0xf]
  %v42 = vld [vmem:[%s0 + $0x78] sm:$0xf]
  %v43 = vld [vmem:[%s0 + $0x7c] sm:$0xf]
  %v44 = vld [vmem:[%s0 + $0x80] sm:$0xf]
  %v45 = vld [vmem:[%s0 + $0x84] sm:$0xf]
  %v46 = vld [vmem:[%s0 + $0x88] sm:$0xf]
  %v47 = vld [vmem:[%s0 + $0x8c] sm:$0xf]
  %v48 = vld [vmem:[%s0 + $0x90] sm:$0xf]
  %v49 = vld [vmem:[%s0 + $0x94] sm:$0xf]
  %v50 = vld [vmem:[%s0 + $0x98] sm:$0xf]
  %v51 = vld [vmem:[%s0 + $0x9c] sm:$0xf]
  %v52 = vld [vmem:[%s0 + $0xa0] sm:$0xf]
  %v53 = vld [vmem:[%s0 + $0xa4] sm:$0xf]
  %v54 = vld [vmem:[%s0 + $0xa8] sm:$0xf]
  %v55 = vld [vmem:[%s0 + $0xac] sm:$0xf]
  %v56 = vld [vmem:[%s0 + $0xb0] sm:$0xf]
  %v57 = vld [vmem:[%s0 + $0xb4] sm:$0xf]
  %v58 = vld [vmem:[%s0 + $0xb8] sm:$0xf]
  %v59 = vld [vmem:[%s0 + $0xbc] sm:$0xf]
  %v60 = vld [vmem:[%s0 + $0xc0] sm:$0xf]
  %v61 = vld [vmem:[%s0 + $0xc4] sm:$0xf]
  %v62 = vld [vmem:[%s0 + $0xc8] sm:$0xf]
  %v63 = vld [vmem:[%s0 + $0xcc] sm:$0xf]
  %v64 = vld [vmem:[%s0 + $0xd0] sm:$0xf]
  %v65 = vld [vmem:[%s0 + $0xd4] sm:$0xf]
  %v66 = vld [vmem:[%s0 + $0xd8] sm:$0xf]
  %v67 = vld [vmem:[%s0 + $0xdc] sm:$0xf]
  %v68 = vld [vmem:[%s0 + $0xe0] sm:$0xf]
  %v69 = vld [vmem:[%s0 + $0xe4] sm:$0xf]
  %v70 = vld [vmem:[%s0 + $0xe8] sm:$0xf]
  %v71 = vld [vmem:[%s0 + $0xec] sm:$0xf]
  %v72 = vld [vmem:[%s0 + $0xf0] sm:$0xf]
  %v73 = vld [vmem:[%s0 + $0xf4] sm:$0xf]
  %v74 = vld [vmem:[%s0 + $0xf8] sm:$0xf]
  %v75 = vld [vmem:[%s0 + $0xfc] sm:$0xf]
  %v76 = vld [vmem:[%s1] sm:$0xf]
  %v77 = vld [vmem:[%s1 + $0x4] sm:$0xf]
  %v78 = vld [vmem:[%s1 + $0x8] sm:$0xf]
  %v79 = vld [vmem:[%s1 + $0xc] sm:$0xf]
  %v80 = vld [vmem:[%s1 + $0x10] sm:$0xf]
  %v81 = vld [vmem:[%s1 + $0x14] sm:$0xf]
  %v146 = vunpack.c.l.b16 %v12
  %v147 = vunpack.c.l.b16 %v13
  %v148 = vunpack.c.l.b16 %v14
  %v149 = vunpack.c.l.b16 %v15
  %v150 = vunpack.c.l.b16 %v16
  %v151 = vunpack.c.l.b16 %v17
  %v152 = vunpack.c.l.b16 %v18
  %v153 = vunpack.c.l.b16 %v19
  %v154 = vunpack.c.l.b16 %v20
  %v155 = vunpack.c.l.b16 %v21
  %v156 = vunpack.c.l.b16 %v22
  %v157 = vunpack.c.l.b16 %v23
  %v158 = vunpack.c.l.b16 %v24
  %v159 = vunpack.c.l.b16 %v25
  %v160 = vunpack.c.l.b16 %v26
  %v161 = vunpack.c.l.b16 %v27
  %v162 = vunpack.c.l.b16 %v28
  %v163 = vunpack.c.l.b16 %v29
  %v164 = vunpack.c.l.b16 %v30
  %v165 = vunpack.c.l.b16 %v31
  %v166 = vunpack.c.l.b16 %v32
  %v167 = vunpack.c.l.b16 %v33
  %v168 = vunpack.c.l.b16 %v34
  %v169 = vunpack.c.l.b16 %v35
  %v170 = vunpack.c.l.b16 %v36
  %v171 = vunpack.c.l.b16 %v37
  %v172 = vunpack.c.l.b16 %v38
  %v173 = vunpack.c.l.b16 %v39
  %v174 = vunpack.c.l.b16 %v40
  %v175 = vunpack.c.l.b16 %v41
  %v176 = vunpack.c.l.b16 %v42
  %v177 = vunpack.c.l.b16 %v43
  %v178 = vunpack.c.l.b16 %v44
  %v179 = vunpack.c.l.b16 %v45
  %v180 = vunpack.c.l.b16 %v46
  %v181 = vunpack.c.l.b16 %v47
  %v182 = vunpack.c.l.b16 %v48
  %v183 = vunpack.c.l.b16 %v49
  %v184 = vunpack.c.l.b16 %v50
  %v185 = vunpack.c.l.b16 %v51
  %v186 = vunpack.c.l.b16 %v52
  %v187 = vunpack.c.l.b16 %v53
  %v188 = vunpack.c.l.b16 %v54
  %v189 = vunpack.c.l.b16 %v55
  %v190 = vunpack.c.l.b16 %v56
  %v191 = vunpack.c.l.b16 %v57
  %v192 = vunpack.c.l.b16 %v58
  %v193 = vunpack.c.l.b16 %v59
  %v194 = vunpack.c.l.b16 %v60
  %v195 = vunpack.c.l.b16 %v61
  %v196 = vunpack.c.l.b16 %v62
  %v197 = vunpack.c.l.b16 %v63
  %v198 = vunpack.c.l.b16 %v64
  %v199 = vunpack.c.l.b16 %v65
  %v200 = vunpack.c.l.b16 %v66
  %v201 = vunpack.c.l.b16 %v67
  %v202 = vunpack.c.l.b16 %v68
  %v203 = vunpack.c.l.b16 %v69
  %v204 = vunpack.c.l.b16 %v70
  %v205 = vunpack.c.l.b16 %v71
  %v206 = vunpack.c.l.b16 %v72
  %v207 = vunpack.c.l.b16 %v73
  %v208 = vunpack.c.l.b16 %v74
  %v209 = vunpack.c.l.b16 %v75
  %v210 = vpack.c.b16 %v147, %v146
  %v211 = vpack.c.b16 %v149, %v148
  %v212 = vpack.c.b16 %v151, %v150
  %v213 = vpack.c.b16 %v153, %v152
  %v214 = vpack.c.b16 %v155, %v154
  %v215 = vpack.c.b16 %v157, %v156
  %v216 = vpack.c.b16 %v159, %v158
  %v217 = vpack.c.b16 %v161, %v160
  %v218 = vpack.c.b16 %v163, %v162
  %v219 = vpack.c.b16 %v165, %v164
  %v220 = vpack.c.b16 %v167, %v166
  %v221 = vpack.c.b16 %v169, %v168
  %v222 = vpack.c.b16 %v171, %v170
  %v223 = vpack.c.b16 %v173, %v172
  %v224 = vpack.c.b16 %v175, %v174
  %v225 = vpack.c.b16 %v177, %v176
  %v226 = vpack.c.b16 %v179, %v178
  %v227 = vpack.c.b16 %v181, %v180
  %v228 = vpack.c.b16 %v183, %v182
  %v229 = vpack.c.b16 %v185, %v184
  %v230 = vpack.c.b16 %v187, %v186
  %v231 = vpack.c.b16 %v189, %v188
  %v232 = vpack.c.b16 %v191, %v190
  %v233 = vpack.c.b16 %v193, %v192
  %v234 = vpack.c.b16 %v195, %v194
  %v235 = vpack.c.b16 %v197, %v196
  %v236 = vpack.c.b16 %v199, %v198
  %v237 = vpack.c.b16 %v201, %v200
  %v238 = vpack.c.b16 %v203, %v202
  %v239 = vpack.c.b16 %v205, %v204
  %v240 = vpack.c.b16 %v207, %v206
  %v241 = vpack.c.b16 %v209, %v208
  %v248 = vunpack.c.l.b16 %v76
  %v249 = vunpack.c.l.b16 %v77
  %v250 = vunpack.c.l.b16 %v78
  %v251 = vunpack.c.l.b16 %v79
  %v252 = vunpack.c.l.b16 %v80
  %v253 = vunpack.c.l.b16 %v81
  %v254 = vpack.c.b16 %v249, %v248
  %v255 = vpack.c.b16 %v251, %v250
  %v256 = vpack.c.b16 %v253, %v252
  %vm260 = vcmask 392192
  %v262 = vsel %vm260, %v210, 0
  %v265 = vsel %vm260, %v211, 0
  %v268 = vsel %vm260, %v212, 0
  %v271 = vsel %vm260, %v213, 0
  %v274 = vsel %vm260, %v214, 0
  %v277 = vsel %vm260, %v215, 0
  %v280 = vsel %vm260, %v216, 0
  %v283 = vsel %vm260, %v217, 0
  %v286 = vsel %vm260, %v218, 0
  %v289 = vsel %vm260, %v219, 0
  %v292 = vsel %vm260, %v220, 0
  %v295 = vsel %vm260, %v221, 0
  %v298 = vsel %vm260, %v222, 0
  %v301 = vsel %vm260, %v223, 0
  %v304 = vsel %vm260, %v224, 0
  %v307 = vsel %vm260, %v225, 0
  %v310 = vsel %vm260, %v226, 0
  %v313 = vsel %vm260, %v227, 0
  %v316 = vsel %vm260, %v228, 0
  %v319 = vsel %vm260, %v229, 0
  %v322 = vsel %vm260, %v230, 0
  %v325 = vsel %vm260, %v231, 0
  %v328 = vsel %vm260, %v232, 0
  %v331 = vsel %vm260, %v233, 0
  %v334 = vsel %vm260, %v234, 0
  %v337 = vsel %vm260, %v235, 0
  %v340 = vsel %vm260, %v236, 0
  %v343 = vsel %vm260, %v237, 0
  %v346 = vsel %vm260, %v238, 0
  %v349 = vsel %vm260, %v239, 0
  %v352 = vsel %vm260, %v240, 0
  %v355 = vsel %vm260, %v241, 0
  %357 = vmatprep.subr.bf16.mxu0 0
  %358 = vmatpush1.bf16.msra.mxu0 0
  %359 = vmatprep.subr.bf16.mxu0 0
  %360 = vmatpush1.bf16.msra.mxu0 0
  %361 = vmatprep.subr.bf16.mxu0 0
  %362 = vmatpush1.bf16.msra.mxu0 0
  %363 = vmatprep.subr.bf16.mxu0 0
  %364 = vmatpush1.bf16.msra.mxu0 0
  %365 = vmatprep.subr.bf16.mxu0 0
  %366 = vmatpush1.bf16.msra.mxu0 0
  %367 = vmatprep.subr.bf16.mxu0 0
  %368 = vmatpush1.bf16.msra.mxu0 %v256
  %369 = vmatprep.subr.bf16.mxu0 0
  %370 = vmatpush1.bf16.msra.mxu0 %v255
  %371 = vmatprep.subr.bf16.mxu0 0
  %372 = vmatpush1.bf16.msra.mxu0 %v254
  %373 = vmatprep.subr.bf16.mxu0 0
  %374 = vmatpush2.bf16.msra.mxu0 0
  %375 = vmatprep.subr.bf16.mxu0 0
  %376 = vmatpush2.bf16.msra.mxu0 0
  %377 = vmatprep.subr.bf16.mxu0 0
  %378 = vmatpush2.bf16.msra.mxu0 0
  %379 = vmatprep.subr.bf16.mxu0 0
  %380 = vmatpush2.bf16.msra.mxu0 0
  %381 = vmatprep.subr.bf16.mxu0 0
  %382 = vmatpush2.bf16.msra.mxu0 0
  %383 = vmatprep.subr.bf16.mxu0 0
  %384 = vmatpush2.bf16.msra.mxu0 0
  %385 = vmatprep.subr.bf16.mxu0 0
  %386 = vmatpush2.bf16.msra.mxu0 0
  %387 = vmatprep.subr.bf16.mxu0 0
  %388 = vmatpush2.bf16.msra.mxu0 0
  %389 = vmatprep.mubr.bf16.mxu0 0
  %390 = vmatmul.mubr.bf16.gmra.mxu0 %v262
  %v391 = vpop.f32.mrf.mxu0
  %v392 = vadd.f32 0.0, %v391
  %v393 = vpop.f32.mrf.mxu0
  %v394 = vpop.f32.mrf.mxu0
  %v395 = vadd.f32 0.0, %v394
  %v396 = vpop.f32.mrf.mxu0
  %397 = vmatprep.mubr.bf16.mxu0 0
  %398 = vmatmul.mubr.bf16.gmra.mxu0 %v265
  %v399 = vpop.f32.mrf.mxu0
  %v400 = vadd.f32 0.0, %v399
  %v401 = vpop.f32.mrf.mxu0
  %v402 = vpop.f32.mrf.mxu0
  %v403 = vadd.f32 0.0, %v402
  %v404 = vpop.f32.mrf.mxu0
  %405 = vmatprep.mubr.bf16.mxu0 0
  %406 = vmatmul.mubr.bf16.gmra.mxu0 %v268
  %v407 = vpop.f32.mrf.mxu0
  %v408 = vadd.f32 0.0, %v407
  %v409 = vpop.f32.mrf.mxu0
  %v410 = vpop.f32.mrf.mxu0
  %v411 = vadd.f32 0.0, %v410
  %v412 = vpop.f32.mrf.mxu0
  %413 = vmatprep.mubr.bf16.mxu0 0
  %414 = vmatmul.mubr.bf16.gmra.mxu0 %v271
  %v415 = vpop.f32.mrf.mxu0
  %v416 = vadd.f32 0.0, %v415
  %v417 = vpop.f32.mrf.mxu0
  %v418 = vpop.f32.mrf.mxu0
  %v419 = vadd.f32 0.0, %v418
  %v420 = vpop.f32.mrf.mxu0
  %421 = vmatprep.mubr.bf16.mxu0 0
  %422 = vmatmul.mubr.bf16.gmra.mxu0 %v274
  %v423 = vpop.f32.mrf.mxu0
  %v424 = vadd.f32 0.0, %v423
  %v425 = vpop.f32.mrf.mxu0
  %v426 = vpop.f32.mrf.mxu0
  %v427 = vadd.f32 0.0, %v426
  %v428 = vpop.f32.mrf.mxu0
  %429 = vmatprep.mubr.bf16.mxu0 0
  %430 = vmatmul.mubr.bf16.gmra.mxu0 %v277
  %v431 = vpop.f32.mrf.mxu0
  %v432 = vadd.f32 0.0, %v431
  %v433 = vpop.f32.mrf.mxu0
  %v434 = vpop.f32.mrf.mxu0
  %v435 = vadd.f32 0.0, %v434
  %v436 = vpop.f32.mrf.mxu0
  %437 = vmatprep.mubr.bf16.mxu0 0
  %438 = vmatmul.mubr.bf16.gmra.mxu0 %v280
  %v439 = vpop.f32.mrf.mxu0
  %v440 = vadd.f32 0.0, %v439
  %v441 = vpop.f32.mrf.mxu0
  %v442 = vpop.f32.mrf.mxu0
  %v443 = vadd.f32 0.0, %v442
  %v444 = vpop.f32.mrf.mxu0
  %445 = vmatprep.mubr.bf16.mxu0 0
  %446 = vmatmul.mubr.bf16.gmra.mxu0 %v283
  %v447 = vpop.f32.mrf.mxu0
  %v448 = vadd.f32 0.0, %v447
  %v449 = vpop.f32.mrf.mxu0
  %v450 = vpop.f32.mrf.mxu0
  %v451 = vadd.f32 0.0, %v450
  %v452 = vpop.f32.mrf.mxu0
  %453 = vmatprep.mubr.bf16.mxu0 0
  %454 = vmatmul.mubr.bf16.gmra.mxu0 %v286
  %v455 = vpop.f32.mrf.mxu0
  %v456 = vadd.f32 0.0, %v455
  %v457 = vpop.f32.mrf.mxu0
  %v458 = vpop.f32.mrf.mxu0
  %v459 = vadd.f32 0.0, %v458
  %v460 = vpop.f32.mrf.mxu0
  %461 = vmatprep.mubr.bf16.mxu0 0
  %462 = vmatmul.mubr.bf16.gmra.mxu0 %v289
  %v463 = vpop.f32.mrf.mxu0
  %v464 = vadd.f32 0.0, %v463
  %v465 = vpop.f32.mrf.mxu0
  %v466 = vpop.f32.mrf.mxu0
  %v467 = vadd.f32 0.0, %v466
  %v468 = vpop.f32.mrf.mxu0
  %469 = vmatprep.mubr.bf16.mxu0 0
  %470 = vmatmul.mubr.bf16.gmra.mxu0 %v292
  %v471 = vpop.f32.mrf.mxu0
  %v472 = vadd.f32 0.0, %v471
  %v473 = vpop.f32.mrf.mxu0
  %v474 = vpop.f32.mrf.mxu0
  %v475 = vadd.f32 0.0, %v474
  %v476 = vpop.f32.mrf.mxu0
  %477 = vmatprep.mubr.bf16.mxu0 0
  %478 = vmatmul.mubr.bf16.gmra.mxu0 %v295
  %v479 = vpop.f32.mrf.mxu0
  %v480 = vadd.f32 0.0, %v479
  %v481 = vpop.f32.mrf.mxu0
  %v482 = vpop.f32.mrf.mxu0
  %v483 = vadd.f32 0.0, %v482
  %v484 = vpop.f32.mrf.mxu0
  %485 = vmatprep.mubr.bf16.mxu0 0
  %486 = vmatmul.mubr.bf16.gmra.mxu0 %v298
  %v487 = vpop.f32.mrf.mxu0
  %v488 = vadd.f32 0.0, %v487
  %v489 = vpop.f32.mrf.mxu0
  %v490 = vpop.f32.mrf.mxu0
  %v491 = vadd.f32 0.0, %v490
  %v492 = vpop.f32.mrf.mxu0
  %493 = vmatprep.mubr.bf16.mxu0 0
  %494 = vmatmul.mubr.bf16.gmra.mxu0 %v301
  %v495 = vpop.f32.mrf.mxu0
  %v496 = vadd.f32 0.0, %v495
  %v497 = vpop.f32.mrf.mxu0
  %v498 = vpop.f32.mrf.mxu0
  %v499 = vadd.f32 0.0, %v498
  %v500 = vpop.f32.mrf.mxu0
  %501 = vmatprep.mubr.bf16.mxu0 0
  %502 = vmatmul.mubr.bf16.gmra.mxu0 %v304
  %v503 = vpop.f32.mrf.mxu0
  %v504 = vadd.f32 0.0, %v503
  %v505 = vpop.f32.mrf.mxu0
  %v506 = vpop.f32.mrf.mxu0
  %v507 = vadd.f32 0.0, %v506
  %v508 = vpop.f32.mrf.mxu0
  %509 = vmatprep.mubr.bf16.mxu0 0
  %510 = vmatmul.mubr.bf16.gmra.mxu0 %v307
  %v511 = vpop.f32.mrf.mxu0
  %v512 = vadd.f32 0.0, %v511
  %v513 = vpop.f32.mrf.mxu0
  %v514 = vpop.f32.mrf.mxu0
  %v515 = vadd.f32 0.0, %v514
  %v516 = vpop.f32.mrf.mxu0
  %517 = vmatprep.mubr.bf16.mxu0 0
  %518 = vmatmul.mubr.bf16.gmra.mxu0 %v310
  %v519 = vpop.f32.mrf.mxu0
  %v520 = vadd.f32 0.0, %v519
  %v521 = vpop.f32.mrf.mxu0
  %v522 = vpop.f32.mrf.mxu0
  %v523 = vadd.f32 0.0, %v522
  %v524 = vpop.f32.mrf.mxu0
  %525 = vmatprep.mubr.bf16.mxu0 0
  %526 = vmatmul.mubr.bf16.gmra.mxu0 %v313
  %v527 = vpop.f32.mrf.mxu0
  %v528 = vadd.f32 0.0, %v527
  %v529 = vpop.f32.mrf.mxu0
  %v530 = vpop.f32.mrf.mxu0
  %v531 = vadd.f32 0.0, %v530
  %v532 = vpop.f32.mrf.mxu0
  %533 = vmatprep.mubr.bf16.mxu0 0
  %534 = vmatmul.mubr.bf16.gmra.mxu0 %v316
  %v535 = vpop.f32.mrf.mxu0
  %v536 = vadd.f32 0.0, %v535
  %v537 = vpop.f32.mrf.mxu0
  %v538 = vpop.f32.mrf.mxu0
  %v539 = vadd.f32 0.0, %v538
  %v540 = vpop.f32.mrf.mxu0
  %541 = vmatprep.mubr.bf16.mxu0 0
  %542 = vmatmul.mubr.bf16.gmra.mxu0 %v319
  %v543 = vpop.f32.mrf.mxu0
  %v544 = vadd.f32 0.0, %v543
  %v545 = vpop.f32.mrf.mxu0
  %v546 = vpop.f32.mrf.mxu0
  %v547 = vadd.f32 0.0, %v546
  %v548 = vpop.f32.mrf.mxu0
  %549 = vmatprep.mubr.bf16.mxu0 0
  %550 = vmatmul.mubr.bf16.gmra.mxu0 %v322
  %v551 = vpop.f32.mrf.mxu0
  %v552 = vadd.f32 0.0, %v551
  %v553 = vpop.f32.mrf.mxu0
  %v554 = vpop.f32.mrf.mxu0
  %v555 = vadd.f32 0.0, %v554
  %v556 = vpop.f32.mrf.mxu0
  %557 = vmatprep.mubr.bf16.mxu0 0
  %558 = vmatmul.mubr.bf16.gmra.mxu0 %v325
  %v559 = vpop.f32.mrf.mxu0
  %v560 = vadd.f32 0.0, %v559
  %v561 = vpop.f32.mrf.mxu0
  %v562 = vpop.f32.mrf.mxu0
  %v563 = vadd.f32 0.0, %v562
  %v564 = vpop.f32.mrf.mxu0
  %565 = vmatprep.mubr.bf16.mxu0 0
  %566 = vmatmul.mubr.bf16.gmra.mxu0 %v328
  %v567 = vpop.f32.mrf.mxu0
  %v568 = vadd.f32 0.0, %v567
  %v569 = vpop.f32.mrf.mxu0
  %v570 = vpop.f32.mrf.mxu0
  %v571 = vadd.f32 0.0, %v570
  %v572 = vpop.f32.mrf.mxu0
  %573 = vmatprep.mubr.bf16.mxu0 0
  %574 = vmatmul.mubr.bf16.gmra.mxu0 %v331
  %v575 = vpop.f32.mrf.mxu0
  %v576 = vadd.f32 0.0, %v575
  %v577 = vpop.f32.mrf.mxu0
  %v578 = vpop.f32.mrf.mxu0
  %v579 = vadd.f32 0.0, %v578
  %v580 = vpop.f32.mrf.mxu0
  %581 = vmatprep.mubr.bf16.mxu0 0
  %582 = vmatmul.mubr.bf16.gmra.mxu0 %v334
  %v583 = vpop.f32.mrf.mxu0
  %v584 = vadd.f32 0.0, %v583
  %v585 = vpop.f32.mrf.mxu0
  %v586 = vpop.f32.mrf.mxu0
  %v587 = vadd.f32 0.0, %v586
  %v588 = vpop.f32.mrf.mxu0
  %589 = vmatprep.mubr.bf16.mxu0 0
  %590 = vmatmul.mubr.bf16.gmra.mxu0 %v337
  %v591 = vpop.f32.mrf.mxu0
  %v592 = vadd.f32 0.0, %v591
  %v593 = vpop.f32.mrf.mxu0
  %v594 = vpop.f32.mrf.mxu0
  %v595 = vadd.f32 0.0, %v594
  %v596 = vpop.f32.mrf.mxu0
  %597 = vmatprep.mubr.bf16.mxu0 0
  %598 = vmatmul.mubr.bf16.gmra.mxu0 %v340
  %v599 = vpop.f32.mrf.mxu0
  %v600 = vadd.f32 0.0, %v599
  %v601 = vpop.f32.mrf.mxu0
  %v602 = vpop.f32.mrf.mxu0
  %v603 = vadd.f32 0.0, %v602
  %v604 = vpop.f32.mrf.mxu0
  %605 = vmatprep.mubr.bf16.mxu0 0
  %606 = vmatmul.mubr.bf16.gmra.mxu0 %v343
  %v607 = vpop.f32.mrf.mxu0
  %v608 = vadd.f32 0.0, %v607
  %v609 = vpop.f32.mrf.mxu0
  %v610 = vpop.f32.mrf.mxu0
  %v611 = vadd.f32 0.0, %v610
  %v612 = vpop.f32.mrf.mxu0
  %613 = vmatprep.mubr.bf16.mxu0 0
  %614 = vmatmul.mubr.bf16.gmra.mxu0 %v346
  %v615 = vpop.f32.mrf.mxu0
  %v616 = vadd.f32 0.0, %v615
  %v617 = vpop.f32.mrf.mxu0
  %v618 = vpop.f32.mrf.mxu0
  %v619 = vadd.f32 0.0, %v618
  %v620 = vpop.f32.mrf.mxu0
  %621 = vmatprep.mubr.bf16.mxu0 0
  %622 = vmatmul.mubr.bf16.gmra.mxu0 %v349
  %v623 = vpop.f32.mrf.mxu0
  %v624 = vadd.f32 0.0, %v623
  %v625 = vpop.f32.mrf.mxu0
  %v626 = vpop.f32.mrf.mxu0
  %v627 = vadd.f32 0.0, %v626
  %v628 = vpop.f32.mrf.mxu0
  %629 = vmatprep.mubr.bf16.mxu0 0
  %630 = vmatmul.mubr.bf16.gmra.mxu0 %v352
  %v631 = vpop.f32.mrf.mxu0
  %v632 = vadd.f32 0.0, %v631
  %v633 = vpop.f32.mrf.mxu0
  %v634 = vpop.f32.mrf.mxu0
  %v635 = vadd.f32 0.0, %v634
  %v636 = vpop.f32.mrf.mxu0
  %637 = vmatprep.mubr.bf16.mxu0 0
  %638 = vmatmul.mubr.bf16.gmra.mxu0 %v355
  %v639 = vpop.f32.mrf.mxu0
  %v640 = vadd.f32 0.0, %v639
  %v641 = vpop.f32.mrf.mxu0
  %v642 = vpop.f32.mrf.mxu0
  %v643 = vadd.f32 0.0, %v642
  %v644 = vpop.f32.mrf.mxu0
  %645 = vdwg.mxu0
  %v646 = vadd.f32 %v392, %v395
  %v647 = vadd.f32 %v646, %v400
  %v648 = vadd.f32 %v647, %v403
  %v649 = vadd.f32 %v648, %v408
  %v650 = vadd.f32 %v649, %v411
  %v651 = vadd.f32 %v650, %v416
  %v652 = vadd.f32 %v651, %v419
  %v653 = vadd.f32 %v652, %v424
  %v654 = vadd.f32 %v653, %v427
  %v655 = vadd.f32 %v654, %v432
  %v656 = vadd.f32 %v655, %v435
  %v657 = vadd.f32 %v656, %v440
  %v658 = vadd.f32 %v657, %v443
  %v659 = vadd.f32 %v658, %v448
  %v660 = vadd.f32 %v659, %v451
  %v661 = vadd.f32 %v660, %v456
  %v662 = vadd.f32 %v661, %v459
  %v663 = vadd.f32 %v662, %v464
  %v664 = vadd.f32 %v663, %v467
  %v665 = vadd.f32 %v664, %v472
  %v666 = vadd.f32 %v665, %v475
  %v667 = vadd.f32 %v666, %v480
  %v668 = vadd.f32 %v667, %v483
  %v669 = vadd.f32 %v668, %v488
  %v670 = vadd.f32 %v669, %v491
  %v671 = vadd.f32 %v670, %v496
  %v672 = vadd.f32 %v671, %v499
  %v673 = vadd.f32 %v672, %v504
  %v674 = vadd.f32 %v673, %v507
  %v675 = vadd.f32 %v674, %v512
  %v676 = vadd.f32 %v675, %v515
  %v677 = vadd.f32 %v676, %v520
  %v678 = vadd.f32 %v677, %v523
  %v679 = vadd.f32 %v678, %v528
  %v680 = vadd.f32 %v679, %v531
  %v681 = vadd.f32 %v680, %v536
  %v682 = vadd.f32 %v681, %v539
  %v683 = vadd.f32 %v682, %v544
  %v684 = vadd.f32 %v683, %v547
  %v685 = vadd.f32 %v684, %v552
  %v686 = vadd.f32 %v685, %v555
  %v687 = vadd.f32 %v686, %v560
  %v688 = vadd.f32 %v687, %v563
  %v689 = vadd.f32 %v688, %v568
  %v690 = vadd.f32 %v689, %v571
  %v691 = vadd.f32 %v690, %v576
  %v692 = vadd.f32 %v691, %v579
  %v693 = vadd.f32 %v692, %v584
  %v694 = vadd.f32 %v693, %v587
  %v695 = vadd.f32 %v694, %v592
  %v696 = vadd.f32 %v695, %v595
  %v697 = vadd.f32 %v696, %v600
  %v698 = vadd.f32 %v697, %v603
  %v699 = vadd.f32 %v698, %v608
  %v700 = vadd.f32 %v699, %v611
  %v701 = vadd.f32 %v700, %v616
  %v702 = vadd.f32 %v701, %v619
  %v703 = vadd.f32 %v702, %v624
  %v704 = vadd.f32 %v703, %v627
  %v705 = vadd.f32 %v704, %v632
  %v706 = vadd.f32 %v705, %v635
  %v707 = vadd.f32 %v706, %v640
  %v708 = vadd.f32 %v707, %v643
  %v709 = vrot.slane %v708, 4
  %v710 = vadd.f32 %v708, %v709
  %v711 = vrot.slane %v710, 2
  %v712 = vadd.f32 %v710, %v711
  %v713 = vrot.slane %v712, 1
  %v714 = vadd.f32 %v712, %v713
  %v715 = vmul.f32 %v392, %v392
  %v716 = vmul.f32 %v395, %v395
  %v717 = vmul.f32 %v400, %v400
  %v718 = vmul.f32 %v403, %v403
  %v719 = vmul.f32 %v408, %v408
  %v720 = vmul.f32 %v411, %v411
  %v721 = vmul.f32 %v416, %v416
  %v722 = vmul.f32 %v419, %v419
  %v723 = vmul.f32 %v424, %v424
  %v724 = vmul.f32 %v427, %v427
  %v725 = vmul.f32 %v432, %v432
  %v726 = vmul.f32 %v435, %v435
  %v727 = vmul.f32 %v440, %v440
  %v728 = vmul.f32 %v443, %v443
  %v729 = vmul.f32 %v448, %v448
  %v730 = vmul.f32 %v451, %v451
  %v731 = vmul.f32 %v456, %v456
  %v732 = vmul.f32 %v459, %v459
  %v733 = vmul.f32 %v464, %v464
  %v734 = vmul.f32 %v467, %v467
  %v735 = vmul.f32 %v472, %v472
  %v736 = vmul.f32 %v475, %v475
  %v737 = vmul.f32 %v480, %v480
  %v738 = vmul.f32 %v483, %v483
  %v739 = vmul.f32 %v488, %v488
  %v740 = vmul.f32 %v491, %v491
  %v741 = vmul.f32 %v496, %v496
  %v742 = vmul.f32 %v499, %v499
  %v743 = vmul.f32 %v504, %v504
  %v744 = vmul.f32 %v507, %v507
  %v745 = vmul.f32 %v512, %v512
  %v746 = vmul.f32 %v515, %v515
  %v747 = vmul.f32 %v520, %v520
  %v748 = vmul.f32 %v523, %v523
  %v749 = vmul.f32 %v528, %v528
  %v750 = vmul.f32 %v531, %v531
  %v751 = vmul.f32 %v536, %v536
  %v752 = vmul.f32 %v539, %v539
  %v753 = vmul.f32 %v544, %v544
  %v754 = vmul.f32 %v547, %v547
  %v755 = vmul.f32 %v552, %v552
  %v756 = vmul.f32 %v555, %v555
  %v757 = vmul.f32 %v560, %v560
  %v758 = vmul.f32 %v563, %v563
  %v759 = vmul.f32 %v568, %v568
  %v760 = vmul.f32 %v571, %v571
  %v761 = vmul.f32 %v576, %v576
  %v762 = vmul.f32 %v579, %v579
  %v763 = vmul.f32 %v584, %v584
  %v764 = vmul.f32 %v587, %v587
  %v765 = vmul.f32 %v592, %v592
  %v766 = vmul.f32 %v595, %v595
  %v767 = vmul.f32 %v600, %v600
  %v768 = vmul.f32 %v603, %v603
  %v769 = vmul.f32 %v608, %v608
  %v770 = vmul.f32 %v611, %v611
  %v771 = vmul.f32 %v616, %v616
  %v772 = vmul.f32 %v619, %v619
  %v773 = vmul.f32 %v624, %v624
  %v774 = vmul.f32 %v627, %v627
  %v775 = vmul.f32 %v632, %v632
  %v776 = vmul.f32 %v635, %v635
  %v777 = vmul.f32 %v640, %v640
  %v778 = vmul.f32 %v643, %v643
  %v779 = vadd.f32 %v715, %v716
  %v780 = vadd.f32 %v779, %v717
  %v781 = vadd.f32 %v780, %v718
  %v782 = vadd.f32 %v781, %v719
  %v783 = vadd.f32 %v782, %v720
  %v784 = vadd.f32 %v783, %v721
  %v785 = vadd.f32 %v784, %v722
  %v786 = vadd.f32 %v785, %v723
  %v787 = vadd.f32 %v786, %v724
  %v788 = vadd.f32 %v787, %v725
  %v789 = vadd.f32 %v788, %v726
  %v790 = vadd.f32 %v789, %v727
  %v791 = vadd.f32 %v790, %v728
  %v792 = vadd.f32 %v791, %v729
  %v793 = vadd.f32 %v792, %v730
  %v794 = vadd.f32 %v793, %v731
  %v795 = vadd.f32 %v794, %v732
  %v796 = vadd.f32 %v795, %v733
  %v797 = vadd.f32 %v796, %v734
  %v798 = vadd.f32 %v797, %v735
  %v799 = vadd.f32 %v798, %v736
  %v800 = vadd.f32 %v799, %v737
  %v801 = vadd.f32 %v800, %v738
  %v802 = vadd.f32 %v801, %v739
  %v803 = vadd.f32 %v802, %v740
  %v804 = vadd.f32 %v803, %v741
  %v805 = vadd.f32 %v804, %v742
  %v806 = vadd.f32 %v805, %v743
  %v807 = vadd.f32 %v806, %v744
  %v808 = vadd.f32 %v807, %v745
  %v809 = vadd.f32 %v808, %v746
  %v810 = vadd.f32 %v809, %v747
  %v811 = vadd.f32 %v810, %v748
  %v812 = vadd.f32 %v811, %v749
  %v813 = vadd.f32 %v812, %v750
  %v814 = vadd.f32 %v813, %v751
  %v815 = vadd.f32 %v814, %v752
  %v816 = vadd.f32 %v815, %v753
  %v817 = vadd.f32 %v816, %v754
  %v818 = vadd.f32 %v817, %v755
  %v819 = vadd.f32 %v818, %v756
  %v820 = vadd.f32 %v819, %v757
  %v821 = vadd.f32 %v820, %v758
  %v822 = vadd.f32 %v821, %v759
  %v823 = vadd.f32 %v822, %v760
  %v824 = vadd.f32 %v823, %v761
  %v825 = vadd.f32 %v824, %v762
  %v826 = vadd.f32 %v825, %v763
  %v827 = vadd.f32 %v826, %v764
  %v828 = vadd.f32 %v827, %v765
  %v829 = vadd.f32 %v828, %v766
  %v830 = vadd.f32 %v829, %v767
  %v831 = vadd.f32 %v830, %v768
  %v832 = vadd.f32 %v831, %v769
  %v833 = vadd.f32 %v832, %v770
  %v834 = vadd.f32 %v833, %v771
  %v835 = vadd.f32 %v834, %v772
  %v836 = vadd.f32 %v835, %v773
  %v837 = vadd.f32 %v836, %v774
  %v838 = vadd.f32 %v837, %v775
  %v839 = vadd.f32 %v838, %v776
  %v840 = vadd.f32 %v839, %v777
  %v841 = vadd.f32 %v840, %v778
  %v842 = vrot.slane %v841, 4
  %v843 = vadd.f32 %v841, %v842
  %v844 = vrot.slane %v843, 2
  %v845 = vadd.f32 %v843, %v844
  %v846 = vrot.slane %v845, 1
  %v847 = vadd.f32 %v845, %v846
  %v848 = vmul.f32 %v714, 0.001953125
  %v849 = vmul.f32 %v847, 0.001953125
  %v850 = vmul.f32 %v848, %v848
  %v851 = vsub.f32 %v849, %v850
  %v852 = vsub.f32 %v392, %v848
  %v853 = vsub.f32 %v395, %v848
  %v854 = vsub.f32 %v400, %v848
  %v855 = vsub.f32 %v403, %v848
  %v856 = vsub.f32 %v408, %v848
  %v857 = vsub.f32 %v411, %v848
  %v858 = vsub.f32 %v416, %v848
  %v859 = vsub.f32 %v419, %v848
  %v860 = vsub.f32 %v424, %v848
  %v861 = vsub.f32 %v427, %v848
  %v862 = vsub.f32 %v432, %v848
  %v863 = vsub.f32 %v435, %v848
  %v864 = vsub.f32 %v440, %v848
  %v865 = vsub.f32 %v443, %v848
  %v866 = vsub.f32 %v448, %v848
  %v867 = vsub.f32 %v451, %v848
  %v868 = vsub.f32 %v456, %v848
  %v869 = vsub.f32 %v459, %v848
  %v870 = vsub.f32 %v464, %v848
  %v871 = vsub.f32 %v467, %v848
  %v872 = vsub.f32 %v472, %v848
  %v873 = vsub.f32 %v475, %v848
  %v874 = vsub.f32 %v480, %v848
  %v875 = vsub.f32 %v483, %v848
  %v876 = vsub.f32 %v488, %v848
  %v877 = vsub.f32 %v491, %v848
  %v878 = vsub.f32 %v496, %v848
  %v879 = vsub.f32 %v499, %v848
  %v880 = vsub.f32 %v504, %v848
  %v881 = vsub.f32 %v507, %v848
  %v882 = vsub.f32 %v512, %v848
  %v883 = vsub.f32 %v515, %v848
  %v884 = vsub.f32 %v520, %v848
  %v885 = vsub.f32 %v523, %v848
  %v886 = vsub.f32 %v528, %v848
  %v887 = vsub.f32 %v531, %v848
  %v888 = vsub.f32 %v536, %v848
  %v889 = vsub.f32 %v539, %v848
  %v890 = vsub.f32 %v544, %v848
  %v891 = vsub.f32 %v547, %v848
  %v892 = vsub.f32 %v552, %v848
  %v893 = vsub.f32 %v555, %v848
  %v894 = vsub.f32 %v560, %v848
  %v895 = vsub.f32 %v563, %v848
  %v896 = vsub.f32 %v568, %v848
  %v897 = vsub.f32 %v571, %v848
  %v898 = vsub.f32 %v576, %v848
  %v899 = vsub.f32 %v579, %v848
  %v900 = vsub.f32 %v584, %v848
  %v901 = vsub.f32 %v587, %v848
  %v902 = vsub.f32 %v592, %v848
  %v903 = vsub.f32 %v595, %v848
  %v904 = vsub.f32 %v600, %v848
  %v905 = vsub.f32 %v603, %v848
  %v906 = vsub.f32 %v608, %v848
  %v907 = vsub.f32 %v611, %v848
  %v908 = vsub.f32 %v616, %v848
  %v909 = vsub.f32 %v619, %v848
  %v910 = vsub.f32 %v624, %v848
  %v911 = vsub.f32 %v627, %v848
  %v912 = vsub.f32 %v632, %v848
  %v913 = vsub.f32 %v635, %v848
  %v914 = vsub.f32 %v640, %v848
  %v915 = vsub.f32 %v643, %v848
  %v916 = vadd.f32 %v851, 1e-05
  %v917 = vrsqrt.pop %v916
  %v918 = vmul.f32 %v852, %v917
  %v919 = vmul.f32 %v853, %v917
  %v920 = vmul.f32 %v854, %v917
  %v921 = vmul.f32 %v855, %v917
  %v922 = vmul.f32 %v856, %v917
  %v923 = vmul.f32 %v857, %v917
  %v924 = vmul.f32 %v858, %v917
  %v925 = vmul.f32 %v859, %v917
  %v926 = vmul.f32 %v860, %v917
  %v927 = vmul.f32 %v861, %v917
  %v928 = vmul.f32 %v862, %v917
  %v929 = vmul.f32 %v863, %v917
  %v930 = vmul.f32 %v864, %v917
  %v931 = vmul.f32 %v865, %v917
  %v932 = vmul.f32 %v866, %v917
  %v933 = vmul.f32 %v867, %v917
  %v934 = vmul.f32 %v868, %v917
  %v935 = vmul.f32 %v869, %v917
  %v936 = vmul.f32 %v870, %v917
  %v937 = vmul.f32 %v871, %v917
  %v938 = vmul.f32 %v872, %v917
  %v939 = vmul.f32 %v873, %v917
  %v940 = vmul.f32 %v874, %v917
  %v941 = vmul.f32 %v875, %v917
  %v942 = vmul.f32 %v876, %v917
  %v943 = vmul.f32 %v877, %v917
  %v944 = vmul.f32 %v878, %v917
  %v945 = vmul.f32 %v879, %v917
  %v946 = vmul.f32 %v880, %v917
  %v947 = vmul.f32 %v881, %v917
  %v948 = vmul.f32 %v882, %v917
  %v949 = vmul.f32 %v883, %v917
  %v950 = vmul.f32 %v884, %v917
  %v951 = vmul.f32 %v885, %v917
  %v952 = vmul.f32 %v886, %v917
  %v953 = vmul.f32 %v887, %v917
  %v954 = vmul.f32 %v888, %v917
  %v955 = vmul.f32 %v889, %v917
  %v956 = vmul.f32 %v890, %v917
  %v957 = vmul.f32 %v891, %v917
  %v958 = vmul.f32 %v892, %v917
  %v959 = vmul.f32 %v893, %v917
  %v960 = vmul.f32 %v894, %v917
  %v961 = vmul.f32 %v895, %v917
  %v962 = vmul.f32 %v896, %v917
  %v963 = vmul.f32 %v897, %v917
  %v964 = vmul.f32 %v898, %v917
  %v965 = vmul.f32 %v899, %v917
  %v966 = vmul.f32 %v900, %v917
  %v967 = vmul.f32 %v901, %v917
  %v968 = vmul.f32 %v902, %v917
  %v969 = vmul.f32 %v903, %v917
  %v970 = vmul.f32 %v904, %v917
  %v971 = vmul.f32 %v905, %v917
  %v972 = vmul.f32 %v906, %v917
  %v973 = vmul.f32 %v907, %v917
  %v974 = vmul.f32 %v908, %v917
  %v975 = vmul.f32 %v909, %v917
  %v976 = vmul.f32 %v910, %v917
  %v977 = vmul.f32 %v911, %v917
  %v978 = vmul.f32 %v912, %v917
  %v979 = vmul.f32 %v913, %v917
  %v980 = vmul.f32 %v914, %v917
  %v981 = vmul.f32 %v915, %v917
  %v982 = vmax.f32 %v918, 0.0
  %v983 = vmax.f32 %v919, 0.0
  %v984 = vmax.f32 %v920, 0.0
  %v985 = vmax.f32 %v921, 0.0
  %v986 = vmax.f32 %v922, 0.0
  %v987 = vmax.f32 %v923, 0.0
  %v988 = vmax.f32 %v924, 0.0
  %v989 = vmax.f32 %v925, 0.0
  %v990 = vmax.f32 %v926, 0.0
  %v991 = vmax.f32 %v927, 0.0
  %v992 = vmax.f32 %v928, 0.0
  %v993 = vmax.f32 %v929, 0.0
  %v994 = vmax.f32 %v930, 0.0
  %v995 = vmax.f32 %v931, 0.0
  %v996 = vmax.f32 %v932, 0.0
  %v997 = vmax.f32 %v933, 0.0
  %v998 = vmax.f32 %v934, 0.0
  %v999 = vmax.f32 %v935, 0.0
  %v1000 = vmax.f32 %v936, 0.0
  %v1001 = vmax.f32 %v937, 0.0
  %v1002 = vmax.f32 %v938, 0.0
  %v1003 = vmax.f32 %v939, 0.0
  %v1004 = vmax.f32 %v940, 0.0
  %v1005 = vmax.f32 %v941, 0.0
  %v1006 = vmax.f32 %v942, 0.0
  %v1007 = vmax.f32 %v943, 0.0
  %v1008 = vmax.f32 %v944, 0.0
  %v1009 = vmax.f32 %v945, 0.0
  %v1010 = vmax.f32 %v946, 0.0
  %v1011 = vmax.f32 %v947, 0.0
  %v1012 = vmax.f32 %v948, 0.0
  %v1013 = vmax.f32 %v949, 0.0
  %v1014 = vmax.f32 %v950, 0.0
  %v1015 = vmax.f32 %v951, 0.0
  %v1016 = vmax.f32 %v952, 0.0
  %v1017 = vmax.f32 %v953, 0.0
  %v1018 = vmax.f32 %v954, 0.0
  %v1019 = vmax.f32 %v955, 0.0
  %v1020 = vmax.f32 %v956, 0.0
  %v1021 = vmax.f32 %v957, 0.0
  %v1022 = vmax.f32 %v958, 0.0
  %v1023 = vmax.f32 %v959, 0.0
  %v1024 = vmax.f32 %v960, 0.0
  %v1025 = vmax.f32 %v961, 0.0
  %v1026 = vmax.f32 %v962, 0.0
  %v1027 = vmax.f32 %v963, 0.0
  %v1028 = vmax.f32 %v964, 0.0
  %v1029 = vmax.f32 %v965, 0.0
  %v1030 = vmax.f32 %v966, 0.0
  %v1031 = vmax.f32 %v967, 0.0
  %v1032 = vmax.f32 %v968, 0.0
  %v1033 = vmax.f32 %v969, 0.0
  %v1034 = vmax.f32 %v970, 0.0
  %v1035 = vmax.f32 %v971, 0.0
  %v1036 = vmax.f32 %v972, 0.0
  %v1037 = vmax.f32 %v973, 0.0
  %v1038 = vmax.f32 %v974, 0.0
  %v1039 = vmax.f32 %v975, 0.0
  %v1040 = vmax.f32 %v976, 0.0
  %v1041 = vmax.f32 %v977, 0.0
  %v1042 = vmax.f32 %v978, 0.0
  %v1043 = vmax.f32 %v979, 0.0
  %v1044 = vmax.f32 %v980, 0.0
  %v1045 = vmax.f32 %v981, 0.0
  %1046 = vst [vmem:[%s2] sm:$0xff] %v982
  %1047 = vst [vmem:[%s2 + $0x8] sm:$0xff] %v983
  %1048 = vst [vmem:[%s2 + $0x10] sm:$0xff] %v984
  %1049 = vst [vmem:[%s2 + $0x18] sm:$0xff] %v985
  %1050 = vst [vmem:[%s2 + $0x20] sm:$0xff] %v986
  %1051 = vst [vmem:[%s2 + $0x28] sm:$0xff] %v987
  %1052 = vst [vmem:[%s2 + $0x30] sm:$0xff] %v988
  %1053 = vst [vmem:[%s2 + $0x38] sm:$0xff] %v989
  %1054 = vst [vmem:[%s2 + $0x40] sm:$0xff] %v990
  %1055 = vst [vmem:[%s2 + $0x48] sm:$0xff] %v991
  %1056 = vst [vmem:[%s2 + $0x50] sm:$0xff] %v992
  %1057 = vst [vmem:[%s2 + $0x58] sm:$0xff] %v993
  %1058 = vst [vmem:[%s2 + $0x60] sm:$0xff] %v994
  %1059 = vst [vmem:[%s2 + $0x68] sm:$0xff] %v995
  %1060 = vst [vmem:[%s2 + $0x70] sm:$0xff] %v996
  %1061 = vst [vmem:[%s2 + $0x78] sm:$0xff] %v997
  %1062 = vst [vmem:[%s2 + $0x80] sm:$0xff] %v998
  %1063 = vst [vmem:[%s2 + $0x88] sm:$0xff] %v999
  %1064 = vst [vmem:[%s2 + $0x90] sm:$0xff] %v1000
  %1065 = vst [vmem:[%s2 + $0x98] sm:$0xff] %v1001
  %1066 = vst [vmem:[%s2 + $0xa0] sm:$0xff] %v1002
  %1067 = vst [vmem:[%s2 + $0xa8] sm:$0xff] %v1003
  %1068 = vst [vmem:[%s2 + $0xb0] sm:$0xff] %v1004
  %1069 = vst [vmem:[%s2 + $0xb8] sm:$0xff] %v1005
  %1070 = vst [vmem:[%s2 + $0xc0] sm:$0xff] %v1006
  %1071 = vst [vmem:[%s2 + $0xc8] sm:$0xff] %v1007
  %1072 = vst [vmem:[%s2 + $0xd0] sm:$0xff] %v1008
  %1073 = vst [vmem:[%s2 + $0xd8] sm:$0xff] %v1009
  %1074 = vst [vmem:[%s2 + $0xe0] sm:$0xff] %v1010
  %1075 = vst [vmem:[%s2 + $0xe8] sm:$0xff] %v1011
  %1076 = vst [vmem:[%s2 + $0xf0] sm:$0xff] %v1012
  %1077 = vst [vmem:[%s2 + $0xf8] sm:$0xff] %v1013
  %1078 = vst [vmem:[%s2 + $0x100] sm:$0xff] %v1014
  %1079 = vst [vmem:[%s2 + $0x108] sm:$0xff] %v1015
  %1080 = vst [vmem:[%s2 + $0x110] sm:$0xff] %v1016
  %1081 = vst [vmem:[%s2 + $0x118] sm:$0xff] %v1017
  %1082 = vst [vmem:[%s2 + $0x120] sm:$0xff] %v1018
  %1083 = vst [vmem:[%s2 + $0x128] sm:$0xff] %v1019
  %1084 = vst [vmem:[%s2 + $0x130] sm:$0xff] %v1020
  %1085 = vst [vmem:[%s2 + $0x138] sm:$0xff] %v1021
  %1086 = vst [vmem:[%s2 + $0x140] sm:$0xff] %v1022
  %1087 = vst [vmem:[%s2 + $0x148] sm:$0xff] %v1023
  %1088 = vst [vmem:[%s2 + $0x150] sm:$0xff] %v1024
  %1089 = vst [vmem:[%s2 + $0x158] sm:$0xff] %v1025
  %1090 = vst [vmem:[%s2 + $0x160] sm:$0xff] %v1026
  %1091 = vst [vmem:[%s2 + $0x168] sm:$0xff] %v1027
  %1092 = vst [vmem:[%s2 + $0x170] sm:$0xff] %v1028
  %1093 = vst [vmem:[%s2 + $0x178] sm:$0xff] %v1029
  %1094 = vst [vmem:[%s2 + $0x180] sm:$0xff] %v1030
  %1095 = vst [vmem:[%s2 + $0x188] sm:$0xff] %v1031
  %1096 = vst [vmem:[%s2 + $0x190] sm:$0xff] %v1032
  %1097 = vst [vmem:[%s2 + $0x198] sm:$0xff] %v1033
  %1098 = vst [vmem:[%s2 + $0x1a0] sm:$0xff] %v1034
  %1099 = vst [vmem:[%s2 + $0x1a8] sm:$0xff] %v1035
  %1100 = vst [vmem:[%s2 + $0x1b0] sm:$0xff] %v1036
  %1101 = vst [vmem:[%s2 + $0x1b8] sm:$0xff] %v1037
  %1102 = vst [vmem:[%s2 + $0x1c0] sm:$0xff] %v1038
  %1103 = vst [vmem:[%s2 + $0x1c8] sm:$0xff] %v1039
  %1104 = vst [vmem:[%s2 + $0x1d0] sm:$0xff] %v1040
  %1105 = vst [vmem:[%s2 + $0x1d8] sm:$0xff] %v1041
  %1106 = vst [vmem:[%s2 + $0x1e0] sm:$0xff] %v1042
  %1107 = vst [vmem:[%s2 + $0x1e8] sm:$0xff] %v1043
  %1108 = vst [vmem:[%s2 + $0x1f0] sm:$0xff] %v1044
  %1109 = vst [vmem:[%s2 + $0x1f8] sm:$0xff] %v1045
  // Predicated region
  $region10: #{cycle_generator_forward.4} parent=0 // pred_check
    _
  $region11: #{cycle_generator_forward.4} parent=0 // pred_check_branch
    %1111 = sbr.rel (0) target = $region13
  $region12: #{cycle_generator_forward.4} parent=0 // pred_region
    _
  $region13: #{cycle_generator_forward.4} parent=0 // pred_fallthru
    _
  // Predicated region
  $region14: #{cycle_generator_forward.4} parent=0 // pred_check
    _
  $region15: #{cycle_generator_forward.4} parent=0 // pred_check_branch
    %1113 = sbr.rel (0) target = $region17
  $region16: #{cycle_generator_forward.4} parent=0 // pred_region
    _
  $region17: #{cycle_generator_forward.4} parent=0 // pred_fallthru
    _

// kernel: cycle_generator_forward.5
$region0: #{cycle_generator_forward.5}
  #allocation0 [shape = 'u32[]', space=smem, size = 0x4, offset = 0x4, fixed_abs, tag = 'smem constant byte address 0x4 - core index']
  #allocation1 [shape = 'u32[144,128]{1,0:T(1,128)}', space=vmem, size = 0x12000, scoped, tag = 'internal scratch']
  %s0 = inlined_call_operand.vmem [shape: bf16[128,512], index: 0, kind: input, shape index: {}]
  %s1 = inlined_call_operand.vmem [shape: bf16[512,128], index: 1, kind: input, shape index: {}]
  %s2 = inlined_call_operand.vmem [shape: bf16[9,128,128], index: 2, kind: input, shape index: {}]
  %s3 = inlined_call_operand.vmem [shape: bf16[9,128,128], index: 3, kind: input, shape index: {}]
  %s4 = inlined_call_operand.vmem [shape: f32[128,128], index: 4, kind: output, shape index: {}]
  %s5 = sld [smem:[#allocation0]]
  $region26: #{cycle_generator_forward.5} parent=0
    _
  %s7 = ssub.s32 1, %s5
  %s8 = scalar_select 0, %s7, %s5
  // Predicated region
  $region2: #{cycle_generator_forward.5} parent=0 // pred_check
    _
  $region3: #{cycle_generator_forward.5} parent=0 // pred_check_branch
    %10 = sbr.rel (0) target = $region5
  $region4: #{cycle_generator_forward.5} parent=0 // pred_region
    _
  $region5: #{cycle_generator_forward.5} parent=0 // pred_fallthru
    _
  // Predicated region
  $region6: #{cycle_generator_forward.5} parent=0 // pred_check
    _
  $region7: #{cycle_generator_forward.5} parent=0 // pred_check_branch
    %12 = sbr.rel (0) target = $region9
  $region8: #{cycle_generator_forward.5} parent=0 // pred_region
    _
  $region9: #{cycle_generator_forward.5} parent=0 // pred_fallthru
    _
  // Predicated region
  $region10: #{cycle_generator_forward.5} parent=0 // pred_check
    _
  $region11: #{cycle_generator_forward.5} parent=0 // pred_check_branch
    %14 = sbr.rel (0) target = $region13
  $region12: #{cycle_generator_forward.5} parent=0 // pred_region
    _
  $region13: #{cycle_generator_forward.5} parent=0 // pred_fallthru
    _
  // Predicated region
  $region14: #{cycle_generator_forward.5} parent=0 // pred_check
    _
  $region15: #{cycle_generator_forward.5} parent=0 // pred_check_branch
    %16 = sbr.rel (0) target = $region17
  $region16: #{cycle_generator_forward.5} parent=0 // pred_region
    _
  $region17: #{cycle_generator_forward.5} parent=0 // pred_fallthru
    _
  %v18 = vld [vmem:[%s0] sm:$0xff]
  %v19 = vld [vmem:[%s0 + $0x8] sm:$0xff]
  %v20 = vld [vmem:[%s0 + $0x10] sm:$0xff]
  %v21 = vld [vmem:[%s0 + $0x18] sm:$0xff]
  %v22 = vld [vmem:[%s0 + $0x20] sm:$0xff]
  %v23 = vld [vmem:[%s0 + $0x28] sm:$0xff]
  %v24 = vld [vmem:[%s0 + $0x30] sm:$0xff]
  %v25 = vld [vmem:[%s0 + $0x38] sm:$0xff]
  %v26 = vld [vmem:[%s0 + $0x40] sm:$0xff]
  %v27 = vld [vmem:[%s0 + $0x48] sm:$0xff]
  %v28 = vld [vmem:[%s0 + $0x50] sm:$0xff]
  %v29 = vld [vmem:[%s0 + $0x58] sm:$0xff]
  %v30 = vld [vmem:[%s0 + $0x60] sm:$0xff]
  %v31 = vld [vmem:[%s0 + $0x68] sm:$0xff]
  %v32 = vld [vmem:[%s0 + $0x70] sm:$0xff]
  %v33 = vld [vmem:[%s0 + $0x78] sm:$0xff]
  %v34 = vld [vmem:[%s0 + $0x80] sm:$0xff]
  %v35 = vld [vmem:[%s0 + $0x88] sm:$0xff]
  %v36 = vld [vmem:[%s0 + $0x90] sm:$0xff]
  %v37 = vld [vmem:[%s0 + $0x98] sm:$0xff]
  %v38 = vld [vmem:[%s0 + $0xa0] sm:$0xff]
  %v39 = vld [vmem:[%s0 + $0xa8] sm:$0xff]
  %v40 = vld [vmem:[%s0 + $0xb0] sm:$0xff]
  %v41 = vld [vmem:[%s0 + $0xb8] sm:$0xff]
  %v42 = vld [vmem:[%s0 + $0xc0] sm:$0xff]
  %v43 = vld [vmem:[%s0 + $0xc8] sm:$0xff]
  %v44 = vld [vmem:[%s0 + $0xd0] sm:$0xff]
  %v45 = vld [vmem:[%s0 + $0xd8] sm:$0xff]
  %v46 = vld [vmem:[%s0 + $0xe0] sm:$0xff]
  %v47 = vld [vmem:[%s0 + $0xe8] sm:$0xff]
  %v48 = vld [vmem:[%s0 + $0xf0] sm:$0xff]
  %v49 = vld [vmem:[%s0 + $0xf8] sm:$0xff]
  %v50 = vld [vmem:[%s1] sm:$0xf]
  %v51 = vld [vmem:[%s1 + $0x4] sm:$0xf]
  %v52 = vld [vmem:[%s1 + $0x8] sm:$0xf]
  %v53 = vld [vmem:[%s1 + $0xc] sm:$0xf]
  %v54 = vld [vmem:[%s1 + $0x10] sm:$0xf]
  %v55 = vld [vmem:[%s1 + $0x14] sm:$0xf]
  %v56 = vld [vmem:[%s1 + $0x18] sm:$0xf]
  %v57 = vld [vmem:[%s1 + $0x1c] sm:$0xf]
  %v58 = vld [vmem:[%s1 + $0x20] sm:$0xf]
  %v59 = vld [vmem:[%s1 + $0x24] sm:$0xf]
  %v60 = vld [vmem:[%s1 + $0x28] sm:$0xf]
  %v61 = vld [vmem:[%s1 + $0x2c] sm:$0xf]
  %v62 = vld [vmem:[%s1 + $0x30] sm:$0xf]
  %v63 = vld [vmem:[%s1 + $0x34] sm:$0xf]
  %v64 = vld [vmem:[%s1 + $0x38] sm:$0xf]
  %v65 = vld [vmem:[%s1 + $0x3c] sm:$0xf]
  %v66 = vld [vmem:[%s1 + $0x40] sm:$0xf]
  %v67 = vld [vmem:[%s1 + $0x44] sm:$0xf]
  %v68 = vld [vmem:[%s1 + $0x48] sm:$0xf]
  %v69 = vld [vmem:[%s1 + $0x4c] sm:$0xf]
  %v70 = vld [vmem:[%s1 + $0x50] sm:$0xf]
  %v71 = vld [vmem:[%s1 + $0x54] sm:$0xf]
  %v72 = vld [vmem:[%s1 + $0x58] sm:$0xf]
  %v73 = vld [vmem:[%s1 + $0x5c] sm:$0xf]
  %v74 = vld [vmem:[%s1 + $0x60] sm:$0xf]
  %v75 = vld [vmem:[%s1 + $0x64] sm:$0xf]
  %v76 = vld [vmem:[%s1 + $0x68] sm:$0xf]
  %v77 = vld [vmem:[%s1 + $0x6c] sm:$0xf]
  %v78 = vld [vmem:[%s1 + $0x70] sm:$0xf]
  %v79 = vld [vmem:[%s1 + $0x74] sm:$0xf]
  %v80 = vld [vmem:[%s1 + $0x78] sm:$0xf]
  %v81 = vld [vmem:[%s1 + $0x7c] sm:$0xf]
  %v82 = vld [vmem:[%s1 + $0x80] sm:$0xf]
  %v83 = vld [vmem:[%s1 + $0x84] sm:$0xf]
  %v84 = vld [vmem:[%s1 + $0x88] sm:$0xf]
  %v85 = vld [vmem:[%s1 + $0x8c] sm:$0xf]
  %v86 = vld [vmem:[%s1 + $0x90] sm:$0xf]
  %v87 = vld [vmem:[%s1 + $0x94] sm:$0xf]
  %v88 = vld [vmem:[%s1 + $0x98] sm:$0xf]
  %v89 = vld [vmem:[%s1 + $0x9c] sm:$0xf]
  %v90 = vld [vmem:[%s1 + $0xa0] sm:$0xf]
  %v91 = vld [vmem:[%s1 + $0xa4] sm:$0xf]
  %v92 = vld [vmem:[%s1 + $0xa8] sm:$0xf]
  %v93 = vld [vmem:[%s1 + $0xac] sm:$0xf]
  %v94 = vld [vmem:[%s1 + $0xb0] sm:$0xf]
  %v95 = vld [vmem:[%s1 + $0xb4] sm:$0xf]
  %v96 = vld [vmem:[%s1 + $0xb8] sm:$0xf]
  %v97 = vld [vmem:[%s1 + $0xbc] sm:$0xf]
  %v98 = vld [vmem:[%s1 + $0xc0] sm:$0xf]
  %v99 = vld [vmem:[%s1 + $0xc4] sm:$0xf]
  %v100 = vld [vmem:[%s1 + $0xc8] sm:$0xf]
  %v101 = vld [vmem:[%s1 + $0xcc] sm:$0xf]
  %v102 = vld [vmem:[%s1 + $0xd0] sm:$0xf]
  %v103 = vld [vmem:[%s1 + $0xd4] sm:$0xf]
  %v104 = vld [vmem:[%s1 + $0xd8] sm:$0xf]
  %v105 = vld [vmem:[%s1 + $0xdc] sm:$0xf]
  %v106 = vld [vmem:[%s1 + $0xe0] sm:$0xf]
  %v107 = vld [vmem:[%s1 + $0xe4] sm:$0xf]
  %v108 = vld [vmem:[%s1 + $0xe8] sm:$0xf]
  %v109 = vld [vmem:[%s1 + $0xec] sm:$0xf]
  %v110 = vld [vmem:[%s1 + $0xf0] sm:$0xf]
  %v111 = vld [vmem:[%s1 + $0xf4] sm:$0xf]
  %v112 = vld [vmem:[%s1 + $0xf8] sm:$0xf]
  %v113 = vld [vmem:[%s1 + $0xfc] sm:$0xf]
  %v146 = vunpack.c.l.b16 %v18
  %v147 = vunpack.c.h.b16 %v18
  %v148 = vunpack.c.l.b16 %v19
  %v149 = vunpack.c.h.b16 %v19
  %v150 = vunpack.c.l.b16 %v20
  %v151 = vunpack.c.h.b16 %v20
  %v152 = vunpack.c.l.b16 %v21
  %v153 = vunpack.c.h.b16 %v21
  %v154 = vunpack.c.l.b16 %v22
  %v155 = vunpack.c.h.b16 %v22
  %v156 = vunpack.c.l.b16 %v23
  %v157 = vunpack.c.h.b16 %v23
  %v158 = vunpack.c.l.b16 %v24
  %v159 = vunpack.c.h.b16 %v24
  %v160 = vunpack.c.l.b16 %v25
  %v161 = vunpack.c.h.b16 %v25
  %v162 = vunpack.c.l.b16 %v26
  %v163 = vunpack.c.h.b16 %v26
  %v164 = vunpack.c.l.b16 %v27
  %v165 = vunpack.c.h.b16 %v27
  %v166 = vunpack.c.l.b16 %v28
  %v167 = vunpack.c.h.b16 %v28
  %v168 = vunpack.c.l.b16 %v29
  %v169 = vunpack.c.h.b16 %v29
  %v170 = vunpack.c.l.b16 %v30
  %v171 = vunpack.c.h.b16 %v30
  %v172 = vunpack.c.l.b16 %v31
  %v173 = vunpack.c.h.b16 %v31
  %v174 = vunpack.c.l.b16 %v32
  %v175 = vunpack.c.h.b16 %v32
  %v176 = vunpack.c.l.b16 %v33
  %v177 = vunpack.c.h.b16 %v33
  %v178 = vunpack.c.l.b16 %v34
  %v179 = vunpack.c.h.b16 %v34
  %v180 = vunpack.c.l.b16 %v35
  %v181 = vunpack.c.h.b16 %v35
  %v182 = vunpack.c.l.b16 %v36
  %v183 = vunpack.c.h.b16 %v36
  %v184 = vunpack.c.l.b16 %v37
  %v185 = vunpack.c.h.b16 %v37
  %v186 = vunpack.c.l.b16 %v38
  %v187 = vunpack.c.h.b16 %v38
  %v188 = vunpack.c.l.b16 %v39
  %v189 = vunpack.c.h.b16 %v39
  %v190 = vunpack.c.l.b16 %v40
  %v191 = vunpack.c.h.b16 %v40
  %v192 = vunpack.c.l.b16 %v41
  %v193 = vunpack.c.h.b16 %v41
  %v194 = vunpack.c.l.b16 %v42
  %v195 = vunpack.c.h.b16 %v42
  %v196 = vunpack.c.l.b16 %v43
  %v197 = vunpack.c.h.b16 %v43
  %v198 = vunpack.c.l.b16 %v44
  %v199 = vunpack.c.h.b16 %v44
  %v200 = vunpack.c.l.b16 %v45
  %v201 = vunpack.c.h.b16 %v45
  %v202 = vunpack.c.l.b16 %v46
  %v203 = vunpack.c.h.b16 %v46
  %v204 = vunpack.c.l.b16 %v47
  %v205 = vunpack.c.h.b16 %v47
  %v206 = vunpack.c.l.b16 %v48
  %v207 = vunpack.c.h.b16 %v48
  %v208 = vunpack.c.l.b16 %v49
  %v209 = vunpack.c.h.b16 %v49
  %v210 = vpack.c.b16 %v150, %v146
  %v211 = vpack.c.b16 %v151, %v147
  %v212 = vpack.c.b16 %v152, %v148
  %v213 = vpack.c.b16 %v153, %v149
  %v214 = vpack.c.b16 %v158, %v154
  %v215 = vpack.c.b16 %v159, %v155
  %v216 = vpack.c.b16 %v160, %v156
  %v217 = vpack.c.b16 %v161, %v157
  %v218 = vpack.c.b16 %v166, %v162
  %v219 = vpack.c.b16 %v167, %v163
  %v220 = vpack.c.b16 %v168, %v164
  %v221 = vpack.c.b16 %v169, %v165
  %v222 = vpack.c.b16 %v174, %v170
  %v223 = vpack.c.b16 %v175, %v171
  %v224 = vpack.c.b16 %v176, %v172
  %v225 = vpack.c.b16 %v177, %v173
  %v226 = vpack.c.b16 %v182, %v178
  %v227 = vpack.c.b16 %v183, %v179
  %v228 = vpack.c.b16 %v184, %v180
  %v229 = vpack.c.b16 %v185, %v181
  %v230 = vpack.c.b16 %v190, %v186
  %v231 = vpack.c.b16 %v191, %v187
  %v232 = vpack.c.b16 %v192, %v188
  %v233 = vpack.c.b16 %v193, %v189
  %v234 = vpack.c.b16 %v198, %v194
  %v235 = vpack.c.b16 %v199, %v195
  %v236 = vpack.c.b16 %v200, %v196
  %v237 = vpack.c.b16 %v201, %v197
  %v238 = vpack.c.b16 %v206, %v202
  %v239 = vpack.c.b16 %v207, %v203
  %v240 = vpack.c.b16 %v208, %v204
  %v241 = vpack.c.b16 %v209, %v205
  %v338 = vunpack.c.l.b16 %v50
  %v339 = vunpack.c.l.b16 %v51
  %v340 = vunpack.c.l.b16 %v52
  %v341 = vunpack.c.l.b16 %v53
  %v342 = vunpack.c.l.b16 %v54
  %v343 = vunpack.c.l.b16 %v55
  %v344 = vunpack.c.l.b16 %v56
  %v345 = vunpack.c.l.b16 %v57
  %v346 = vunpack.c.l.b16 %v58
  %v347 = vunpack.c.l.b16 %v59
  %v348 = vunpack.c.l.b16 %v60
  %v349 = vunpack.c.l.b16 %v61
  %v350 = vunpack.c.l.b16 %v62
  %v351 = vunpack.c.l.b16 %v63
  %v352 = vunpack.c.l.b16 %v64
  %v353 = vunpack.c.l.b16 %v65
  %v354 = vunpack.c.l.b16 %v66
  %v355 = vunpack.c.l.b16 %v67
  %v356 = vunpack.c.l.b16 %v68
  %v357 = vunpack.c.l.b16 %v69
  %v358 = vunpack.c.l.b16 %v70
  %v359 = vunpack.c.l.b16 %v71
  %v360 = vunpack.c.l.b16 %v72
  %v361 = vunpack.c.l.b16 %v73
  %v362 = vunpack.c.l.b16 %v74
  %v363 = vunpack.c.l.b16 %v75
  %v364 = vunpack.c.l.b16 %v76
  %v365 = vunpack.c.l.b16 %v77
  %v366 = vunpack.c.l.b16 %v78
  %v367 = vunpack.c.l.b16 %v79
  %v368 = vunpack.c.l.b16 %v80
  %v369 = vunpack.c.l.b16 %v81
  %v370 = vunpack.c.l.b16 %v82
  %v371 = vunpack.c.l.b16 %v83
  %v372 = vunpack.c.l.b16 %v84
  %v373 = vunpack.c.l.b16 %v85
  %v374 = vunpack.c.l.b16 %v86
  %v375 = vunpack.c.l.b16 %v87
  %v376 = vunpack.c.l.b16 %v88
  %v377 = vunpack.c.l.b16 %v89
  %v378 = vunpack.c.l.b16 %v90
  %v379 = vunpack.c.l.b16 %v91
  %v380 = vunpack.c.l.b16 %v92
  %v381 = vunpack.c.l.b16 %v93
  %v382 = vunpack.c.l.b16 %v94
  %v383 = vunpack.c.l.b16 %v95
  %v384 = vunpack.c.l.b16 %v96
  %v385 = vunpack.c.l.b16 %v97
  %v386 = vunpack.c.l.b16 %v98
  %v387 = vunpack.c.l.b16 %v99
  %v388 = vunpack.c.l.b16 %v100
  %v389 = vunpack.c.l.b16 %v101
  %v390 = vunpack.c.l.b16 %v102
  %v391 = vunpack.c.l.b16 %v103
  %v392 = vunpack.c.l.b16 %v104
  %v393 = vunpack.c.l.b16 %v105
  %v394 = vunpack.c.l.b16 %v106
  %v395 = vunpack.c.l.b16 %v107
  %v396 = vunpack.c.l.b16 %v108
  %v397 = vunpack.c.l.b16 %v109
  %v398 = vunpack.c.l.b16 %v110
  %v399 = vunpack.c.l.b16 %v111
  %v400 = vunpack.c.l.b16 %v112
  %v401 = vunpack.c.l.b16 %v113
  %v402 = vpack.c.b16 %v339, %v338
  %v403 = vpack.c.b16 %v341, %v340
  %v404 = vpack.c.b16 %v343, %v342
  %v405 = vpack.c.b16 %v345, %v344
  %v406 = vpack.c.b16 %v347, %v346
  %v407 = vpack.c.b16 %v349, %v348
  %v408 = vpack.c.b16 %v351, %v350
  %v409 = vpack.c.b16 %v353, %v352
  %v410 = vpack.c.b16 %v355, %v354
  %v411 = vpack.c.b16 %v357, %v356
  %v412 = vpack.c.b16 %v359, %v358
  %v413 = vpack.c.b16 %v361, %v360
  %v414 = vpack.c.b16 %v363, %v362
  %v415 = vpack.c.b16 %v365, %v364
  %v416 = vpack.c.b16 %v367, %v366
  %v417 = vpack.c.b16 %v369, %v368
  %v418 = vpack.c.b16 %v371, %v370
  %v419 = vpack.c.b16 %v373, %v372
  %v420 = vpack.c.b16 %v375, %v374
  %v421 = vpack.c.b16 %v377, %v376
  %v422 = vpack.c.b16 %v379, %v378
  %v423 = vpack.c.b16 %v381, %v380
  %v424 = vpack.c.b16 %v383, %v382
  %v425 = vpack.c.b16 %v385, %v384
  %v426 = vpack.c.b16 %v387, %v386
  %v427 = vpack.c.b16 %v389, %v388
  %v428 = vpack.c.b16 %v391, %v390
  %v429 = vpack.c.b16 %v393, %v392
  %v430 = vpack.c.b16 %v395, %v394
  %v431 = vpack.c.b16 %v397, %v396
  %v432 = vpack.c.b16 %v399, %v398
  %v433 = vpack.c.b16 %v401, %v400
  %466 = vmatprep.subr.bf16.mxu0 0
  %467 = vmatpush1.bf16.msra.mxu0 %v409
  %468 = vmatprep.subr.bf16.mxu0 0
  %469 = vmatpush1.bf16.msra.mxu0 %v408
  %470 = vmatprep.subr.bf16.mxu0 0
  %471 = vmatpush1.bf16.msra.mxu0 %v407
  %472 = vmatprep.subr.bf16.mxu0 0
  %473 = vmatpush1.bf16.msra.mxu0 %v406
  %474 = vmatprep.subr.bf16.mxu0 0
  %475 = vmatpush1.bf16.msra.mxu0 %v405
  %476 = vmatprep.subr.bf16.mxu0 0
  %477 = vmatpush1.bf16.msra.mxu0 %v404
  %478 = vmatprep.subr.bf16.mxu0 0
  %479 = vmatpush1.bf16.msra.mxu0 %v403
  %480 = vmatprep.subr.bf16.mxu0 0
  %481 = vmatpush1.bf16.msra.mxu0 %v402
  %482 = vmatprep.subr.bf16.mxu0 0
  %483 = vmatpush2.bf16.msra.mxu0 %v417
  %484 = vmatprep.subr.bf16.mxu0 0
  %485 = vmatpush2.bf16.msra.mxu0 %v416
  %486 = vmatprep.subr.bf16.mxu0 0
  %487 = vmatpush2.bf16.msra.mxu0 %v415
  %488 = vmatprep.subr.bf16.mxu0 0
  %489 = vmatpush2.bf16.msra.mxu0 %v414
  %490 = vmatprep.subr.bf16.mxu0 0
  %491 = vmatpush2.bf16.msra.mxu0 %v413
  %492 = vmatprep.subr.bf16.mxu0 0
  %493 = vmatpush2.bf16.msra.mxu0 %v412
  %494 = vmatprep.subr.bf16.mxu0 0
  %495 = vmatpush2.bf16.msra.mxu0 %v411
  %496 = vmatprep.subr.bf16.mxu0 0
  %497 = vmatpush2.bf16.msra.mxu0 %v410
  %498 = vmatprep.mubr.bf16.mxu0 %v211
  %499 = vmatmul.mubr.bf16.gmra.mxu0 %v210
  %v500 = vpop.f32.mrf.mxu0
  %v501 = vadd.f32 0.0, %v500
  %v502 = vpop.f32.mrf.mxu0
  %v503 = vpop.f32.mrf.mxu0
  %v504 = vadd.f32 0.0, %v503
  %v505 = vpop.f32.mrf.mxu0
  %506 = vmatprep.mubr.bf16.mxu0 %v215
  %507 = vmatmul.mubr.bf16.gmra.mxu0 %v214
  %v508 = vpop.f32.mrf.mxu0
  %v509 = vadd.f32 0.0, %v508
  %v510 = vpop.f32.mrf.mxu0
  %v511 = vpop.f32.mrf.mxu0
  %v512 = vadd.f32 0.0, %v511
  %v513 = vpop.f32.mrf.mxu0
  %514 = vmatprep.mubr.bf16.mxu0 %v219
  %515 = vmatmul.mubr.bf16.gmra.mxu0 %v218
  %v516 = vpop.f32.mrf.mxu0
  %v517 = vadd.f32 0.0, %v516
  %v518 = vpop.f32.mrf.mxu0
  %v519 = vpop.f32.mrf.mxu0
  %v520 = vadd.f32 0.0, %v519
  %v521 = vpop.f32.mrf.mxu0
  %522 = vmatprep.mubr.bf16.mxu0 %v223
  %523 = vmatmul.mubr.bf16.gmra.mxu0 %v222
  %v524 = vpop.f32.mrf.mxu0
  %v525 = vadd.f32 0.0, %v524
  %v526 = vpop.f32.mrf.mxu0
  %v527 = vpop.f32.mrf.mxu0
  %v528 = vadd.f32 0.0, %v527
  %v529 = vpop.f32.mrf.mxu0
  %530 = vmatprep.mubr.bf16.mxu0 %v227
  %531 = vmatmul.mubr.bf16.gmra.mxu0 %v226
  %v532 = vpop.f32.mrf.mxu0
  %v533 = vadd.f32 0.0, %v532
  %v534 = vpop.f32.mrf.mxu0
  %v535 = vpop.f32.mrf.mxu0
  %v536 = vadd.f32 0.0, %v535
  %v537 = vpop.f32.mrf.mxu0
  %538 = vmatprep.mubr.bf16.mxu0 %v231
  %539 = vmatmul.mubr.bf16.gmra.mxu0 %v230
  %v540 = vpop.f32.mrf.mxu0
  %v541 = vadd.f32 0.0, %v540
  %v542 = vpop.f32.mrf.mxu0
  %v543 = vpop.f32.mrf.mxu0
  %v544 = vadd.f32 0.0, %v543
  %v545 = vpop.f32.mrf.mxu0
  %546 = vmatprep.mubr.bf16.mxu0 %v235
  %547 = vmatmul.mubr.bf16.gmra.mxu0 %v234
  %v548 = vpop.f32.mrf.mxu0
  %v549 = vadd.f32 0.0, %v548
  %v550 = vpop.f32.mrf.mxu0
  %v551 = vpop.f32.mrf.mxu0
  %v552 = vadd.f32 0.0, %v551
  %v553 = vpop.f32.mrf.mxu0
  %554 = vmatprep.mubr.bf16.mxu0 %v239
  %555 = vmatmul.mubr.bf16.gmra.mxu0 %v238
  %v556 = vpop.f32.mrf.mxu0
  %v557 = vadd.f32 0.0, %v556
  %v558 = vpop.f32.mrf.mxu0
  %v559 = vpop.f32.mrf.mxu0
  %v560 = vadd.f32 0.0, %v559
  %v561 = vpop.f32.mrf.mxu0
  %562 = vdwg.mxu0
  %563 = vmatprep.subr.bf16.mxu0 0
  %564 = vmatpush1.bf16.msra.mxu0 %v425
  %565 = vmatprep.subr.bf16.mxu0 0
  %566 = vmatpush1.bf16.msra.mxu0 %v424
  %567 = vmatprep.subr.bf16.mxu0 0
  %568 = vmatpush1.bf16.msra.mxu0 %v423
  %569 = vmatprep.subr.bf16.mxu0 0
  %570 = vmatpush1.bf16.msra.mxu0 %v422
  %571 = vmatprep.subr.bf16.mxu0 0
  %572 = vmatpush1.bf16.msra.mxu0 %v421
  %573 = vmatprep.subr.bf16.mxu0 0
  %574 = vmatpush1.bf16.msra.mxu0 %v420
  %575 = vmatprep.subr.bf16.mxu0 0
  %576 = vmatpush1.bf16.msra.mxu0 %v419
  %577 = vmatprep.subr.bf16.mxu0 0
  %578 = vmatpush1.bf16.msra.mxu0 %v418
  %579 = vmatprep.subr.bf16.mxu0 0
  %580 = vmatpush2.bf16.msra.mxu0 %v433
  %581 = vmatprep.subr.bf16.mxu0 0
  %582 = vmatpush2.bf16.msra.mxu0 %v432
  %583 = vmatprep.subr.bf16.mxu0 0
  %584 = vmatpush2.bf16.msra.mxu0 %v431
  %585 = vmatprep.subr.bf16.mxu0 0
  %586 = vmatpush2.bf16.msra.mxu0 %v430
  %587 = vmatprep.subr.bf16.mxu0 0
  %588 = vmatpush2.bf16.msra.mxu0 %v429
  %589 = vmatprep.subr.bf16.mxu0 0
  %590 = vmatpush2.bf16.msra.mxu0 %v428
  %591 = vmatprep.subr.bf16.mxu0 0
  %592 = vmatpush2.bf16.msra.mxu0 %v427
  %593 = vmatprep.subr.bf16.mxu0 0
  %594 = vmatpush2.bf16.msra.mxu0 %v426
  %595 = vmatprep.mubr.bf16.mxu0 %v213
  %596 = vmatmul.mubr.bf16.gmra.mxu0 %v212
  %v597 = vpop.f32.mrf.mxu0
  %v598 = vadd.f32 %v501, %v597
  %v599 = vpop.f32.mrf.mxu0
  %v600 = vpop.f32.mrf.mxu0
  %v601 = vadd.f32 %v504, %v600
  %v602 = vpop.f32.mrf.mxu0
  %603 = vmatprep.mubr.bf16.mxu0 %v217
  %604 = vmatmul.mubr.bf16.gmra.mxu0 %v216
  %v605 = vpop.f32.mrf.mxu0
  %v606 = vadd.f32 %v509, %v605
  %v607 = vpop.f32.mrf.mxu0
  %v608 = vpop.f32.mrf.mxu0
  %v609 = vadd.f32 %v512, %v608
  %v610 = vpop.f32.mrf.mxu0
  %611 = vmatprep.mubr.bf16.mxu0 %v221
  %612 = vmatmul.mubr.bf16.gmra.mxu0 %v220
  %v613 = vpop.f32.mrf.mxu0
  %v614 = vadd.f32 %v517, %v613
  %v615 = vpop.f32.mrf.mxu0
  %v616 = vpop.f32.mrf.mxu0
  %v617 = vadd.f32 %v520, %v616
  %v618 = vpop.f32.mrf.mxu0
  %619 = vmatprep.mubr.bf16.mxu0 %v225
  %620 = vmatmul.mubr.bf16.gmra.mxu0 %v224
  %v621 = vpop.f32.mrf.mxu0
  %v622 = vadd.f32 %v525, %v621
  %v623 = vpop.f32.mrf.mxu0
  %v624 = vpop.f32.mrf.mxu0
  %v625 = vadd.f32 %v528, %v624
  %v626 = vpop.f32.mrf.mxu0
  %627 = vmatprep.mubr.bf16.mxu0 %v229
  %628 = vmatmul.mubr.bf16.gmra.mxu0 %v228
  %v629 = vpop.f32.mrf.mxu0
  %v630 = vadd.f32 %v533, %v629
  %v631 = vpop.f32.mrf.mxu0
  %v632 = vpop.f32.mrf.mxu0
  %v633 = vadd.f32 %v536, %v632
  %v634 = vpop.f32.mrf.mxu0
  %635 = vmatprep.mubr.bf16.mxu0 %v233
  %636 = vmatmul.mubr.bf16.gmra.mxu0 %v232
  %v637 = vpop.f32.mrf.mxu0
  %v638 = vadd.f32 %v541, %v637
  %v639 = vpop.f32.mrf.mxu0
  %v640 = vpop.f32.mrf.mxu0
  %v641 = vadd.f32 %v544, %v640
  %v642 = vpop.f32.mrf.mxu0
  %643 = vmatprep.mubr.bf16.mxu0 %v237
  %644 = vmatmul.mubr.bf16.gmra.mxu0 %v236
  %v645 = vpop.f32.mrf.mxu0
  %v646 = vadd.f32 %v549, %v645
  %v647 = vpop.f32.mrf.mxu0
  %v648 = vpop.f32.mrf.mxu0
  %v649 = vadd.f32 %v552, %v648
  %v650 = vpop.f32.mrf.mxu0
  %651 = vmatprep.mubr.bf16.mxu0 %v241
  %652 = vmatmul.mubr.bf16.gmra.mxu0 %v240
  %v653 = vpop.f32.mrf.mxu0
  %v654 = vadd.f32 %v557, %v653
  %v655 = vpop.f32.mrf.mxu0
  %v656 = vpop.f32.mrf.mxu0
  %v657 = vadd.f32 %v560, %v656
  %v658 = vpop.f32.mrf.mxu0
  %659 = vdwg.mxu0
  %v660 = vadd.f32 %v598, %v601
  %v661 = vadd.f32 %v660, %v606
  %v662 = vadd.f32 %v661, %v609
  %v663 = vadd.f32 %v662, %v614
  %v664 = vadd.f32 %v663, %v617
  %v665 = vadd.f32 %v664, %v622
  %v666 = vadd.f32 %v665, %v625
  %v667 = vadd.f32 %v666, %v630
  %v668 = vadd.f32 %v667, %v633
  %v669 = vadd.f32 %v668, %v638
  %v670 = vadd.f32 %v669, %v641
  %v671 = vadd.f32 %v670, %v646
  %v672 = vadd.f32 %v671, %v649
  %v673 = vadd.f32 %v672, %v654
  %v674 = vadd.f32 %v673, %v657
  %v675 = vrot.slane %v674, 4
  %v676 = vadd.f32 %v674, %v675
  %v677 = vrot.slane %v676, 2
  %v678 = vadd.f32 %v676, %v677
  %v679 = vrot.slane %v678, 1
  %v680 = vadd.f32 %v678, %v679
  %v681 = vmul.f32 %v598, %v598
  %v682 = vmul.f32 %v601, %v601
  %v683 = vmul.f32 %v606, %v606
  %v684 = vmul.f32 %v609, %v609
  %v685 = vmul.f32 %v614, %v614
  %v686 = vmul.f32 %v617, %v617
  %v687 = vmul.f32 %v622, %v622
  %v688 = vmul.f32 %v625, %v625
  %v689 = vmul.f32 %v630, %v630
  %v690 = vmul.f32 %v633, %v633
  %v691 = vmul.f32 %v638, %v638
  %v692 = vmul.f32 %v641, %v641
  %v693 = vmul.f32 %v646, %v646
  %v694 = vmul.f32 %v649, %v649
  %v695 = vmul.f32 %v654, %v654
  %v696 = vmul.f32 %v657, %v657
  %v697 = vadd.f32 %v681, %v682
  %v698 = vadd.f32 %v697, %v683
  %v699 = vadd.f32 %v698, %v684
  %v700 = vadd.f32 %v699, %v685
  %v701 = vadd.f32 %v700, %v686
  %v702 = vadd.f32 %v701, %v687
  %v703 = vadd.f32 %v702, %v688
  %v704 = vadd.f32 %v703, %v689
  %v705 = vadd.f32 %v704, %v690
  %v706 = vadd.f32 %v705, %v691
  %v707 = vadd.f32 %v706, %v692
  %v708 = vadd.f32 %v707, %v693
  %v709 = vadd.f32 %v708, %v694
  %v710 = vadd.f32 %v709, %v695
  %v711 = vadd.f32 %v710, %v696
  %v712 = vrot.slane %v711, 4
  %v713 = vadd.f32 %v711, %v712
  %v714 = vrot.slane %v713, 2
  %v715 = vadd.f32 %v713, %v714
  %v716 = vrot.slane %v715, 1
  %v717 = vadd.f32 %v715, %v716
  %v718 = vmul.f32 %v680, 0.0078125
  %v719 = vmul.f32 %v717, 0.0078125
  %v720 = vmul.f32 %v718, %v718
  %v721 = vsub.f32 %v719, %v720
  %v722 = vsub.f32 %v598, %v718
  %v723 = vsub.f32 %v601, %v718
  %v724 = vsub.f32 %v606, %v718
  %v725 = vsub.f32 %v609, %v718
  %v726 = vsub.f32 %v614, %v718
  %v727 = vsub.f32 %v617, %v718
  %v728 = vsub.f32 %v622, %v718
  %v729 = vsub.f32 %v625, %v718
  %v730 = vsub.f32 %v630, %v718
  %v731 = vsub.f32 %v633, %v718
  %v732 = vsub.f32 %v638, %v718
  %v733 = vsub.f32 %v641, %v718
  %v734 = vsub.f32 %v646, %v718
  %v735 = vsub.f32 %v649, %v718
  %v736 = vsub.f32 %v654, %v718
  %v737 = vsub.f32 %v657, %v718
  %v738 = vadd.f32 %v721, 1e-05
  %v739 = vrsqrt.pop %v738
  %v740 = vmul.f32 %v722, %v739
  %v741 = vmul.f32 %v723, %v739
  %v742 = vmul.f32 %v724, %v739
  %v743 = vmul.f32 %v725, %v739
  %v744 = vmul.f32 %v726, %v739
  %v745 = vmul.f32 %v727, %v739
  %v746 = vmul.f32 %v728, %v739
  %v747 = vmul.f32 %v729, %v739
  %v748 = vmul.f32 %v730, %v739
  %v749 = vmul.f32 %v731, %v739
  %v750 = vmul.f32 %v732, %v739
  %v751 = vmul.f32 %v733, %v739
  %v752 = vmul.f32 %v734, %v739
  %v753 = vmul.f32 %v735, %v739
  %v754 = vmul.f32 %v736, %v739
  %v755 = vmul.f32 %v737, %v739
  %v756 = vmax.f32 %v740, 0.0
  %v757 = vmax.f32 %v741, 0.0
  %v758 = vmax.f32 %v742, 0.0
  %v759 = vmax.f32 %v743, 0.0
  %v760 = vmax.f32 %v744, 0.0
  %v761 = vmax.f32 %v745, 0.0
  %v762 = vmax.f32 %v746, 0.0
  %v763 = vmax.f32 %v747, 0.0
  %v764 = vmax.f32 %v748, 0.0
  %v765 = vmax.f32 %v749, 0.0
  %v766 = vmax.f32 %v750, 0.0
  %v767 = vmax.f32 %v751, 0.0
  %v768 = vmax.f32 %v752, 0.0
  %v769 = vmax.f32 %v753, 0.0
  %v770 = vmax.f32 %v754, 0.0
  %v771 = vmax.f32 %v755, 0.0
  %v772 = vpack.c.bf16 %v757, %v756
  %v773 = vpack.c.bf16 %v759, %v758
  %v774 = vpack.c.bf16 %v761, %v760
  %v775 = vpack.c.bf16 %v763, %v762
  %v776 = vpack.c.bf16 %v765, %v764
  %v777 = vpack.c.bf16 %v767, %v766
  %v778 = vpack.c.bf16 %v769, %v768
  %v779 = vpack.c.bf16 %v771, %v770
  %v780 = vld [vmem:[%s3] sm:$0xf]
  %v781 = vld [vmem:[%s3 + $0x4] sm:$0xf]
  %v782 = vld [vmem:[%s3 + $0x8] sm:$0xf]
  %v783 = vld [vmem:[%s3 + $0xc] sm:$0xf]
  %v784 = vld [vmem:[%s3 + $0x10] sm:$0xf]
  %v785 = vld [vmem:[%s3 + $0x14] sm:$0xf]
  %v786 = vld [vmem:[%s3 + $0x18] sm:$0xf]
  %v787 = vld [vmem:[%s3 + $0x1c] sm:$0xf]
  %v788 = vld [vmem:[%s3 + $0x20] sm:$0xf]
  %v789 = vld [vmem:[%s3 + $0x24] sm:$0xf]
  %v790 = vld [vmem:[%s3 + $0x28] sm:$0xf]
  %v791 = vld [vmem:[%s3 + $0x2c] sm:$0xf]
  %v792 = vld [vmem:[%s3 + $0x30] sm:$0xf]
  %v793 = vld [vmem:[%s3 + $0x34] sm:$0xf]
  %v794 = vld [vmem:[%s3 + $0x38] sm:$0xf]
  %v795 = vld [vmem:[%s3 + $0x3c] sm:$0xf]
  %v812 = vunpack.c.l.b16 %v780
  %v813 = vunpack.c.l.b16 %v781
  %v814 = vunpack.c.l.b16 %v782
  %v815 = vunpack.c.l.b16 %v783
  %v816 = vunpack.c.l.b16 %v784
  %v817 = vunpack.c.l.b16 %v785
  %v818 = vunpack.c.l.b16 %v786
  %v819 = vunpack.c.l.b16 %v787
  %v820 = vunpack.c.l.b16 %v788
  %v821 = vunpack.c.l.b16 %v789
  %v822 = vunpack.c.l.b16 %v790
  %v823 = vunpack.c.l.b16 %v791
  %v824 = vunpack.c.l.b16 %v792
  %v825 = vunpack.c.l.b16 %v793
  %v826 = vunpack.c.l.b16 %v794
  %v827 = vunpack.c.l.b16 %v795
  %v828 = vpack.c.b16 %v813, %v812
  %v829 = vpack.c.b16 %v815, %v814
  %v830 = vpack.c.b16 %v817, %v816
  %v831 = vpack.c.b16 %v819, %v818
  %v832 = vpack.c.b16 %v821, %v820
  %v833 = vpack.c.b16 %v823, %v822
  %v834 = vpack.c.b16 %v825, %v824
  %v835 = vpack.c.b16 %v827, %v826
  %844 = vmatprep.subr.bf16.mxu0 0
  %845 = vmatpush1.bf16.msra.mxu0 %v779
  %846 = vmatprep.subr.bf16.mxu0 0
  %847 = vmatpush1.bf16.msra.mxu0 %v778
  %848 = vmatprep.subr.bf16.mxu0 0
  %849 = vmatpush1.bf16.msra.mxu0 %v777
  %850 = vmatprep.subr.bf16.mxu0 0
  %851 = vmatpush1.bf16.msra.mxu0 %v776
  %852 = vmatprep.subr.bf16.mxu0 0
  %853 = vmatpush1.bf16.msra.mxu0 %v775
  %854 = vmatprep.subr.bf16.mxu0 0
  %855 = vmatpush1.bf16.msra.mxu0 %v774
  %856 = vmatprep.subr.bf16.mxu0 0
  %857 = vmatpush1.bf16.msra.mxu0 %v773
  %858 = vmatprep.subr.bf16.mxu0 0
  %859 = vmatpush1.bf16.msra.mxu0 %v772
  %860 = vmatprep.subr.bf16.mxu0 0
  %861 = vmatpush2.bf16.msra.mxu0 0
  %862 = vmatprep.subr.bf16.mxu0 0
  %863 = vmatpush2.bf16.msra.mxu0 0
  %864 = vmatprep.subr.bf16.mxu0 0
  %865 = vmatpush2.bf16.msra.mxu0 0
  %866 = vmatprep.subr.bf16.mxu0 0
  %867 = vmatpush2.bf16.msra.mxu0 0
  %868 = vmatprep.subr.bf16.mxu0 0
  %869 = vmatpush2.bf16.msra.mxu0 0
  %870 = vmatprep.subr.bf16.mxu0 0
  %871 = vmatpush2.bf16.msra.mxu0 0
  %872 = vmatprep.subr.bf16.mxu0 0
  %873 = vmatpush2.bf16.msra.mxu0 0
  %874 = vmatprep.subr.bf16.mxu0 0
  %875 = vmatpush2.bf16.msra.mxu0 0
  %876 = vmatprep.mubr.bf16.mxu0 0
  %877 = vmatmul.mubr.bf16.gmra.mxu0 %v828
  %v878 = vpop.f32.mrf.mxu0
  %v879 = vadd.f32 0.0, %v878
  %v880 = vpop.f32.mrf.mxu0
  %v881 = vpop.f32.mrf.mxu0
  %v882 = vadd.f32 0.0, %v881
  %v883 = vpop.f32.mrf.mxu0
  %884 = vmatprep.mubr.bf16.mxu0 0
  %885 = vmatmul.mubr.bf16.gmra.mxu0 %v829
  %v886 = vpop.f32.mrf.mxu0
  %v887 = vadd.f32 0.0, %v886
  %v888 = vpop.f32.mrf.mxu0
  %v889 = vpop.f32.mrf.mxu0
  %v890 = vadd.f32 0.0, %v889
  %v891 = vpop.f32.mrf.mxu0
  %892 = vmatprep.mubr.bf16.mxu0 0
  %893 = vmatmul.mubr.bf16.gmra.mxu0 %v830
  %v894 = vpop.f32.mrf.mxu0
  %v895 = vadd.f32 0.0, %v894
  %v896 = vpop.f32.mrf.mxu0
  %v897 = vpop.f32.mrf.mxu0
  %v898 = vadd.f32 0.0, %v897
  %v899 = vpop.f32.mrf.mxu0
  %900 = vmatprep.mubr.bf16.mxu0 0
  %901 = vmatmul.mubr.bf16.gmra.mxu0 %v831
  %v902 = vpop.f32.mrf.mxu0
  %v903 = vadd.f32 0.0, %v902
  %v904 = vpop.f32.mrf.mxu0
  %v905 = vpop.f32.mrf.mxu0
  %v906 = vadd.f32 0.0, %v905
  %v907 = vpop.f32.mrf.mxu0
  %908 = vmatprep.mubr.bf16.mxu0 0
  %909 = vmatmul.mubr.bf16.gmra.mxu0 %v832
  %v910 = vpop.f32.mrf.mxu0
  %v911 = vadd.f32 0.0, %v910
  %v912 = vpop.f32.mrf.mxu0
  %v913 = vpop.f32.mrf.mxu0
  %v914 = vadd.f32 0.0, %v913
  %v915 = vpop.f32.mrf.mxu0
  %916 = vmatprep.mubr.bf16.mxu0 0
  %917 = vmatmul.mubr.bf16.gmra.mxu0 %v833
  %v918 = vpop.f32.mrf.mxu0
  %v919 = vadd.f32 0.0, %v918
  %v920 = vpop.f32.mrf.mxu0
  %v921 = vpop.f32.mrf.mxu0
  %v922 = vadd.f32 0.0, %v921
  %v923 = vpop.f32.mrf.mxu0
  %924 = vmatprep.mubr.bf16.mxu0 0
  %925 = vmatmul.mubr.bf16.gmra.mxu0 %v834
  %v926 = vpop.f32.mrf.mxu0
  %v927 = vadd.f32 0.0, %v926
  %v928 = vpop.f32.mrf.mxu0
  %v929 = vpop.f32.mrf.mxu0
  %v930 = vadd.f32 0.0, %v929
  %v931 = vpop.f32.mrf.mxu0
  %932 = vmatprep.mubr.bf16.mxu0 0
  %933 = vmatmul.mubr.bf16.gmra.mxu0 %v835
  %v934 = vpop.f32.mrf.mxu0
  %v935 = vadd.f32 0.0, %v934
  %v936 = vpop.f32.mrf.mxu0
  %v937 = vpop.f32.mrf.mxu0
  %v938 = vadd.f32 0.0, %v937
  %v939 = vpop.f32.mrf.mxu0
  %940 = vdwg.mxu0
  %v941 = vpack.c.bf16 %v882, %v879
  %v942 = vpack.c.bf16 %v890, %v887
  %v943 = vpack.c.bf16 %v898, %v895
  %v944 = vpack.c.bf16 %v906, %v903
  %v945 = vpack.c.bf16 %v914, %v911
  %v946 = vpack.c.bf16 %v922, %v919
  %v947 = vpack.c.bf16 %v930, %v927
  %v948 = vpack.c.bf16 %v938, %v935
  %v949 = vld [vmem:[%s2] sm:$0xf]
  %v950 = vld [vmem:[%s2 + $0x4] sm:$0xf]
  %v951 = vld [vmem:[%s2 + $0x8] sm:$0xf]
  %v952 = vld [vmem:[%s2 + $0xc] sm:$0xf]
  %v953 = vld [vmem:[%s2 + $0x10] sm:$0xf]
  %v954 = vld [vmem:[%s2 + $0x14] sm:$0xf]
  %v955 = vld [vmem:[%s2 + $0x18] sm:$0xf]
  %v956 = vld [vmem:[%s2 + $0x1c] sm:$0xf]
  %v957 = vld [vmem:[%s2 + $0x20] sm:$0xf]
  %v958 = vld [vmem:[%s2 + $0x24] sm:$0xf]
  %v959 = vld [vmem:[%s2 + $0x28] sm:$0xf]
  %v960 = vld [vmem:[%s2 + $0x2c] sm:$0xf]
  %v961 = vld [vmem:[%s2 + $0x30] sm:$0xf]
  %v962 = vld [vmem:[%s2 + $0x34] sm:$0xf]
  %v963 = vld [vmem:[%s2 + $0x38] sm:$0xf]
  %v964 = vld [vmem:[%s2 + $0x3c] sm:$0xf]
  %s965 = scalar_lea.vmem %s3, 64
  %v966 = vld [vmem:[%s965] sm:$0xf]
  %v967 = vld [vmem:[%s965 + $0x4] sm:$0xf]
  %v968 = vld [vmem:[%s965 + $0x8] sm:$0xf]
  %v969 = vld [vmem:[%s965 + $0xc] sm:$0xf]
  %v970 = vld [vmem:[%s965 + $0x10] sm:$0xf]
  %v971 = vld [vmem:[%s965 + $0x14] sm:$0xf]
  %v972 = vld [vmem:[%s965 + $0x18] sm:$0xf]
  %v973 = vld [vmem:[%s965 + $0x1c] sm:$0xf]
  %v974 = vld [vmem:[%s965 + $0x20] sm:$0xf]
  %v975 = vld [vmem:[%s965 + $0x24] sm:$0xf]
  %v976 = vld [vmem:[%s965 + $0x28] sm:$0xf]
  %v977 = vld [vmem:[%s965 + $0x2c] sm:$0xf]
  %v978 = vld [vmem:[%s965 + $0x30] sm:$0xf]
  %v979 = vld [vmem:[%s965 + $0x34] sm:$0xf]
  %v980 = vld [vmem:[%s965 + $0x38] sm:$0xf]
  %v981 = vld [vmem:[%s965 + $0x3c] sm:$0xf]
  %v998 = vunpack.c.l.b16 %v966
  %v999 = vunpack.c.l.b16 %v967
  %v1000 = vunpack.c.l.b16 %v968
  %v1001 = vunpack.c.l.b16 %v969
  %v1002 = vunpack.c.l.b16 %v970
  %v1003 = vunpack.c.l.b16 %v971
  %v1004 = vunpack.c.l.b16 %v972
  %v1005 = vunpack.c.l.b16 %v973
  %v1006 = vunpack.c.l.b16 %v974
  %v1007 = vunpack.c.l.b16 %v975
  %v1008 = vunpack.c.l.b16 %v976
  %v1009 = vunpack.c.l.b16 %v977
  %v1010 = vunpack.c.l.b16 %v978
  %v1011 = vunpack.c.l.b16 %v979
  %v1012 = vunpack.c.l.b16 %v980
  %v1013 = vunpack.c.l.b16 %v981
  %v1014 = vpack.c.b16 %v999, %v998
  %v1015 = vpack.c.b16 %v1001, %v1000
  %v1016 = vpack.c.b16 %v1003, %v1002
  %v1017 = vpack.c.b16 %v1005, %v1004
  %v1018 = vpack.c.b16 %v1007, %v1006
  %v1019 = vpack.c.b16 %v1009, %v1008
  %v1020 = vpack.c.b16 %v1011, %v1010
  %v1021 = vpack.c.b16 %v1013, %v1012
  %1030 = vmatprep.subr.bf16.mxu0 0
  %1031 = vmatpush1.bf16.msra.mxu0 %v779
  %1032 = vmatprep.subr.bf16.mxu0 0
  %1033 = vmatpush1.bf16.msra.mxu0 %v778
  %1034 = vmatprep.subr.bf16.mxu0 0
  %1035 = vmatpush1.bf16.msra.mxu0 %v777
  %1036 = vmatprep.subr.bf16.mxu0 0
  %1037 = vmatpush1.bf16.msra.mxu0 %v776
  %1038 = vmatprep.subr.bf16.mxu0 0
  %1039 = vmatpush1.bf16.msra.mxu0 %v775
  %1040 = vmatprep.subr.bf16.mxu0 0
  %1041 = vmatpush1.bf16.msra.mxu0 %v774
  %1042 = vmatprep.subr.bf16.mxu0 0
  %1043 = vmatpush1.bf16.msra.mxu0 %v773
  %1044 = vmatprep.subr.bf16.mxu0 0
  %1045 = vmatpush1.bf16.msra.mxu0 %v772
  %1046 = vmatprep.subr.bf16.mxu0 0
  %1047 = vmatpush2.bf16.msra.mxu0 0
  %1048 = vmatprep.subr.bf16.mxu0 0
  %1049 = vmatpush2.bf16.msra.mxu0 0
  %1050 = vmatprep.subr.bf16.mxu0 0
  %1051 = vmatpush2.bf16.msra.mxu0 0
  %1052 = vmatprep.subr.bf16.mxu0 0
  %1053 = vmatpush2.bf16.msra.mxu0 0
  %1054 = vmatprep.subr.bf16.mxu0 0
  %1055 = vmatpush2.bf16.msra.mxu0 0
  %1056 = vmatprep.subr.bf16.mxu0 0
  %1057 = vmatpush2.bf16.msra.mxu0 0
  %1058 = vmatprep.subr.bf16.mxu0 0
  %1059 = vmatpush2.bf16.msra.mxu0 0
  %1060 = vmatprep.subr.bf16.mxu0 0
  %1061 = vmatpush2.bf16.msra.mxu0 0
  %1062 = vmatprep.mubr.bf16.mxu0 0
  %1063 = vmatmul.mubr.bf16.gmra.mxu0 %v1014
  %v1064 = vpop.f32.mrf.mxu0
  %v1065 = vadd.f32 0.0, %v1064
  %v1066 = vpop.f32.mrf.mxu0
  %v1067 = vpop.f32.mrf.mxu0
  %v1068 = vadd.f32 0.0, %v1067
  %v1069 = vpop.f32.mrf.mxu0
  %1070 = vmatprep.mubr.bf16.mxu0 0
  %1071 = vmatmul.mubr.bf16.gmra.mxu0 %v1015
  %v1072 = vpop.f32.mrf.mxu0
  %v1073 = vadd.f32 0.0, %v1072
  %v1074 = vpop.f32.mrf.mxu0
  %v1075 = vpop.f32.mrf.mxu0
  %v1076 = vadd.f32 0.0, %v1075
  %v1077 = vpop.f32.mrf.mxu0
  %1078 = vmatprep.mubr.bf16.mxu0 0
  %1079 = vmatmul.mubr.bf16.gmra.mxu0 %v1016
  %v1080 = vpop.f32.mrf.mxu0
  %v1081 = vadd.f32 0.0, %v1080
  %v1082 = vpop.f32.mrf.mxu0
  %v1083 = vpop.f32.mrf.mxu0
  %v1084 = vadd.f32 0.0, %v1083
  %v1085 = vpop.f32.mrf.mxu0
  %1086 = vmatprep.mubr.bf16.mxu0 0
  %1087 = vmatmul.mubr.bf16.gmra.mxu0 %v1017
  %v1088 = vpop.f32.mrf.mxu0
  %v1089 = vadd.f32 0.0, %v1088
  %v1090 = vpop.f32.mrf.mxu0
  %v1091 = vpop.f32.mrf.mxu0
  %v1092 = vadd.f32 0.0, %v1091
  %v1093 = vpop.f32.mrf.mxu0
  %1094 = vmatprep.mubr.bf16.mxu0 0
  %1095 = vmatmul.mubr.bf16.gmra.mxu0 %v1018
  %v1096 = vpop.f32.mrf.mxu0
  %v1097 = vadd.f32 0.0, %v1096
  %v1098 = vpop.f32.mrf.mxu0
  %v1099 = vpop.f32.mrf.mxu0
  %v1100 = vadd.f32 0.0, %v1099
  %v1101 = vpop.f32.mrf.mxu0
  %1102 = vmatprep.mubr.bf16.mxu0 0
  %1103 = vmatmul.mubr.bf16.gmra.mxu0 %v1019
  %v1104 = vpop.f32.mrf.mxu0
  %v1105 = vadd.f32 0.0, %v1104
  %v1106 = vpop.f32.mrf.mxu0
  %v1107 = vpop.f32.mrf.mxu0
  %v1108 = vadd.f32 0.0, %v1107
  %v1109 = vpop.f32.mrf.mxu0
  %1110 = vmatprep.mubr.bf16.mxu0 0
  %1111 = vmatmul.mubr.bf16.gmra.mxu0 %v1020
  %v1112 = vpop.f32.mrf.mxu0
  %v1113 = vadd.f32 0.0, %v1112
  %v1114 = vpop.f32.mrf.mxu0
  %v1115 = vpop.f32.mrf.mxu0
  %v1116 = vadd.f32 0.0, %v1115
  %v1117 = vpop.f32.mrf.mxu0
  %1118 = vmatprep.mubr.bf16.mxu0 0
  %1119 = vmatmul.mubr.bf16.gmra.mxu0 %v1021
  %v1120 = vpop.f32.mrf.mxu0
  %v1121 = vadd.f32 0.0, %v1120
  %v1122 = vpop.f32.mrf.mxu0
  %v1123 = vpop.f32.mrf.mxu0
  %v1124 = vadd.f32 0.0, %v1123
  %v1125 = vpop.f32.mrf.mxu0
  %1126 = vdwg.mxu0
  %v1127 = vpack.c.bf16 %v1068, %v1065
  %v1128 = vpack.c.bf16 %v1076, %v1073
  %v1129 = vpack.c.bf16 %v1084, %v1081
  %v1130 = vpack.c.bf16 %v1092, %v1089
  %v1131 = vpack.c.bf16 %v1100, %v1097
  %v1132 = vpack.c.bf16 %v1108, %v1105
  %v1133 = vpack.c.bf16 %v1116, %v1113
  %v1134 = vpack.c.bf16 %v1124, %v1121
  %s1135 = scalar_lea.vmem %s2, 64
  %v1136 = vld [vmem:[%s1135] sm:$0xf]
  %v1137 = vld [vmem:[%s1135 + $0x4] sm:$0xf]
  %v1138 = vld [vmem:[%s1135 + $0x8] sm:$0xf]
  %v1139 = vld [vmem:[%s1135 + $0xc] sm:$0xf]
  %v1140 = vld [vmem:[%s1135 + $0x10] sm:$0xf]
  %v1141 = vld [vmem:[%s1135 + $0x14] sm:$0xf]
  %v1142 = vld [vmem:[%s1135 + $0x18] sm:$0xf]
  %v1143 = vld [vmem:[%s1135 + $0x1c] sm:$0xf]
  %v1144 = vld [vmem:[%s1135 + $0x20] sm:$0xf]
  %v1145 = vld [vmem:[%s1135 + $0x24] sm:$0xf]
  %v1146 = vld [vmem:[%s1135 + $0x28] sm:$0xf]
  %v1147 = vld [vmem:[%s1135 + $0x2c] sm:$0xf]
  %v1148 = vld [vmem:[%s1135 + $0x30] sm:$0xf]
  %v1149 = vld [vmem:[%s1135 + $0x34] sm:$0xf]
  %v1150 = vld [vmem:[%s1135 + $0x38] sm:$0xf]
  %v1151 = vld [vmem:[%s1135 + $0x3c] sm:$0xf]
  %v1168 = vunpack.c.l.b16 %v1136
  %v1169 = vunpack.c.l.b16 %v1137
  %v1170 = vunpack.c.l.b16 %v1138
  %v1171 = vunpack.c.l.b16 %v1139
  %v1172 = vunpack.c.l.b16 %v1140
  %v1173 = vunpack.c.l.b16 %v1141
  %v1174 = vunpack.c.l.b16 %v1142
  %v1175 = vunpack.c.l.b16 %v1143
  %v1176 = vunpack.c.l.b16 %v1144
  %v1177 = vunpack.c.l.b16 %v1145
  %v1178 = vunpack.c.l.b16 %v1146
  %v1179 = vunpack.c.l.b16 %v1147
  %v1180 = vunpack.c.l.b16 %v1148
  %v1181 = vunpack.c.l.b16 %v1149
  %v1182 = vunpack.c.l.b16 %v1150
  %v1183 = vunpack.c.l.b16 %v1151
  %v1184 = vpack.c.b16 %v1169, %v1168
  %v1185 = vpack.c.b16 %v1171, %v1170
  %v1186 = vpack.c.b16 %v1173, %v1172
  %v1187 = vpack.c.b16 %v1175, %v1174
  %v1188 = vpack.c.b16 %v1177, %v1176
  %v1189 = vpack.c.b16 %v1179, %v1178
  %v1190 = vpack.c.b16 %v1181, %v1180
  %v1191 = vpack.c.b16 %v1183, %v1182
  %1200 = vmatprep.subr.bf16.mxu0 0
  %1201 = vmatpush1.bf16.msra.mxu0 %v1191
  %1202 = vmatprep.subr.bf16.mxu0 0
  %1203 = vmatpush1.bf16.msra.mxu0 %v1190
  %1204 = vmatprep.subr.bf16.mxu0 0
  %1205 = vmatpush1.bf16.msra.mxu0 %v1189
  %1206 = vmatprep.subr.bf16.mxu0 0
  %1207 = vmatpush1.bf16.msra.mxu0 %v1188
  %1208 = vmatprep.subr.bf16.mxu0 0
  %1209 = vmatpush1.bf16.msra.mxu0 %v1187
  %1210 = vmatprep.subr.bf16.mxu0 0
  %1211 = vmatpush1.bf16.msra.mxu0 %v1186
  %1212 = vmatprep.subr.bf16.mxu0 0
  %1213 = vmatpush1.bf16.msra.mxu0 %v1185
  %1214 = vmatprep.subr.bf16.mxu0 0
  %1215 = vmatpush1.bf16.msra.mxu0 %v1184
  %1216 = vmatprep.subr.bf16.mxu0 0
  %1217 = vmatpush2.bf16.msra.mxu0 0
  %1218 = vmatprep.subr.bf16.mxu0 0
  %1219 = vmatpush2.bf16.msra.mxu0 0
  %1220 = vmatprep.subr.bf16.mxu0 0
  %1221 = vmatpush2.bf16.msra.mxu0 0
  %1222 = vmatprep.subr.bf16.mxu0 0
  %1223 = vmatpush2.bf16.msra.mxu0 0
  %1224 = vmatprep.subr.bf16.mxu0 0
  %1225 = vmatpush2.bf16.msra.mxu0 0
  %1226 = vmatprep.subr.bf16.mxu0 0
  %1227 = vmatpush2.bf16.msra.mxu0 0
  %1228 = vmatprep.subr.bf16.mxu0 0
  %1229 = vmatpush2.bf16.msra.mxu0 0
  %1230 = vmatprep.subr.bf16.mxu0 0
  %1231 = vmatpush2.bf16.msra.mxu0 0
  %1232 = vmatprep.mubr.bf16.mxu0 0
  %1233 = vmatmul.mubr.bf16.gmra.mxu0 %v1127
  %v1234 = vpop.f32.mrf.mxu0
  %v1235 = vadd.f32 0.0, %v1234
  %v1236 = vpop.f32.mrf.mxu0
  %v1237 = vpop.f32.mrf.mxu0
  %v1238 = vadd.f32 0.0, %v1237
  %v1239 = vpop.f32.mrf.mxu0
  %1240 = vmatprep.mubr.bf16.mxu0 0
  %1241 = vmatmul.mubr.bf16.gmra.mxu0 %v1128
  %v1242 = vpop.f32.mrf.mxu0
  %v1243 = vadd.f32 0.0, %v1242
  %v1244 = vpop.f32.mrf.mxu0
  %v1245 = vpop.f32.mrf.mxu0
  %v1246 = vadd.f32 0.0, %v1245
  %v1247 = vpop.f32.mrf.mxu0
  %1248 = vmatprep.mubr.bf16.mxu0 0
  %1249 = vmatmul.mubr.bf16.gmra.mxu0 %v1129
  %v1250 = vpop.f32.mrf.mxu0
  %v1251 = vadd.f32 0.0, %v1250
  %v1252 = vpop.f32.mrf.mxu0
  %v1253 = vpop.f32.mrf.mxu0
  %v1254 = vadd.f32 0.0, %v1253
  %v1255 = vpop.f32.mrf.mxu0
  %1256 = vmatprep.mubr.bf16.mxu0 0
  %1257 = vmatmul.mubr.bf16.gmra.mxu0 %v1130
  %v1258 = vpop.f32.mrf.mxu0
  %v1259 = vadd.f32 0.0, %v1258
  %v1260 = vpop.f32.mrf.mxu0
  %v1261 = vpop.f32.mrf.mxu0
  %v1262 = vadd.f32 0.0, %v1261
  %v1263 = vpop.f32.mrf.mxu0
  %1264 = vmatprep.mubr.bf16.mxu0 0
  %1265 = vmatmul.mubr.bf16.gmra.mxu0 %v1131
  %v1266 = vpop.f32.mrf.mxu0
  %v1267 = vadd.f32 0.0, %v1266
  %v1268 = vpop.f32.mrf.mxu0
  %v1269 = vpop.f32.mrf.mxu0
  %v1270 = vadd.f32 0.0, %v1269
  %v1271 = vpop.f32.mrf.mxu0
  %1272 = vmatprep.mubr.bf16.mxu0 0
  %1273 = vmatmul.mubr.bf16.gmra.mxu0 %v1132
  %v1274 = vpop.f32.mrf.mxu0
  %v1275 = vadd.f32 0.0, %v1274
  %v1276 = vpop.f32.mrf.mxu0
  %v1277 = vpop.f32.mrf.mxu0
  %v1278 = vadd.f32 0.0, %v1277
  %v1279 = vpop.f32.mrf.mxu0
  %1280 = vmatprep.mubr.bf16.mxu0 0
  %1281 = vmatmul.mubr.bf16.gmra.mxu0 %v1133
  %v1282 = vpop.f32.mrf.mxu0
  %v1283 = vadd.f32 0.0, %v1282
  %v1284 = vpop.f32.mrf.mxu0
  %v1285 = vpop.f32.mrf.mxu0
  %v1286 = vadd.f32 0.0, %v1285
  %v1287 = vpop.f32.mrf.mxu0
  %1288 = vmatprep.mubr.bf16.mxu0 0
  %1289 = vmatmul.mubr.bf16.gmra.mxu0 %v1134
  %v1290 = vpop.f32.mrf.mxu0
  %v1291 = vadd.f32 0.0, %v1290
  %v1292 = vpop.f32.mrf.mxu0
  %v1293 = vpop.f32.mrf.mxu0
  %v1294 = vadd.f32 0.0, %v1293
  %v1295 = vpop.f32.mrf.mxu0
  %1296 = vdwg.mxu0
  %v1313 = vunpack.c.l.b16 %v949
  %v1314 = vunpack.c.l.b16 %v950
  %v1315 = vunpack.c.l.b16 %v951
  %v1316 = vunpack.c.l.b16 %v952
  %v1317 = vunpack.c.l.b16 %v953
  %v1318 = vunpack.c.l.b16 %v954
  %v1319 = vunpack.c.l.b16 %v955
  %v1320 = vunpack.c.l.b16 %v956
  %v1321 = vunpack.c.l.b16 %v957
  %v1322 = vunpack.c.l.b16 %v958
  %v1323 = vunpack.c.l.b16 %v959
  %v1324 = vunpack.c.l.b16 %v960
  %v1325 = vunpack.c.l.b16 %v961
  %v1326 = vunpack.c.l.b16 %v962
  %v1327 = vunpack.c.l.b16 %v963
  %v1328 = vunpack.c.l.b16 %v964
  %v1329 = vpack.c.b16 %v1314, %v1313
  %v1330 = vpack.c.b16 %v1316, %v1315
  %v1331 = vpack.c.b16 %v1318, %v1317
  %v1332 = vpack.c.b16 %v1320, %v1319
  %v1333 = vpack.c.b16 %v1322, %v1321
  %v1334 = vpack.c.b16 %v1324, %v1323
  %v1335 = vpack.c.b16 %v1326, %v1325
  %v1336 = vpack.c.b16 %v1328, %v1327
  %1345 = vmatprep.subr.bf16.mxu0 0
  %1346 = vmatpush1.bf16.msra.mxu0 %v1336
  %1347 = vmatprep.subr.bf16.mxu0 0
  %1348 = vmatpush1.bf16.msra.mxu0 %v1335
  %1349 = vmatprep.subr.bf16.mxu0 0
  %1350 = vmatpush1.bf16.msra.mxu0 %v1334
  %1351 = vmatprep.subr.bf16.mxu0 0
  %1352 = vmatpush1.bf16.msra.mxu0 %v1333
  %1353 = vmatprep.subr.bf16.mxu0 0
  %1354 = vmatpush1.bf16.msra.mxu0 %v1332
  %1355 = vmatprep.subr.bf16.mxu0 0
  %1356 = vmatpush1.bf16.msra.mxu0 %v1331
  %1357 = vmatprep.subr.bf16.mxu0 0
  %1358 = vmatpush1.bf16.msra.mxu0 %v1330
  %1359 = vmatprep.subr.bf16.mxu0 0
  %1360 = vmatpush1.bf16.msra.mxu0 %v1329
  %1361 = vmatprep.subr.bf16.mxu0 0
  %1362 = vmatpush2.bf16.msra.mxu0 0
  %1363 = vmatprep.subr.bf16.mxu0 0
  %1364 = vmatpush2.bf16.msra.mxu0 0
  %1365 = vmatprep.subr.bf16.mxu0 0
  %1366 = vmatpush2.bf16.msra.mxu0 0
  %1367 = vmatprep.subr.bf16.mxu0 0
  %1368 = vmatpush2.bf16.msra.mxu0 0
  %1369 = vmatprep.subr.bf16.mxu0 0
  %1370 = vmatpush2.bf16.msra.mxu0 0
  %1371 = vmatprep.subr.bf16.mxu0 0
  %1372 = vmatpush2.bf16.msra.mxu0 0
  %1373 = vmatprep.subr.bf16.mxu0 0
  %1374 = vmatpush2.bf16.msra.mxu0 0
  %1375 = vmatprep.subr.bf16.mxu0 0
  %1376 = vmatpush2.bf16.msra.mxu0 0
  %1377 = vmatprep.mubr.bf16.mxu0 0
  %1378 = vmatmul.mubr.bf16.gmra.mxu0 %v941
  %v1379 = vpop.f32.mrf.mxu0
  %v1380 = vadd.f32 %v1235, %v1379
  %v1381 = vpop.f32.mrf.mxu0
  %v1382 = vpop.f32.mrf.mxu0
  %v1383 = vadd.f32 %v1238, %v1382
  %v1384 = vpop.f32.mrf.mxu0
  %1385 = vmatprep.mubr.bf16.mxu0 0
  %1386 = vmatmul.mubr.bf16.gmra.mxu0 %v942
  %v1387 = vpop.f32.mrf.mxu0
  %v1388 = vadd.f32 %v1243, %v1387
  %v1389 = vpop.f32.mrf.mxu0
  %v1390 = vpop.f32.mrf.mxu0
  %v1391 = vadd.f32 %v1246, %v1390
  %v1392 = vpop.f32.mrf.mxu0
  %1393 = vmatprep.mubr.bf16.mxu0 0
  %1394 = vmatmul.mubr.bf16.gmra.mxu0 %v943
  %v1395 = vpop.f32.mrf.mxu0
  %v1396 = vadd.f32 %v1251, %v1395
  %v1397 = vpop.f32.mrf.mxu0
  %v1398 = vpop.f32.mrf.mxu0
  %v1399 = vadd.f32 %v1254, %v1398
  %v1400 = vpop.f32.mrf.mxu0
  %1401 = vmatprep.mubr.bf16.mxu0 0
  %1402 = vmatmul.mubr.bf16.gmra.mxu0 %v944
  %v1403 = vpop.f32.mrf.mxu0
  %v1404 = vadd.f32 %v1259, %v1403
  %v1405 = vpop.f32.mrf.mxu0
  %v1406 = vpop.f32.mrf.mxu0
  %v1407 = vadd.f32 %v1262, %v1406
  %v1408 = vpop.f32.mrf.mxu0
  %1409 = vmatprep.mubr.bf16.mxu0 0
  %1410 = vmatmul.mubr.bf16.gmra.mxu0 %v945
  %v1411 = vpop.f32.mrf.mxu0
  %v1412 = vadd.f32 %v1267, %v1411
  %v1413 = vpop.f32.mrf.mxu0
  %v1414 = vpop.f32.mrf.mxu0
  %v1415 = vadd.f32 %v1270, %v1414
  %v1416 = vpop.f32.mrf.mxu0
  %1417 = vmatprep.mubr.bf16.mxu0 0
  %1418 = vmatmul.mubr.bf16.gmra.mxu0 %v946
  %v1419 = vpop.f32.mrf.mxu0
  %v1420 = vadd.f32 %v1275, %v1419
  %v1421 = vpop.f32.mrf.mxu0
  %v1422 = vpop.f32.mrf.mxu0
  %v1423 = vadd.f32 %v1278, %v1422
  %v1424 = vpop.f32.mrf.mxu0
  %1425 = vmatprep.mubr.bf16.mxu0 0
  %1426 = vmatmul.mubr.bf16.gmra.mxu0 %v947
  %v1427 = vpop.f32.mrf.mxu0
  %v1428 = vadd.f32 %v1283, %v1427
  %v1429 = vpop.f32.mrf.mxu0
  %v1430 = vpop.f32.mrf.mxu0
  %v1431 = vadd.f32 %v1286, %v1430
  %v1432 = vpop.f32.mrf.mxu0
  %1433 = vmatprep.mubr.bf16.mxu0 0
  %1434 = vmatmul.mubr.bf16.gmra.mxu0 %v948
  %v1435 = vpop.f32.mrf.mxu0
  %v1436 = vadd.f32 %v1291, %v1435
  %v1437 = vpop.f32.mrf.mxu0
  %v1438 = vpop.f32.mrf.mxu0
  %v1439 = vadd.f32 %v1294, %v1438
  %v1440 = vpop.f32.mrf.mxu0
  %1441 = vdwg.mxu0
  %s1442 = scalar_lea.vmem %s3, 128
  %v1443 = vld [vmem:[%s1442] sm:$0xf]
  %v1444 = vld [vmem:[%s1442 + $0x4] sm:$0xf]
  %v1445 = vld [vmem:[%s1442 + $0x8] sm:$0xf]
  %v1446 = vld [vmem:[%s1442 + $0xc] sm:$0xf]
  %v1447 = vld [vmem:[%s1442 + $0x10] sm:$0xf]
  %v1448 = vld [vmem:[%s1442 + $0x14] sm:$0xf]
  %v1449 = vld [vmem:[%s1442 + $0x18] sm:$0xf]
  %v1450 = vld [vmem:[%s1442 + $0x1c] sm:$0xf]
  %v1451 = vld [vmem:[%s1442 + $0x20] sm:$0xf]
  %v1452 = vld [vmem:[%s1442 + $0x24] sm:$0xf]
  %v1453 = vld [vmem:[%s1442 + $0x28] sm:$0xf]
  %v1454 = vld [vmem:[%s1442 + $0x2c] sm:$0xf]
  %v1455 = vld [vmem:[%s1442 + $0x30] sm:$0xf]
  %v1456 = vld [vmem:[%s1442 + $0x34] sm:$0xf]
  %v1457 = vld [vmem:[%s1442 + $0x38] sm:$0xf]
  %v1458 = vld [vmem:[%s1442 + $0x3c] sm:$0xf]
  %v1475 = vunpack.c.l.b16 %v1443
  %v1476 = vunpack.c.l.b16 %v1444
  %v1477 = vunpack.c.l.b16 %v1445
  %v1478 = vunpack.c.l.b16 %v1446
  %v1479 = vunpack.c.l.b16 %v1447
  %v1480 = vunpack.c.l.b16 %v1448
  %v1481 = vunpack.c.l.b16 %v1449
  %v1482 = vunpack.c.l.b16 %v1450
  %v1483 = vunpack.c.l.b16 %v1451
  %v1484 = vunpack.c.l.b16 %v1452
  %v1485 = vunpack.c.l.b16 %v1453
  %v1486 = vunpack.c.l.b16 %v1454
  %v1487 = vunpack.c.l.b16 %v1455
  %v1488 = vunpack.c.l.b16 %v1456
  %v1489 = vunpack.c.l.b16 %v1457
  %v1490 = vunpack.c.l.b16 %v1458
  %v1491 = vpack.c.b16 %v1476, %v1475
  %v1492 = vpack.c.b16 %v1478, %v1477
  %v1493 = vpack.c.b16 %v1480, %v1479
  %v1494 = vpack.c.b16 %v1482, %v1481
  %v1495 = vpack.c.b16 %v1484, %v1483
  %v1496 = vpack.c.b16 %v1486, %v1485
  %v1497 = vpack.c.b16 %v1488, %v1487
  %v1498 = vpack.c.b16 %v1490, %v1489
  %1507 = vmatprep.subr.bf16.mxu0 0
  %1508 = vmatpush1.bf16.msra.mxu0 %v779
  %1509 = vmatprep.subr.bf16.mxu0 0
  %1510 = vmatpush1.bf16.msra.mxu0 %v778
  %1511 = vmatprep.subr.bf16.mxu0 0
  %1512 = vmatpush1.bf16.msra.mxu0 %v777
  %1513 = vmatprep.subr.bf16.mxu0 0
  %1514 = vmatpush1.bf16.msra.mxu0 %v776
  %1515 = vmatprep.subr.bf16.mxu0 0
  %1516 = vmatpush1.bf16.msra.mxu0 %v775
  %1517 = vmatprep.subr.bf16.mxu0 0
  %1518 = vmatpush1.bf16.msra.mxu0 %v774
  %1519 = vmatprep.subr.bf16.mxu0 0
  %1520 = vmatpush1.bf16.msra.mxu0 %v773
  %1521 = vmatprep.subr.bf16.mxu0 0
  %1522 = vmatpush1.bf16.msra.mxu0 %v772
  %1523 = vmatprep.subr.bf16.mxu0 0
  %1524 = vmatpush2.bf16.msra.mxu0 0
  %1525 = vmatprep.subr.bf16.mxu0 0
  %1526 = vmatpush2.bf16.msra.mxu0 0
  %1527 = vmatprep.subr.bf16.mxu0 0
  %1528 = vmatpush2.bf16.msra.mxu0 0
  %1529 = vmatprep.subr.bf16.mxu0 0
  %1530 = vmatpush2.bf16.msra.mxu0 0
  %1531 = vmatprep.subr.bf16.mxu0 0
  %1532 = vmatpush2.bf16.msra.mxu0 0
  %1533 = vmatprep.subr.bf16.mxu0 0
  %1534 = vmatpush2.bf16.msra.mxu0 0
  %1535 = vmatprep.subr.bf16.mxu0 0
  %1536 = vmatpush2.bf16.msra.mxu0 0
  %1537 = vmatprep.subr.bf16.mxu0 0
  %1538 = vmatpush2.bf16.msra.mxu0 0
  %1539 = vmatprep.mubr.bf16.mxu0 0
  %1540 = vmatmul.mubr.bf16.gmra.mxu0 %v1491
  %v1541 = vpop.f32.mrf.mxu0
  %v1542 = vadd.f32 0.0, %v1541
  %v1543 = vpop.f32.mrf.mxu0
  %v1544 = vpop.f32.mrf.mxu0
  %v1545 = vadd.f32 0.0, %v1544
  %v1546 = vpop.f32.mrf.mxu0
  %1547 = vmatprep.mubr.bf16.mxu0 0
  %1548 = vmatmul.mubr.bf16.gmra.mxu0 %v1492
  %v1549 = vpop.f32.mrf.mxu0
  %v1550 = vadd.f32 0.0, %v1549
  %v1551 = vpop.f32.mrf.mxu0
  %v1552 = vpop.f32.mrf.mxu0
  %v1553 = vadd.f32 0.0, %v1552
  %v1554 = vpop.f32.mrf.mxu0
  %1555 = vmatprep.mubr.bf16.mxu0 0
  %1556 = vmatmul.mubr.bf16.gmra.mxu0 %v1493
  %v1557 = vpop.f32.mrf.mxu0
  %v1558 = vadd.f32 0.0, %v1557
  %v1559 = vpop.f32.mrf.mxu0
  %v1560 = vpop.f32.mrf.mxu0
  %v1561 = vadd.f32 0.0, %v1560
  %v1562 = vpop.f32.mrf.mxu0
  %1563 = vmatprep.mubr.bf16.mxu0 0
  %1564 = vmatmul.mubr.bf16.gmra.mxu0 %v1494
  %v1565 = vpop.f32.mrf.mxu0
  %v1566 = vadd.f32 0.0, %v1565
  %v1567 = vpop.f32.mrf.mxu0
  %v1568 = vpop.f32.mrf.mxu0
  %v1569 = vadd.f32 0.0, %v1568
  %v1570 = vpop.f32.mrf.mxu0
  %1571 = vmatprep.mubr.bf16.mxu0 0
  %1572 = vmatmul.mubr.bf16.gmra.mxu0 %v1495
  %v1573 = vpop.f32.mrf.mxu0
  %v1574 = vadd.f32 0.0, %v1573
  %v1575 = vpop.f32.mrf.mxu0
  %v1576 = vpop.f32.mrf.mxu0
  %v1577 = vadd.f32 0.0, %v1576
  %v1578 = vpop.f32.mrf.mxu0
  %1579 = vmatprep.mubr.bf16.mxu0 0
  %1580 = vmatmul.mubr.bf16.gmra.mxu0 %v1496
  %v1581 = vpop.f32.mrf.mxu0
  %v1582 = vadd.f32 0.0, %v1581
  %v1583 = vpop.f32.mrf.mxu0
  %v1584 = vpop.f32.mrf.mxu0
  %v1585 = vadd.f32 0.0, %v1584
  %v1586 = vpop.f32.mrf.mxu0
  %1587 = vmatprep.mubr.bf16.mxu0 0
  %1588 = vmatmul.mubr.bf16.gmra.mxu0 %v1497
  %v1589 = vpop.f32.mrf.mxu0
  %v1590 = vadd.f32 0.0, %v1589
  %v1591 = vpop.f32.mrf.mxu0
  %v1592 = vpop.f32.mrf.mxu0
  %v1593 = vadd.f32 0.0, %v1592
  %v1594 = vpop.f32.mrf.mxu0
  %1595 = vmatprep.mubr.bf16.mxu0 0
  %1596 = vmatmul.mubr.bf16.gmra.mxu0 %v1498
  %v1597 = vpop.f32.mrf.mxu0
  %v1598 = vadd.f32 0.0, %v1597
  %v1599 = vpop.f32.mrf.mxu0
  %v1600 = vpop.f32.mrf.mxu0
  %v1601 = vadd.f32 0.0, %v1600
  %v1602 = vpop.f32.mrf.mxu0
  %1603 = vdwg.mxu0
  %v1604 = vpack.c.bf16 %v1545, %v1542
  %v1605 = vpack.c.bf16 %v1553, %v1550
  %v1606 = vpack.c.bf16 %v1561, %v1558
  %v1607 = vpack.c.bf16 %v1569, %v1566
  %v1608 = vpack.c.bf16 %v1577, %v1574
  %v1609 = vpack.c.bf16 %v1585, %v1582
  %v1610 = vpack.c.bf16 %v1593, %v1590
  %v1611 = vpack.c.bf16 %v1601, %v1598
  %s1612 = scalar_lea.vmem %s2, 128
  %v1613 = vld [vmem:[%s1612] sm:$0xf]
  %v1614 = vld [vmem:[%s1612 + $0x4] sm:$0xf]
  %v1615 = vld [vmem:[%s1612 + $0x8] sm:$0xf]
  %v1616 = vld [vmem:[%s1612 + $0xc] sm:$0xf]
  %v1617 = vld [vmem:[%s1612 + $0x10] sm:$0xf]
  %v1618 = vld [vmem:[%s1612 + $0x14] sm:$0xf]
  %v1619 = vld [vmem:[%s1612 + $0x18] sm:$0xf]
  %v1620 = vld [vmem:[%s1612 + $0x1c] sm:$0xf]
  %v1621 = vld [vmem:[%s1612 + $0x20] sm:$0xf]
  %v1622 = vld [vmem:[%s1612 + $0x24] sm:$0xf]
  %v1623 = vld [vmem:[%s1612 + $0x28] sm:$0xf]
  %v1624 = vld [vmem:[%s1612 + $0x2c] sm:$0xf]
  %v1625 = vld [vmem:[%s1612 + $0x30] sm:$0xf]
  %v1626 = vld [vmem:[%s1612 + $0x34] sm:$0xf]
  %v1627 = vld [vmem:[%s1612 + $0x38] sm:$0xf]
  %v1628 = vld [vmem:[%s1612 + $0x3c] sm:$0xf]
  %v1645 = vunpack.c.l.b16 %v1613
  %v1646 = vunpack.c.l.b16 %v1614
  %v1647 = vunpack.c.l.b16 %v1615
  %v1648 = vunpack.c.l.b16 %v1616
  %v1649 = vunpack.c.l.b16 %v1617
  %v1650 = vunpack.c.l.b16 %v1618
  %v1651 = vunpack.c.l.b16 %v1619
  %v1652 = vunpack.c.l.b16 %v1620
  %v1653 = vunpack.c.l.b16 %v1621
  %v1654 = vunpack.c.l.b16 %v1622
  %v1655 = vunpack.c.l.b16 %v1623
  %v1656 = vunpack.c.l.b16 %v1624
  %v1657 = vunpack.c.l.b16 %v1625
  %v1658 = vunpack.c.l.b16 %v1626
  %v1659 = vunpack.c.l.b16 %v1627
  %v1660 = vunpack.c.l.b16 %v1628
  %v1661 = vpack.c.b16 %v1646, %v1645
  %v1662 = vpack.c.b16 %v1648, %v1647
  %v1663 = vpack.c.b16 %v1650, %v1649
  %v1664 = vpack.c.b16 %v1652, %v1651
  %v1665 = vpack.c.b16 %v1654, %v1653
  %v1666 = vpack.c.b16 %v1656, %v1655
  %v1667 = vpack.c.b16 %v1658, %v1657
  %v1668 = vpack.c.b16 %v1660, %v1659
  %1677 = vmatprep.subr.bf16.mxu0 0
  %1678 = vmatpush1.bf16.msra.mxu0 %v1668
  %1679 = vmatprep.subr.bf16.mxu0 0
  %1680 = vmatpush1.bf16.msra.mxu0 %v1667
  %1681 = vmatprep.subr.bf16.mxu0 0
  %1682 = vmatpush1.bf16.msra.mxu0 %v1666
  %1683 = vmatprep.subr.bf16.mxu0 0
  %1684 = vmatpush1.bf16.msra.mxu0 %v1665
  %1685 = vmatprep.subr.bf16.mxu0 0
  %1686 = vmatpush1.bf16.msra.mxu0 %v1664
  %1687 = vmatprep.subr.bf16.mxu0 0
  %1688 = vmatpush1.bf16.msra.mxu0 %v1663
  %1689 = vmatprep.subr.bf16.mxu0 0
  %1690 = vmatpush1.bf16.msra.mxu0 %v1662
  %1691 = vmatprep.subr.bf16.mxu0 0
  %1692 = vmatpush1.bf16.msra.mxu0 %v1661
  %1693 = vmatprep.subr.bf16.mxu0 0
  %1694 = vmatpush2.bf16.msra.mxu0 0
  %1695 = vmatprep.subr.bf16.mxu0 0
  %1696 = vmatpush2.bf16.msra.mxu0 0
  %1697 = vmatprep.subr.bf16.mxu0 0
  %1698 = vmatpush2.bf16.msra.mxu0 0
  %1699 = vmatprep.subr.bf16.mxu0 0
  %1700 = vmatpush2.bf16.msra.mxu0 0
  %1701 = vmatprep.subr.bf16.mxu0 0
  %1702 = vmatpush2.bf16.msra.mxu0 0
  %1703 = vmatprep.subr.bf16.mxu0 0
  %1704 = vmatpush2.bf16.msra.mxu0 0
  %1705 = vmatprep.subr.bf16.mxu0 0
  %1706 = vmatpush2.bf16.msra.mxu0 0
  %1707 = vmatprep.subr.bf16.mxu0 0
  %1708 = vmatpush2.bf16.msra.mxu0 0
  %1709 = vmatprep.mubr.bf16.mxu0 0
  %1710 = vmatmul.mubr.bf16.gmra.mxu0 %v1604
  %v1711 = vpop.f32.mrf.mxu0
  %v1712 = vadd.f32 0.0, %v1711
  %v1713 = vpop.f32.mrf.mxu0
  %v1714 = vpop.f32.mrf.mxu0
  %v1715 = vadd.f32 0.0, %v1714
  %v1716 = vpop.f32.mrf.mxu0
  %1717 = vmatprep.mubr.bf16.mxu0 0
  %1718 = vmatmul.mubr.bf16.gmra.mxu0 %v1605
  %v1719 = vpop.f32.mrf.mxu0
  %v1720 = vadd.f32 0.0, %v1719
  %v1721 = vpop.f32.mrf.mxu0
  %v1722 = vpop.f32.mrf.mxu0
  %v1723 = vadd.f32 0.0, %v1722
  %v1724 = vpop.f32.mrf.mxu0
  %1725 = vmatprep.mubr.bf16.mxu0 0
  %1726 = vmatmul.mubr.bf16.gmra.mxu0 %v1606
  %v1727 = vpop.f32.mrf.mxu0
  %v1728 = vadd.f32 0.0, %v1727
  %v1729 = vpop.f32.mrf.mxu0
  %v1730 = vpop.f32.mrf.mxu0
  %v1731 = vadd.f32 0.0, %v1730
  %v1732 = vpop.f32.mrf.mxu0
  %1733 = vmatprep.mubr.bf16.mxu0 0
  %1734 = vmatmul.mubr.bf16.gmra.mxu0 %v1607
  %v1735 = vpop.f32.mrf.mxu0
  %v1736 = vadd.f32 0.0, %v1735
  %v1737 = vpop.f32.mrf.mxu0
  %v1738 = vpop.f32.mrf.mxu0
  %v1739 = vadd.f32 0.0, %v1738
  %v1740 = vpop.f32.mrf.mxu0
  %1741 = vmatprep.mubr.bf16.mxu0 0
  %1742 = vmatmul.mubr.bf16.gmra.mxu0 %v1608
  %v1743 = vpop.f32.mrf.mxu0
  %v1744 = vadd.f32 0.0, %v1743
  %v1745 = vpop.f32.mrf.mxu0
  %v1746 = vpop.f32.mrf.mxu0
  %v1747 = vadd.f32 0.0, %v1746
  %v1748 = vpop.f32.mrf.mxu0
  %1749 = vmatprep.mubr.bf16.mxu0 0
  %1750 = vmatmul.mubr.bf16.gmra.mxu0 %v1609
  %v1751 = vpop.f32.mrf.mxu0
  %v1752 = vadd.f32 0.0, %v1751
  %v1753 = vpop.f32.mrf.mxu0
  %v1754 = vpop.f32.mrf.mxu0
  %v1755 = vadd.f32 0.0, %v1754
  %v1756 = vpop.f32.mrf.mxu0
  %1757 = vmatprep.mubr.bf16.mxu0 0
  %1758 = vmatmul.mubr.bf16.gmra.mxu0 %v1610
  %v1759 = vpop.f32.mrf.mxu0
  %v1760 = vadd.f32 0.0, %v1759
  %v1761 = vpop.f32.mrf.mxu0
  %v1762 = vpop.f32.mrf.mxu0
  %v1763 = vadd.f32 0.0, %v1762
  %v1764 = vpop.f32.mrf.mxu0
  %1765 = vmatprep.mubr.bf16.mxu0 0
  %1766 = vmatmul.mubr.bf16.gmra.mxu0 %v1611
  %v1767 = vpop.f32.mrf.mxu0
  %v1768 = vadd.f32 0.0, %v1767
  %v1769 = vpop.f32.mrf.mxu0
  %v1770 = vpop.f32.mrf.mxu0
  %v1771 = vadd.f32 0.0, %v1770
  %v1772 = vpop.f32.mrf.mxu0
  %1773 = vdwg.mxu0
  %v1774 = vadd.f32 %v1380, %v1712
  %v1775 = vadd.f32 %v1383, %v1715
  %v1776 = vadd.f32 %v1388, %v1720
  %v1777 = vadd.f32 %v1391, %v1723
  %v1778 = vadd.f32 %v1396, %v1728
  %v1779 = vadd.f32 %v1399, %v1731
  %v1780 = vadd.f32 %v1404, %v1736
  %v1781 = vadd.f32 %v1407, %v1739
  %v1782 = vadd.f32 %v1412, %v1744
  %v1783 = vadd.f32 %v1415, %v1747
  %v1784 = vadd.f32 %v1420, %v1752
  %v1785 = vadd.f32 %v1423, %v1755
  %v1786 = vadd.f32 %v1428, %v1760
  %v1787 = vadd.f32 %v1431, %v1763
  %v1788 = vadd.f32 %v1436, %v1768
  %v1789 = vadd.f32 %v1439, %v1771
  %s1790 = scalar_lea.vmem %s3, 192
  %v1791 = vld [vmem:[%s1790] sm:$0xf]
  %v1792 = vld [vmem:[%s1790 + $0x4] sm:$0xf]
  %v1793 = vld [vmem:[%s1790 + $0x8] sm:$0xf]
  %v1794 = vld [vmem:[%s1790 + $0xc] sm:$0xf]
  %v1795 = vld [vmem:[%s1790 + $0x10] sm:$0xf]
  %v1796 = vld [vmem:[%s1790 + $0x14] sm:$0xf]
  %v1797 = vld [vmem:[%s1790 + $0x18] sm:$0xf]
  %v1798 = vld [vmem:[%s1790 + $0x1c] sm:$0xf]
  %v1799 = vld [vmem:[%s1790 + $0x20] sm:$0xf]
  %v1800 = vld [vmem:[%s1790 + $0x24] sm:$0xf]
  %v1801 = vld [vmem:[%s1790 + $0x28] sm:$0xf]
  %v1802 = vld [vmem:[%s1790 + $0x2c] sm:$0xf]
  %v1803 = vld [vmem:[%s1790 + $0x30] sm:$0xf]
  %v1804 = vld [vmem:[%s1790 + $0x34] sm:$0xf]
  %v1805 = vld [vmem:[%s1790 + $0x38] sm:$0xf]
  %v1806 = vld [vmem:[%s1790 + $0x3c] sm:$0xf]
  %v1823 = vunpack.c.l.b16 %v1791
  %v1824 = vunpack.c.l.b16 %v1792
  %v1825 = vunpack.c.l.b16 %v1793
  %v1826 = vunpack.c.l.b16 %v1794
  %v1827 = vunpack.c.l.b16 %v1795
  %v1828 = vunpack.c.l.b16 %v1796
  %v1829 = vunpack.c.l.b16 %v1797
  %v1830 = vunpack.c.l.b16 %v1798
  %v1831 = vunpack.c.l.b16 %v1799
  %v1832 = vunpack.c.l.b16 %v1800
  %v1833 = vunpack.c.l.b16 %v1801
  %v1834 = vunpack.c.l.b16 %v1802
  %v1835 = vunpack.c.l.b16 %v1803
  %v1836 = vunpack.c.l.b16 %v1804
  %v1837 = vunpack.c.l.b16 %v1805
  %v1838 = vunpack.c.l.b16 %v1806
  %v1839 = vpack.c.b16 %v1824, %v1823
  %v1840 = vpack.c.b16 %v1826, %v1825
  %v1841 = vpack.c.b16 %v1828, %v1827
  %v1842 = vpack.c.b16 %v1830, %v1829
  %v1843 = vpack.c.b16 %v1832, %v1831
  %v1844 = vpack.c.b16 %v1834, %v1833
  %v1845 = vpack.c.b16 %v1836, %v1835
  %v1846 = vpack.c.b16 %v1838, %v1837
  %1855 = vmatprep.subr.bf16.mxu0 0
  %1856 = vmatpush1.bf16.msra.mxu0 %v779
  %1857 = vmatprep.subr.bf16.mxu0 0
  %1858 = vmatpush1.bf16.msra.mxu0 %v778
  %1859 = vmatprep.subr.bf16.mxu0 0
  %1860 = vmatpush1.bf16.msra.mxu0 %v777
  %1861 = vmatprep.subr.bf16.mxu0 0
  %1862 = vmatpush1.bf16.msra.mxu0 %v776
  %1863 = vmatprep.subr.bf16.mxu0 0
  %1864 = vmatpush1.bf16.msra.mxu0 %v775
  %1865 = vmatprep.subr.bf16.mxu0 0
  %1866 = vmatpush1.bf16.msra.mxu0 %v774
  %1867 = vmatprep.subr.bf16.mxu0 0
  %1868 = vmatpush1.bf16.msra.mxu0 %v773
  %1869 = vmatprep.subr.bf16.mxu0 0
  %1870 = vmatpush1.bf16.msra.mxu0 %v772
  %1871 = vmatprep.subr.bf16.mxu0 0
  %1872 = vmatpush2.bf16.msra.mxu0 0
  %1873 = vmatprep.subr.bf16.mxu0 0
  %1874 = vmatpush2.bf16.msra.mxu0 0
  %1875 = vmatprep.subr.bf16.mxu0 0
  %1876 = vmatpush2.bf16.msra.mxu0 0
  %1877 = vmatprep.subr.bf16.mxu0 0
  %1878 = vmatpush2.bf16.msra.mxu0 0
  %1879 = vmatprep.subr.bf16.mxu0 0
  %1880 = vmatpush2.bf16.msra.mxu0 0
  %1881 = vmatprep.subr.bf16.mxu0 0
  %1882 = vmatpush2.bf16.msra.mxu0 0
  %1883 = vmatprep.subr.bf16.mxu0 0
  %1884 = vmatpush2.bf16.msra.mxu0 0
  %1885 = vmatprep.subr.bf16.mxu0 0
  %1886 = vmatpush2.bf16.msra.mxu0 0
  %1887 = vmatprep.mubr.bf16.mxu0 0
  %1888 = vmatmul.mubr.bf16.gmra.mxu0 %v1839
  %v1889 = vpop.f32.mrf.mxu0
  %v1890 = vadd.f32 0.0, %v1889
  %v1891 = vpop.f32.mrf.mxu0
  %v1892 = vpop.f32.mrf.mxu0
  %v1893 = vadd.f32 0.0, %v1892
  %v1894 = vpop.f32.mrf.mxu0
  %1895 = vmatprep.mubr.bf16.mxu0 0
  %1896 = vmatmul.mubr.bf16.gmra.mxu0 %v1840
  %v1897 = vpop.f32.mrf.mxu0
  %v1898 = vadd.f32 0.0, %v1897
  %v1899 = vpop.f32.mrf.mxu0
  %v1900 = vpop.f32.mrf.mxu0
  %v1901 = vadd.f32 0.0, %v1900
  %v1902 = vpop.f32.mrf.mxu0
  %1903 = vmatprep.mubr.bf16.mxu0 0
  %1904 = vmatmul.mubr.bf16.gmra.mxu0 %v1841
  %v1905 = vpop.f32.mrf.mxu0
  %v1906 = vadd.f32 0.0, %v1905
  %v1907 = vpop.f32.mrf.mxu0
  %v1908 = vpop.f32.mrf.mxu0
  %v1909 = vadd.f32 0.0, %v1908
  %v1910 = vpop.f32.mrf.mxu0
  %1911 = vmatprep.mubr.bf16.mxu0 0
  %1912 = vmatmul.mubr.bf16.gmra.mxu0 %v1842
  %v1913 = vpop.f32.mrf.mxu0
  %v1914 = vadd.f32 0.0, %v1913
  %v1915 = vpop.f32.mrf.mxu0
  %v1916 = vpop.f32.mrf.mxu0
  %v1917 = vadd.f32 0.0, %v1916
  %v1918 = vpop.f32.mrf.mxu0
  %1919 = vmatprep.mubr.bf16.mxu0 0
  %1920 = vmatmul.mubr.bf16.gmra.mxu0 %v1843
  %v1921 = vpop.f32.mrf.mxu0
  %v1922 = vadd.f32 0.0, %v1921
  %v1923 = vpop.f32.mrf.mxu0
  %v1924 = vpop.f32.mrf.mxu0
  %v1925 = vadd.f32 0.0, %v1924
  %v1926 = vpop.f32.mrf.mxu0
  %1927 = vmatprep.mubr.bf16.mxu0 0
  %1928 = vmatmul.mubr.bf16.gmra.mxu0 %v1844
  %v1929 = vpop.f32.mrf.mxu0
  %v1930 = vadd.f32 0.0, %v1929
  %v1931 = vpop.f32.mrf.mxu0
  %v1932 = vpop.f32.mrf.mxu0
  %v1933 = vadd.f32 0.0, %v1932
  %v1934 = vpop.f32.mrf.mxu0
  %1935 = vmatprep.mubr.bf16.mxu0 0
  %1936 = vmatmul.mubr.bf16.gmra.mxu0 %v1845
  %v1937 = vpop.f32.mrf.mxu0
  %v1938 = vadd.f32 0.0, %v1937
  %v1939 = vpop.f32.mrf.mxu0
  %v1940 = vpop.f32.mrf.mxu0
  %v1941 = vadd.f32 0.0, %v1940
  %v1942 = vpop.f32.mrf.mxu0
  %1943 = vmatprep.mubr.bf16.mxu0 0
  %1944 = vmatmul.mubr.bf16.gmra.mxu0 %v1846
  %v1945 = vpop.f32.mrf.mxu0
  %v1946 = vadd.f32 0.0, %v1945
  %v1947 = vpop.f32.mrf.mxu0
  %v1948 = vpop.f32.mrf.mxu0
  %v1949 = vadd.f32 0.0, %v1948
  %v1950 = vpop.f32.mrf.mxu0
  %1951 = vdwg.mxu0
  %v1952 = vpack.c.bf16 %v1893, %v1890
  %v1953 = vpack.c.bf16 %v1901, %v1898
  %v1954 = vpack.c.bf16 %v1909, %v1906
  %v1955 = vpack.c.bf16 %v1917, %v1914
  %v1956 = vpack.c.bf16 %v1925, %v1922
  %v1957 = vpack.c.bf16 %v1933, %v1930
  %v1958 = vpack.c.bf16 %v1941, %v1938
  %v1959 = vpack.c.bf16 %v1949, %v1946
  %s1960 = scalar_lea.vmem %s2, 192
  %v1961 = vld [vmem:[%s1960] sm:$0xf]
  %v1962 = vld [vmem:[%s1960 + $0x4] sm:$0xf]
  %v1963 = vld [vmem:[%s1960 + $0x8] sm:$0xf]
  %v1964 = vld [vmem:[%s1960 + $0xc] sm:$0xf]
  %v1965 = vld [vmem:[%s1960 + $0x10] sm:$0xf]
  %v1966 = vld [vmem:[%s1960 + $0x14] sm:$0xf]
  %v1967 = vld [vmem:[%s1960 + $0x18] sm:$0xf]
  %v1968 = vld [vmem:[%s1960 + $0x1c] sm:$0xf]
  %v1969 = vld [vmem:[%s1960 + $0x20] sm:$0xf]
  %v1970 = vld [vmem:[%s1960 + $0x24] sm:$0xf]
  %v1971 = vld [vmem:[%s1960 + $0x28] sm:$0xf]
  %v1972 = vld [vmem:[%s1960 + $0x2c] sm:$0xf]
  %v1973 = vld [vmem:[%s1960 + $0x30] sm:$0xf]
  %v1974 = vld [vmem:[%s1960 + $0x34] sm:$0xf]
  %v1975 = vld [vmem:[%s1960 + $0x38] sm:$0xf]
  %v1976 = vld [vmem:[%s1960 + $0x3c] sm:$0xf]
  %v1993 = vunpack.c.l.b16 %v1961
  %v1994 = vunpack.c.l.b16 %v1962
  %v1995 = vunpack.c.l.b16 %v1963
  %v1996 = vunpack.c.l.b16 %v1964
  %v1997 = vunpack.c.l.b16 %v1965
  %v1998 = vunpack.c.l.b16 %v1966
  %v1999 = vunpack.c.l.b16 %v1967
  %v2000 = vunpack.c.l.b16 %v1968
  %v2001 = vunpack.c.l.b16 %v1969
  %v2002 = vunpack.c.l.b16 %v1970
  %v2003 = vunpack.c.l.b16 %v1971
  %v2004 = vunpack.c.l.b16 %v1972
  %v2005 = vunpack.c.l.b16 %v1973
  %v2006 = vunpack.c.l.b16 %v1974
  %v2007 = vunpack.c.l.b16 %v1975
  %v2008 = vunpack.c.l.b16 %v1976
  %v2009 = vpack.c.b16 %v1994, %v1993
  %v2010 = vpack.c.b16 %v1996, %v1995
  %v2011 = vpack.c.b16 %v1998, %v1997
  %v2012 = vpack.c.b16 %v2000, %v1999
  %v2013 = vpack.c.b16 %v2002, %v2001
  %v2014 = vpack.c.b16 %v2004, %v2003
  %v2015 = vpack.c.b16 %v2006, %v2005
  %v2016 = vpack.c.b16 %v2008, %v2007
  %2025 = vmatprep.subr.bf16.mxu0 0
  %2026 = vmatpush1.bf16.msra.mxu0 %v2016
  %2027 = vmatprep.subr.bf16.mxu0 0
  %2028 = vmatpush1.bf16.msra.mxu0 %v2015
  %2029 = vmatprep.subr.bf16.mxu0 0
  %2030 = vmatpush1.bf16.msra.mxu0 %v2014
  %2031 = vmatprep.subr.bf16.mxu0 0
  %2032 = vmatpush1.bf16.msra.mxu0 %v2013
  %2033 = vmatprep.subr.bf16.mxu0 0
  %2034 = vmatpush1.bf16.msra.mxu0 %v2012
  %2035 = vmatprep.subr.bf16.mxu0 0
  %2036 = vmatpush1.bf16.msra.mxu0 %v2011
  %2037 = vmatprep.subr.bf16.mxu0 0
  %2038 = vmatpush1.bf16.msra.mxu0 %v2010
  %2039 = vmatprep.subr.bf16.mxu0 0
  %2040 = vmatpush1.bf16.msra.mxu0 %v2009
  %2041 = vmatprep.subr.bf16.mxu0 0
  %2042 = vmatpush2.bf16.msra.mxu0 0
  %2043 = vmatprep.subr.bf16.mxu0 0
  %2044 = vmatpush2.bf16.msra.mxu0 0
  %2045 = vmatprep.subr.bf16.mxu0 0
  %2046 = vmatpush2.bf16.msra.mxu0 0
  %2047 = vmatprep.subr.bf16.mxu0 0
  %2048 = vmatpush2.bf16.msra.mxu0 0
  %2049 = vmatprep.subr.bf16.mxu0 0
  %2050 = vmatpush2.bf16.msra.mxu0 0
  %2051 = vmatprep.subr.bf16.mxu0 0
  %2052 = vmatpush2.bf16.msra.mxu0 0
  %2053 = vmatprep.subr.bf16.mxu0 0
  %2054 = vmatpush2.bf16.msra.mxu0 0
  %2055 = vmatprep.subr.bf16.mxu0 0
  %2056 = vmatpush2.bf16.msra.mxu0 0
  %2057 = vmatprep.mubr.bf16.mxu0 0
  %2058 = vmatmul.mubr.bf16.gmra.mxu0 %v1952
  %v2059 = vpop.f32.mrf.mxu0
  %v2060 = vadd.f32 0.0, %v2059
  %v2061 = vpop.f32.mrf.mxu0
  %v2062 = vpop.f32.mrf.mxu0
  %v2063 = vadd.f32 0.0, %v2062
  %v2064 = vpop.f32.mrf.mxu0
  %2065 = vmatprep.mubr.bf16.mxu0 0
  %2066 = vmatmul.mubr.bf16.gmra.mxu0 %v1953
  %v2067 = vpop.f32.mrf.mxu0
  %v2068 = vadd.f32 0.0, %v2067
  %v2069 = vpop.f32.mrf.mxu0
  %v2070 = vpop.f32.mrf.mxu0
  %v2071 = vadd.f32 0.0, %v2070
  %v2072 = vpop.f32.mrf.mxu0
  %2073 = vmatprep.mubr.bf16.mxu0 0
  %2074 = vmatmul.mubr.bf16.gmra.mxu0 %v1954
  %v2075 = vpop.f32.mrf.mxu0
  %v2076 = vadd.f32 0.0, %v2075
  %v2077 = vpop.f32.mrf.mxu0
  %v2078 = vpop.f32.mrf.mxu0
  %v2079 = vadd.f32 0.0, %v2078
  %v2080 = vpop.f32.mrf.mxu0
  %2081 = vmatprep.mubr.bf16.mxu0 0
  %2082 = vmatmul.mubr.bf16.gmra.mxu0 %v1955
  %v2083 = vpop.f32.mrf.mxu0
  %v2084 = vadd.f32 0.0, %v2083
  %v2085 = vpop.f32.mrf.mxu0
  %v2086 = vpop.f32.mrf.mxu0
  %v2087 = vadd.f32 0.0, %v2086
  %v2088 = vpop.f32.mrf.mxu0
  %2089 = vmatprep.mubr.bf16.mxu0 0
  %2090 = vmatmul.mubr.bf16.gmra.mxu0 %v1956
  %v2091 = vpop.f32.mrf.mxu0
  %v2092 = vadd.f32 0.0, %v2091
  %v2093 = vpop.f32.mrf.mxu0
  %v2094 = vpop.f32.mrf.mxu0
  %v2095 = vadd.f32 0.0, %v2094
  %v2096 = vpop.f32.mrf.mxu0
  %2097 = vmatprep.mubr.bf16.mxu0 0
  %2098 = vmatmul.mubr.bf16.gmra.mxu0 %v1957
  %v2099 = vpop.f32.mrf.mxu0
  %v2100 = vadd.f32 0.0, %v2099
  %v2101 = vpop.f32.mrf.mxu0
  %v2102 = vpop.f32.mrf.mxu0
  %v2103 = vadd.f32 0.0, %v2102
  %v2104 = vpop.f32.mrf.mxu0
  %2105 = vmatprep.mubr.bf16.mxu0 0
  %2106 = vmatmul.mubr.bf16.gmra.mxu0 %v1958
  %v2107 = vpop.f32.mrf.mxu0
  %v2108 = vadd.f32 0.0, %v2107
  %v2109 = vpop.f32.mrf.mxu0
  %v2110 = vpop.f32.mrf.mxu0
  %v2111 = vadd.f32 0.0, %v2110
  %v2112 = vpop.f32.mrf.mxu0
  %2113 = vmatprep.mubr.bf16.mxu0 0
  %2114 = vmatmul.mubr.bf16.gmra.mxu0 %v1959
  %v2115 = vpop.f32.mrf.mxu0
  %v2116 = vadd.f32 0.0, %v2115
  %v2117 = vpop.f32.mrf.mxu0
  %v2118 = vpop.f32.mrf.mxu0
  %v2119 = vadd.f32 0.0, %v2118
  %v2120 = vpop.f32.mrf.mxu0
  %2121 = vdwg.mxu0
  %v2122 = vadd.f32 %v1774, %v2060
  %v2123 = vadd.f32 %v1775, %v2063
  %v2124 = vadd.f32 %v1776, %v2068
  %v2125 = vadd.f32 %v1777, %v2071
  %v2126 = vadd.f32 %v1778, %v2076
  %v2127 = vadd.f32 %v1779, %v2079
  %v2128 = vadd.f32 %v1780, %v2084
  %v2129 = vadd.f32 %v1781, %v2087
  %v2130 = vadd.f32 %v1782, %v2092
  %v2131 = vadd.f32 %v1783, %v2095
  %v2132 = vadd.f32 %v1784, %v2100
  %v2133 = vadd.f32 %v1785, %v2103
  %v2134 = vadd.f32 %v1786, %v2108
  %v2135 = vadd.f32 %v1787, %v2111
  %v2136 = vadd.f32 %v1788, %v2116
  %v2137 = vadd.f32 %v1789, %v2119
  %s2138 = scalar_lea.vmem %s3, 256
  %v2139 = vld [vmem:[%s2138] sm:$0xf]
  %v2140 = vld [vmem:[%s2138 + $0x4] sm:$0xf]
  %v2141 = vld [vmem:[%s2138 + $0x8] sm:$0xf]
  %v2142 = vld [vmem:[%s2138 + $0xc] sm:$0xf]
  %v2143 = vld [vmem:[%s2138 + $0x10] sm:$0xf]
  %v2144 = vld [vmem:[%s2138 + $0x14] sm:$0xf]
  %v2145 = vld [vmem:[%s2138 + $0x18] sm:$0xf]
  %v2146 = vld [vmem:[%s2138 + $0x1c] sm:$0xf]
  %v2147 = vld [vmem:[%s2138 + $0x20] sm:$0xf]
  %v2148 = vld [vmem:[%s2138 + $0x24] sm:$0xf]
  %v2149 = vld [vmem:[%s2138 + $0x28] sm:$0xf]
  %v2150 = vld [vmem:[%s2138 + $0x2c] sm:$0xf]
  %v2151 = vld [vmem:[%s2138 + $0x30] sm:$0xf]
  %v2152 = vld [vmem:[%s2138 + $0x34] sm:$0xf]
  %v2153 = vld [vmem:[%s2138 + $0x38] sm:$0xf]
  %v2154 = vld [vmem:[%s2138 + $0x3c] sm:$0xf]
  %v2171 = vunpack.c.l.b16 %v2139
  %v2172 = vunpack.c.l.b16 %v2140
  %v2173 = vunpack.c.l.b16 %v2141
  %v2174 = vunpack.c.l.b16 %v2142
  %v2175 = vunpack.c.l.b16 %v2143
  %v2176 = vunpack.c.l.b16 %v2144
  %v2177 = vunpack.c.l.b16 %v2145
  %v2178 = vunpack.c.l.b16 %v2146
  %v2179 = vunpack.c.l.b16 %v2147
  %v2180 = vunpack.c.l.b16 %v2148
  %v2181 = vunpack.c.l.b16 %v2149
  %v2182 = vunpack.c.l.b16 %v2150
  %v2183 = vunpack.c.l.b16 %v2151
  %v2184 = vunpack.c.l.b16 %v2152
  %v2185 = vunpack.c.l.b16 %v2153
  %v2186 = vunpack.c.l.b16 %v2154
  %v2187 = vpack.c.b16 %v2172, %v2171
  %v2188 = vpack.c.b16 %v2174, %v2173
  %v2189 = vpack.c.b16 %v2176, %v2175
  %v2190 = vpack.c.b16 %v2178, %v2177
  %v2191 = vpack.c.b16 %v2180, %v2179
  %v2192 = vpack.c.b16 %v2182, %v2181
  %v2193 = vpack.c.b16 %v2184, %v2183
  %v2194 = vpack.c.b16 %v2186, %v2185
  %2203 = vmatprep.subr.bf16.mxu0 0
  %2204 = vmatpush1.bf16.msra.mxu0 %v779
  %2205 = vmatprep.subr.bf16.mxu0 0
  %2206 = vmatpush1.bf16.msra.mxu0 %v778
  %2207 = vmatprep.subr.bf16.mxu0 0
  %2208 = vmatpush1.bf16.msra.mxu0 %v777
  %2209 = vmatprep.subr.bf16.mxu0 0
  %2210 = vmatpush1.bf16.msra.mxu0 %v776
  %2211 = vmatprep.subr.bf16.mxu0 0
  %2212 = vmatpush1.bf16.msra.mxu0 %v775
  %2213 = vmatprep.subr.bf16.mxu0 0
  %2214 = vmatpush1.bf16.msra.mxu0 %v774
  %2215 = vmatprep.subr.bf16.mxu0 0
  %2216 = vmatpush1.bf16.msra.mxu0 %v773
  %2217 = vmatprep.subr.bf16.mxu0 0
  %2218 = vmatpush1.bf16.msra.mxu0 %v772
  %2219 = vmatprep.subr.bf16.mxu0 0
  %2220 = vmatpush2.bf16.msra.mxu0 0
  %2221 = vmatprep.subr.bf16.mxu0 0
  %2222 = vmatpush2.bf16.msra.mxu0 0
  %2223 = vmatprep.subr.bf16.mxu0 0
  %2224 = vmatpush2.bf16.msra.mxu0 0
  %2225 = vmatprep.subr.bf16.mxu0 0
  %2226 = vmatpush2.bf16.msra.mxu0 0
  %2227 = vmatprep.subr.bf16.mxu0 0
  %2228 = vmatpush2.bf16.msra.mxu0 0
  %2229 = vmatprep.subr.bf16.mxu0 0
  %2230 = vmatpush2.bf16.msra.mxu0 0
  %2231 = vmatprep.subr.bf16.mxu0 0
  %2232 = vmatpush2.bf16.msra.mxu0 0
  %2233 = vmatprep.subr.bf16.mxu0 0
  %2234 = vmatpush2.bf16.msra.mxu0 0
  %2235 = vmatprep.mubr.bf16.mxu0 0
  %2236 = vmatmul.mubr.bf16.gmra.mxu0 %v2187
  %v2237 = vpop.f32.mrf.mxu0
  %v2238 = vadd.f32 0.0, %v2237
  %v2239 = vpop.f32.mrf.mxu0
  %v2240 = vpop.f32.mrf.mxu0
  %v2241 = vadd.f32 0.0, %v2240
  %v2242 = vpop.f32.mrf.mxu0
  %2243 = vmatprep.mubr.bf16.mxu0 0
  %2244 = vmatmul.mubr.bf16.gmra.mxu0 %v2188
  %v2245 = vpop.f32.mrf.mxu0
  %v2246 = vadd.f32 0.0, %v2245
  %v2247 = vpop.f32.mrf.mxu0
  %v2248 = vpop.f32.mrf.mxu0
  %v2249 = vadd.f32 0.0, %v2248
  %v2250 = vpop.f32.mrf.mxu0
  %2251 = vmatprep.mubr.bf16.mxu0 0
  %2252 = vmatmul.mubr.bf16.gmra.mxu0 %v2189
  %v2253 = vpop.f32.mrf.mxu0
  %v2254 = vadd.f32 0.0, %v2253
  %v2255 = vpop.f32.mrf.mxu0
  %v2256 = vpop.f32.mrf.mxu0
  %v2257 = vadd.f32 0.0, %v2256
  %v2258 = vpop.f32.mrf.mxu0
  %2259 = vmatprep.mubr.bf16.mxu0 0
  %2260 = vmatmul.mubr.bf16.gmra.mxu0 %v2190
  %v2261 = vpop.f32.mrf.mxu0
  %v2262 = vadd.f32 0.0, %v2261
  %v2263 = vpop.f32.mrf.mxu0
  %v2264 = vpop.f32.mrf.mxu0
  %v2265 = vadd.f32 0.0, %v2264
  %v2266 = vpop.f32.mrf.mxu0
  %2267 = vmatprep.mubr.bf16.mxu0 0
  %2268 = vmatmul.mubr.bf16.gmra.mxu0 %v2191
  %v2269 = vpop.f32.mrf.mxu0
  %v2270 = vadd.f32 0.0, %v2269
  %v2271 = vpop.f32.mrf.mxu0
  %v2272 = vpop.f32.mrf.mxu0
  %v2273 = vadd.f32 0.0, %v2272
  %v2274 = vpop.f32.mrf.mxu0
  %2275 = vmatprep.mubr.bf16.mxu0 0
  %2276 = vmatmul.mubr.bf16.gmra.mxu0 %v2192
  %v2277 = vpop.f32.mrf.mxu0
  %v2278 = vadd.f32 0.0, %v2277
  %v2279 = vpop.f32.mrf.mxu0
  %v2280 = vpop.f32.mrf.mxu0
  %v2281 = vadd.f32 0.0, %v2280
  %v2282 = vpop.f32.mrf.mxu0
  %2283 = vmatprep.mubr.bf16.mxu0 0
  %2284 = vmatmul.mubr.bf16.gmra.mxu0 %v2193
  %v2285 = vpop.f32.mrf.mxu0
  %v2286 = vadd.f32 0.0, %v2285
  %v2287 = vpop.f32.mrf.mxu0
  %v2288 = vpop.f32.mrf.mxu0
  %v2289 = vadd.f32 0.0, %v2288
  %v2290 = vpop.f32.mrf.mxu0
  %2291 = vmatprep.mubr.bf16.mxu0 0
  %2292 = vmatmul.mubr.bf16.gmra.mxu0 %v2194
  %v2293 = vpop.f32.mrf.mxu0
  %v2294 = vadd.f32 0.0, %v2293
  %v2295 = vpop.f32.mrf.mxu0
  %v2296 = vpop.f32.mrf.mxu0
  %v2297 = vadd.f32 0.0, %v2296
  %v2298 = vpop.f32.mrf.mxu0
  %2299 = vdwg.mxu0
  %v2300 = vpack.c.bf16 %v2241, %v2238
  %v2301 = vpack.c.bf16 %v2249, %v2246
  %v2302 = vpack.c.bf16 %v2257, %v2254
  %v2303 = vpack.c.bf16 %v2265, %v2262
  %v2304 = vpack.c.bf16 %v2273, %v2270
  %v2305 = vpack.c.bf16 %v2281, %v2278
  %v2306 = vpack.c.bf16 %v2289, %v2286
  %v2307 = vpack.c.bf16 %v2297, %v2294
  %s2308 = scalar_lea.vmem %s2, 256
  %v2309 = vld [vmem:[%s2308] sm:$0xf]
  %v2310 = vld [vmem:[%s2308 + $0x4] sm:$0xf]
  %v2311 = vld [vmem:[%s2308 + $0x8] sm:$0xf]
  %v2312 = vld [vmem:[%s2308 + $0xc] sm:$0xf]
  %v2313 = vld [vmem:[%s2308 + $0x10] sm:$0xf]
  %v2314 = vld [vmem:[%s2308 + $0x14] sm:$0xf]
  %v2315 = vld [vmem:[%s2308 + $0x18] sm:$0xf]
  %v2316 = vld [vmem:[%s2308 + $0x1c] sm:$0xf]
  %v2317 = vld [vmem:[%s2308 + $0x20] sm:$0xf]
  %v2318 = vld [vmem:[%s2308 + $0x24] sm:$0xf]
  %v2319 = vld [vmem:[%s2308 + $0x28] sm:$0xf]
  %v2320 = vld [vmem:[%s2308 + $0x2c] sm:$0xf]
  %v2321 = vld [vmem:[%s2308 + $0x30] sm:$0xf]
  %v2322 = vld [vmem:[%s2308 + $0x34] sm:$0xf]
  %v2323 = vld [vmem:[%s2308 + $0x38] sm:$0xf]
  %v2324 = vld [vmem:[%s2308 + $0x3c] sm:$0xf]
  %v2341 = vunpack.c.l.b16 %v2309
  %v2342 = vunpack.c.l.b16 %v2310
  %v2343 = vunpack.c.l.b16 %v2311
  %v2344 = vunpack.c.l.b16 %v2312
  %v2345 = vunpack.c.l.b16 %v2313
  %v2346 = vunpack.c.l.b16 %v2314
  %v2347 = vunpack.c.l.b16 %v2315
  %v2348 = vunpack.c.l.b16 %v2316
  %v2349 = vunpack.c.l.b16 %v2317
  %v2350 = vunpack.c.l.b16 %v2318
  %v2351 = vunpack.c.l.b16 %v2319
  %v2352 = vunpack.c.l.b16 %v2320
  %v2353 = vunpack.c.l.b16 %v2321
  %v2354 = vunpack.c.l.b16 %v2322
  %v2355 = vunpack.c.l.b16 %v2323
  %v2356 = vunpack.c.l.b16 %v2324
  %v2357 = vpack.c.b16 %v2342, %v2341
  %v2358 = vpack.c.b16 %v2344, %v2343
  %v2359 = vpack.c.b16 %v2346, %v2345
  %v2360 = vpack.c.b16 %v2348, %v2347
  %v2361 = vpack.c.b16 %v2350, %v2349
  %v2362 = vpack.c.b16 %v2352, %v2351
  %v2363 = vpack.c.b16 %v2354, %v2353
  %v2364 = vpack.c.b16 %v2356, %v2355
  %2373 = vmatprep.subr.bf16.mxu0 0
  %2374 = vmatpush1.bf16.msra.mxu0 %v2364
  %2375 = vmatprep.subr.bf16.mxu0 0
  %2376 = vmatpush1.bf16.msra.mxu0 %v2363
  %2377 = vmatprep.subr.bf16.mxu0 0
  %2378 = vmatpush1.bf16.msra.mxu0 %v2362
  %2379 = vmatprep.subr.bf16.mxu0 0
  %2380 = vmatpush1.bf16.msra.mxu0 %v2361
  %2381 = vmatprep.subr.bf16.mxu0 0
  %2382 = vmatpush1.bf16.msra.mxu0 %v2360
  %2383 = vmatprep.subr.bf16.mxu0 0
  %2384 = vmatpush1.bf16.msra.mxu0 %v2359
  %2385 = vmatprep.subr.bf16.mxu0 0
  %2386 = vmatpush1.bf16.msra.mxu0 %v2358
  %2387 = vmatprep.subr.bf16.mxu0 0
  %2388 = vmatpush1.bf16.msra.mxu0 %v2357
  %2389 = vmatprep.subr.bf16.mxu0 0
  %2390 = vmatpush2.bf16.msra.mxu0 0
  %2391 = vmatprep.subr.bf16.mxu0 0
  %2392 = vmatpush2.bf16.msra.mxu0 0
  %2393 = vmatprep.subr.bf16.mxu0 0
  %2394 = vmatpush2.bf16.msra.mxu0 0
  %2395 = vmatprep.subr.bf16.mxu0 0
  %2396 = vmatpush2.bf16.msra.mxu0 0
  %2397 = vmatprep.subr.bf16.mxu0 0
  %2398 = vmatpush2.bf16.msra.mxu0 0
  %2399 = vmatprep.subr.bf16.mxu0 0
  %2400 = vmatpush2.bf16.msra.mxu0 0
  %2401 = vmatprep.subr.bf16.mxu0 0
  %2402 = vmatpush2.bf16.msra.mxu0 0
  %2403 = vmatprep.subr.bf16.mxu0 0
  %2404 = vmatpush2.bf16.msra.mxu0 0
  %2405 = vmatprep.mubr.bf16.mxu0 0
  %2406 = vmatmul.mubr.bf16.gmra.mxu0 %v2300
  %v2407 = vpop.f32.mrf.mxu0
  %v2408 = vadd.f32 0.0, %v2407
  %v2409 = vpop.f32.mrf.mxu0
  %v2410 = vpop.f32.mrf.mxu0
  %v2411 = vadd.f32 0.0, %v2410
  %v2412 = vpop.f32.mrf.mxu0
  %2413 = vmatprep.mubr.bf16.mxu0 0
  %2414 = vmatmul.mubr.bf16.gmra.mxu0 %v2301
  %v2415 = vpop.f32.mrf.mxu0
  %v2416 = vadd.f32 0.0, %v2415
  %v2417 = vpop.f32.mrf.mxu0
  %v2418 = vpop.f32.mrf.mxu0
  %v2419 = vadd.f32 0.0, %v2418
  %v2420 = vpop.f32.mrf.mxu0
  %2421 = vmatprep.mubr.bf16.mxu0 0
  %2422 = vmatmul.mubr.bf16.gmra.mxu0 %v2302
  %v2423 = vpop.f32.mrf.mxu0
  %v2424 = vadd.f32 0.0, %v2423
  %v2425 = vpop.f32.mrf.mxu0
  %v2426 = vpop.f32.mrf.mxu0
  %v2427 = vadd.f32 0.0, %v2426
  %v2428 = vpop.f32.mrf.mxu0
  %2429 = vmatprep.mubr.bf16.mxu0 0
  %2430 = vmatmul.mubr.bf16.gmra.mxu0 %v2303
  %v2431 = vpop.f32.mrf.mxu0
  %v2432 = vadd.f32 0.0, %v2431
  %v2433 = vpop.f32.mrf.mxu0
  %v2434 = vpop.f32.mrf.mxu0
  %v2435 = vadd.f32 0.0, %v2434
  %v2436 = vpop.f32.mrf.mxu0
  %2437 = vmatprep.mubr.bf16.mxu0 0
  %2438 = vmatmul.mubr.bf16.gmra.mxu0 %v2304
  %v2439 = vpop.f32.mrf.mxu0
  %v2440 = vadd.f32 0.0, %v2439
  %v2441 = vpop.f32.mrf.mxu0
  %v2442 = vpop.f32.mrf.mxu0
  %v2443 = vadd.f32 0.0, %v2442
  %v2444 = vpop.f32.mrf.mxu0
  %2445 = vmatprep.mubr.bf16.mxu0 0
  %2446 = vmatmul.mubr.bf16.gmra.mxu0 %v2305
  %v2447 = vpop.f32.mrf.mxu0
  %v2448 = vadd.f32 0.0, %v2447
  %v2449 = vpop.f32.mrf.mxu0
  %v2450 = vpop.f32.mrf.mxu0
  %v2451 = vadd.f32 0.0, %v2450
  %v2452 = vpop.f32.mrf.mxu0
  %2453 = vmatprep.mubr.bf16.mxu0 0
  %2454 = vmatmul.mubr.bf16.gmra.mxu0 %v2306
  %v2455 = vpop.f32.mrf.mxu0
  %v2456 = vadd.f32 0.0, %v2455
  %v2457 = vpop.f32.mrf.mxu0
  %v2458 = vpop.f32.mrf.mxu0
  %v2459 = vadd.f32 0.0, %v2458
  %v2460 = vpop.f32.mrf.mxu0
  %2461 = vmatprep.mubr.bf16.mxu0 0
  %2462 = vmatmul.mubr.bf16.gmra.mxu0 %v2307
  %v2463 = vpop.f32.mrf.mxu0
  %v2464 = vadd.f32 0.0, %v2463
  %v2465 = vpop.f32.mrf.mxu0
  %v2466 = vpop.f32.mrf.mxu0
  %v2467 = vadd.f32 0.0, %v2466
  %v2468 = vpop.f32.mrf.mxu0
  %2469 = vdwg.mxu0
  %v2470 = vadd.f32 %v2122, %v2408
  %v2471 = vadd.f32 %v2123, %v2411
  %v2472 = vadd.f32 %v2124, %v2416
  %v2473 = vadd.f32 %v2125, %v2419
  %v2474 = vadd.f32 %v2126, %v2424
  %v2475 = vadd.f32 %v2127, %v2427
  %v2476 = vadd.f32 %v2128, %v2432
  %v2477 = vadd.f32 %v2129, %v2435
  %v2478 = vadd.f32 %v2130, %v2440
  %v2479 = vadd.f32 %v2131, %v2443
  %v2480 = vadd.f32 %v2132, %v2448
  %v2481 = vadd.f32 %v2133, %v2451
  %v2482 = vadd.f32 %v2134, %v2456
  %v2483 = vadd.f32 %v2135, %v2459
  %v2484 = vadd.f32 %v2136, %v2464
  %v2485 = vadd.f32 %v2137, %v2467
  %s2486 = scalar_lea.vmem %s3, 320
  %v2487 = vld [vmem:[%s2486] sm:$0xf]
  %v2488 = vld [vmem:[%s2486 + $0x4] sm:$0xf]
  %v2489 = vld [vmem:[%s2486 + $0x8] sm:$0xf]
  %v2490 = vld [vmem:[%s2486 + $0xc] sm:$0xf]
  %v2491 = vld [vmem:[%s2486 + $0x10] sm:$0xf]
  %v2492 = vld [vmem:[%s2486 + $0x14] sm:$0xf]
  %v2493 = vld [vmem:[%s2486 + $0x18] sm:$0xf]
  %v2494 = vld [vmem:[%s2486 + $0x1c] sm:$0xf]
  %v2495 = vld [vmem:[%s2486 + $0x20] sm:$0xf]
  %v2496 = vld [vmem:[%s2486 + $0x24] sm:$0xf]
  %v2497 = vld [vmem:[%s2486 + $0x28] sm:$0xf]
  %v2498 = vld [vmem:[%s2486 + $0x2c] sm:$0xf]
  %v2499 = vld [vmem:[%s2486 + $0x30] sm:$0xf]
  %v2500 = vld [vmem:[%s2486 + $0x34] sm:$0xf]
  %v2501 = vld [vmem:[%s2486 + $0x38] sm:$0xf]
  %v2502 = vld [vmem:[%s2486 + $0x3c] sm:$0xf]
  %v2519 = vunpack.c.l.b16 %v2487
  %v2520 = vunpack.c.l.b16 %v2488
  %v2521 = vunpack.c.l.b16 %v2489
  %v2522 = vunpack.c.l.b16 %v2490
  %v2523 = vunpack.c.l.b16 %v2491
  %v2524 = vunpack.c.l.b16 %v2492
  %v2525 = vunpack.c.l.b16 %v2493
  %v2526 = vunpack.c.l.b16 %v2494
  %v2527 = vunpack.c.l.b16 %v2495
  %v2528 = vunpack.c.l.b16 %v2496
  %v2529 = vunpack.c.l.b16 %v2497
  %v2530 = vunpack.c.l.b16 %v2498
  %v2531 = vunpack.c.l.b16 %v2499
  %v2532 = vunpack.c.l.b16 %v2500
  %v2533 = vunpack.c.l.b16 %v2501
  %v2534 = vunpack.c.l.b16 %v2502
  %v2535 = vpack.c.b16 %v2520, %v2519
  %v2536 = vpack.c.b16 %v2522, %v2521
  %v2537 = vpack.c.b16 %v2524, %v2523
  %v2538 = vpack.c.b16 %v2526, %v2525
  %v2539 = vpack.c.b16 %v2528, %v2527
  %v2540 = vpack.c.b16 %v2530, %v2529
  %v2541 = vpack.c.b16 %v2532, %v2531
  %v2542 = vpack.c.b16 %v2534, %v2533
  %2551 = vmatprep.subr.bf16.mxu0 0
  %2552 = vmatpush1.bf16.msra.mxu0 %v779
  %2553 = vmatprep.subr.bf16.mxu0 0
  %2554 = vmatpush1.bf16.msra.mxu0 %v778
  %2555 = vmatprep.subr.bf16.mxu0 0
  %2556 = vmatpush1.bf16.msra.mxu0 %v777
  %2557 = vmatprep.subr.bf16.mxu0 0
  %2558 = vmatpush1.bf16.msra.mxu0 %v776
  %2559 = vmatprep.subr.bf16.mxu0 0
  %2560 = vmatpush1.bf16.msra.mxu0 %v775
  %2561 = vmatprep.subr.bf16.mxu0 0
  %2562 = vmatpush1.bf16.msra.mxu0 %v774
  %2563 = vmatprep.subr.bf16.mxu0 0
  %2564 = vmatpush1.bf16.msra.mxu0 %v773
  %2565 = vmatprep.subr.bf16.mxu0 0
  %2566 = vmatpush1.bf16.msra.mxu0 %v772
  %2567 = vmatprep.subr.bf16.mxu0 0
  %2568 = vmatpush2.bf16.msra.mxu0 0
  %2569 = vmatprep.subr.bf16.mxu0 0
  %2570 = vmatpush2.bf16.msra.mxu0 0
  %2571 = vmatprep.subr.bf16.mxu0 0
  %2572 = vmatpush2.bf16.msra.mxu0 0
  %2573 = vmatprep.subr.bf16.mxu0 0
  %2574 = vmatpush2.bf16.msra.mxu0 0
  %2575 = vmatprep.subr.bf16.mxu0 0
  %2576 = vmatpush2.bf16.msra.mxu0 0
  %2577 = vmatprep.subr.bf16.mxu0 0
  %2578 = vmatpush2.bf16.msra.mxu0 0
  %2579 = vmatprep.subr.bf16.mxu0 0
  %2580 = vmatpush2.bf16.msra.mxu0 0
  %2581 = vmatprep.subr.bf16.mxu0 0
  %2582 = vmatpush2.bf16.msra.mxu0 0
  %2583 = vmatprep.mubr.bf16.mxu0 0
  %2584 = vmatmul.mubr.bf16.gmra.mxu0 %v2535
  %v2585 = vpop.f32.mrf.mxu0
  %v2586 = vadd.f32 0.0, %v2585
  %v2587 = vpop.f32.mrf.mxu0
  %v2588 = vpop.f32.mrf.mxu0
  %v2589 = vadd.f32 0.0, %v2588
  %v2590 = vpop.f32.mrf.mxu0
  %2591 = vmatprep.mubr.bf16.mxu0 0
  %2592 = vmatmul.mubr.bf16.gmra.mxu0 %v2536
  %v2593 = vpop.f32.mrf.mxu0
  %v2594 = vadd.f32 0.0, %v2593
  %v2595 = vpop.f32.mrf.mxu0
  %v2596 = vpop.f32.mrf.mxu0
  %v2597 = vadd.f32 0.0, %v2596
  %v2598 = vpop.f32.mrf.mxu0
  %2599 = vmatprep.mubr.bf16.mxu0 0
  %2600 = vmatmul.mubr.bf16.gmra.mxu0 %v2537
  %v2601 = vpop.f32.mrf.mxu0
  %v2602 = vadd.f32 0.0, %v2601
  %v2603 = vpop.f32.mrf.mxu0
  %v2604 = vpop.f32.mrf.mxu0
  %v2605 = vadd.f32 0.0, %v2604
  %v2606 = vpop.f32.mrf.mxu0
  %2607 = vmatprep.mubr.bf16.mxu0 0
  %2608 = vmatmul.mubr.bf16.gmra.mxu0 %v2538
  %v2609 = vpop.f32.mrf.mxu0
  %v2610 = vadd.f32 0.0, %v2609
  %v2611 = vpop.f32.mrf.mxu0
  %v2612 = vpop.f32.mrf.mxu0
  %v2613 = vadd.f32 0.0, %v2612
  %v2614 = vpop.f32.mrf.mxu0
  %2615 = vmatprep.mubr.bf16.mxu0 0
  %2616 = vmatmul.mubr.bf16.gmra.mxu0 %v2539
  %v2617 = vpop.f32.mrf.mxu0
  %v2618 = vadd.f32 0.0, %v2617
  %v2619 = vpop.f32.mrf.mxu0
  %v2620 = vpop.f32.mrf.mxu0
  %v2621 = vadd.f32 0.0, %v2620
  %v2622 = vpop.f32.mrf.mxu0
  %2623 = vmatprep.mubr.bf16.mxu0 0
  %2624 = vmatmul.mubr.bf16.gmra.mxu0 %v2540
  %v2625 = vpop.f32.mrf.mxu0
  %v2626 = vadd.f32 0.0, %v2625
  %v2627 = vpop.f32.mrf.mxu0
  %v2628 = vpop.f32.mrf.mxu0
  %v2629 = vadd.f32 0.0, %v2628
  %v2630 = vpop.f32.mrf.mxu0
  %2631 = vmatprep.mubr.bf16.mxu0 0
  %2632 = vmatmul.mubr.bf16.gmra.mxu0 %v2541
  %v2633 = vpop.f32.mrf.mxu0
  %v2634 = vadd.f32 0.0, %v2633
  %v2635 = vpop.f32.mrf.mxu0
  %v2636 = vpop.f32.mrf.mxu0
  %v2637 = vadd.f32 0.0, %v2636
  %v2638 = vpop.f32.mrf.mxu0
  %2639 = vmatprep.mubr.bf16.mxu0 0
  %2640 = vmatmul.mubr.bf16.gmra.mxu0 %v2542
  %v2641 = vpop.f32.mrf.mxu0
  %v2642 = vadd.f32 0.0, %v2641
  %v2643 = vpop.f32.mrf.mxu0
  %v2644 = vpop.f32.mrf.mxu0
  %v2645 = vadd.f32 0.0, %v2644
  %v2646 = vpop.f32.mrf.mxu0
  %2647 = vdwg.mxu0
  %v2648 = vpack.c.bf16 %v2589, %v2586
  %v2649 = vpack.c.bf16 %v2597, %v2594
  %v2650 = vpack.c.bf16 %v2605, %v2602
  %v2651 = vpack.c.bf16 %v2613, %v2610
  %v2652 = vpack.c.bf16 %v2621, %v2618
  %v2653 = vpack.c.bf16 %v2629, %v2626
  %v2654 = vpack.c.bf16 %v2637, %v2634
  %v2655 = vpack.c.bf16 %v2645, %v2642
  %s2656 = scalar_lea.vmem %s2, 320
  %v2657 = vld [vmem:[%s2656] sm:$0xf]
  %v2658 = vld [vmem:[%s2656 + $0x4] sm:$0xf]
  %v2659 = vld [vmem:[%s2656 + $0x8] sm:$0xf]
  %v2660 = vld [vmem:[%s2656 + $0xc] sm:$0xf]
  %v2661 = vld [vmem:[%s2656 + $0x10] sm:$0xf]
  %v2662 = vld [vmem:[%s2656 + $0x14] sm:$0xf]
  %v2663 = vld [vmem:[%s2656 + $0x18] sm:$0xf]
  %v2664 = vld [vmem:[%s2656 + $0x1c] sm:$0xf]
  %v2665 = vld [vmem:[%s2656 + $0x20] sm:$0xf]
  %v2666 = vld [vmem:[%s2656 + $0x24] sm:$0xf]
  %v2667 = vld [vmem:[%s2656 + $0x28] sm:$0xf]
  %v2668 = vld [vmem:[%s2656 + $0x2c] sm:$0xf]
  %v2669 = vld [vmem:[%s2656 + $0x30] sm:$0xf]
  %v2670 = vld [vmem:[%s2656 + $0x34] sm:$0xf]
  %v2671 = vld [vmem:[%s2656 + $0x38] sm:$0xf]
  %v2672 = vld [vmem:[%s2656 + $0x3c] sm:$0xf]
  %v2689 = vunpack.c.l.b16 %v2657
  %v2690 = vunpack.c.l.b16 %v2658
  %v2691 = vunpack.c.l.b16 %v2659
  %v2692 = vunpack.c.l.b16 %v2660
  %v2693 = vunpack.c.l.b16 %v2661
  %v2694 = vunpack.c.l.b16 %v2662
  %v2695 = vunpack.c.l.b16 %v2663
  %v2696 = vunpack.c.l.b16 %v2664
  %v2697 = vunpack.c.l.b16 %v2665
  %v2698 = vunpack.c.l.b16 %v2666
  %v2699 = vunpack.c.l.b16 %v2667
  %v2700 = vunpack.c.l.b16 %v2668
  %v2701 = vunpack.c.l.b16 %v2669
  %v2702 = vunpack.c.l.b16 %v2670
  %v2703 = vunpack.c.l.b16 %v2671
  %v2704 = vunpack.c.l.b16 %v2672
  %v2705 = vpack.c.b16 %v2690, %v2689
  %v2706 = vpack.c.b16 %v2692, %v2691
  %v2707 = vpack.c.b16 %v2694, %v2693
  %v2708 = vpack.c.b16 %v2696, %v2695
  %v2709 = vpack.c.b16 %v2698, %v2697
  %v2710 = vpack.c.b16 %v2700, %v2699
  %v2711 = vpack.c.b16 %v2702, %v2701
  %v2712 = vpack.c.b16 %v2704, %v2703
  %2721 = vmatprep.subr.bf16.mxu0 0
  %2722 = vmatpush1.bf16.msra.mxu0 %v2712
  %2723 = vmatprep.subr.bf16.mxu0 0
  %2724 = vmatpush1.bf16.msra.mxu0 %v2711
  %2725 = vmatprep.subr.bf16.mxu0 0
  %2726 = vmatpush1.bf16.msra.mxu0 %v2710
  %2727 = vmatprep.subr.bf16.mxu0 0
  %2728 = vmatpush1.bf16.msra.mxu0 %v2709
  %2729 = vmatprep.subr.bf16.mxu0 0
  %2730 = vmatpush1.bf16.msra.mxu0 %v2708
  %2731 = vmatprep.subr.bf16.mxu0 0
  %2732 = vmatpush1.bf16.msra.mxu0 %v2707
  %2733 = vmatprep.subr.bf16.mxu0 0
  %2734 = vmatpush1.bf16.msra.mxu0 %v2706
  %2735 = vmatprep.subr.bf16.mxu0 0
  %2736 = vmatpush1.bf16.msra.mxu0 %v2705
  %2737 = vmatprep.subr.bf16.mxu0 0
  %2738 = vmatpush2.bf16.msra.mxu0 0
  %2739 = vmatprep.subr.bf16.mxu0 0
  %2740 = vmatpush2.bf16.msra.mxu0 0
  %2741 = vmatprep.subr.bf16.mxu0 0
  %2742 = vmatpush2.bf16.msra.mxu0 0
  %2743 = vmatprep.subr.bf16.mxu0 0
  %2744 = vmatpush2.bf16.msra.mxu0 0
  %2745 = vmatprep.subr.bf16.mxu0 0
  %2746 = vmatpush2.bf16.msra.mxu0 0
  %2747 = vmatprep.subr.bf16.mxu0 0
  %2748 = vmatpush2.bf16.msra.mxu0 0
  %2749 = vmatprep.subr.bf16.mxu0 0
  %2750 = vmatpush2.bf16.msra.mxu0 0
  %2751 = vmatprep.subr.bf16.mxu0 0
  %2752 = vmatpush2.bf16.msra.mxu0 0
  %2753 = vmatprep.mubr.bf16.mxu0 0
  %2754 = vmatmul.mubr.bf16.gmra.mxu0 %v2648
  %v2755 = vpop.f32.mrf.mxu0
  %v2756 = vadd.f32 0.0, %v2755
  %v2757 = vpop.f32.mrf.mxu0
  %v2758 = vpop.f32.mrf.mxu0
  %v2759 = vadd.f32 0.0, %v2758
  %v2760 = vpop.f32.mrf.mxu0
  %2761 = vmatprep.mubr.bf16.mxu0 0
  %2762 = vmatmul.mubr.bf16.gmra.mxu0 %v2649
  %v2763 = vpop.f32.mrf.mxu0
  %v2764 = vadd.f32 0.0, %v2763
  %v2765 = vpop.f32.mrf.mxu0
  %v2766 = vpop.f32.mrf.mxu0
  %v2767 = vadd.f32 0.0, %v2766
  %v2768 = vpop.f32.mrf.mxu0
  %2769 = vmatprep.mubr.bf16.mxu0 0
  %2770 = vmatmul.mubr.bf16.gmra.mxu0 %v2650
  %v2771 = vpop.f32.mrf.mxu0
  %v2772 = vadd.f32 0.0, %v2771
  %v2773 = vpop.f32.mrf.mxu0
  %v2774 = vpop.f32.mrf.mxu0
  %v2775 = vadd.f32 0.0, %v2774
  %v2776 = vpop.f32.mrf.mxu0
  %2777 = vmatprep.mubr.bf16.mxu0 0
  %2778 = vmatmul.mubr.bf16.gmra.mxu0 %v2651
  %v2779 = vpop.f32.mrf.mxu0
  %v2780 = vadd.f32 0.0, %v2779
  %v2781 = vpop.f32.mrf.mxu0
  %v2782 = vpop.f32.mrf.mxu0
  %v2783 = vadd.f32 0.0, %v2782
  %v2784 = vpop.f32.mrf.mxu0
  %2785 = vmatprep.mubr.bf16.mxu0 0
  %2786 = vmatmul.mubr.bf16.gmra.mxu0 %v2652
  %v2787 = vpop.f32.mrf.mxu0
  %v2788 = vadd.f32 0.0, %v2787
  %v2789 = vpop.f32.mrf.mxu0
  %v2790 = vpop.f32.mrf.mxu0
  %v2791 = vadd.f32 0.0, %v2790
  %v2792 = vpop.f32.mrf.mxu0
  %2793 = vmatprep.mubr.bf16.mxu0 0
  %2794 = vmatmul.mubr.bf16.gmra.mxu0 %v2653
  %v2795 = vpop.f32.mrf.mxu0
  %v2796 = vadd.f32 0.0, %v2795
  %v2797 = vpop.f32.mrf.mxu0
  %v2798 = vpop.f32.mrf.mxu0
  %v2799 = vadd.f32 0.0, %v2798
  %v2800 = vpop.f32.mrf.mxu0
  %2801 = vmatprep.mubr.bf16.mxu0 0
  %2802 = vmatmul.mubr.bf16.gmra.mxu0 %v2654
  %v2803 = vpop.f32.mrf.mxu0
  %v2804 = vadd.f32 0.0, %v2803
  %v2805 = vpop.f32.mrf.mxu0
  %v2806 = vpop.f32.mrf.mxu0
  %v2807 = vadd.f32 0.0, %v2806
  %v2808 = vpop.f32.mrf.mxu0
  %2809 = vmatprep.mubr.bf16.mxu0 0
  %2810 = vmatmul.mubr.bf16.gmra.mxu0 %v2655
  %v2811 = vpop.f32.mrf.mxu0
  %v2812 = vadd.f32 0.0, %v2811
  %v2813 = vpop.f32.mrf.mxu0
  %v2814 = vpop.f32.mrf.mxu0
  %v2815 = vadd.f32 0.0, %v2814
  %v2816 = vpop.f32.mrf.mxu0
  %2817 = vdwg.mxu0
  %v2818 = vadd.f32 %v2470, %v2756
  %v2819 = vadd.f32 %v2471, %v2759
  %v2820 = vadd.f32 %v2472, %v2764
  %v2821 = vadd.f32 %v2473, %v2767
  %v2822 = vadd.f32 %v2474, %v2772
  %v2823 = vadd.f32 %v2475, %v2775
  %v2824 = vadd.f32 %v2476, %v2780
  %v2825 = vadd.f32 %v2477, %v2783
  %v2826 = vadd.f32 %v2478, %v2788
  %v2827 = vadd.f32 %v2479, %v2791
  %v2828 = vadd.f32 %v2480, %v2796
  %v2829 = vadd.f32 %v2481, %v2799
  %v2830 = vadd.f32 %v2482, %v2804
  %v2831 = vadd.f32 %v2483, %v2807
  %v2832 = vadd.f32 %v2484, %v2812
  %v2833 = vadd.f32 %v2485, %v2815
  %s2834 = scalar_lea.vmem %s3, 384
  %v2835 = vld [vmem:[%s2834] sm:$0xf]
  %v2836 = vld [vmem:[%s2834 + $0x4] sm:$0xf]
  %v2837 = vld [vmem:[%s2834 + $0x8] sm:$0xf]
  %v2838 = vld [vmem:[%s2834 + $0xc] sm:$0xf]
  %v2839 = vld [vmem:[%s2834 + $0x10] sm:$0xf]
  %v2840 = vld [vmem:[%s2834 + $0x14] sm:$0xf]
  %v2841 = vld [vmem:[%s2834 + $0x18] sm:$0xf]
  %v2842 = vld [vmem:[%s2834 + $0x1c] sm:$0xf]
  %v2843 = vld [vmem:[%s2834 + $0x20] sm:$0xf]
  %v2844 = vld [vmem:[%s2834 + $0x24] sm:$0xf]
  %v2845 = vld [vmem:[%s2834 + $0x28] sm:$0xf]
  %v2846 = vld [vmem:[%s2834 + $0x2c] sm:$0xf]
  %v2847 = vld [vmem:[%s2834 + $0x30] sm:$0xf]
  %v2848 = vld [vmem:[%s2834 + $0x34] sm:$0xf]
  %v2849 = vld [vmem:[%s2834 + $0x38] sm:$0xf]
  %v2850 = vld [vmem:[%s2834 + $0x3c] sm:$0xf]
  %v2867 = vunpack.c.l.b16 %v2835
  %v2868 = vunpack.c.l.b16 %v2836
  %v2869 = vunpack.c.l.b16 %v2837
  %v2870 = vunpack.c.l.b16 %v2838
  %v2871 = vunpack.c.l.b16 %v2839
  %v2872 = vunpack.c.l.b16 %v2840
  %v2873 = vunpack.c.l.b16 %v2841
  %v2874 = vunpack.c.l.b16 %v2842
  %v2875 = vunpack.c.l.b16 %v2843
  %v2876 = vunpack.c.l.b16 %v2844
  %v2877 = vunpack.c.l.b16 %v2845
  %v2878 = vunpack.c.l.b16 %v2846
  %v2879 = vunpack.c.l.b16 %v2847
  %v2880 = vunpack.c.l.b16 %v2848
  %v2881 = vunpack.c.l.b16 %v2849
  %v2882 = vunpack.c.l.b16 %v2850
  %v2883 = vpack.c.b16 %v2868, %v2867
  %v2884 = vpack.c.b16 %v2870, %v2869
  %v2885 = vpack.c.b16 %v2872, %v2871
  %v2886 = vpack.c.b16 %v2874, %v2873
  %v2887 = vpack.c.b16 %v2876, %v2875
  %v2888 = vpack.c.b16 %v2878, %v2877
  %v2889 = vpack.c.b16 %v2880, %v2879
  %v2890 = vpack.c.b16 %v2882, %v2881
  %2899 = vmatprep.subr.bf16.mxu0 0
  %2900 = vmatpush1.bf16.msra.mxu0 %v779
  %2901 = vmatprep.subr.bf16.mxu0 0
  %2902 = vmatpush1.bf16.msra.mxu0 %v778
  %2903 = vmatprep.subr.bf16.mxu0 0
  %2904 = vmatpush1.bf16.msra.mxu0 %v777
  %2905 = vmatprep.subr.bf16.mxu0 0
  %2906 = vmatpush1.bf16.msra.mxu0 %v776
  %2907 = vmatprep.subr.bf16.mxu0 0
  %2908 = vmatpush1.bf16.msra.mxu0 %v775
  %2909 = vmatprep.subr.bf16.mxu0 0
  %2910 = vmatpush1.bf16.msra.mxu0 %v774
  %2911 = vmatprep.subr.bf16.mxu0 0
  %2912 = vmatpush1.bf16.msra.mxu0 %v773
  %2913 = vmatprep.subr.bf16.mxu0 0
  %2914 = vmatpush1.bf16.msra.mxu0 %v772
  %2915 = vmatprep.subr.bf16.mxu0 0
  %2916 = vmatpush2.bf16.msra.mxu0 0
  %2917 = vmatprep.subr.bf16.mxu0 0
  %2918 = vmatpush2.bf16.msra.mxu0 0
  %2919 = vmatprep.subr.bf16.mxu0 0
  %2920 = vmatpush2.bf16.msra.mxu0 0
  %2921 = vmatprep.subr.bf16.mxu0 0
  %2922 = vmatpush2.bf16.msra.mxu0 0
  %2923 = vmatprep.subr.bf16.mxu0 0
  %2924 = vmatpush2.bf16.msra.mxu0 0
  %2925 = vmatprep.subr.bf16.mxu0 0
  %2926 = vmatpush2.bf16.msra.mxu0 0
  %2927 = vmatprep.subr.bf16.mxu0 0
  %2928 = vmatpush2.bf16.msra.mxu0 0
  %2929 = vmatprep.subr.bf16.mxu0 0
  %2930 = vmatpush2.bf16.msra.mxu0 0
  %2931 = vmatprep.mubr.bf16.mxu0 0
  %2932 = vmatmul.mubr.bf16.gmra.mxu0 %v2883
  %v2933 = vpop.f32.mrf.mxu0
  %v2934 = vadd.f32 0.0, %v2933
  %v2935 = vpop.f32.mrf.mxu0
  %v2936 = vpop.f32.mrf.mxu0
  %v2937 = vadd.f32 0.0, %v2936
  %v2938 = vpop.f32.mrf.mxu0
  %2939 = vmatprep.mubr.bf16.mxu0 0
  %2940 = vmatmul.mubr.bf16.gmra.mxu0 %v2884
  %v2941 = vpop.f32.mrf.mxu0
  %v2942 = vadd.f32 0.0, %v2941
  %v2943 = vpop.f32.mrf.mxu0
  %v2944 = vpop.f32.mrf.mxu0
  %v2945 = vadd.f32 0.0, %v2944
  %v2946 = vpop.f32.mrf.mxu0
  %2947 = vmatprep.mubr.bf16.mxu0 0
  %2948 = vmatmul.mubr.bf16.gmra.mxu0 %v2885
  %v2949 = vpop.f32.mrf.mxu0
  %v2950 = vadd.f32 0.0, %v2949
  %v2951 = vpop.f32.mrf.mxu0
  %v2952 = vpop.f32.mrf.mxu0
  %v2953 = vadd.f32 0.0, %v2952
  %v2954 = vpop.f32.mrf.mxu0
  %2955 = vmatprep.mubr.bf16.mxu0 0
  %2956 = vmatmul.mubr.bf16.gmra.mxu0 %v2886
  %v2957 = vpop.f32.mrf.mxu0
  %v2958 = vadd.f32 0.0, %v2957
  %v2959 = vpop.f32.mrf.mxu0
  %v2960 = vpop.f32.mrf.mxu0
  %v2961 = vadd.f32 0.0, %v2960
  %v2962 = vpop.f32.mrf.mxu0
  %2963 = vmatprep.mubr.bf16.mxu0 0
  %2964 = vmatmul.mubr.bf16.gmra.mxu0 %v2887
  %v2965 = vpop.f32.mrf.mxu0
  %v2966 = vadd.f32 0.0, %v2965
  %v2967 = vpop.f32.mrf.mxu0
  %v2968 = vpop.f32.mrf.mxu0
  %v2969 = vadd.f32 0.0, %v2968
  %v2970 = vpop.f32.mrf.mxu0
  %2971 = vmatprep.mubr.bf16.mxu0 0
  %2972 = vmatmul.mubr.bf16.gmra.mxu0 %v2888
  %v2973 = vpop.f32.mrf.mxu0
  %v2974 = vadd.f32 0.0, %v2973
  %v2975 = vpop.f32.mrf.mxu0
  %v2976 = vpop.f32.mrf.mxu0
  %v2977 = vadd.f32 0.0, %v2976
  %v2978 = vpop.f32.mrf.mxu0
  %2979 = vmatprep.mubr.bf16.mxu0 0
  %2980 = vmatmul.mubr.bf16.gmra.mxu0 %v2889
  %v2981 = vpop.f32.mrf.mxu0
  %v2982 = vadd.f32 0.0, %v2981
  %v2983 = vpop.f32.mrf.mxu0
  %v2984 = vpop.f32.mrf.mxu0
  %v2985 = vadd.f32 0.0, %v2984
  %v2986 = vpop.f32.mrf.mxu0
  %2987 = vmatprep.mubr.bf16.mxu0 0
  %2988 = vmatmul.mubr.bf16.gmra.mxu0 %v2890
  %v2989 = vpop.f32.mrf.mxu0
  %v2990 = vadd.f32 0.0, %v2989
  %v2991 = vpop.f32.mrf.mxu0
  %v2992 = vpop.f32.mrf.mxu0
  %v2993 = vadd.f32 0.0, %v2992
  %v2994 = vpop.f32.mrf.mxu0
  %2995 = vdwg.mxu0
  %v2996 = vpack.c.bf16 %v2937, %v2934
  %v2997 = vpack.c.bf16 %v2945, %v2942
  %v2998 = vpack.c.bf16 %v2953, %v2950
  %v2999 = vpack.c.bf16 %v2961, %v2958
  %v3000 = vpack.c.bf16 %v2969, %v2966
  %v3001 = vpack.c.bf16 %v2977, %v2974
  %v3002 = vpack.c.bf16 %v2985, %v2982
  %v3003 = vpack.c.bf16 %v2993, %v2990
  %s3004 = scalar_lea.vmem %s2, 384
  %v3005 = vld [vmem:[%s3004] sm:$0xf]
  %v3006 = vld [vmem:[%s3004 + $0x4] sm:$0xf]
  %v3007 = vld [vmem:[%s3004 + $0x8] sm:$0xf]
  %v3008 = vld [vmem:[%s3004 + $0xc] sm:$0xf]
  %v3009 = vld [vmem:[%s3004 + $0x10] sm:$0xf]
  %v3010 = vld [vmem:[%s3004 + $0x14] sm:$0xf]
  %v3011 = vld [vmem:[%s3004 + $0x18] sm:$0xf]
  %v3012 = vld [vmem:[%s3004 + $0x1c] sm:$0xf]
  %v3013 = vld [vmem:[%s3004 + $0x20] sm:$0xf]
  %v3014 = vld [vmem:[%s3004 + $0x24] sm:$0xf]
  %v3015 = vld [vmem:[%s3004 + $0x28] sm:$0xf]
  %v3016 = vld [vmem:[%s3004 + $0x2c] sm:$0xf]
  %v3017 = vld [vmem:[%s3004 + $0x30] sm:$0xf]
  %v3018 = vld [vmem:[%s3004 + $0x34] sm:$0xf]
  %v3019 = vld [vmem:[%s3004 + $0x38] sm:$0xf]
  %v3020 = vld [vmem:[%s3004 + $0x3c] sm:$0xf]
  %v3037 = vunpack.c.l.b16 %v3005
  %v3038 = vunpack.c.l.b16 %v3006
  %v3039 = vunpack.c.l.b16 %v3007
  %v3040 = vunpack.c.l.b16 %v3008
  %v3041 = vunpack.c.l.b16 %v3009
  %v3042 = vunpack.c.l.b16 %v3010
  %v3043 = vunpack.c.l.b16 %v3011
  %v3044 = vunpack.c.l.b16 %v3012
  %v3045 = vunpack.c.l.b16 %v3013
  %v3046 = vunpack.c.l.b16 %v3014
  %v3047 = vunpack.c.l.b16 %v3015
  %v3048 = vunpack.c.l.b16 %v3016
  %v3049 = vunpack.c.l.b16 %v3017
  %v3050 = vunpack.c.l.b16 %v3018
  %v3051 = vunpack.c.l.b16 %v3019
  %v3052 = vunpack.c.l.b16 %v3020
  %v3053 = vpack.c.b16 %v3038, %v3037
  %v3054 = vpack.c.b16 %v3040, %v3039
  %v3055 = vpack.c.b16 %v3042, %v3041
  %v3056 = vpack.c.b16 %v3044, %v3043
  %v3057 = vpack.c.b16 %v3046, %v3045
  %v3058 = vpack.c.b16 %v3048, %v3047
  %v3059 = vpack.c.b16 %v3050, %v3049
  %v3060 = vpack.c.b16 %v3052, %v3051
  %3069 = vmatprep.subr.bf16.mxu0 0
  %3070 = vmatpush1.bf16.msra.mxu0 %v3060
  %3071 = vmatprep.subr.bf16.mxu0 0
  %3072 = vmatpush1.bf16.msra.mxu0 %v3059
  %3073 = vmatprep.subr.bf16.mxu0 0
  %3074 = vmatpush1.bf16.msra.mxu0 %v3058
  %3075 = vmatprep.subr.bf16.mxu0 0
  %3076 = vmatpush1.bf16.msra.mxu0 %v3057
  %3077 = vmatprep.subr.bf16.mxu0 0
  %3078 = vmatpush1.bf16.msra.mxu0 %v3056
  %3079 = vmatprep.subr.bf16.mxu0 0
  %3080 = vmatpush1.bf16.msra.mxu0 %v3055
  %3081 = vmatprep.subr.bf16.mxu0 0
  %3082 = vmatpush1.bf16.msra.mxu0 %v3054
  %3083 = vmatprep.subr.bf16.mxu0 0
  %3084 = vmatpush1.bf16.msra.mxu0 %v3053
  %3085 = vmatprep.subr.bf16.mxu0 0
  %3086 = vmatpush2.bf16.msra.mxu0 0
  %3087 = vmatprep.subr.bf16.mxu0 0
  %3088 = vmatpush2.bf16.msra.mxu0 0
  %3089 = vmatprep.subr.bf16.mxu0 0
  %3090 = vmatpush2.bf16.msra.mxu0 0
  %3091 = vmatprep.subr.bf16.mxu0 0
  %3092 = vmatpush2.bf16.msra.mxu0 0
  %3093 = vmatprep.subr.bf16.mxu0 0
  %3094 = vmatpush2.bf16.msra.mxu0 0
  %3095 = vmatprep.subr.bf16.mxu0 0
  %3096 = vmatpush2.bf16.msra.mxu0 0
  %3097 = vmatprep.subr.bf16.mxu0 0
  %3098 = vmatpush2.bf16.msra.mxu0 0
  %3099 = vmatprep.subr.bf16.mxu0 0
  %3100 = vmatpush2.bf16.msra.mxu0 0
  %3101 = vmatprep.mubr.bf16.mxu0 0
  %3102 = vmatmul.mubr.bf16.gmra.mxu0 %v2996
  %v3103 = vpop.f32.mrf.mxu0
  %v3104 = vadd.f32 0.0, %v3103
  %v3105 = vpop.f32.mrf.mxu0
  %v3106 = vpop.f32.mrf.mxu0
  %v3107 = vadd.f32 0.0, %v3106
  %v3108 = vpop.f32.mrf.mxu0
  %3109 = vmatprep.mubr.bf16.mxu0 0
  %3110 = vmatmul.mubr.bf16.gmra.mxu0 %v2997
  %v3111 = vpop.f32.mrf.mxu0
  %v3112 = vadd.f32 0.0, %v3111
  %v3113 = vpop.f32.mrf.mxu0
  %v3114 = vpop.f32.mrf.mxu0
  %v3115 = vadd.f32 0.0, %v3114
  %v3116 = vpop.f32.mrf.mxu0
  %3117 = vmatprep.mubr.bf16.mxu0 0
  %3118 = vmatmul.mubr.bf16.gmra.mxu0 %v2998
  %v3119 = vpop.f32.mrf.mxu0
  %v3120 = vadd.f32 0.0, %v3119
  %v3121 = vpop.f32.mrf.mxu0
  %v3122 = vpop.f32.mrf.mxu0
  %v3123 = vadd.f32 0.0, %v3122
  %v3124 = vpop.f32.mrf.mxu0
  %3125 = vmatprep.mubr.bf16.mxu0 0
  %3126 = vmatmul.mubr.bf16.gmra.mxu0 %v2999
  %v3127 = vpop.f32.mrf.mxu0
  %v3128 = vadd.f32 0.0, %v3127
  %v3129 = vpop.f32.mrf.mxu0
  %v3130 = vpop.f32.mrf.mxu0
  %v3131 = vadd.f32 0.0, %v3130
  %v3132 = vpop.f32.mrf.mxu0
  %3133 = vmatprep.mubr.bf16.mxu0 0
  %3134 = vmatmul.mubr.bf16.gmra.mxu0 %v3000
  %v3135 = vpop.f32.mrf.mxu0
  %v3136 = vadd.f32 0.0, %v3135
  %v3137 = vpop.f32.mrf.mxu0
  %v3138 = vpop.f32.mrf.mxu0
  %v3139 = vadd.f32 0.0, %v3138
  %v3140 = vpop.f32.mrf.mxu0
  %3141 = vmatprep.mubr.bf16.mxu0 0
  %3142 = vmatmul.mubr.bf16.gmra.mxu0 %v3001
  %v3143 = vpop.f32.mrf.mxu0
  %v3144 = vadd.f32 0.0, %v3143
  %v3145 = vpop.f32.mrf.mxu0
  %v3146 = vpop.f32.mrf.mxu0
  %v3147 = vadd.f32 0.0, %v3146
  %v3148 = vpop.f32.mrf.mxu0
  %3149 = vmatprep.mubr.bf16.mxu0 0
  %3150 = vmatmul.mubr.bf16.gmra.mxu0 %v3002
  %v3151 = vpop.f32.mrf.mxu0
  %v3152 = vadd.f32 0.0, %v3151
  %v3153 = vpop.f32.mrf.mxu0
  %v3154 = vpop.f32.mrf.mxu0
  %v3155 = vadd.f32 0.0, %v3154
  %v3156 = vpop.f32.mrf.mxu0
  %3157 = vmatprep.mubr.bf16.mxu0 0
  %3158 = vmatmul.mubr.bf16.gmra.mxu0 %v3003
  %v3159 = vpop.f32.mrf.mxu0
  %v3160 = vadd.f32 0.0, %v3159
  %v3161 = vpop.f32.mrf.mxu0
  %v3162 = vpop.f32.mrf.mxu0
  %v3163 = vadd.f32 0.0, %v3162
  %v3164 = vpop.f32.mrf.mxu0
  %3165 = vdwg.mxu0
  %v3166 = vadd.f32 %v2818, %v3104
  %v3167 = vadd.f32 %v2819, %v3107
  %v3168 = vadd.f32 %v2820, %v3112
  %v3169 = vadd.f32 %v2821, %v3115
  %v3170 = vadd.f32 %v2822, %v3120
  %v3171 = vadd.f32 %v2823, %v3123
  %v3172 = vadd.f32 %v2824, %v3128
  %v3173 = vadd.f32 %v2825, %v3131
  %v3174 = vadd.f32 %v2826, %v3136
  %v3175 = vadd.f32 %v2827, %v3139
  %v3176 = vadd.f32 %v2828, %v3144
  %v3177 = vadd.f32 %v2829, %v3147
  %v3178 = vadd.f32 %v2830, %v3152
  %v3179 = vadd.f32 %v2831, %v3155
  %v3180 = vadd.f32 %v2832, %v3160
  %v3181 = vadd.f32 %v2833, %v3163
  %s3182 = scalar_lea.vmem %s3, 448
  %v3183 = vld [vmem:[%s3182] sm:$0xf]
  %v3184 = vld [vmem:[%s3182 + $0x4] sm:$0xf]
  %v3185 = vld [vmem:[%s3182 + $0x8] sm:$0xf]
  %v3186 = vld [vmem:[%s3182 + $0xc] sm:$0xf]
  %v3187 = vld [vmem:[%s3182 + $0x10] sm:$0xf]
  %v3188 = vld [vmem:[%s3182 + $0x14] sm:$0xf]
  %v3189 = vld [vmem:[%s3182 + $0x18] sm:$0xf]
  %v3190 = vld [vmem:[%s3182 + $0x1c] sm:$0xf]
  %v3191 = vld [vmem:[%s3182 + $0x20] sm:$0xf]
  %v3192 = vld [vmem:[%s3182 + $0x24] sm:$0xf]
  %v3193 = vld [vmem:[%s3182 + $0x28] sm:$0xf]
  %v3194 = vld [vmem:[%s3182 + $0x2c] sm:$0xf]
  %v3195 = vld [vmem:[%s3182 + $0x30] sm:$0xf]
  %v3196 = vld [vmem:[%s3182 + $0x34] sm:$0xf]
  %v3197 = vld [vmem:[%s3182 + $0x38] sm:$0xf]
  %v3198 = vld [vmem:[%s3182 + $0x3c] sm:$0xf]
  %v3215 = vunpack.c.l.b16 %v3183
  %v3216 = vunpack.c.l.b16 %v3184
  %v3217 = vunpack.c.l.b16 %v3185
  %v3218 = vunpack.c.l.b16 %v3186
  %v3219 = vunpack.c.l.b16 %v3187
  %v3220 = vunpack.c.l.b16 %v3188
  %v3221 = vunpack.c.l.b16 %v3189
  %v3222 = vunpack.c.l.b16 %v3190
  %v3223 = vunpack.c.l.b16 %v3191
  %v3224 = vunpack.c.l.b16 %v3192
  %v3225 = vunpack.c.l.b16 %v3193
  %v3226 = vunpack.c.l.b16 %v3194
  %v3227 = vunpack.c.l.b16 %v3195
  %v3228 = vunpack.c.l.b16 %v3196
  %v3229 = vunpack.c.l.b16 %v3197
  %v3230 = vunpack.c.l.b16 %v3198
  %v3231 = vpack.c.b16 %v3216, %v3215
  %v3232 = vpack.c.b16 %v3218, %v3217
  %v3233 = vpack.c.b16 %v3220, %v3219
  %v3234 = vpack.c.b16 %v3222, %v3221
  %v3235 = vpack.c.b16 %v3224, %v3223
  %v3236 = vpack.c.b16 %v3226, %v3225
  %v3237 = vpack.c.b16 %v3228, %v3227
  %v3238 = vpack.c.b16 %v3230, %v3229
  %3247 = vmatprep.subr.bf16.mxu0 0
  %3248 = vmatpush1.bf16.msra.mxu0 %v779
  %3249 = vmatprep.subr.bf16.mxu0 0
  %3250 = vmatpush1.bf16.msra.mxu0 %v778
  %3251 = vmatprep.subr.bf16.mxu0 0
  %3252 = vmatpush1.bf16.msra.mxu0 %v777
  %3253 = vmatprep.subr.bf16.mxu0 0
  %3254 = vmatpush1.bf16.msra.mxu0 %v776
  %3255 = vmatprep.subr.bf16.mxu0 0
  %3256 = vmatpush1.bf16.msra.mxu0 %v775
  %3257 = vmatprep.subr.bf16.mxu0 0
  %3258 = vmatpush1.bf16.msra.mxu0 %v774
  %3259 = vmatprep.subr.bf16.mxu0 0
  %3260 = vmatpush1.bf16.msra.mxu0 %v773
  %3261 = vmatprep.subr.bf16.mxu0 0
  %3262 = vmatpush1.bf16.msra.mxu0 %v772
  %3263 = vmatprep.subr.bf16.mxu0 0
  %3264 = vmatpush2.bf16.msra.mxu0 0
  %3265 = vmatprep.subr.bf16.mxu0 0
  %3266 = vmatpush2.bf16.msra.mxu0 0
  %3267 = vmatprep.subr.bf16.mxu0 0
  %3268 = vmatpush2.bf16.msra.mxu0 0
  %3269 = vmatprep.subr.bf16.mxu0 0
  %3270 = vmatpush2.bf16.msra.mxu0 0
  %3271 = vmatprep.subr.bf16.mxu0 0
  %3272 = vmatpush2.bf16.msra.mxu0 0
  %3273 = vmatprep.subr.bf16.mxu0 0
  %3274 = vmatpush2.bf16.msra.mxu0 0
  %3275 = vmatprep.subr.bf16.mxu0 0
  %3276 = vmatpush2.bf16.msra.mxu0 0
  %3277 = vmatprep.subr.bf16.mxu0 0
  %3278 = vmatpush2.bf16.msra.mxu0 0
  %3279 = vmatprep.mubr.bf16.mxu0 0
  %3280 = vmatmul.mubr.bf16.gmra.mxu0 %v3231
  %v3281 = vpop.f32.mrf.mxu0
  %v3282 = vadd.f32 0.0, %v3281
  %v3283 = vpop.f32.mrf.mxu0
  %v3284 = vpop.f32.mrf.mxu0
  %v3285 = vadd.f32 0.0, %v3284
  %v3286 = vpop.f32.mrf.mxu0
  %3287 = vmatprep.mubr.bf16.mxu0 0
  %3288 = vmatmul.mubr.bf16.gmra.mxu0 %v3232
  %v3289 = vpop.f32.mrf.mxu0
  %v3290 = vadd.f32 0.0, %v3289
  %v3291 = vpop.f32.mrf.mxu0
  %v3292 = vpop.f32.mrf.mxu0
  %v3293 = vadd.f32 0.0, %v3292
  %v3294 = vpop.f32.mrf.mxu0
  %3295 = vmatprep.mubr.bf16.mxu0 0
  %3296 = vmatmul.mubr.bf16.gmra.mxu0 %v3233
  %v3297 = vpop.f32.mrf.mxu0
  %v3298 = vadd.f32 0.0, %v3297
  %v3299 = vpop.f32.mrf.mxu0
  %v3300 = vpop.f32.mrf.mxu0
  %v3301 = vadd.f32 0.0, %v3300
  %v3302 = vpop.f32.mrf.mxu0
  %3303 = vmatprep.mubr.bf16.mxu0 0
  %3304 = vmatmul.mubr.bf16.gmra.mxu0 %v3234
  %v3305 = vpop.f32.mrf.mxu0
  %v3306 = vadd.f32 0.0, %v3305
  %v3307 = vpop.f32.mrf.mxu0
  %v3308 = vpop.f32.mrf.mxu0
  %v3309 = vadd.f32 0.0, %v3308
  %v3310 = vpop.f32.mrf.mxu0
  %3311 = vmatprep.mubr.bf16.mxu0 0
  %3312 = vmatmul.mubr.bf16.gmra.mxu0 %v3235
  %v3313 = vpop.f32.mrf.mxu0
  %v3314 = vadd.f32 0.0, %v3313
  %v3315 = vpop.f32.mrf.mxu0
  %v3316 = vpop.f32.mrf.mxu0
  %v3317 = vadd.f32 0.0, %v3316
  %v3318 = vpop.f32.mrf.mxu0
  %3319 = vmatprep.mubr.bf16.mxu0 0
  %3320 = vmatmul.mubr.bf16.gmra.mxu0 %v3236
  %v3321 = vpop.f32.mrf.mxu0
  %v3322 = vadd.f32 0.0, %v3321
  %v3323 = vpop.f32.mrf.mxu0
  %v3324 = vpop.f32.mrf.mxu0
  %v3325 = vadd.f32 0.0, %v3324
  %v3326 = vpop.f32.mrf.mxu0
  %3327 = vmatprep.mubr.bf16.mxu0 0
  %3328 = vmatmul.mubr.bf16.gmra.mxu0 %v3237
  %v3329 = vpop.f32.mrf.mxu0
  %v3330 = vadd.f32 0.0, %v3329
  %v3331 = vpop.f32.mrf.mxu0
  %v3332 = vpop.f32.mrf.mxu0
  %v3333 = vadd.f32 0.0, %v3332
  %v3334 = vpop.f32.mrf.mxu0
  %3335 = vmatprep.mubr.bf16.mxu0 0
  %3336 = vmatmul.mubr.bf16.gmra.mxu0 %v3238
  %v3337 = vpop.f32.mrf.mxu0
  %v3338 = vadd.f32 0.0, %v3337
  %v3339 = vpop.f32.mrf.mxu0
  %v3340 = vpop.f32.mrf.mxu0
  %v3341 = vadd.f32 0.0, %v3340
  %v3342 = vpop.f32.mrf.mxu0
  %3343 = vdwg.mxu0
  %v3344 = vpack.c.bf16 %v3285, %v3282
  %v3345 = vpack.c.bf16 %v3293, %v3290
  %v3346 = vpack.c.bf16 %v3301, %v3298
  %v3347 = vpack.c.bf16 %v3309, %v3306
  %v3348 = vpack.c.bf16 %v3317, %v3314
  %v3349 = vpack.c.bf16 %v3325, %v3322
  %v3350 = vpack.c.bf16 %v3333, %v3330
  %v3351 = vpack.c.bf16 %v3341, %v3338
  %s3352 = scalar_lea.vmem %s2, 448
  %v3353 = vld [vmem:[%s3352] sm:$0xf]
  %v3354 = vld [vmem:[%s3352 + $0x4] sm:$0xf]
  %v3355 = vld [vmem:[%s3352 + $0x8] sm:$0xf]
  %v3356 = vld [vmem:[%s3352 + $0xc] sm:$0xf]
  %v3357 = vld [vmem:[%s3352 + $0x10] sm:$0xf]
  %v3358 = vld [vmem:[%s3352 + $0x14] sm:$0xf]
  %v3359 = vld [vmem:[%s3352 + $0x18] sm:$0xf]
  %v3360 = vld [vmem:[%s3352 + $0x1c] sm:$0xf]
  %v3361 = vld [vmem:[%s3352 + $0x20] sm:$0xf]
  %v3362 = vld [vmem:[%s3352 + $0x24] sm:$0xf]
  %v3363 = vld [vmem:[%s3352 + $0x28] sm:$0xf]
  %v3364 = vld [vmem:[%s3352 + $0x2c] sm:$0xf]
  %v3365 = vld [vmem:[%s3352 + $0x30] sm:$0xf]
  %v3366 = vld [vmem:[%s3352 + $0x34] sm:$0xf]
  %v3367 = vld [vmem:[%s3352 + $0x38] sm:$0xf]
  %v3368 = vld [vmem:[%s3352 + $0x3c] sm:$0xf]
  %v3385 = vunpack.c.l.b16 %v3353
  %v3386 = vunpack.c.l.b16 %v3354
  %v3387 = vunpack.c.l.b16 %v3355
  %v3388 = vunpack.c.l.b16 %v3356
  %v3389 = vunpack.c.l.b16 %v3357
  %v3390 = vunpack.c.l.b16 %v3358
  %v3391 = vunpack.c.l.b16 %v3359
  %v3392 = vunpack.c.l.b16 %v3360
  %v3393 = vunpack.c.l.b16 %v3361
  %v3394 = vunpack.c.l.b16 %v3362
  %v3395 = vunpack.c.l.b16 %v3363
  %v3396 = vunpack.c.l.b16 %v3364
  %v3397 = vunpack.c.l.b16 %v3365
  %v3398 = vunpack.c.l.b16 %v3366
  %v3399 = vunpack.c.l.b16 %v3367
  %v3400 = vunpack.c.l.b16 %v3368
  %v3401 = vpack.c.b16 %v3386, %v3385
  %v3402 = vpack.c.b16 %v3388, %v3387
  %v3403 = vpack.c.b16 %v3390, %v3389
  %v3404 = vpack.c.b16 %v3392, %v3391
  %v3405 = vpack.c.b16 %v3394, %v3393
  %v3406 = vpack.c.b16 %v3396, %v3395
  %v3407 = vpack.c.b16 %v3398, %v3397
  %v3408 = vpack.c.b16 %v3400, %v3399
  %3417 = vmatprep.subr.bf16.mxu0 0
  %3418 = vmatpush1.bf16.msra.mxu0 %v3408
  %3419 = vmatprep.subr.bf16.mxu0 0
  %3420 = vmatpush1.bf16.msra.mxu0 %v3407
  %3421 = vmatprep.subr.bf16.mxu0 0
  %3422 = vmatpush1.bf16.msra.mxu0 %v3406
  %3423 = vmatprep.subr.bf16.mxu0 0
  %3424 = vmatpush1.bf16.msra.mxu0 %v3405
  %3425 = vmatprep.subr.bf16.mxu0 0
  %3426 = vmatpush1.bf16.msra.mxu0 %v3404
  %3427 = vmatprep.subr.bf16.mxu0 0
  %3428 = vmatpush1.bf16.msra.mxu0 %v3403
  %3429 = vmatprep.subr.bf16.mxu0 0
  %3430 = vmatpush1.bf16.msra.mxu0 %v3402
  %3431 = vmatprep.subr.bf16.mxu0 0
  %3432 = vmatpush1.bf16.msra.mxu0 %v3401
  %3433 = vmatprep.subr.bf16.mxu0 0
  %3434 = vmatpush2.bf16.msra.mxu0 0
  %3435 = vmatprep.subr.bf16.mxu0 0
  %3436 = vmatpush2.bf16.msra.mxu0 0
  %3437 = vmatprep.subr.bf16.mxu0 0
  %3438 = vmatpush2.bf16.msra.mxu0 0
  %3439 = vmatprep.subr.bf16.mxu0 0
  %3440 = vmatpush2.bf16.msra.mxu0 0
  %3441 = vmatprep.subr.bf16.mxu0 0
  %3442 = vmatpush2.bf16.msra.mxu0 0
  %3443 = vmatprep.subr.bf16.mxu0 0
  %3444 = vmatpush2.bf16.msra.mxu0 0
  %3445 = vmatprep.subr.bf16.mxu0 0
  %3446 = vmatpush2.bf16.msra.mxu0 0
  %3447 = vmatprep.subr.bf16.mxu0 0
  %3448 = vmatpush2.bf16.msra.mxu0 0
  %3449 = vmatprep.mubr.bf16.mxu0 0
  %3450 = vmatmul.mubr.bf16.gmra.mxu0 %v3344
  %v3451 = vpop.f32.mrf.mxu0
  %v3452 = vadd.f32 0.0, %v3451
  %v3453 = vpop.f32.mrf.mxu0
  %v3454 = vpop.f32.mrf.mxu0
  %v3455 = vadd.f32 0.0, %v3454
  %v3456 = vpop.f32.mrf.mxu0
  %3457 = vmatprep.mubr.bf16.mxu0 0
  %3458 = vmatmul.mubr.bf16.gmra.mxu0 %v3345
  %v3459 = vpop.f32.mrf.mxu0
  %v3460 = vadd.f32 0.0, %v3459
  %v3461 = vpop.f32.mrf.mxu0
  %v3462 = vpop.f32.mrf.mxu0
  %v3463 = vadd.f32 0.0, %v3462
  %v3464 = vpop.f32.mrf.mxu0
  %3465 = vmatprep.mubr.bf16.mxu0 0
  %3466 = vmatmul.mubr.bf16.gmra.mxu0 %v3346
  %v3467 = vpop.f32.mrf.mxu0
  %v3468 = vadd.f32 0.0, %v3467
  %v3469 = vpop.f32.mrf.mxu0
  %v3470 = vpop.f32.mrf.mxu0
  %v3471 = vadd.f32 0.0, %v3470
  %v3472 = vpop.f32.mrf.mxu0
  %3473 = vmatprep.mubr.bf16.mxu0 0
  %3474 = vmatmul.mubr.bf16.gmra.mxu0 %v3347
  %v3475 = vpop.f32.mrf.mxu0
  %v3476 = vadd.f32 0.0, %v3475
  %v3477 = vpop.f32.mrf.mxu0
  %v3478 = vpop.f32.mrf.mxu0
  %v3479 = vadd.f32 0.0, %v3478
  %v3480 = vpop.f32.mrf.mxu0
  %3481 = vmatprep.mubr.bf16.mxu0 0
  %3482 = vmatmul.mubr.bf16.gmra.mxu0 %v3348
  %v3483 = vpop.f32.mrf.mxu0
  %v3484 = vadd.f32 0.0, %v3483
  %v3485 = vpop.f32.mrf.mxu0
  %v3486 = vpop.f32.mrf.mxu0
  %v3487 = vadd.f32 0.0, %v3486
  %v3488 = vpop.f32.mrf.mxu0
  %3489 = vmatprep.mubr.bf16.mxu0 0
  %3490 = vmatmul.mubr.bf16.gmra.mxu0 %v3349
  %v3491 = vpop.f32.mrf.mxu0
  %v3492 = vadd.f32 0.0, %v3491
  %v3493 = vpop.f32.mrf.mxu0
  %v3494 = vpop.f32.mrf.mxu0
  %v3495 = vadd.f32 0.0, %v3494
  %v3496 = vpop.f32.mrf.mxu0
  %3497 = vmatprep.mubr.bf16.mxu0 0
  %3498 = vmatmul.mubr.bf16.gmra.mxu0 %v3350
  %v3499 = vpop.f32.mrf.mxu0
  %v3500 = vadd.f32 0.0, %v3499
  %v3501 = vpop.f32.mrf.mxu0
  %v3502 = vpop.f32.mrf.mxu0
  %v3503 = vadd.f32 0.0, %v3502
  %v3504 = vpop.f32.mrf.mxu0
  %3505 = vmatprep.mubr.bf16.mxu0 0
  %3506 = vmatmul.mubr.bf16.gmra.mxu0 %v3351
  %v3507 = vpop.f32.mrf.mxu0
  %v3508 = vadd.f32 0.0, %v3507
  %v3509 = vpop.f32.mrf.mxu0
  %v3510 = vpop.f32.mrf.mxu0
  %v3511 = vadd.f32 0.0, %v3510
  %v3512 = vpop.f32.mrf.mxu0
  %3513 = vdwg.mxu0
  %v3514 = vadd.f32 %v3166, %v3452
  %v3515 = vadd.f32 %v3167, %v3455
  %v3516 = vadd.f32 %v3168, %v3460
  %v3517 = vadd.f32 %v3169, %v3463
  %v3518 = vadd.f32 %v3170, %v3468
  %v3519 = vadd.f32 %v3171, %v3471
  %v3520 = vadd.f32 %v3172, %v3476
  %v3521 = vadd.f32 %v3173, %v3479
  %v3522 = vadd.f32 %v3174, %v3484
  %v3523 = vadd.f32 %v3175, %v3487
  %v3524 = vadd.f32 %v3176, %v3492
  %v3525 = vadd.f32 %v3177, %v3495
  %v3526 = vadd.f32 %v3178, %v3500
  %v3527 = vadd.f32 %v3179, %v3503
  %v3528 = vadd.f32 %v3180, %v3508
  %v3529 = vadd.f32 %v3181, %v3511
  %s3530 = scalar_lea.vmem %s3, 512
  %v3531 = vld [vmem:[%s3530] sm:$0xf]
  %v3532 = vld [vmem:[%s3530 + $0x4] sm:$0xf]
  %v3533 = vld [vmem:[%s3530 + $0x8] sm:$0xf]
  %v3534 = vld [vmem:[%s3530 + $0xc] sm:$0xf]
  %v3535 = vld [vmem:[%s3530 + $0x10] sm:$0xf]
  %v3536 = vld [vmem:[%s3530 + $0x14] sm:$0xf]
  %v3537 = vld [vmem:[%s3530 + $0x18] sm:$0xf]
  %v3538 = vld [vmem:[%s3530 + $0x1c] sm:$0xf]
  %v3539 = vld [vmem:[%s3530 + $0x20] sm:$0xf]
  %v3540 = vld [vmem:[%s3530 + $0x24] sm:$0xf]
  %v3541 = vld [vmem:[%s3530 + $0x28] sm:$0xf]
  %v3542 = vld [vmem:[%s3530 + $0x2c] sm:$0xf]
  %v3543 = vld [vmem:[%s3530 + $0x30] sm:$0xf]
  %v3544 = vld [vmem:[%s3530 + $0x34] sm:$0xf]
  %v3545 = vld [vmem:[%s3530 + $0x38] sm:$0xf]
  %v3546 = vld [vmem:[%s3530 + $0x3c] sm:$0xf]
  %v3563 = vunpack.c.l.b16 %v3531
  %v3564 = vunpack.c.l.b16 %v3532
  %v3565 = vunpack.c.l.b16 %v3533
  %v3566 = vunpack.c.l.b16 %v3534
  %v3567 = vunpack.c.l.b16 %v3535
  %v3568 = vunpack.c.l.b16 %v3536
  %v3569 = vunpack.c.l.b16 %v3537
  %v3570 = vunpack.c.l.b16 %v3538
  %v3571 = vunpack.c.l.b16 %v3539
  %v3572 = vunpack.c.l.b16 %v3540
  %v3573 = vunpack.c.l.b16 %v3541
  %v3574 = vunpack.c.l.b16 %v3542
  %v3575 = vunpack.c.l.b16 %v3543
  %v3576 = vunpack.c.l.b16 %v3544
  %v3577 = vunpack.c.l.b16 %v3545
  %v3578 = vunpack.c.l.b16 %v3546
  %v3579 = vpack.c.b16 %v3564, %v3563
  %v3580 = vpack.c.b16 %v3566, %v3565
  %v3581 = vpack.c.b16 %v3568, %v3567
  %v3582 = vpack.c.b16 %v3570, %v3569
  %v3583 = vpack.c.b16 %v3572, %v3571
  %v3584 = vpack.c.b16 %v3574, %v3573
  %v3585 = vpack.c.b16 %v3576, %v3575
  %v3586 = vpack.c.b16 %v3578, %v3577
  %3595 = vmatprep.subr.bf16.mxu0 0
  %3596 = vmatpush1.bf16.msra.mxu0 %v779
  %3597 = vmatprep.subr.bf16.mxu0 0
  %3598 = vmatpush1.bf16.msra.mxu0 %v778
  %3599 = vmatprep.subr.bf16.mxu0 0
  %3600 = vmatpush1.bf16.msra.mxu0 %v777
  %3601 = vmatprep.subr.bf16.mxu0 0
  %3602 = vmatpush1.bf16.msra.mxu0 %v776
  %3603 = vmatprep.subr.bf16.mxu0 0
  %3604 = vmatpush1.bf16.msra.mxu0 %v775
  %3605 = vmatprep.subr.bf16.mxu0 0
  %3606 = vmatpush1.bf16.msra.mxu0 %v774
  %3607 = vmatprep.subr.bf16.mxu0 0
  %3608 = vmatpush1.bf16.msra.mxu0 %v773
  %3609 = vmatprep.subr.bf16.mxu0 0
  %3610 = vmatpush1.bf16.msra.mxu0 %v772
  %3611 = vmatprep.subr.bf16.mxu0 0
  %3612 = vmatpush2.bf16.msra.mxu0 0
  %3613 = vmatprep.subr.bf16.mxu0 0
  %3614 = vmatpush2.bf16.msra.mxu0 0
  %3615 = vmatprep.subr.bf16.mxu0 0
  %3616 = vmatpush2.bf16.msra.mxu0 0
  %3617 = vmatprep.subr.bf16.mxu0 0
  %3618 = vmatpush2.bf16.msra.mxu0 0
  %3619 = vmatprep.subr.bf16.mxu0 0
  %3620 = vmatpush2.bf16.msra.mxu0 0
  %3621 = vmatprep.subr.bf16.mxu0 0
  %3622 = vmatpush2.bf16.msra.mxu0 0
  %3623 = vmatprep.subr.bf16.mxu0 0
  %3624 = vmatpush2.bf16.msra.mxu0 0
  %3625 = vmatprep.subr.bf16.mxu0 0
  %3626 = vmatpush2.bf16.msra.mxu0 0
  %3627 = vmatprep.mubr.bf16.mxu0 0
  %3628 = vmatmul.mubr.bf16.gmra.mxu0 %v3579
  %v3629 = vpop.f32.mrf.mxu0
  %v3630 = vadd.f32 0.0, %v3629
  %v3631 = vpop.f32.mrf.mxu0
  %v3632 = vpop.f32.mrf.mxu0
  %v3633 = vadd.f32 0.0, %v3632
  %v3634 = vpop.f32.mrf.mxu0
  %3635 = vmatprep.mubr.bf16.mxu0 0
  %3636 = vmatmul.mubr.bf16.gmra.mxu0 %v3580
  %v3637 = vpop.f32.mrf.mxu0
  %v3638 = vadd.f32 0.0, %v3637
  %v3639 = vpop.f32.mrf.mxu0
  %v3640 = vpop.f32.mrf.mxu0
  %v3641 = vadd.f32 0.0, %v3640
  %v3642 = vpop.f32.mrf.mxu0
  %3643 = vmatprep.mubr.bf16.mxu0 0
  %3644 = vmatmul.mubr.bf16.gmra.mxu0 %v3581
  %v3645 = vpop.f32.mrf.mxu0
  %v3646 = vadd.f32 0.0, %v3645
  %v3647 = vpop.f32.mrf.mxu0
  %v3648 = vpop.f32.mrf.mxu0
  %v3649 = vadd.f32 0.0, %v3648
  %v3650 = vpop.f32.mrf.mxu0
  %3651 = vmatprep.mubr.bf16.mxu0 0
  %3652 = vmatmul.mubr.bf16.gmra.mxu0 %v3582
  %v3653 = vpop.f32.mrf.mxu0
  %v3654 = vadd.f32 0.0, %v3653
  %v3655 = vpop.f32.mrf.mxu0
  %v3656 = vpop.f32.mrf.mxu0
  %v3657 = vadd.f32 0.0, %v3656
  %v3658 = vpop.f32.mrf.mxu0
  %3659 = vmatprep.mubr.bf16.mxu0 0
  %3660 = vmatmul.mubr.bf16.gmra.mxu0 %v3583
  %v3661 = vpop.f32.mrf.mxu0
  %v3662 = vadd.f32 0.0, %v3661
  %v3663 = vpop.f32.mrf.mxu0
  %v3664 = vpop.f32.mrf.mxu0
  %v3665 = vadd.f32 0.0, %v3664
  %v3666 = vpop.f32.mrf.mxu0
  %3667 = vmatprep.mubr.bf16.mxu0 0
  %3668 = vmatmul.mubr.bf16.gmra.mxu0 %v3584
  %v3669 = vpop.f32.mrf.mxu0
  %v3670 = vadd.f32 0.0, %v3669
  %v3671 = vpop.f32.mrf.mxu0
  %v3672 = vpop.f32.mrf.mxu0
  %v3673 = vadd.f32 0.0, %v3672
  %v3674 = vpop.f32.mrf.mxu0
  %3675 = vmatprep.mubr.bf16.mxu0 0
  %3676 = vmatmul.mubr.bf16.gmra.mxu0 %v3585
  %v3677 = vpop.f32.mrf.mxu0
  %v3678 = vadd.f32 0.0, %v3677
  %v3679 = vpop.f32.mrf.mxu0
  %v3680 = vpop.f32.mrf.mxu0
  %v3681 = vadd.f32 0.0, %v3680
  %v3682 = vpop.f32.mrf.mxu0
  %3683 = vmatprep.mubr.bf16.mxu0 0
  %3684 = vmatmul.mubr.bf16.gmra.mxu0 %v3586
  %v3685 = vpop.f32.mrf.mxu0
  %v3686 = vadd.f32 0.0, %v3685
  %v3687 = vpop.f32.mrf.mxu0
  %v3688 = vpop.f32.mrf.mxu0
  %v3689 = vadd.f32 0.0, %v3688
  %v3690 = vpop.f32.mrf.mxu0
  %3691 = vdwg.mxu0
  %v3692 = vpack.c.bf16 %v3633, %v3630
  %v3693 = vpack.c.bf16 %v3641, %v3638
  %v3694 = vpack.c.bf16 %v3649, %v3646
  %v3695 = vpack.c.bf16 %v3657, %v3654
  %v3696 = vpack.c.bf16 %v3665, %v3662
  %v3697 = vpack.c.bf16 %v3673, %v3670
  %v3698 = vpack.c.bf16 %v3681, %v3678
  %v3699 = vpack.c.bf16 %v3689, %v3686
  %s3700 = scalar_lea.vmem %s2, 512
  %v3701 = vld [vmem:[%s3700] sm:$0xf]
  %v3702 = vld [vmem:[%s3700 + $0x4] sm:$0xf]
  %v3703 = vld [vmem:[%s3700 + $0x8] sm:$0xf]
  %v3704 = vld [vmem:[%s3700 + $0xc] sm:$0xf]
  %v3705 = vld [vmem:[%s3700 + $0x10] sm:$0xf]
  %v3706 = vld [vmem:[%s3700 + $0x14] sm:$0xf]
  %v3707 = vld [vmem:[%s3700 + $0x18] sm:$0xf]
  %v3708 = vld [vmem:[%s3700 + $0x1c] sm:$0xf]
  %v3709 = vld [vmem:[%s3700 + $0x20] sm:$0xf]
  %v3710 = vld [vmem:[%s3700 + $0x24] sm:$0xf]
  %v3711 = vld [vmem:[%s3700 + $0x28] sm:$0xf]
  %v3712 = vld [vmem:[%s3700 + $0x2c] sm:$0xf]
  %v3713 = vld [vmem:[%s3700 + $0x30] sm:$0xf]
  %v3714 = vld [vmem:[%s3700 + $0x34] sm:$0xf]
  %v3715 = vld [vmem:[%s3700 + $0x38] sm:$0xf]
  %v3716 = vld [vmem:[%s3700 + $0x3c] sm:$0xf]
  %v3733 = vunpack.c.l.b16 %v3701
  %v3734 = vunpack.c.l.b16 %v3702
  %v3735 = vunpack.c.l.b16 %v3703
  %v3736 = vunpack.c.l.b16 %v3704
  %v3737 = vunpack.c.l.b16 %v3705
  %v3738 = vunpack.c.l.b16 %v3706
  %v3739 = vunpack.c.l.b16 %v3707
  %v3740 = vunpack.c.l.b16 %v3708
  %v3741 = vunpack.c.l.b16 %v3709
  %v3742 = vunpack.c.l.b16 %v3710
  %v3743 = vunpack.c.l.b16 %v3711
  %v3744 = vunpack.c.l.b16 %v3712
  %v3745 = vunpack.c.l.b16 %v3713
  %v3746 = vunpack.c.l.b16 %v3714
  %v3747 = vunpack.c.l.b16 %v3715
  %v3748 = vunpack.c.l.b16 %v3716
  %v3749 = vpack.c.b16 %v3734, %v3733
  %v3750 = vpack.c.b16 %v3736, %v3735
  %v3751 = vpack.c.b16 %v3738, %v3737
  %v3752 = vpack.c.b16 %v3740, %v3739
  %v3753 = vpack.c.b16 %v3742, %v3741
  %v3754 = vpack.c.b16 %v3744, %v3743
  %v3755 = vpack.c.b16 %v3746, %v3745
  %v3756 = vpack.c.b16 %v3748, %v3747
  %3765 = vmatprep.subr.bf16.mxu0 0
  %3766 = vmatpush1.bf16.msra.mxu0 %v3756
  %3767 = vmatprep.subr.bf16.mxu0 0
  %3768 = vmatpush1.bf16.msra.mxu0 %v3755
  %3769 = vmatprep.subr.bf16.mxu0 0
  %3770 = vmatpush1.bf16.msra.mxu0 %v3754
  %3771 = vmatprep.subr.bf16.mxu0 0
  %3772 = vmatpush1.bf16.msra.mxu0 %v3753
  %3773 = vmatprep.subr.bf16.mxu0 0
  %3774 = vmatpush1.bf16.msra.mxu0 %v3752
  %3775 = vmatprep.subr.bf16.mxu0 0
  %3776 = vmatpush1.bf16.msra.mxu0 %v3751
  %3777 = vmatprep.subr.bf16.mxu0 0
  %3778 = vmatpush1.bf16.msra.mxu0 %v3750
  %3779 = vmatprep.subr.bf16.mxu0 0
  %3780 = vmatpush1.bf16.msra.mxu0 %v3749
  %3781 = vmatprep.subr.bf16.mxu0 0
  %3782 = vmatpush2.bf16.msra.mxu0 0
  %3783 = vmatprep.subr.bf16.mxu0 0
  %3784 = vmatpush2.bf16.msra.mxu0 0
  %3785 = vmatprep.subr.bf16.mxu0 0
  %3786 = vmatpush2.bf16.msra.mxu0 0
  %3787 = vmatprep.subr.bf16.mxu0 0
  %3788 = vmatpush2.bf16.msra.mxu0 0
  %3789 = vmatprep.subr.bf16.mxu0 0
  %3790 = vmatpush2.bf16.msra.mxu0 0
  %3791 = vmatprep.subr.bf16.mxu0 0
  %3792 = vmatpush2.bf16.msra.mxu0 0
  %3793 = vmatprep.subr.bf16.mxu0 0
  %3794 = vmatpush2.bf16.msra.mxu0 0
  %3795 = vmatprep.subr.bf16.mxu0 0
  %3796 = vmatpush2.bf16.msra.mxu0 0
  %3797 = vmatprep.mubr.bf16.mxu0 0
  %3798 = vmatmul.mubr.bf16.gmra.mxu0 %v3692
  %v3799 = vpop.f32.mrf.mxu0
  %v3800 = vadd.f32 0.0, %v3799
  %v3801 = vpop.f32.mrf.mxu0
  %v3802 = vpop.f32.mrf.mxu0
  %v3803 = vadd.f32 0.0, %v3802
  %v3804 = vpop.f32.mrf.mxu0
  %3805 = vmatprep.mubr.bf16.mxu0 0
  %3806 = vmatmul.mubr.bf16.gmra.mxu0 %v3693
  %v3807 = vpop.f32.mrf.mxu0
  %v3808 = vadd.f32 0.0, %v3807
  %v3809 = vpop.f32.mrf.mxu0
  %v3810 = vpop.f32.mrf.mxu0
  %v3811 = vadd.f32 0.0, %v3810
  %v3812 = vpop.f32.mrf.mxu0
  %3813 = vmatprep.mubr.bf16.mxu0 0
  %3814 = vmatmul.mubr.bf16.gmra.mxu0 %v3694
  %v3815 = vpop.f32.mrf.mxu0
  %v3816 = vadd.f32 0.0, %v3815
  %v3817 = vpop.f32.mrf.mxu0
  %v3818 = vpop.f32.mrf.mxu0
  %v3819 = vadd.f32 0.0, %v3818
  %v3820 = vpop.f32.mrf.mxu0
  %3821 = vmatprep.mubr.bf16.mxu0 0
  %3822 = vmatmul.mubr.bf16.gmra.mxu0 %v3695
  %v3823 = vpop.f32.mrf.mxu0
  %v3824 = vadd.f32 0.0, %v3823
  %v3825 = vpop.f32.mrf.mxu0
  %v3826 = vpop.f32.mrf.mxu0
  %v3827 = vadd.f32 0.0, %v3826
  %v3828 = vpop.f32.mrf.mxu0
  %3829 = vmatprep.mubr.bf16.mxu0 0
  %3830 = vmatmul.mubr.bf16.gmra.mxu0 %v3696
  %v3831 = vpop.f32.mrf.mxu0
  %v3832 = vadd.f32 0.0, %v3831
  %v3833 = vpop.f32.mrf.mxu0
  %v3834 = vpop.f32.mrf.mxu0
  %v3835 = vadd.f32 0.0, %v3834
  %v3836 = vpop.f32.mrf.mxu0
  %3837 = vmatprep.mubr.bf16.mxu0 0
  %3838 = vmatmul.mubr.bf16.gmra.mxu0 %v3697
  %v3839 = vpop.f32.mrf.mxu0
  %v3840 = vadd.f32 0.0, %v3839
  %v3841 = vpop.f32.mrf.mxu0
  %v3842 = vpop.f32.mrf.mxu0
  %v3843 = vadd.f32 0.0, %v3842
  %v3844 = vpop.f32.mrf.mxu0
  %3845 = vmatprep.mubr.bf16.mxu0 0
  %3846 = vmatmul.mubr.bf16.gmra.mxu0 %v3698
  %v3847 = vpop.f32.mrf.mxu0
  %v3848 = vadd.f32 0.0, %v3847
  %v3849 = vpop.f32.mrf.mxu0
  %v3850 = vpop.f32.mrf.mxu0
  %v3851 = vadd.f32 0.0, %v3850
  %v3852 = vpop.f32.mrf.mxu0
  %3853 = vmatprep.mubr.bf16.mxu0 0
  %3854 = vmatmul.mubr.bf16.gmra.mxu0 %v3699
  %v3855 = vpop.f32.mrf.mxu0
  %v3856 = vadd.f32 0.0, %v3855
  %v3857 = vpop.f32.mrf.mxu0
  %v3858 = vpop.f32.mrf.mxu0
  %v3859 = vadd.f32 0.0, %v3858
  %v3860 = vpop.f32.mrf.mxu0
  %3861 = vdwg.mxu0
  %v3862 = vadd.f32 %v3514, %v3800
  %v3863 = vadd.f32 %v3515, %v3803
  %v3864 = vadd.f32 %v3516, %v3808
  %v3865 = vadd.f32 %v3517, %v3811
  %v3866 = vadd.f32 %v3518, %v3816
  %v3867 = vadd.f32 %v3519, %v3819
  %v3868 = vadd.f32 %v3520, %v3824
  %v3869 = vadd.f32 %v3521, %v3827
  %v3870 = vadd.f32 %v3522, %v3832
  %v3871 = vadd.f32 %v3523, %v3835
  %v3872 = vadd.f32 %v3524, %v3840
  %v3873 = vadd.f32 %v3525, %v3843
  %v3874 = vadd.f32 %v3526, %v3848
  %v3875 = vadd.f32 %v3527, %v3851
  %v3876 = vadd.f32 %v3528, %v3856
  %v3877 = vadd.f32 %v3529, %v3859
  %v3878 = vadd.f32 %v3862, %v3863
  %v3879 = vadd.f32 %v3878, %v3864
  %v3880 = vadd.f32 %v3879, %v3865
  %v3881 = vadd.f32 %v3880, %v3866
  %v3882 = vadd.f32 %v3881, %v3867
  %v3883 = vadd.f32 %v3882, %v3868
  %v3884 = vadd.f32 %v3883, %v3869
  %v3885 = vadd.f32 %v3884, %v3870
  %v3886 = vadd.f32 %v3885, %v3871
  %v3887 = vadd.f32 %v3886, %v3872
  %v3888 = vadd.f32 %v3887, %v3873
  %v3889 = vadd.f32 %v3888, %v3874
  %v3890 = vadd.f32 %v3889, %v3875
  %v3891 = vadd.f32 %v3890, %v3876
  %v3892 = vadd.f32 %v3891, %v3877
  %v3893 = vrot.slane %v3892, 4
  %v3894 = vadd.f32 %v3892, %v3893
  %v3895 = vrot.slane %v3894, 2
  %v3896 = vadd.f32 %v3894, %v3895
  %v3897 = vrot.slane %v3896, 1
  %v3898 = vadd.f32 %v3896, %v3897
  %v3899 = vmul.f32 %v3862, %v3862
  %v3900 = vmul.f32 %v3863, %v3863
  %v3901 = vmul.f32 %v3864, %v3864
  %v3902 = vmul.f32 %v3865, %v3865
  %v3903 = vmul.f32 %v3866, %v3866
  %v3904 = vmul.f32 %v3867, %v3867
  %v3905 = vmul.f32 %v3868, %v3868
  %v3906 = vmul.f32 %v3869, %v3869
  %v3907 = vmul.f32 %v3870, %v3870
  %v3908 = vmul.f32 %v3871, %v3871
  %v3909 = vmul.f32 %v3872, %v3872
  %v3910 = vmul.f32 %v3873, %v3873
  %v3911 = vmul.f32 %v3874, %v3874
  %v3912 = vmul.f32 %v3875, %v3875
  %v3913 = vmul.f32 %v3876, %v3876
  %v3914 = vmul.f32 %v3877, %v3877
  %v3915 = vadd.f32 %v3899, %v3900
  %v3916 = vadd.f32 %v3915, %v3901
  %v3917 = vadd.f32 %v3916, %v3902
  %v3918 = vadd.f32 %v3917, %v3903
  %v3919 = vadd.f32 %v3918, %v3904
  %v3920 = vadd.f32 %v3919, %v3905
  %v3921 = vadd.f32 %v3920, %v3906
  %v3922 = vadd.f32 %v3921, %v3907
  %v3923 = vadd.f32 %v3922, %v3908
  %v3924 = vadd.f32 %v3923, %v3909
  %v3925 = vadd.f32 %v3924, %v3910
  %v3926 = vadd.f32 %v3925, %v3911
  %v3927 = vadd.f32 %v3926, %v3912
  %v3928 = vadd.f32 %v3927, %v3913
  %v3929 = vadd.f32 %v3928, %v3914
  %v3930 = vrot.slane %v3929, 4
  %v3931 = vadd.f32 %v3929, %v3930
  %v3932 = vrot.slane %v3931, 2
  %v3933 = vadd.f32 %v3931, %v3932
  %v3934 = vrot.slane %v3933, 1
  %v3935 = vadd.f32 %v3933, %v3934
  %v3936 = vmul.f32 %v3898, 0.0078125
  %v3937 = vmul.f32 %v3935, 0.0078125
  %v3938 = vmul.f32 %v3936, %v3936
  %v3939 = vsub.f32 %v3937, %v3938
  %v3940 = vsub.f32 %v3862, %v3936
  %v3941 = vsub.f32 %v3863, %v3936
  %v3942 = vsub.f32 %v3864, %v3936
  %v3943 = vsub.f32 %v3865, %v3936
  %v3944 = vsub.f32 %v3866, %v3936
  %v3945 = vsub.f32 %v3867, %v3936
  %v3946 = vsub.f32 %v3868, %v3936
  %v3947 = vsub.f32 %v3869, %v3936
  %v3948 = vsub.f32 %v3870, %v3936
  %v3949 = vsub.f32 %v3871, %v3936
  %v3950 = vsub.f32 %v3872, %v3936
  %v3951 = vsub.f32 %v3873, %v3936
  %v3952 = vsub.f32 %v3874, %v3936
  %v3953 = vsub.f32 %v3875, %v3936
  %v3954 = vsub.f32 %v3876, %v3936
  %v3955 = vsub.f32 %v3877, %v3936
  %v3956 = vadd.f32 %v3939, 1e-05
  %v3957 = vrsqrt.pop %v3956
  %v3958 = vmul.f32 %v3940, %v3957
  %v3959 = vmul.f32 %v3941, %v3957
  %v3960 = vmul.f32 %v3942, %v3957
  %v3961 = vmul.f32 %v3943, %v3957
  %v3962 = vmul.f32 %v3944, %v3957
  %v3963 = vmul.f32 %v3945, %v3957
  %v3964 = vmul.f32 %v3946, %v3957
  %v3965 = vmul.f32 %v3947, %v3957
  %v3966 = vmul.f32 %v3948, %v3957
  %v3967 = vmul.f32 %v3949, %v3957
  %v3968 = vmul.f32 %v3950, %v3957
  %v3969 = vmul.f32 %v3951, %v3957
  %v3970 = vmul.f32 %v3952, %v3957
  %v3971 = vmul.f32 %v3953, %v3957
  %v3972 = vmul.f32 %v3954, %v3957
  %v3973 = vmul.f32 %v3955, %v3957
  %v3974 = vadd.f32 %v756, %v3958
  %v3975 = vadd.f32 %v757, %v3959
  %v3976 = vadd.f32 %v758, %v3960
  %v3977 = vadd.f32 %v759, %v3961
  %v3978 = vadd.f32 %v760, %v3962
  %v3979 = vadd.f32 %v761, %v3963
  %v3980 = vadd.f32 %v762, %v3964
  %v3981 = vadd.f32 %v763, %v3965
  %v3982 = vadd.f32 %v764, %v3966
  %v3983 = vadd.f32 %v765, %v3967
  %v3984 = vadd.f32 %v766, %v3968
  %v3985 = vadd.f32 %v767, %v3969
  %v3986 = vadd.f32 %v768, %v3970
  %v3987 = vadd.f32 %v769, %v3971
  %v3988 = vadd.f32 %v770, %v3972
  %v3989 = vadd.f32 %v771, %v3973
  %v3990 = vmax.f32 %v3974, 0.0
  %v3991 = vmax.f32 %v3975, 0.0
  %v3992 = vmax.f32 %v3976, 0.0
  %v3993 = vmax.f32 %v3977, 0.0
  %v3994 = vmax.f32 %v3978, 0.0
  %v3995 = vmax.f32 %v3979, 0.0
  %v3996 = vmax.f32 %v3980, 0.0
  %v3997 = vmax.f32 %v3981, 0.0
  %v3998 = vmax.f32 %v3982, 0.0
  %v3999 = vmax.f32 %v3983, 0.0
  %v4000 = vmax.f32 %v3984, 0.0
  %v4001 = vmax.f32 %v3985, 0.0
  %v4002 = vmax.f32 %v3986, 0.0
  %v4003 = vmax.f32 %v3987, 0.0
  %v4004 = vmax.f32 %v3988, 0.0
  %v4005 = vmax.f32 %v3989, 0.0
  %4006 = vst [vmem:[%s4] sm:$0xff] %v3990
  %4007 = vst [vmem:[%s4 + $0x8] sm:$0xff] %v3991
  %4008 = vst [vmem:[%s4 + $0x10] sm:$0xff] %v3992
  %4009 = vst [vmem:[%s4 + $0x18] sm:$0xff] %v3993
  %4010 = vst [vmem:[%s4 + $0x20] sm:$0xff] %v3994
  %4011 = vst [vmem:[%s4 + $0x28] sm:$0xff] %v3995
  %4012 = vst [vmem:[%s4 + $0x30] sm:$0xff] %v3996
  %4013 = vst [vmem:[%s4 + $0x38] sm:$0xff] %v3997
  %4014 = vst [vmem:[%s4 + $0x40] sm:$0xff] %v3998
  %4015 = vst [vmem:[%s4 + $0x48] sm:$0xff] %v3999
  %4016 = vst [vmem:[%s4 + $0x50] sm:$0xff] %v4000
  %4017 = vst [vmem:[%s4 + $0x58] sm:$0xff] %v4001
  %4018 = vst [vmem:[%s4 + $0x60] sm:$0xff] %v4002
  %4019 = vst [vmem:[%s4 + $0x68] sm:$0xff] %v4003
  %4020 = vst [vmem:[%s4 + $0x70] sm:$0xff] %v4004
  %4021 = vst [vmem:[%s4 + $0x78] sm:$0xff] %v4005
  // Predicated region
  $region18: #{cycle_generator_forward.5} parent=0 // pred_check
    _
  $region19: #{cycle_generator_forward.5} parent=0 // pred_check_branch
    %4023 = sbr.rel (0) target = $region21
  $region20: #{cycle_generator_forward.5} parent=0 // pred_region
    _
  $region21: #{cycle_generator_forward.5} parent=0 // pred_fallthru
    _
  // Predicated region
  $region22: #{cycle_generator_forward.5} parent=0 // pred_check
    _
  $region23: #{cycle_generator_forward.5} parent=0 // pred_check_branch
    %4025 = sbr.rel (0) target = $region25
  $region24: #{cycle_generator_forward.5} parent=0 // pred_region
    _
  $region25: #{cycle_generator_forward.5} parent=0 // pred_fallthru
    _

// kernel: cycle_generator_forward.6
$region0: #{cycle_generator_forward.6}
  #allocation0 [shape = 'u32[]', space=smem, size = 0x4, offset = 0x4, fixed_abs, tag = 'smem constant byte address 0x4 - core index']
  #allocation1 [shape = 'u32[144,128]{1,0:T(1,128)}', space=vmem, size = 0x12000, scoped, tag = 'internal scratch']
  %s0 = inlined_call_operand.vmem [shape: bf16[128,576], index: 0, kind: input, shape index: {}]
  %s1 = inlined_call_operand.vmem [shape: bf16[576,128], index: 1, kind: input, shape index: {}]
  %s2 = inlined_call_operand.vmem [shape: f32[128,128], index: 2, kind: output, shape index: {}]
  %s3 = sld [smem:[#allocation0]]
  $region18: #{cycle_generator_forward.6} parent=0
    _
  %s5 = ssub.s32 1, %s3
  %s6 = scalar_select 0, %s5, %s3
  // Predicated region
  $region2: #{cycle_generator_forward.6} parent=0 // pred_check
    _
  $region3: #{cycle_generator_forward.6} parent=0 // pred_check_branch
    %8 = sbr.rel (0) target = $region5
  $region4: #{cycle_generator_forward.6} parent=0 // pred_region
    _
  $region5: #{cycle_generator_forward.6} parent=0 // pred_fallthru
    _
  // Predicated region
  $region6: #{cycle_generator_forward.6} parent=0 // pred_check
    _
  $region7: #{cycle_generator_forward.6} parent=0 // pred_check_branch
    %10 = sbr.rel (0) target = $region9
  $region8: #{cycle_generator_forward.6} parent=0 // pred_region
    _
  $region9: #{cycle_generator_forward.6} parent=0 // pred_fallthru
    _
  %v12 = vld [vmem:[%s0] sm:$0xff]
  %v13 = vld [vmem:[%s0 + $0x8] sm:$0xff]
  %v14 = vld [vmem:[%s0 + $0x10] sm:$0xf]
  %v15 = vld [vmem:[%s0 + $0x14] sm:$0xff]
  %v16 = vld [vmem:[%s0 + $0x1c] sm:$0xff]
  %v17 = vld [vmem:[%s0 + $0x24] sm:$0xf]
  %v18 = vld [vmem:[%s0 + $0x28] sm:$0xff]
  %v19 = vld [vmem:[%s0 + $0x30] sm:$0xff]
  %v20 = vld [vmem:[%s0 + $0x38] sm:$0xf]
  %v21 = vld [vmem:[%s0 + $0x3c] sm:$0xff]
  %v22 = vld [vmem:[%s0 + $0x44] sm:$0xff]
  %v23 = vld [vmem:[%s0 + $0x4c] sm:$0xf]
  %v24 = vld [vmem:[%s0 + $0x50] sm:$0xff]
  %v25 = vld [vmem:[%s0 + $0x58] sm:$0xff]
  %v26 = vld [vmem:[%s0 + $0x60] sm:$0xf]
  %v27 = vld [vmem:[%s0 + $0x64] sm:$0xff]
  %v28 = vld [vmem:[%s0 + $0x6c] sm:$0xff]
  %v29 = vld [vmem:[%s0 + $0x74] sm:$0xf]
  %v30 = vld [vmem:[%s0 + $0x78] sm:$0xff]
  %v31 = vld [vmem:[%s0 + $0x80] sm:$0xff]
  %v32 = vld [vmem:[%s0 + $0x88] sm:$0xf]
  %v33 = vld [vmem:[%s0 + $0x8c] sm:$0xff]
  %v34 = vld [vmem:[%s0 + $0x94] sm:$0xff]
  %v35 = vld [vmem:[%s0 + $0x9c] sm:$0xf]
  %v36 = vld [vmem:[%s0 + $0xa0] sm:$0xff]
  %v37 = vld [vmem:[%s0 + $0xa8] sm:$0xff]
  %v38 = vld [vmem:[%s0 + $0xb0] sm:$0xf]
  %v39 = vld [vmem:[%s0 + $0xb4] sm:$0xff]
  %v40 = vld [vmem:[%s0 + $0xbc] sm:$0xff]
  %v41 = vld [vmem:[%s0 + $0xc4] sm:$0xf]
  %v42 = vld [vmem:[%s0 + $0xc8] sm:$0xff]
  %v43 = vld [vmem:[%s0 + $0xd0] sm:$0xff]
  %v44 = vld [vmem:[%s0 + $0xd8] sm:$0xf]
  %v45 = vld [vmem:[%s0 + $0xdc] sm:$0xff]
  %v46 = vld [vmem:[%s0 + $0xe4] sm:$0xff]
  %v47 = vld [vmem:[%s0 + $0xec] sm:$0xf]
  %v48 = vld [vmem:[%s0 + $0xf0] sm:$0xff]
  %v49 = vld [vmem:[%s0 + $0xf8] sm:$0xff]
  %v50 = vld [vmem:[%s0 + $0x100] sm:$0xf]
  %v51 = vld [vmem:[%s0 + $0x104] sm:$0xff]
  %v52 = vld [vmem:[%s0 + $0x10c] sm:$0xff]
  %v53 = vld [vmem:[%s0 + $0x114] sm:$0xf]
  %v54 = vld [vmem:[%s0 + $0x118] sm:$0xff]
  %v55 = vld [vmem:[%s0 + $0x120] sm:$0xff]
  %v56 = vld [vmem:[%s0 + $0x128] sm:$0xf]
  %v57 = vld [vmem:[%s0 + $0x12c] sm:$0xff]
  %v58 = vld [vmem:[%s0 + $0x134] sm:$0xff]
  %v59 = vld [vmem:[%s0 + $0x13c] sm:$0xf]
  %v60 = vld [vmem:[%s1] sm:$0xf]
  %v61 = vld [vmem:[%s1 + $0x4] sm:$0xf]
  %v62 = vld [vmem:[%s1 + $0x8] sm:$0xf]
  %v63 = vld [vmem:[%s1 + $0xc] sm:$0xf]
  %v64 = vld [vmem:[%s1 + $0x10] sm:$0xf]
  %v65 = vld [vmem:[%s1 + $0x14] sm:$0xf]
  %v66 = vld [vmem:[%s1 + $0x18] sm:$0xf]
  %v67 = vld [vmem:[%s1 + $0x1c] sm:$0xf]
  %v68 = vld [vmem:[%s1 + $0x20] sm:$0xf]
  %v69 = vld [vmem:[%s1 + $0x24] sm:$0xf]
  %v70 = vld [vmem:[%s1 + $0x28] sm:$0xf]
  %v71 = vld [vmem:[%s1 + $0x2c] sm:$0xf]
  %v72 = vld [vmem:[%s1 + $0x30] sm:$0xf]
  %v73 = vld [vmem:[%s1 + $0x34] sm:$0xf]
  %v74 = vld [vmem:[%s1 + $0x38] sm:$0xf]
  %v75 = vld [vmem:[%s1 + $0x3c] sm:$0xf]
  %v76 = vld [vmem:[%s1 + $0x40] sm:$0xf]
  %v77 = vld [vmem:[%s1 + $0x44] sm:$0xf]
  %v78 = vld [vmem:[%s1 + $0x48] sm:$0xf]
  %v79 = vld [vmem:[%s1 + $0x4c] sm:$0xf]
  %v80 = vld [vmem:[%s1 + $0x50] sm:$0xf]
  %v81 = vld [vmem:[%s1 + $0x54] sm:$0xf]
  %v82 = vld [vmem:[%s1 + $0x58] sm:$0xf]
  %v83 = vld [vmem:[%s1 + $0x5c] sm:$0xf]
  %v84 = vld [vmem:[%s1 + $0x60] sm:$0xf]
  %v85 = vld [vmem:[%s1 + $0x64] sm:$0xf]
  %v86 = vld [vmem:[%s1 + $0x68] sm:$0xf]
  %v87 = vld [vmem:[%s1 + $0x6c] sm:$0xf]
  %v88 = vld [vmem:[%s1 + $0x70] sm:$0xf]
  %v89 = vld [vmem:[%s1 + $0x74] sm:$0xf]
  %v90 = vld [vmem:[%s1 + $0x78] sm:$0xf]
  %v91 = vld [vmem:[%s1 + $0x7c] sm:$0xf]
  %v92 = vld [vmem:[%s1 + $0x80] sm:$0xf]
  %v93 = vld [vmem:[%s1 + $0x84] sm:$0xf]
  %v94 = vld [vmem:[%s1 + $0x88] sm:$0xf]
  %v95 = vld [vmem:[%s1 + $0x8c] sm:$0xf]
  %v96 = vld [vmem:[%s1 + $0x90] sm:$0xf]
  %v97 = vld [vmem:[%s1 + $0x94] sm:$0xf]
  %v98 = vld [vmem:[%s1 + $0x98] sm:$0xf]
  %v99 = vld [vmem:[%s1 + $0x9c] sm:$0xf]
  %v100 = vld [vmem:[%s1 + $0xa0] sm:$0xf]
  %v101 = vld [vmem:[%s1 + $0xa4] sm:$0xf]
  %v102 = vld [vmem:[%s1 + $0xa8] sm:$0xf]
  %v103 = vld [vmem:[%s1 + $0xac] sm:$0xf]
  %v104 = vld [vmem:[%s1 + $0xb0] sm:$0xf]
  %v105 = vld [vmem:[%s1 + $0xb4] sm:$0xf]
  %v106 = vld [vmem:[%s1 + $0xb8] sm:$0xf]
  %v107 = vld [vmem:[%s1 + $0xbc] sm:$0xf]
  %v108 = vld [vmem:[%s1 + $0xc0] sm:$0xf]
  %v109 = vld [vmem:[%s1 + $0xc4] sm:$0xf]
  %v110 = vld [vmem:[%s1 + $0xc8] sm:$0xf]
  %v111 = vld [vmem:[%s1 + $0xcc] sm:$0xf]
  %v112 = vld [vmem:[%s1 + $0xd0] sm:$0xf]
  %v113 = vld [vmem:[%s1 + $0xd4] sm:$0xf]
  %v114 = vld [vmem:[%s1 + $0xd8] sm:$0xf]
  %v115 = vld [vmem:[%s1 + $0xdc] sm:$0xf]
  %v116 = vld [vmem:[%s1 + $0xe0] sm:$0xf]
  %v117 = vld [vmem:[%s1 + $0xe4] sm:$0xf]
  %v118 = vld [vmem:[%s1 + $0xe8] sm:$0xf]
  %v119 = vld [vmem:[%s1 + $0xec] sm:$0xf]
  %v120 = vld [vmem:[%s1 + $0xf0] sm:$0xf]
  %v121 = vld [vmem:[%s1 + $0xf4] sm:$0xf]
  %v122 = vld [vmem:[%s1 + $0xf8] sm:$0xf]
  %v123 = vld [vmem:[%s1 + $0xfc] sm:$0xf]
  %v124 = vld [vmem:[%s1 + $0x100] sm:$0xf]
  %v125 = vld [vmem:[%s1 + $0x104] sm:$0xf]
  %v126 = vld [vmem:[%s1 + $0x108] sm:$0xf]
  %v127 = vld [vmem:[%s1 + $0x10c] sm:$0xf]
  %v128 = vld [vmem:[%s1 + $0x110] sm:$0xf]
  %v129 = vld [vmem:[%s1 + $0x114] sm:$0xf]
  %v130 = vld [vmem:[%s1 + $0x118] sm:$0xf]
  %v131 = vld [vmem:[%s1 + $0x11c] sm:$0xf]
  %v180 = vunpack.c.l.b16 %v12
  %v181 = vunpack.c.h.b16 %v12
  %v182 = vunpack.c.l.b16 %v13
  %v183 = vunpack.c.h.b16 %v13
  %v184 = vunpack.c.l.b16 %v14
  %v185 = vunpack.c.l.b16 %v15
  %v186 = vunpack.c.h.b16 %v15
  %v187 = vunpack.c.l.b16 %v16
  %v188 = vunpack.c.h.b16 %v16
  %v189 = vunpack.c.l.b16 %v17
  %v190 = vunpack.c.l.b16 %v18
  %v191 = vunpack.c.h.b16 %v18
  %v192 = vunpack.c.l.b16 %v19
  %v193 = vunpack.c.h.b16 %v19
  %v194 = vunpack.c.l.b16 %v20
  %v195 = vunpack.c.l.b16 %v21
  %v196 = vunpack.c.h.b16 %v21
  %v197 = vunpack.c.l.b16 %v22
  %v198 = vunpack.c.h.b16 %v22
  %v199 = vunpack.c.l.b16 %v23
  %v200 = vunpack.c.l.b16 %v24
  %v201 = vunpack.c.h.b16 %v24
  %v202 = vunpack.c.l.b16 %v25
  %v203 = vunpack.c.h.b16 %v25
  %v204 = vunpack.c.l.b16 %v26
  %v205 = vunpack.c.l.b16 %v27
  %v206 = vunpack.c.h.b16 %v27
  %v207 = vunpack.c.l.b16 %v28
  %v208 = vunpack.c.h.b16 %v28
  %v209 = vunpack.c.l.b16 %v29
  %v210 = vunpack.c.l.b16 %v30
  %v211 = vunpack.c.h.b16 %v30
  %v212 = vunpack.c.l.b16 %v31
  %v213 = vunpack.c.h.b16 %v31
  %v214 = vunpack.c.l.b16 %v32
  %v215 = vunpack.c.l.b16 %v33
  %v216 = vunpack.c.h.b16 %v33
  %v217 = vunpack.c.l.b16 %v34
  %v218 = vunpack.c.h.b16 %v34
  %v219 = vunpack.c.l.b16 %v35
  %v220 = vunpack.c.l.b16 %v36
  %v221 = vunpack.c.h.b16 %v36
  %v222 = vunpack.c.l.b16 %v37
  %v223 = vunpack.c.h.b16 %v37
  %v224 = vunpack.c.l.b16 %v38
  %v225 = vunpack.c.l.b16 %v39
  %v226 = vunpack.c.h.b16 %v39
  %v227 = vunpack.c.l.b16 %v40
  %v228 = vunpack.c.h.b16 %v40
  %v229 = vunpack.c.l.b16 %v41
  %v230 = vunpack.c.l.b16 %v42
  %v231 = vunpack.c.h.b16 %v42
  %v232 = vunpack.c.l.b16 %v43
  %v233 = vunpack.c.h.b16 %v43
  %v234 = vunpack.c.l.b16 %v44
  %v235 = vunpack.c.l.b16 %v45
  %v236 = vunpack.c.h.b16 %v45
  %v237 = vunpack.c.l.b16 %v46
  %v238 = vunpack.c.h.b16 %v46
  %v239 = vunpack.c.l.b16 %v47
  %v240 = vunpack.c.l.b16 %v48
  %v241 = vunpack.c.h.b16 %v48
  %v242 = vunpack.c.l.b16 %v49
  %v243 = vunpack.c.h.b16 %v49
  %v244 = vunpack.c.l.b16 %v50
  %v245 = vunpack.c.l.b16 %v51
  %v246 = vunpack.c.h.b16 %v51
  %v247 = vunpack.c.l.b16 %v52
  %v248 = vunpack.c.h.b16 %v52
  %v249 = vunpack.c.l.b16 %v53
  %v250 = vunpack.c.l.b16 %v54
  %v251 = vunpack.c.h.b16 %v54
  %v252 = vunpack.c.l.b16 %v55
  %v253 = vunpack.c.h.b16 %v55
  %v254 = vunpack.c.l.b16 %v56
  %v255 = vunpack.c.l.b16 %v57
  %v256 = vunpack.c.h.b16 %v57
  %v257 = vunpack.c.l.b16 %v58
  %v258 = vunpack.c.h.b16 %v58
  %v259 = vunpack.c.l.b16 %v59
  %v260 = vpack.c.b16 %v185, %v180
  %v261 = vpack.c.b16 %v186, %v181
  %v262 = vpack.c.b16 %v187, %v182
  %v263 = vpack.c.b16 %v188, %v183
  %v264 = vpack.c.b16 %v189, %v184
  %v265 = vpack.c.b16 %v195, %v190
  %v266 = vpack.c.b16 %v196, %v191
  %v267 = vpack.c.b16 %v197, %v192
  %v268 = vpack.c.b16 %v198, %v193
  %v269 = vpack.c.b16 %v199, %v194
  %v270 = vpack.c.b16 %v205, %v200
  %v271 = vpack.c.b16 %v206, %v201
  %v272 = vpack.c.b16 %v207, %v202
  %v273 = vpack.c.b16 %v208, %v203
  %v274 = vpack.c.b16 %v209, %v204
  %v275 = vpack.c.b16 %v215, %v210
  %v276 = vpack.c.b16 %v216, %v211
  %v277 = vpack.c.b16 %v217, %v212
  %v278 = vpack.c.b16 %v218, %v213
  %v279 = vpack.c.b16 %v219, %v214
  %v280 = vpack.c.b16 %v225, %v220
  %v281 = vpack.c.b16 %v226, %v221
  %v282 = vpack.c.b16 %v227, %v222
  %v283 = vpack.c.b16 %v228, %v223
  %v284 = vpack.c.b16 %v229, %v224
  %v285 = vpack.c.b16 %v235, %v230
  %v286 = vpack.c.b16 %v236, %v231
  %v287 = vpack.c.b16 %v237, %v232
  %v288 = vpack.c.b16 %v238, %v233
  %v289 = vpack.c.b16 %v239, %v234
  %v290 = vpack.c.b16 %v245, %v240
  %v291 = vpack.c.b16 %v246, %v241
  %v292 = vpack.c.b16 %v247, %v242
  %v293 = vpack.c.b16 %v248, %v243
  %v294 = vpack.c.b16 %v249, %v244
  %v295 = vpack.c.b16 %v255, %v250
  %v296 = vpack.c.b16 %v256, %v251
  %v297 = vpack.c.b16 %v257, %v252
  %v298 = vpack.c.b16 %v258, %v253
  %v299 = vpack.c.b16 %v259, %v254
  %v404 = vunpack.c.l.b16 %v60
  %v405 = vunpack.c.l.b16 %v61
  %v406 = vunpack.c.l.b16 %v62
  %v407 = vunpack.c.l.b16 %v63
  %v408 = vunpack.c.l.b16 %v64
  %v409 = vunpack.c.l.b16 %v65
  %v410 = vunpack.c.l.b16 %v66
  %v411 = vunpack.c.l.b16 %v67
  %v412 = vunpack.c.l.b16 %v68
  %v413 = vunpack.c.l.b16 %v69
  %v414 = vunpack.c.l.b16 %v70
  %v415 = vunpack.c.l.b16 %v71
  %v416 = vunpack.c.l.b16 %v72
  %v417 = vunpack.c.l.b16 %v73
  %v418 = vunpack.c.l.b16 %v74
  %v419 = vunpack.c.l.b16 %v75
  %v420 = vunpack.c.l.b16 %v76
  %v421 = vunpack.c.l.b16 %v77
  %v422 = vunpack.c.l.b16 %v78
  %v423 = vunpack.c.l.b16 %v79
  %v424 = vunpack.c.l.b16 %v80
  %v425 = vunpack.c.l.b16 %v81
  %v426 = vunpack.c.l.b16 %v82
  %v427 = vunpack.c.l.b16 %v83
  %v428 = vunpack.c.l.b16 %v84
  %v429 = vunpack.c.l.b16 %v85
  %v430 = vunpack.c.l.b16 %v86
  %v431 = vunpack.c.l.b16 %v87
  %v432 = vunpack.c.l.b16 %v88
  %v433 = vunpack.c.l.b16 %v89
  %v434 = vunpack.c.l.b16 %v90
  %v435 = vunpack.c.l.b16 %v91
  %v436 = vunpack.c.l.b16 %v92
  %v437 = vunpack.c.l.b16 %v93
  %v438 = vunpack.c.l.b16 %v94
  %v439 = vunpack.c.l.b16 %v95
  %v440 = vunpack.c.l.b16 %v96
  %v441 = vunpack.c.l.b16 %v97
  %v442 = vunpack.c.l.b16 %v98
  %v443 = vunpack.c.l.b16 %v99
  %v444 = vunpack.c.l.b16 %v100
  %v445 = vunpack.c.l.b16 %v101
  %v446 = vunpack.c.l.b16 %v102
  %v447 = vunpack.c.l.b16 %v103
  %v448 = vunpack.c.l.b16 %v104
  %v449 = vunpack.c.l.b16 %v105
  %v450 = vunpack.c.l.b16 %v106
  %v451 = vunpack.c.l.b16 %v107
  %v452 = vunpack.c.l.b16 %v108
  %v453 = vunpack.c.l.b16 %v109
  %v454 = vunpack.c.l.b16 %v110
  %v455 = vunpack.c.l.b16 %v111
  %v456 = vunpack.c.l.b16 %v112
  %v457 = vunpack.c.l.b16 %v113
  %v458 = vunpack.c.l.b16 %v114
  %v459 = vunpack.c.l.b16 %v115
  %v460 = vunpack.c.l.b16 %v116
  %v461 = vunpack.c.l.b16 %v117
  %v462 = vunpack.c.l.b16 %v118
  %v463 = vunpack.c.l.b16 %v119
  %v464 = vunpack.c.l.b16 %v120
  %v465 = vunpack.c.l.b16 %v121
  %v466 = vunpack.c.l.b16 %v122
  %v467 = vunpack.c.l.b16 %v123
  %v468 = vunpack.c.l.b16 %v124
  %v469 = vunpack.c.l.b16 %v125
  %v470 = vunpack.c.l.b16 %v126
  %v471 = vunpack.c.l.b16 %v127
  %v472 = vunpack.c.l.b16 %v128
  %v473 = vunpack.c.l.b16 %v129
  %v474 = vunpack.c.l.b16 %v130
  %v475 = vunpack.c.l.b16 %v131
  %v476 = vpack.c.b16 %v405, %v404
  %v477 = vpack.c.b16 %v407, %v406
  %v478 = vpack.c.b16 %v409, %v408
  %v479 = vpack.c.b16 %v411, %v410
  %v480 = vpack.c.b16 %v413, %v412
  %v481 = vpack.c.b16 %v415, %v414
  %v482 = vpack.c.b16 %v417, %v416
  %v483 = vpack.c.b16 %v419, %v418
  %v484 = vpack.c.b16 %v421, %v420
  %v485 = vpack.c.b16 %v423, %v422
  %v486 = vpack.c.b16 %v425, %v424
  %v487 = vpack.c.b16 %v427, %v426
  %v488 = vpack.c.b16 %v429, %v428
  %v489 = vpack.c.b16 %v431, %v430
  %v490 = vpack.c.b16 %v433, %v432
  %v491 = vpack.c.b16 %v435, %v434
  %v492 = vpack.c.b16 %v437, %v436
  %v493 = vpack.c.b16 %v439, %v438
  %v494 = vpack.c.b16 %v441, %v440
  %v495 = vpack.c.b16 %v443, %v442
  %v496 = vpack.c.b16 %v445, %v444
  %v497 = vpack.c.b16 %v447, %v446
  %v498 = vpack.c.b16 %v449, %v448
  %v499 = vpack.c.b16 %v451, %v450
  %v500 = vpack.c.b16 %v453, %v452
  %v501 = vpack.c.b16 %v455, %v454
  %v502 = vpack.c.b16 %v457, %v456
  %v503 = vpack.c.b16 %v459, %v458
  %v504 = vpack.c.b16 %v461, %v460
  %v505 = vpack.c.b16 %v463, %v462
  %v506 = vpack.c.b16 %v465, %v464
  %v507 = vpack.c.b16 %v467, %v466
  %v508 = vpack.c.b16 %v469, %v468
  %v509 = vpack.c.b16 %v471, %v470
  %v510 = vpack.c.b16 %v473, %v472
  %v511 = vpack.c.b16 %v475, %v474
  %vm548 = vcmask 523264
  %v550 = vsel %vm548, %v264, 0
  %v553 = vsel %vm548, %v269, 0
  %v556 = vsel %vm548, %v274, 0
  %v559 = vsel %vm548, %v279, 0
  %v562 = vsel %vm548, %v284, 0
  %v565 = vsel %vm548, %v289, 0
  %v568 = vsel %vm548, %v294, 0
  %v571 = vsel %vm548, %v299, 0
  %573 = vmatprep.subr.bf16.mxu0 0
  %574 = vmatpush1.bf16.msra.mxu0 %v483
  %575 = vmatprep.subr.bf16.mxu0 0
  %576 = vmatpush1.bf16.msra.mxu0 %v482
  %577 = vmatprep.subr.bf16.mxu0 0
  %578 = vmatpush1.bf16.msra.mxu0 %v481
  %579 = vmatprep.subr.bf16.mxu0 0
  %580 = vmatpush1.bf16.msra.mxu0 %v480
  %581 = vmatprep.subr.bf16.mxu0 0
  %582 = vmatpush1.bf16.msra.mxu0 %v479
  %583 = vmatprep.subr.bf16.mxu0 0
  %584 = vmatpush1.bf16.msra.mxu0 %v478
  %585 = vmatprep.subr.bf16.mxu0 0
  %586 = vmatpush1.bf16.msra.mxu0 %v477
  %587 = vmatprep.subr.bf16.mxu0 0
  %588 = vmatpush1.bf16.msra.mxu0 %v476
  %589 = vmatprep.subr.bf16.mxu0 0
  %590 = vmatpush2.bf16.msra.mxu0 %v491
  %591 = vmatprep.subr.bf16.mxu0 0
  %592 = vmatpush2.bf16.msra.mxu0 %v490
  %593 = vmatprep.subr.bf16.mxu0 0
  %594 = vmatpush2.bf16.msra.mxu0 %v489
  %595 = vmatprep.subr.bf16.mxu0 0
  %596 = vmatpush2.bf16.msra.mxu0 %v488
  %597 = vmatprep.subr.bf16.mxu0 0
  %598 = vmatpush2.bf16.msra.mxu0 %v487
  %599 = vmatprep.subr.bf16.mxu0 0
  %600 = vmatpush2.bf16.msra.mxu0 %v486
  %601 = vmatprep.subr.bf16.mxu0 0
  %602 = vmatpush2.bf16.msra.mxu0 %v485
  %603 = vmatprep.subr.bf16.mxu0 0
  %604 = vmatpush2.bf16.msra.mxu0 %v484
  %605 = vmatprep.mubr.bf16.mxu0 %v261
  %606 = vmatmul.mubr.bf16.gmra.mxu0 %v260
  %v607 = vpop.f32.mrf.mxu0
  %v608 = vadd.f32 0.0, %v607
  %v609 = vpop.f32.mrf.mxu0
  %v610 = vpop.f32.mrf.mxu0
  %v611 = vadd.f32 0.0, %v610
  %v612 = vpop.f32.mrf.mxu0
  %613 = vmatprep.mubr.bf16.mxu0 %v266
  %614 = vmatmul.mubr.bf16.gmra.mxu0 %v265
  %v615 = vpop.f32.mrf.mxu0
  %v616 = vadd.f32 0.0, %v615
  %v617 = vpop.f32.mrf.mxu0
  %v618 = vpop.f32.mrf.mxu0
  %v619 = vadd.f32 0.0, %v618
  %v620 = vpop.f32.mrf.mxu0
  %621 = vmatprep.mubr.bf16.mxu0 %v271
  %622 = vmatmul.mubr.bf16.gmra.mxu0 %v270
  %v623 = vpop.f32.mrf.mxu0
  %v624 = vadd.f32 0.0, %v623
  %v625 = vpop.f32.mrf.mxu0
  %v626 = vpop.f32.mrf.mxu0
  %v627 = vadd.f32 0.0, %v626
  %v628 = vpop.f32.mrf.mxu0
  %629 = vmatprep.mubr.bf16.mxu0 %v276
  %630 = vmatmul.mubr.bf16.gmra.mxu0 %v275
  %v631 = vpop.f32.mrf.mxu0
  %v632 = vadd.f32 0.0, %v631
  %v633 = vpop.f32.mrf.mxu0
  %v634 = vpop.f32.mrf.mxu0
  %v635 = vadd.f32 0.0, %v634
  %v636 = vpop.f32.mrf.mxu0
  %637 = vmatprep.mubr.bf16.mxu0 %v281
  %638 = vmatmul.mubr.bf16.gmra.mxu0 %v280
  %v639 = vpop.f32.mrf.mxu0
  %v640 = vadd.f32 0.0, %v639
  %v641 = vpop.f32.mrf.mxu0
  %v642 = vpop.f32.mrf.mxu0
  %v643 = vadd.f32 0.0, %v642
  %v644 = vpop.f32.mrf.mxu0
  %645 = vmatprep.mubr.bf16.mxu0 %v286
  %646 = vmatmul.mubr.bf16.gmra.mxu0 %v285
  %v647 = vpop.f32.mrf.mxu0
  %v648 = vadd.f32 0.0, %v647
  %v649 = vpop.f32.mrf.mxu0
  %v650 = vpop.f32.mrf.mxu0
  %v651 = vadd.f32 0.0, %v650
  %v652 = vpop.f32.mrf.mxu0
  %653 = vmatprep.mubr.bf16.mxu0 %v291
  %654 = vmatmul.mubr.bf16.gmra.mxu0 %v290
  %v655 = vpop.f32.mrf.mxu0
  %v656 = vadd.f32 0.0, %v655
  %v657 = vpop.f32.mrf.mxu0
  %v658 = vpop.f32.mrf.mxu0
  %v659 = vadd.f32 0.0, %v658
  %v660 = vpop.f32.mrf.mxu0
  %661 = vmatprep.mubr.bf16.mxu0 %v296
  %662 = vmatmul.mubr.bf16.gmra.mxu0 %v295
  %v663 = vpop.f32.mrf.mxu0
  %v664 = vadd.f32 0.0, %v663
  %v665 = vpop.f32.mrf.mxu0
  %v666 = vpop.f32.mrf.mxu0
  %v667 = vadd.f32 0.0, %v666
  %v668 = vpop.f32.mrf.mxu0
  %669 = vdwg.mxu0
  %670 = vmatprep.subr.bf16.mxu0 0
  %671 = vmatpush1.bf16.msra.mxu0 %v499
  %672 = vmatprep.subr.bf16.mxu0 0
  %673 = vmatpush1.bf16.msra.mxu0 %v498
  %674 = vmatprep.subr.bf16.mxu0 0
  %675 = vmatpush1.bf16.msra.mxu0 %v497
  %676 = vmatprep.subr.bf16.mxu0 0
  %677 = vmatpush1.bf16.msra.mxu0 %v496
  %678 = vmatprep.subr.bf16.mxu0 0
  %679 = vmatpush1.bf16.msra.mxu0 %v495
  %680 = vmatprep.subr.bf16.mxu0 0
  %681 = vmatpush1.bf16.msra.mxu0 %v494
  %682 = vmatprep.subr.bf16.mxu0 0
  %683 = vmatpush1.bf16.msra.mxu0 %v493
  %684 = vmatprep.subr.bf16.mxu0 0
  %685 = vmatpush1.bf16.msra.mxu0 %v492
  %686 = vmatprep.subr.bf16.mxu0 0
  %687 = vmatpush2.bf16.msra.mxu0 %v507
  %688 = vmatprep.subr.bf16.mxu0 0
  %689 = vmatpush2.bf16.msra.mxu0 %v506
  %690 = vmatprep.subr.bf16.mxu0 0
  %691 = vmatpush2.bf16.msra.mxu0 %v505
  %692 = vmatprep.subr.bf16.mxu0 0
  %693 = vmatpush2.bf16.msra.mxu0 %v504
  %694 = vmatprep.subr.bf16.mxu0 0
  %695 = vmatpush2.bf16.msra.mxu0 %v503
  %696 = vmatprep.subr.bf16.mxu0 0
  %697 = vmatpush2.bf16.msra.mxu0 %v502
  %698 = vmatprep.subr.bf16.mxu0 0
  %699 = vmatpush2.bf16.msra.mxu0 %v501
  %700 = vmatprep.subr.bf16.mxu0 0
  %701 = vmatpush2.bf16.msra.mxu0 %v500
  %702 = vmatprep.mubr.bf16.mxu0 %v263
  %703 = vmatmul.mubr.bf16.gmra.mxu0 %v262
  %v704 = vpop.f32.mrf.mxu0
  %v705 = vadd.f32 %v608, %v704
  %v706 = vpop.f32.mrf.mxu0
  %v707 = vpop.f32.mrf.mxu0
  %v708 = vadd.f32 %v611, %v707
  %v709 = vpop.f32.mrf.mxu0
  %710 = vmatprep.mubr.bf16.mxu0 %v268
  %711 = vmatmul.mubr.bf16.gmra.mxu0 %v267
  %v712 = vpop.f32.mrf.mxu0
  %v713 = vadd.f32 %v616, %v712
  %v714 = vpop.f32.mrf.mxu0
  %v715 = vpop.f32.mrf.mxu0
  %v716 = vadd.f32 %v619, %v715
  %v717 = vpop.f32.mrf.mxu0
  %718 = vmatprep.mubr.bf16.mxu0 %v273
  %719 = vmatmul.mubr.bf16.gmra.mxu0 %v272
  %v720 = vpop.f32.mrf.mxu0
  %v721 = vadd.f32 %v624, %v720
  %v722 = vpop.f32.mrf.mxu0
  %v723 = vpop.f32.mrf.mxu0
  %v724 = vadd.f32 %v627, %v723
  %v725 = vpop.f32.mrf.mxu0
  %726 = vmatprep.mubr.bf16.mxu0 %v278
  %727 = vmatmul.mubr.bf16.gmra.mxu0 %v277
  %v728 = vpop.f32.mrf.mxu0
  %v729 = vadd.f32 %v632, %v728
  %v730 = vpop.f32.mrf.mxu0
  %v731 = vpop.f32.mrf.mxu0
  %v732 = vadd.f32 %v635, %v731
  %v733 = vpop.f32.mrf.mxu0
  %734 = vmatprep.mubr.bf16.mxu0 %v283
  %735 = vmatmul.mubr.bf16.gmra.mxu0 %v282
  %v736 = vpop.f32.mrf.mxu0
  %v737 = vadd.f32 %v640, %v736
  %v738 = vpop.f32.mrf.mxu0
  %v739 = vpop.f32.mrf.mxu0
  %v740 = vadd.f32 %v643, %v739
  %v741 = vpop.f32.mrf.mxu0
  %742 = vmatprep.mubr.bf16.mxu0 %v288
  %743 = vmatmul.mubr.bf16.gmra.mxu0 %v287
  %v744 = vpop.f32.mrf.mxu0
  %v745 = vadd.f32 %v648, %v744
  %v746 = vpop.f32.mrf.mxu0
  %v747 = vpop.f32.mrf.mxu0
  %v748 = vadd.f32 %v651, %v747
  %v749 = vpop.f32.mrf.mxu0
  %750 = vmatprep.mubr.bf16.mxu0 %v293
  %751 = vmatmul.mubr.bf16.gmra.mxu0 %v292
  %v752 = vpop.f32.mrf.mxu0
  %v753 = vadd.f32 %v656, %v752
  %v754 = vpop.f32.mrf.mxu0
  %v755 = vpop.f32.mrf.mxu0
  %v756 = vadd.f32 %v659, %v755
  %v757 = vpop.f32.mrf.mxu0
  %758 = vmatprep.mubr.bf16.mxu0 %v298
  %759 = vmatmul.mubr.bf16.gmra.mxu0 %v297
  %v760 = vpop.f32.mrf.mxu0
  %v761 = vadd.f32 %v664, %v760
  %v762 = vpop.f32.mrf.mxu0
  %v763 = vpop.f32.mrf.mxu0
  %v764 = vadd.f32 %v667, %v763
  %v765 = vpop.f32.mrf.mxu0
  %766 = vdwg.mxu0
  %767 = vmatprep.subr.bf16.mxu0 0
  %768 = vmatpush1.bf16.msra.mxu0 0
  %769 = vmatprep.subr.bf16.mxu0 0
  %770 = vmatpush1.bf16.msra.mxu0 0
  %771 = vmatprep.subr.bf16.mxu0 0
  %772 = vmatpush1.bf16.msra.mxu0 0
  %773 = vmatprep.subr.bf16.mxu0 0
  %774 = vmatpush1.bf16.msra.mxu0 0
  %775 = vmatprep.subr.bf16.mxu0 0
  %776 = vmatpush1.bf16.msra.mxu0 %v511
  %777 = vmatprep.subr.bf16.mxu0 0
  %778 = vmatpush1.bf16.msra.mxu0 %v510
  %779 = vmatprep.subr.bf16.mxu0 0
  %780 = vmatpush1.bf16.msra.mxu0 %v509
  %781 = vmatprep.subr.bf16.mxu0 0
  %782 = vmatpush1.bf16.msra.mxu0 %v508
  %783 = vmatprep.subr.bf16.mxu0 0
  %784 = vmatpush2.bf16.msra.mxu0 0
  %785 = vmatprep.subr.bf16.mxu0 0
  %786 = vmatpush2.bf16.msra.mxu0 0
  %787 = vmatprep.subr.bf16.mxu0 0
  %788 = vmatpush2.bf16.msra.mxu0 0
  %789 = vmatprep.subr.bf16.mxu0 0
  %790 = vmatpush2.bf16.msra.mxu0 0
  %791 = vmatprep.subr.bf16.mxu0 0
  %792 = vmatpush2.bf16.msra.mxu0 0
  %793 = vmatprep.subr.bf16.mxu0 0
  %794 = vmatpush2.bf16.msra.mxu0 0
  %795 = vmatprep.subr.bf16.mxu0 0
  %796 = vmatpush2.bf16.msra.mxu0 0
  %797 = vmatprep.subr.bf16.mxu0 0
  %798 = vmatpush2.bf16.msra.mxu0 0
  %799 = vmatprep.mubr.bf16.mxu0 0
  %800 = vmatmul.mubr.bf16.gmra.mxu0 %v550
  %v801 = vpop.f32.mrf.mxu0
  %v802 = vadd.f32 %v705, %v801
  %v803 = vpop.f32.mrf.mxu0
  %v804 = vpop.f32.mrf.mxu0
  %v805 = vadd.f32 %v708, %v804
  %v806 = vpop.f32.mrf.mxu0
  %807 = vmatprep.mubr.bf16.mxu0 0
  %808 = vmatmul.mubr.bf16.gmra.mxu0 %v553
  %v809 = vpop.f32.mrf.mxu0
  %v810 = vadd.f32 %v713, %v809
  %v811 = vpop.f32.mrf.mxu0
  %v812 = vpop.f32.mrf.mxu0
  %v813 = vadd.f32 %v716, %v812
  %v814 = vpop.f32.mrf.mxu0
  %815 = vmatprep.mubr.bf16.mxu0 0
  %816 = vmatmul.mubr.bf16.gmra.mxu0 %v556
  %v817 = vpop.f32.mrf.mxu0
  %v818 = vadd.f32 %v721, %v817
  %v819 = vpop.f32.mrf.mxu0
  %v820 = vpop.f32.mrf.mxu0
  %v821 = vadd.f32 %v724, %v820
  %v822 = vpop.f32.mrf.mxu0
  %823 = vmatprep.mubr.bf16.mxu0 0
  %824 = vmatmul.mubr.bf16.gmra.mxu0 %v559
  %v825 = vpop.f32.mrf.mxu0
  %v826 = vadd.f32 %v729, %v825
  %v827 = vpop.f32.mrf.mxu0
  %v828 = vpop.f32.mrf.mxu0
  %v829 = vadd.f32 %v732, %v828
  %v830 = vpop.f32.mrf.mxu0
  %831 = vmatprep.mubr.bf16.mxu0 0
  %832 = vmatmul.mubr.bf16.gmra.mxu0 %v562
  %v833 = vpop.f32.mrf.mxu0
  %v834 = vadd.f32 %v737, %v833
  %v835 = vpop.f32.mrf.mxu0
  %v836 = vpop.f32.mrf.mxu0
  %v837 = vadd.f32 %v740, %v836
  %v838 = vpop.f32.mrf.mxu0
  %839 = vmatprep.mubr.bf16.mxu0 0
  %840 = vmatmul.mubr.bf16.gmra.mxu0 %v565
  %v841 = vpop.f32.mrf.mxu0
  %v842 = vadd.f32 %v745, %v841
  %v843 = vpop.f32.mrf.mxu0
  %v844 = vpop.f32.mrf.mxu0
  %v845 = vadd.f32 %v748, %v844
  %v846 = vpop.f32.mrf.mxu0
  %847 = vmatprep.mubr.bf16.mxu0 0
  %848 = vmatmul.mubr.bf16.gmra.mxu0 %v568
  %v849 = vpop.f32.mrf.mxu0
  %v850 = vadd.f32 %v753, %v849
  %v851 = vpop.f32.mrf.mxu0
  %v852 = vpop.f32.mrf.mxu0
  %v853 = vadd.f32 %v756, %v852
  %v854 = vpop.f32.mrf.mxu0
  %855 = vmatprep.mubr.bf16.mxu0 0
  %856 = vmatmul.mubr.bf16.gmra.mxu0 %v571
  %v857 = vpop.f32.mrf.mxu0
  %v858 = vadd.f32 %v761, %v857
  %v859 = vpop.f32.mrf.mxu0
  %v860 = vpop.f32.mrf.mxu0
  %v861 = vadd.f32 %v764, %v860
  %v862 = vpop.f32.mrf.mxu0
  %863 = vdwg.mxu0
  %v864 = vmax.f32 %v802, 0.0
  %v865 = vmax.f32 %v805, 0.0
  %v866 = vmax.f32 %v810, 0.0
  %v867 = vmax.f32 %v813, 0.0
  %v868 = vmax.f32 %v818, 0.0
  %v869 = vmax.f32 %v821, 0.0
  %v870 = vmax.f32 %v826, 0.0
  %v871 = vmax.f32 %v829, 0.0
  %v872 = vmax.f32 %v834, 0.0
  %v873 = vmax.f32 %v837, 0.0
  %v874 = vmax.f32 %v842, 0.0
  %v875 = vmax.f32 %v845, 0.0
  %v876 = vmax.f32 %v850, 0.0
  %v877 = vmax.f32 %v853, 0.0
  %v878 = vmax.f32 %v858, 0.0
  %v879 = vmax.f32 %v861, 0.0
  %880 = vst [vmem:[%s2] sm:$0xff] %v864
  %881 = vst [vmem:[%s2 + $0x8] sm:$0xff] %v865
  %882 = vst [vmem:[%s2 + $0x10] sm:$0xff] %v866
  %883 = vst [vmem:[%s2 + $0x18] sm:$0xff] %v867
  %884 = vst [vmem:[%s2 + $0x20] sm:$0xff] %v868
  %885 = vst [vmem:[%s2 + $0x28] sm:$0xff] %v869
  %886 = vst [vmem:[%s2 + $0x30] sm:$0xff] %v870
  %887 = vst [vmem:[%s2 + $0x38] sm:$0xff] %v871
  %888 = vst [vmem:[%s2 + $0x40] sm:$0xff] %v872
  %889 = vst [vmem:[%s2 + $0x48] sm:$0xff] %v873
  %890 = vst [vmem:[%s2 + $0x50] sm:$0xff] %v874
  %891 = vst [vmem:[%s2 + $0x58] sm:$0xff] %v875
  %892 = vst [vmem:[%s2 + $0x60] sm:$0xff] %v876
  %893 = vst [vmem:[%s2 + $0x68] sm:$0xff] %v877
  %894 = vst [vmem:[%s2 + $0x70] sm:$0xff] %v878
  %895 = vst [vmem:[%s2 + $0x78] sm:$0xff] %v879
  // Predicated region
  $region10: #{cycle_generator_forward.6} parent=0 // pred_check
    _
  $region11: #{cycle_generator_forward.6} parent=0 // pred_check_branch
    %897 = sbr.rel (0) target = $region13
  $region12: #{cycle_generator_forward.6} parent=0 // pred_region
    _
  $region13: #{cycle_generator_forward.6} parent=0 // pred_fallthru
    _
  // Predicated region
  $region14: #{cycle_generator_forward.6} parent=0 // pred_check
    _
  $region15: #{cycle_generator_forward.6} parent=0 // pred_check_branch
    %899 = sbr.rel (0) target = $region17
  $region16: #{cycle_generator_forward.6} parent=0 // pred_region
    _
  $region17: #{cycle_generator_forward.6} parent=0 // pred_fallthru
    _

// kernel: cycle_generator_forward.7
$region0: #{cycle_generator_forward.7}
  #allocation0 [shape = 'u32[]', space=smem, size = 0x4, offset = 0x4, fixed_abs, tag = 'smem constant byte address 0x4 - core index']
  #allocation1 [shape = 'u32[144,128]{1,0:T(1,128)}', space=vmem, size = 0x12000, scoped, tag = 'internal scratch']
  %s0 = inlined_call_operand.vmem [shape: bf16[512,288], index: 0, kind: input, shape index: {}]
  %s1 = inlined_call_operand.vmem [shape: bf16[288,128], index: 1, kind: input, shape index: {}]
  %s2 = inlined_call_operand.vmem [shape: f32[512,128], index: 2, kind: output, shape index: {}]
  %s3 = sld [smem:[#allocation0]]
  $region18: #{cycle_generator_forward.7} parent=0
    _
  %s5 = ssub.s32 1, %s3
  %s6 = scalar_select 0, %s5, %s3
  // Predicated region
  $region2: #{cycle_generator_forward.7} parent=0 // pred_check
    _
  $region3: #{cycle_generator_forward.7} parent=0 // pred_check_branch
    %8 = sbr.rel (0) target = $region5
  $region4: #{cycle_generator_forward.7} parent=0 // pred_region
    _
  $region5: #{cycle_generator_forward.7} parent=0 // pred_fallthru
    _
  // Predicated region
  $region6: #{cycle_generator_forward.7} parent=0 // pred_check
    _
  $region7: #{cycle_generator_forward.7} parent=0 // pred_check_branch
    %10 = sbr.rel (0) target = $region9
  $region8: #{cycle_generator_forward.7} parent=0 // pred_region
    _
  $region9: #{cycle_generator_forward.7} parent=0 // pred_fallthru
    _
  %v12 = vld [vmem:[%s0] sm:$0xff]
  %v13 = vld [vmem:[%s0 + $0x8] sm:$0xf]
  %v14 = vld [vmem:[%s0 + $0xc] sm:$0xff]
  %v15 = vld [vmem:[%s0 + $0x14] sm:$0xf]
  %v16 = vld [vmem:[%s0 + $0x18] sm:$0xff]
  %v17 = vld [vmem:[%s0 + $0x20] sm:$0xf]
  %v18 = vld [vmem:[%s0 + $0x24] sm:$0xff]
  %v19 = vld [vmem:[%s0 + $0x2c] sm:$0xf]
  %v20 = vld [vmem:[%s0 + $0x30] sm:$0xff]
  %v21 = vld [vmem:[%s0 + $0x38] sm:$0xf]
  %v22 = vld [vmem:[%s0 + $0x3c] sm:$0xff]
  %v23 = vld [vmem:[%s0 + $0x44] sm:$0xf]
  %v24 = vld [vmem:[%s0 + $0x48] sm:$0xff]
  %v25 = vld [vmem:[%s0 + $0x50] sm:$0xf]
  %v26 = vld [vmem:[%s0 + $0x54] sm:$0xff]
  %v27 = vld [vmem:[%s0 + $0x5c] sm:$0xf]
  %v28 = vld [vmem:[%s0 + $0x60] sm:$0xff]
  %v29 = vld [vmem:[%s0 + $0x68] sm:$0xf]
  %v30 = vld [vmem:[%s0 + $0x6c] sm:$0xff]
  %v31 = vld [vmem:[%s0 + $0x74] sm:$0xf]
  %v32 = vld [vmem:[%s0 + $0x78] sm:$0xff]
  %v33 = vld [vmem:[%s0 + $0x80] sm:$0xf]
  %v34 = vld [vmem:[%s0 + $0x84] sm:$0xff]
  %v35 = vld [vmem:[%s0 + $0x8c] sm:$0xf]
  %v36 = vld [vmem:[%s0 + $0x90] sm:$0xff]
  %v37 = vld [vmem:[%s0 + $0x98] sm:$0xf]
  %v38 = vld [vmem:[%s0 + $0x9c] sm:$0xff]
  %v39 = vld [vmem:[%s0 + $0xa4] sm:$0xf]
  %v40 = vld [vmem:[%s0 + $0xa8] sm:$0xff]
  %v41 = vld [vmem:[%s0 + $0xb0] sm:$0xf]
  %v42 = vld [vmem:[%s0 + $0xb4] sm:$0xff]
  %v43 = vld [vmem:[%s0 + $0xbc] sm:$0xf]
  %v44 = vld [vmem:[%s0 + $0xc0] sm:$0xff]
  %v45 = vld [vmem:[%s0 + $0xc8] sm:$0xf]
  %v46 = vld [vmem:[%s0 + $0xcc] sm:$0xff]
  %v47 = vld [vmem:[%s0 + $0xd4] sm:$0xf]
  %v48 = vld [vmem:[%s0 + $0xd8] sm:$0xff]
  %v49 = vld [vmem:[%s0 + $0xe0] sm:$0xf]
  %v50 = vld [vmem:[%s0 + $0xe4] sm:$0xff]
  %v51 = vld [vmem:[%s0 + $0xec] sm:$0xf]
  %v52 = vld [vmem:[%s0 + $0xf0] sm:$0xff]
  %v53 = vld [vmem:[%s0 + $0xf8] sm:$0xf]
  %v54 = vld [vmem:[%s0 + $0xfc] sm:$0xff]
  %v55 = vld [vmem:[%s0 + $0x104] sm:$0xf]
  %v56 = vld [vmem:[%s0 + $0x108] sm:$0xff]
  %v57 = vld [vmem:[%s0 + $0x110] sm:$0xf]
  %v58 = vld [vmem:[%s0 + $0x114] sm:$0xff]
  %v59 = vld [vmem:[%s0 + $0x11c] sm:$0xf]
  %v60 = vld [vmem:[%s0 + $0x120] sm:$0xff]
  %v61 = vld [vmem:[%s0 + $0x128] sm:$0xf]
  %v62 = vld [vmem:[%s0 + $0x12c] sm:$0xff]
  %v63 = vld [vmem:[%s0 + $0x134] sm:$0xf]
  %v64 = vld [vmem:[%s0 + $0x138] sm:$0xff]
  %v65 = vld [vmem:[%s0 + $0x140] sm:$0xf]
  %v66 = vld [vmem:[%s0 + $0x144] sm:$0xff]
  %v67 = vld [vmem:[%s0 + $0x14c] sm:$0xf]
  %v68 = vld [vmem:[%s0 + $0x150] sm:$0xff]
  %v69 = vld [vmem:[%s0 + $0x158] sm:$0xf]
  %v70 = vld [vmem:[%s0 + $0x15c] sm:$0xff]
  %v71 = vld [vmem:[%s0 + $0x164] sm:$0xf]
  %v72 = vld [vmem:[%s0 + $0x168] sm:$0xff]
  %v73 = vld [vmem:[%s0 + $0x170] sm:$0xf]
  %v74 = vld [vmem:[%s0 + $0x174] sm:$0xff]
  %v75 = vld [vmem:[%s0 + $0x17c] sm:$0xf]
  %v76 = vld [vmem:[%s0 + $0x180] sm:$0xff]
  %v77 = vld [vmem:[%s0 + $0x188] sm:$0xf]
  %v78 = vld [vmem:[%s0 + $0x18c] sm:$0xff]
  %v79 = vld [vmem:[%s0 + $0x194] sm:$0xf]
  %v80 = vld [vmem:[%s0 + $0x198] sm:$0xff]
  %v81 = vld [vmem:[%s0 + $0x1a0] sm:$0xf]
  %v82 = vld [vmem:[%s0 + $0x1a4] sm:$0xff]
  %v83 = vld [vmem:[%s0 + $0x1ac] sm:$0xf]
  %v84 = vld [vmem:[%s0 + $0x1b0] sm:$0xff]
  %v85 = vld [vmem:[%s0 + $0x1b8] sm:$0xf]
  %v86 = vld [vmem:[%s0 + $0x1bc] sm:$0xff]
  %v87 = vld [vmem:[%s0 + $0x1c4] sm:$0xf]
  %v88 = vld [vmem:[%s0 + $0x1c8] sm:$0xff]
  %v89 = vld [vmem:[%s0 + $0x1d0] sm:$0xf]
  %v90 = vld [vmem:[%s0 + $0x1d4] sm:$0xff]
  %v91 = vld [vmem:[%s0 + $0x1dc] sm:$0xf]
  %v92 = vld [vmem:[%s0 + $0x1e0] sm:$0xff]
  %v93 = vld [vmem:[%s0 + $0x1e8] sm:$0xf]
  %v94 = vld [vmem:[%s0 + $0x1ec] sm:$0xff]
  %v95 = vld [vmem:[%s0 + $0x1f4] sm:$0xf]
  %v96 = vld [vmem:[%s0 + $0x1f8] sm:$0xff]
  %v97 = vld [vmem:[%s0 + $0x200] sm:$0xf]
  %v98 = vld [vmem:[%s0 + $0x204] sm:$0xff]
  %v99 = vld [vmem:[%s0 + $0x20c] sm:$0xf]
  %v100 = vld [vmem:[%s0 + $0x210] sm:$0xff]
  %v101 = vld [vmem:[%s0 + $0x218] sm:$0xf]
  %v102 = vld [vmem:[%s0 + $0x21c] sm:$0xff]
  %v103 = vld [vmem:[%s0 + $0x224] sm:$0xf]
  %v104 = vld [vmem:[%s0 + $0x228] sm:$0xff]
  %v105 = vld [vmem:[%s0 + $0x230] sm:$0xf]
  %v106 = vld [vmem:[%s0 + $0x234] sm:$0xff]
  %v107 = vld [vmem:[%s0 + $0x23c] sm:$0xf]
  %v108 = vld [vmem:[%s0 + $0x240] sm:$0xff]
  %v109 = vld [vmem:[%s0 + $0x248] sm:$0xf]
  %v110 = vld [vmem:[%s0 + $0x24c] sm:$0xff]
  %v111 = vld [vmem:[%s0 + $0x254] sm:$0xf]
  %v112 = vld [vmem:[%s0 + $0x258] sm:$0xff]
  %v113 = vld [vmem:[%s0 + $0x260] sm:$0xf]
  %v114 = vld [vmem:[%s0 + $0x264] sm:$0xff]
  %v115 = vld [vmem:[%s0 + $0x26c] sm:$0xf]
  %v116 = vld [vmem:[%s0 + $0x270] sm:$0xff]
  %v117 = vld [vmem:[%s0 + $0x278] sm:$0xf]
  %v118 = vld [vmem:[%s0 + $0x27c] sm:$0xff]
  %v119 = vld [vmem:[%s0 + $0x284] sm:$0xf]
  %v120 = vld [vmem:[%s0 + $0x288] sm:$0xff]
  %v121 = vld [vmem:[%s0 + $0x290] sm:$0xf]
  %v122 = vld [vmem:[%s0 + $0x294] sm:$0xff]
  %v123 = vld [vmem:[%s0 + $0x29c] sm:$0xf]
  %v124 = vld [vmem:[%s0 + $0x2a0] sm:$0xff]
  %v125 = vld [vmem:[%s0 + $0x2a8] sm:$0xf]
  %v126 = vld [vmem:[%s0 + $0x2ac] sm:$0xff]
  %v127 = vld [vmem:[%s0 + $0x2b4] sm:$0xf]
  %v128 = vld [vmem:[%s0 + $0x2b8] sm:$0xff]
  %v129 = vld [vmem:[%s0 + $0x2c0] sm:$0xf]
  %v130 = vld [vmem:[%s0 + $0x2c4] sm:$0xff]
  %v131 = vld [vmem:[%s0 + $0x2cc] sm:$0xf]
  %v132 = vld [vmem:[%s0 + $0x2d0] sm:$0xff]
  %v133 = vld [vmem:[%s0 + $0x2d8] sm:$0xf]
  %v134 = vld [vmem:[%s0 + $0x2dc] sm:$0xff]
  %v135 = vld [vmem:[%s0 + $0x2e4] sm:$0xf]
  %v136 = vld [vmem:[%s0 + $0x2e8] sm:$0xff]
  %v137 = vld [vmem:[%s0 + $0x2f0] sm:$0xf]
  %v138 = vld [vmem:[%s0 + $0x2f4] sm:$0xff]
  %v139 = vld [vmem:[%s0 + $0x2fc] sm:$0xf]
  %v140 = vld [vmem:[%s1] sm:$0xf]
  %v141 = vld [vmem:[%s1 + $0x4] sm:$0xf]
  %v142 = vld [vmem:[%s1 + $0x8] sm:$0xf]
  %v143 = vld [vmem:[%s1 + $0xc] sm:$0xf]
  %v144 = vld [vmem:[%s1 + $0x10] sm:$0xf]
  %v145 = vld [vmem:[%s1 + $0x14] sm:$0xf]
  %v146 = vld [vmem:[%s1 + $0x18] sm:$0xf]
  %v147 = vld [vmem:[%s1 + $0x1c] sm:$0xf]
  %v148 = vld [vmem:[%s1 + $0x20] sm:$0xf]
  %v149 = vld [vmem:[%s1 + $0x24] sm:$0xf]
  %v150 = vld [vmem:[%s1 + $0x28] sm:$0xf]
  %v151 = vld [vmem:[%s1 + $0x2c] sm:$0xf]
  %v152 = vld [vmem:[%s1 + $0x30] sm:$0xf]
  %v153 = vld [vmem:[%s1 + $0x34] sm:$0xf]
  %v154 = vld [vmem:[%s1 + $0x38] sm:$0xf]
  %v155 = vld [vmem:[%s1 + $0x3c] sm:$0xf]
  %v156 = vld [vmem:[%s1 + $0x40] sm:$0xf]
  %v157 = vld [vmem:[%s1 + $0x44] sm:$0xf]
  %v158 = vld [vmem:[%s1 + $0x48] sm:$0xf]
  %v159 = vld [vmem:[%s1 + $0x4c] sm:$0xf]
  %v160 = vld [vmem:[%s1 + $0x50] sm:$0xf]
  %v161 = vld [vmem:[%s1 + $0x54] sm:$0xf]
  %v162 = vld [vmem:[%s1 + $0x58] sm:$0xf]
  %v163 = vld [vmem:[%s1 + $0x5c] sm:$0xf]
  %v164 = vld [vmem:[%s1 + $0x60] sm:$0xf]
  %v165 = vld [vmem:[%s1 + $0x64] sm:$0xf]
  %v166 = vld [vmem:[%s1 + $0x68] sm:$0xf]
  %v167 = vld [vmem:[%s1 + $0x6c] sm:$0xf]
  %v168 = vld [vmem:[%s1 + $0x70] sm:$0xf]
  %v169 = vld [vmem:[%s1 + $0x74] sm:$0xf]
  %v170 = vld [vmem:[%s1 + $0x78] sm:$0xf]
  %v171 = vld [vmem:[%s1 + $0x7c] sm:$0xf]
  %v172 = vld [vmem:[%s1 + $0x80] sm:$0xf]
  %v173 = vld [vmem:[%s1 + $0x84] sm:$0xf]
  %v174 = vld [vmem:[%s1 + $0x88] sm:$0xf]
  %v175 = vld [vmem:[%s1 + $0x8c] sm:$0xf]
  %v304 = vunpack.c.l.b16 %v12
  %v305 = vunpack.c.h.b16 %v12
  %v306 = vunpack.c.l.b16 %v13
  %v307 = vunpack.c.l.b16 %v14
  %v308 = vunpack.c.h.b16 %v14
  %v309 = vunpack.c.l.b16 %v15
  %v310 = vunpack.c.l.b16 %v16
  %v311 = vunpack.c.h.b16 %v16
  %v312 = vunpack.c.l.b16 %v17
  %v313 = vunpack.c.l.b16 %v18
  %v314 = vunpack.c.h.b16 %v18
  %v315 = vunpack.c.l.b16 %v19
  %v316 = vunpack.c.l.b16 %v20
  %v317 = vunpack.c.h.b16 %v20
  %v318 = vunpack.c.l.b16 %v21
  %v319 = vunpack.c.l.b16 %v22
  %v320 = vunpack.c.h.b16 %v22
  %v321 = vunpack.c.l.b16 %v23
  %v322 = vunpack.c.l.b16 %v24
  %v323 = vunpack.c.h.b16 %v24
  %v324 = vunpack.c.l.b16 %v25
  %v325 = vunpack.c.l.b16 %v26
  %v326 = vunpack.c.h.b16 %v26
  %v327 = vunpack.c.l.b16 %v27
  %v328 = vunpack.c.l.b16 %v28
  %v329 = vunpack.c.h.b16 %v28
  %v330 = vunpack.c.l.b16 %v29
  %v331 = vunpack.c.l.b16 %v30
  %v332 = vunpack.c.h.b16 %v30
  %v333 = vunpack.c.l.b16 %v31
  %v334 = vunpack.c.l.b16 %v32
  %v335 = vunpack.c.h.b16 %v32
  %v336 = vunpack.c.l.b16 %v33
  %v337 = vunpack.c.l.b16 %v34
  %v338 = vunpack.c.h.b16 %v34
  %v339 = vunpack.c.l.b16 %v35
  %v340 = vunpack.c.l.b16 %v36
  %v341 = vunpack.c.h.b16 %v36
  %v342 = vunpack.c.l.b16 %v37
  %v343 = vunpack.c.l.b16 %v38
  %v344 = vunpack.c.h.b16 %v38
  %v345 = vunpack.c.l.b16 %v39
  %v346 = vunpack.c.l.b16 %v40
  %v347 = vunpack.c.h.b16 %v40
  %v348 = vunpack.c.l.b16 %v41
  %v349 = vunpack.c.l.b16 %v42
  %v350 = vunpack.c.h.b16 %v42
  %v351 = vunpack.c.l.b16 %v43
  %v352 = vunpack.c.l.b16 %v44
  %v353 = vunpack.c.h.b16 %v44
  %v354 = vunpack.c.l.b16 %v45
  %v355 = vunpack.c.l.b16 %v46
  %v356 = vunpack.c.h.b16 %v46
  %v357 = vunpack.c.l.b16 %v47
  %v358 = vunpack.c.l.b16 %v48
  %v359 = vunpack.c.h.b16 %v48
  %v360 = vunpack.c.l.b16 %v49
  %v361 = vunpack.c.l.b16 %v50
  %v362 = vunpack.c.h.b16 %v50
  %v363 = vunpack.c.l.b16 %v51
  %v364 = vunpack.c.l.b16 %v52
  %v365 = vunpack.c.h.b16 %v52
  %v366 = vunpack.c.l.b16 %v53
  %v367 = vunpack.c.l.b16 %v54
  %v368 = vunpack.c.h.b16 %v54
  %v369 = vunpack.c.l.b16 %v55
  %v370 = vunpack.c.l.b16 %v56
  %v371 = vunpack.c.h.b16 %v56
  %v372 = vunpack.c.l.b16 %v57
  %v373 = vunpack.c.l.b16 %v58
  %v374 = vunpack.c.h.b16 %v58
  %v375 = vunpack.c.l.b16 %v59
  %v376 = vunpack.c.l.b16 %v60
  %v377 = vunpack.c.h.b16 %v60
  %v378 = vunpack.c.l.b16 %v61
  %v379 = vunpack.c.l.b16 %v62
  %v380 = vunpack.c.h.b16 %v62
  %v381 = vunpack.c.l.b16 %v63
  %v382 = vunpack.c.l.b16 %v64
  %v383 = vunpack.c.h.b16 %v64
  %v384 = vunpack.c.l.b16 %v65
  %v385 = vunpack.c.l.b16 %v66
  %v386 = vunpack.c.h.b16 %v66
  %v387 = vunpack.c.l.b16 %v67
  %v388 = vunpack.c.l.b16 %v68
  %v389 = vunpack.c.h.b16 %v68
  %v390 = vunpack.c.l.b16 %v69
  %v391 = vunpack.c.l.b16 %v70
  %v392 = vunpack.c.h.b16 %v70
  %v393 = vunpack.c.l.b16 %v71
  %v394 = vunpack.c.l.b16 %v72
  %v395 = vunpack.c.h.b16 %v72
  %v396 = vunpack.c.l.b16 %v73
  %v397 = vunpack.c.l.b16 %v74
  %v398 = vunpack.c.h.b16 %v74
  %v399 = vunpack.c.l.b16 %v75
  %v400 = vunpack.c.l.b16 %v76
  %v401 = vunpack.c.h.b16 %v76
  %v402 = vunpack.c.l.b16 %v77
  %v403 = vunpack.c.l.b16 %v78
  %v404 = vunpack.c.h.b16 %v78
  %v405 = vunpack.c.l.b16 %v79
  %v406 = vunpack.c.l.b16 %v80
  %v407 = vunpack.c.h.b16 %v80
  %v408 = vunpack.c.l.b16 %v81
  %v409 = vunpack.c.l.b16 %v82
  %v410 = vunpack.c.h.b16 %v82
  %v411 = vunpack.c.l.b16 %v83
  %v412 = vunpack.c.l.b16 %v84
  %v413 = vunpack.c.h.b16 %v84
  %v414 = vunpack.c.l.b16 %v85
  %v415 = vunpack.c.l.b16 %v86
  %v416 = vunpack.c.h.b16 %v86
  %v417 = vunpack.c.l.b16 %v87
  %v418 = vunpack.c.l.b16 %v88
  %v419 = vunpack.c.h.b16 %v88
  %v420 = vunpack.c.l.b16 %v89
  %v421 = vunpack.c.l.b16 %v90
  %v422 = vunpack.c.h.b16 %v90
  %v423 = vunpack.c.l.b16 %v91
  %v424 = vunpack.c.l.b16 %v92
  %v425 = vunpack.c.h.b16 %v92
  %v426 = vunpack.c.l.b16 %v93
  %v427 = vunpack.c.l.b16 %v94
  %v428 = vunpack.c.h.b16 %v94
  %v429 = vunpack.c.l.b16 %v95
  %v430 = vunpack.c.l.b16 %v96
  %v431 = vunpack.c.h.b16 %v96
  %v432 = vunpack.c.l.b16 %v97
  %v433 = vunpack.c.l.b16 %v98
  %v434 = vunpack.c.h.b16 %v98
  %v435 = vunpack.c.l.b16 %v99
  %v436 = vunpack.c.l.b16 %v100
  %v437 = vunpack.c.h.b16 %v100
  %v438 = vunpack.c.l.b16 %v101
  %v439 = vunpack.c.l.b16 %v102
  %v440 = vunpack.c.h.b16 %v102
  %v441 = vunpack.c.l.b16 %v103
  %v442 = vunpack.c.l.b16 %v104
  %v443 = vunpack.c.h.b16 %v104
  %v444 = vunpack.c.l.b16 %v105
  %v445 = vunpack.c.l.b16 %v106
  %v446 = vunpack.c.h.b16 %v106
  %v447 = vunpack.c.l.b16 %v107
  %v448 = vunpack.c.l.b16 %v108
  %v449 = vunpack.c.h.b16 %v108
  %v450 = vunpack.c.l.b16 %v109
  %v451 = vunpack.c.l.b16 %v110
  %v452 = vunpack.c.h.b16 %v110
  %v453 = vunpack.c.l.b16 %v111
  %v454 = vunpack.c.l.b16 %v112
  %v455 = vunpack.c.h.b16 %v112
  %v456 = vunpack.c.l.b16 %v113
  %v457 = vunpack.c.l.b16 %v114
  %v458 = vunpack.c.h.b16 %v114
  %v459 = vunpack.c.l.b16 %v115
  %v460 = vunpack.c.l.b16 %v116
  %v461 = vunpack.c.h.b16 %v116
  %v462 = vunpack.c.l.b16 %v117
  %v463 = vunpack.c.l.b16 %v118
  %v464 = vunpack.c.h.b16 %v118
  %v465 = vunpack.c.l.b16 %v119
  %v466 = vunpack.c.l.b16 %v120
  %v467 = vunpack.c.h.b16 %v120
  %v468 = vunpack.c.l.b16 %v121
  %v469 = vunpack.c.l.b16 %v122
  %v470 = vunpack.c.h.b16 %v122
  %v471 = vunpack.c.l.b16 %v123
  %v472 = vunpack.c.l.b16 %v124
  %v473 = vunpack.c.h.b16 %v124
  %v474 = vunpack.c.l.b16 %v125
  %v475 = vunpack.c.l.b16 %v126
  %v476 = vunpack.c.h.b16 %v126
  %v477 = vunpack.c.l.b16 %v127
  %v478 = vunpack.c.l.b16 %v128
  %v479 = vunpack.c.h.b16 %v128
  %v480 = vunpack.c.l.b16 %v129
  %v481 = vunpack.c.l.b16 %v130
  %v482 = vunpack.c.h.b16 %v130
  %v483 = vunpack.c.l.b16 %v131
  %v484 = vunpack.c.l.b16 %v132
  %v485 = vunpack.c.h.b16 %v132
  %v486 = vunpack.c.l.b16 %v133
  %v487 = vunpack.c.l.b16 %v134
  %v488 = vunpack.c.h.b16 %v134
  %v489 = vunpack.c.l.b16 %v135
  %v490 = vunpack.c.l.b16 %v136
  %v491 = vunpack.c.h.b16 %v136
  %v492 = vunpack.c.l.b16 %v137
  %v493 = vunpack.c.l.b16 %v138
  %v494 = vunpack.c.h.b16 %v138
  %v495 = vunpack.c.l.b16 %v139
  %v496 = vpack.c.b16 %v307, %v304
  %v497 = vpack.c.b16 %v308, %v305
  %v498 = vpack.c.b16 %v309, %v306
  %v499 = vpack.c.b16 %v313, %v310
  %v500 = vpack.c.b16 %v314, %v311
  %v501 = vpack.c.b16 %v315, %v312
  %v502 = vpack.c.b16 %v319, %v316
  %v503 = vpack.c.b16 %v320, %v317
  %v504 = vpack.c.b16 %v321, %v318
  %v505 = vpack.c.b16 %v325, %v322
  %v506 = vpack.c.b16 %v326, %v323
  %v507 = vpack.c.b16 %v327, %v324
  %v508 = vpack.c.b16 %v331, %v328
  %v509 = vpack.c.b16 %v332, %v329
  %v510 = vpack.c.b16 %v333, %v330
  %v511 = vpack.c.b16 %v337, %v334
  %v512 = vpack.c.b16 %v338, %v335
  %v513 = vpack.c.b16 %v339, %v336
  %v514 = vpack.c.b16 %v343, %v340
  %v515 = vpack.c.b16 %v344, %v341
  %v516 = vpack.c.b16 %v345, %v342
  %v517 = vpack.c.b16 %v349, %v346
  %v518 = vpack.c.b16 %v350, %v347
  %v519 = vpack.c.b16 %v351, %v348
  %v520 = vpack.c.b16 %v355, %v352
  %v521 = vpack.c.b16 %v356, %v353
  %v522 = vpack.c.b16 %v357, %v354
  %v523 = vpack.c.b16 %v361, %v358
  %v524 = vpack.c.b16 %v362, %v359
  %v525 = vpack.c.b16 %v363, %v360
  %v526 = vpack.c.b16 %v367, %v364
  %v527 = vpack.c.b16 %v368, %v365
  %v528 = vpack.c.b16 %v369, %v366
  %v529 = vpack.c.b16 %v373, %v370
  %v530 = vpack.c.b16 %v374, %v371
  %v531 = vpack.c.b16 %v375, %v372
  %v532 = vpack.c.b16 %v379, %v376
  %v533 = vpack.c.b16 %v380, %v377
  %v534 = vpack.c.b16 %v381, %v378
  %v535 = vpack.c.b16 %v385, %v382
  %v536 = vpack.c.b16 %v386, %v383
  %v537 = vpack.c.b16 %v387, %v384
  %v538 = vpack.c.b16 %v391, %v388
  %v539 = vpack.c.b16 %v392, %v389
  %v540 = vpack.c.b16 %v393, %v390
  %v541 = vpack.c.b16 %v397, %v394
  %v542 = vpack.c.b16 %v398, %v395
  %v543 = vpack.c.b16 %v399, %v396
  %v544 = vpack.c.b16 %v403, %v400
  %v545 = vpack.c.b16 %v404, %v401
  %v546 = vpack.c.b16 %v405, %v402
  %v547 = vpack.c.b16 %v409, %v406
  %v548 = vpack.c.b16 %v410, %v407
  %v549 = vpack.c.b16 %v411, %v408
  %v550 = vpack.c.b16 %v415, %v412
  %v551 = vpack.c.b16 %v416, %v413
  %v552 = vpack.c.b16 %v417, %v414
  %v553 = vpack.c.b16 %v421, %v418
  %v554 = vpack.c.b16 %v422, %v419
  %v555 = vpack.c.b16 %v423, %v420
  %v556 = vpack.c.b16 %v427, %v424
  %v557 = vpack.c.b16 %v428, %v425
  %v558 = vpack.c.b16 %v429, %v426
  %v559 = vpack.c.b16 %v433, %v430
  %v560 = vpack.c.b16 %v434, %v431
  %v561 = vpack.c.b16 %v435, %v432
  %v562 = vpack.c.b16 %v439, %v436
  %v563 = vpack.c.b16 %v440, %v437
  %v564 = vpack.c.b16 %v441, %v438
  %v565 = vpack.c.b16 %v445, %v442
  %v566 = vpack.c.b16 %v446, %v443
  %v567 = vpack.c.b16 %v447, %v444
  %v568 = vpack.c.b16 %v451, %v448
  %v569 = vpack.c.b16 %v452, %v449
  %v570 = vpack.c.b16 %v453, %v450
  %v571 = vpack.c.b16 %v457, %v454
  %v572 = vpack.c.b16 %v458, %v455
  %v573 = vpack.c.b16 %v459, %v456
  %v574 = vpack.c.b16 %v463, %v460
  %v575 = vpack.c.b16 %v464, %v461
  %v576 = vpack.c.b16 %v465, %v462
  %v577 = vpack.c.b16 %v469, %v466
  %v578 = vpack.c.b16 %v470, %v467
  %v579 = vpack.c.b16 %v471, %v468
  %v580 = vpack.c.b16 %v475, %v472
  %v581 = vpack.c.b16 %v476, %v473
  %v582 = vpack.c.b16 %v477, %v474
  %v583 = vpack.c.b16 %v481, %v478
  %v584 = vpack.c.b16 %v482, %v479
  %v585 = vpack.c.b16 %v483, %v480
  %v586 = vpack.c.b16 %v487, %v484
  %v587 = vpack.c.b16 %v488, %v485
  %v588 = vpack.c.b16 %v489, %v486
  %v589 = vpack.c.b16 %v493, %v490
  %v590 = vpack.c.b16 %v494, %v491
  %v591 = vpack.c.b16 %v495, %v492
  %v692 = vunpack.c.l.b16 %v140
  %v693 = vunpack.c.l.b16 %v141
  %v694 = vunpack.c.l.b16 %v142
  %v695 = vunpack.c.l.b16 %v143
  %v696 = vunpack.c.l.b16 %v144
  %v697 = vunpack.c.l.b16 %v145
  %v698 = vunpack.c.l.b16 %v146
  %v699 = vunpack.c.l.b16 %v147
  %v700 = vunpack.c.l.b16 %v148
  %v701 = vunpack.c.l.b16 %v149
  %v702 = vunpack.c.l.b16 %v150
  %v703 = vunpack.c.l.b16 %v151
  %v704 = vunpack.c.l.b16 %v152
  %v705 = vunpack.c.l.b16 %v153
  %v706 = vunpack.c.l.b16 %v154
  %v707 = vunpack.c.l.b16 %v155
  %v708 = vunpack.c.l.b16 %v156
  %v709 = vunpack.c.l.b16 %v157
  %v710 = vunpack.c.l.b16 %v158
  %v711 = vunpack.c.l.b16 %v159
  %v712 = vunpack.c.l.b16 %v160
  %v713 = vunpack.c.l.b16 %v161
  %v714 = vunpack.c.l.b16 %v162
  %v715 = vunpack.c.l.b16 %v163
  %v716 = vunpack.c.l.b16 %v164
  %v717 = vunpack.c.l.b16 %v165
  %v718 = vunpack.c.l.b16 %v166
  %v719 = vunpack.c.l.b16 %v167
  %v720 = vunpack.c.l.b16 %v168
  %v721 = vunpack.c.l.b16 %v169
  %v722 = vunpack.c.l.b16 %v170
  %v723 = vunpack.c.l.b16 %v171
  %v724 = vunpack.c.l.b16 %v172
  %v725 = vunpack.c.l.b16 %v173
  %v726 = vunpack.c.l.b16 %v174
  %v727 = vunpack.c.l.b16 %v175
  %v728 = vpack.c.b16 %v693, %v692
  %v729 = vpack.c.b16 %v695, %v694
  %v730 = vpack.c.b16 %v697, %v696
  %v731 = vpack.c.b16 %v699, %v698
  %v732 = vpack.c.b16 %v701, %v700
  %v733 = vpack.c.b16 %v703, %v702
  %v734 = vpack.c.b16 %v705, %v704
  %v735 = vpack.c.b16 %v707, %v706
  %v736 = vpack.c.b16 %v709, %v708
  %v737 = vpack.c.b16 %v711, %v710
  %v738 = vpack.c.b16 %v713, %v712
  %v739 = vpack.c.b16 %v715, %v714
  %v740 = vpack.c.b16 %v717, %v716
  %v741 = vpack.c.b16 %v719, %v718
  %v742 = vpack.c.b16 %v721, %v720
  %v743 = vpack.c.b16 %v723, %v722
  %v744 = vpack.c.b16 %v725, %v724
  %v745 = vpack.c.b16 %v727, %v726
  %vm764 = vcmask 261120
  %v766 = vsel %vm764, %v498, 0
  %v769 = vsel %vm764, %v501, 0
  %v772 = vsel %vm764, %v504, 0
  %v775 = vsel %vm764, %v507, 0
  %v778 = vsel %vm764, %v510, 0
  %v781 = vsel %vm764, %v513, 0
  %v784 = vsel %vm764, %v516, 0
  %v787 = vsel %vm764, %v519, 0
  %v790 = vsel %vm764, %v522, 0
  %v793 = vsel %vm764, %v525, 0
  %v796 = vsel %vm764, %v528, 0
  %v799 = vsel %vm764, %v531, 0
  %v802 = vsel %vm764, %v534, 0
  %v805 = vsel %vm764, %v537, 0
  %v808 = vsel %vm764, %v540, 0
  %v811 = vsel %vm764, %v543, 0
  %v814 = vsel %vm764, %v546, 0
  %v817 = vsel %vm764, %v549, 0
  %v820 = vsel %vm764, %v552, 0
  %v823 = vsel %vm764, %v555, 0
  %v826 = vsel %vm764, %v558, 0
  %v829 = vsel %vm764, %v561, 0
  %v832 = vsel %vm764, %v564, 0
  %v835 = vsel %vm764, %v567, 0
  %v838 = vsel %vm764, %v570, 0
  %v841 = vsel %vm764, %v573, 0
  %v844 = vsel %vm764, %v576, 0
  %v847 = vsel %vm764, %v579, 0
  %v850 = vsel %vm764, %v582, 0
  %v853 = vsel %vm764, %v585, 0
  %v856 = vsel %vm764, %v588, 0
  %v859 = vsel %vm764, %v591, 0
  %861 = vmatprep.subr.bf16.mxu0 0
  %862 = vmatpush1.bf16.msra.mxu0 %v735
  %863 = vmatprep.subr.bf16.mxu0 0
  %864 = vmatpush1.bf16.msra.mxu0 %v734
  %865 = vmatprep.subr.bf16.mxu0 0
  %866 = vmatpush1.bf16.msra.mxu0 %v733
  %867 = vmatprep.subr.bf16.mxu0 0
  %868 = vmatpush1.bf16.msra.mxu0 %v732
  %869 = vmatprep.subr.bf16.mxu0 0
  %870 = vmatpush1.bf16.msra.mxu0 %v731
  %871 = vmatprep.subr.bf16.mxu0 0
  %872 = vmatpush1.bf16.msra.mxu0 %v730
  %873 = vmatprep.subr.bf16.mxu0 0
  %874 = vmatpush1.bf16.msra.mxu0 %v729
  %875 = vmatprep.subr.bf16.mxu0 0
  %876 = vmatpush1.bf16.msra.mxu0 %v728
  %877 = vmatprep.subr.bf16.mxu0 0
  %878 = vmatpush2.bf16.msra.mxu0 %v743
  %879 = vmatprep.subr.bf16.mxu0 0
  %880 = vmatpush2.bf16.msra.mxu0 %v742
  %881 = vmatprep.subr.bf16.mxu0 0
  %882 = vmatpush2.bf16.msra.mxu0 %v741
  %883 = vmatprep.subr.bf16.mxu0 0
  %884 = vmatpush2.bf16.msra.mxu0 %v740
  %885 = vmatprep.subr.bf16.mxu0 0
  %886 = vmatpush2.bf16.msra.mxu0 %v739
  %887 = vmatprep.subr.bf16.mxu0 0
  %888 = vmatpush2.bf16.msra.mxu0 %v738
  %889 = vmatprep.subr.bf16.mxu0 0
  %890 = vmatpush2.bf16.msra.mxu0 %v737
  %891 = vmatprep.subr.bf16.mxu0 0
  %892 = vmatpush2.bf16.msra.mxu0 %v736
  %893 = vmatprep.mubr.bf16.mxu0 %v497
  %894 = vmatmul.mubr.bf16.gmra.mxu0 %v496
  %v895 = vpop.f32.mrf.mxu0
  %v896 = vadd.f32 0.0, %v895
  %v897 = vpop.f32.mrf.mxu0
  %v898 = vpop.f32.mrf.mxu0
  %v899 = vadd.f32 0.0, %v898
  %v900 = vpop.f32.mrf.mxu0
  %901 = vmatprep.mubr.bf16.mxu0 %v500
  %902 = vmatmul.mubr.bf16.gmra.mxu0 %v499
  %v903 = vpop.f32.mrf.mxu0
  %v904 = vadd.f32 0.0, %v903
  %v905 = vpop.f32.mrf.mxu0
  %v906 = vpop.f32.mrf.mxu0
  %v907 = vadd.f32 0.0, %v906
  %v908 = vpop.f32.mrf.mxu0
  %909 = vmatprep.mubr.bf16.mxu0 %v503
  %910 = vmatmul.mubr.bf16.gmra.mxu0 %v502
  %v911 = vpop.f32.mrf.mxu0
  %v912 = vadd.f32 0.0, %v911
  %v913 = vpop.f32.mrf.mxu0
  %v914 = vpop.f32.mrf.mxu0
  %v915 = vadd.f32 0.0, %v914
  %v916 = vpop.f32.mrf.mxu0
  %917 = vmatprep.mubr.bf16.mxu0 %v506
  %918 = vmatmul.mubr.bf16.gmra.mxu0 %v505
  %v919 = vpop.f32.mrf.mxu0
  %v920 = vadd.f32 0.0, %v919
  %v921 = vpop.f32.mrf.mxu0
  %v922 = vpop.f32.mrf.mxu0
  %v923 = vadd.f32 0.0, %v922
  %v924 = vpop.f32.mrf.mxu0
  %925 = vmatprep.mubr.bf16.mxu0 %v509
  %926 = vmatmul.mubr.bf16.gmra.mxu0 %v508
  %v927 = vpop.f32.mrf.mxu0
  %v928 = vadd.f32 0.0, %v927
  %v929 = vpop.f32.mrf.mxu0
  %v930 = vpop.f32.mrf.mxu0
  %v931 = vadd.f32 0.0, %v930
  %v932 = vpop.f32.mrf.mxu0
  %933 = vmatprep.mubr.bf16.mxu0 %v512
  %934 = vmatmul.mubr.bf16.gmra.mxu0 %v511
  %v935 = vpop.f32.mrf.mxu0
  %v936 = vadd.f32 0.0, %v935
  %v937 = vpop.f32.mrf.mxu0
  %v938 = vpop.f32.mrf.mxu0
  %v939 = vadd.f32 0.0, %v938
  %v940 = vpop.f32.mrf.mxu0
  %941 = vmatprep.mubr.bf16.mxu0 %v515
  %942 = vmatmul.mubr.bf16.gmra.mxu0 %v514
  %v943 = vpop.f32.mrf.mxu0
  %v944 = vadd.f32 0.0, %v943
  %v945 = vpop.f32.mrf.mxu0
  %v946 = vpop.f32.mrf.mxu0
  %v947 = vadd.f32 0.0, %v946
  %v948 = vpop.f32.mrf.mxu0
  %949 = vmatprep.mubr.bf16.mxu0 %v518
  %950 = vmatmul.mubr.bf16.gmra.mxu0 %v517
  %v951 = vpop.f32.mrf.mxu0
  %v952 = vadd.f32 0.0, %v951
  %v953 = vpop.f32.mrf.mxu0
  %v954 = vpop.f32.mrf.mxu0
  %v955 = vadd.f32 0.0, %v954
  %v956 = vpop.f32.mrf.mxu0
  %957 = vmatprep.mubr.bf16.mxu0 %v521
  %958 = vmatmul.mubr.bf16.gmra.mxu0 %v520
  %v959 = vpop.f32.mrf.mxu0
  %v960 = vadd.f32 0.0, %v959
  %v961 = vpop.f32.mrf.mxu0
  %v962 = vpop.f32.mrf.mxu0
  %v963 = vadd.f32 0.0, %v962
  %v964 = vpop.f32.mrf.mxu0
  %965 = vmatprep.mubr.bf16.mxu0 %v524
  %966 = vmatmul.mubr.bf16.gmra.mxu0 %v523
  %v967 = vpop.f32.mrf.mxu0
  %v968 = vadd.f32 0.0, %v967
  %v969 = vpop.f32.mrf.mxu0
  %v970 = vpop.f32.mrf.mxu0
  %v971 = vadd.f32 0.0, %v970
  %v972 = vpop.f32.mrf.mxu0
  %973 = vmatprep.mubr.bf16.mxu0 %v527
  %974 = vmatmul.mubr.bf16.gmra.mxu0 %v526
  %v975 = vpop.f32.mrf.mxu0
  %v976 = vadd.f32 0.0, %v975
  %v977 = vpop.f32.mrf.mxu0
  %v978 = vpop.f32.mrf.mxu0
  %v979 = vadd.f32 0.0, %v978
  %v980 = vpop.f32.mrf.mxu0
  %981 = vmatprep.mubr.bf16.mxu0 %v530
  %982 = vmatmul.mubr.bf16.gmra.mxu0 %v529
  %v983 = vpop.f32.mrf.mxu0
  %v984 = vadd.f32 0.0, %v983
  %v985 = vpop.f32.mrf.mxu0
  %v986 = vpop.f32.mrf.mxu0
  %v987 = vadd.f32 0.0, %v986
  %v988 = vpop.f32.mrf.mxu0
  %989 = vmatprep.mubr.bf16.mxu0 %v533
  %990 = vmatmul.mubr.bf16.gmra.mxu0 %v532
  %v991 = vpop.f32.mrf.mxu0
  %v992 = vadd.f32 0.0, %v991
  %v993 = vpop.f32.mrf.mxu0
  %v994 = vpop.f32.mrf.mxu0
  %v995 = vadd.f32 0.0, %v994
  %v996 = vpop.f32.mrf.mxu0
  %997 = vmatprep.mubr.bf16.mxu0 %v536
  %998 = vmatmul.mubr.bf16.gmra.mxu0 %v535
  %v999 = vpop.f32.mrf.mxu0
  %v1000 = vadd.f32 0.0, %v999
  %v1001 = vpop.f32.mrf.mxu0
  %v1002 = vpop.f32.mrf.mxu0
  %v1003 = vadd.f32 0.0, %v1002
  %v1004 = vpop.f32.mrf.mxu0
  %1005 = vmatprep.mubr.bf16.mxu0 %v539
  %1006 = vmatmul.mubr.bf16.gmra.mxu0 %v538
  %v1007 = vpop.f32.mrf.mxu0
  %v1008 = vadd.f32 0.0, %v1007
  %v1009 = vpop.f32.mrf.mxu0
  %v1010 = vpop.f32.mrf.mxu0
  %v1011 = vadd.f32 0.0, %v1010
  %v1012 = vpop.f32.mrf.mxu0
  %1013 = vmatprep.mubr.bf16.mxu0 %v542
  %1014 = vmatmul.mubr.bf16.gmra.mxu0 %v541
  %v1015 = vpop.f32.mrf.mxu0
  %v1016 = vadd.f32 0.0, %v1015
  %v1017 = vpop.f32.mrf.mxu0
  %v1018 = vpop.f32.mrf.mxu0
  %v1019 = vadd.f32 0.0, %v1018
  %v1020 = vpop.f32.mrf.mxu0
  %1021 = vmatprep.mubr.bf16.mxu0 %v545
  %1022 = vmatmul.mubr.bf16.gmra.mxu0 %v544
  %v1023 = vpop.f32.mrf.mxu0
  %v1024 = vadd.f32 0.0, %v1023
  %v1025 = vpop.f32.mrf.mxu0
  %v1026 = vpop.f32.mrf.mxu0
  %v1027 = vadd.f32 0.0, %v1026
  %v1028 = vpop.f32.mrf.mxu0
  %1029 = vmatprep.mubr.bf16.mxu0 %v548
  %1030 = vmatmul.mubr.bf16.gmra.mxu0 %v547
  %v1031 = vpop.f32.mrf.mxu0
  %v1032 = vadd.f32 0.0, %v1031
  %v1033 = vpop.f32.mrf.mxu0
  %v1034 = vpop.f32.mrf.mxu0
  %v1035 = vadd.f32 0.0, %v1034
  %v1036 = vpop.f32.mrf.mxu0
  %1037 = vmatprep.mubr.bf16.mxu0 %v551
  %1038 = vmatmul.mubr.bf16.gmra.mxu0 %v550
  %v1039 = vpop.f32.mrf.mxu0
  %v1040 = vadd.f32 0.0, %v1039
  %v1041 = vpop.f32.mrf.mxu0
  %v1042 = vpop.f32.mrf.mxu0
  %v1043 = vadd.f32 0.0, %v1042
  %v1044 = vpop.f32.mrf.mxu0
  %1045 = vmatprep.mubr.bf16.mxu0 %v554
  %1046 = vmatmul.mubr.bf16.gmra.mxu0 %v553
  %v1047 = vpop.f32.mrf.mxu0
  %v1048 = vadd.f32 0.0, %v1047
  %v1049 = vpop.f32.mrf.mxu0
  %v1050 = vpop.f32.mrf.mxu0
  %v1051 = vadd.f32 0.0, %v1050
  %v1052 = vpop.f32.mrf.mxu0
  %1053 = vmatprep.mubr.bf16.mxu0 %v557
  %1054 = vmatmul.mubr.bf16.gmra.mxu0 %v556
  %v1055 = vpop.f32.mrf.mxu0
  %v1056 = vadd.f32 0.0, %v1055
  %v1057 = vpop.f32.mrf.mxu0
  %v1058 = vpop.f32.mrf.mxu0
  %v1059 = vadd.f32 0.0, %v1058
  %v1060 = vpop.f32.mrf.mxu0
  %1061 = vmatprep.mubr.bf16.mxu0 %v560
  %1062 = vmatmul.mubr.bf16.gmra.mxu0 %v559
  %v1063 = vpop.f32.mrf.mxu0
  %v1064 = vadd.f32 0.0, %v1063
  %v1065 = vpop.f32.mrf.mxu0
  %v1066 = vpop.f32.mrf.mxu0
  %v1067 = vadd.f32 0.0, %v1066
  %v1068 = vpop.f32.mrf.mxu0
  %1069 = vmatprep.mubr.bf16.mxu0 %v563
  %1070 = vmatmul.mubr.bf16.gmra.mxu0 %v562
  %v1071 = vpop.f32.mrf.mxu0
  %v1072 = vadd.f32 0.0, %v1071
  %v1073 = vpop.f32.mrf.mxu0
  %v1074 = vpop.f32.mrf.mxu0
  %v1075 = vadd.f32 0.0, %v1074
  %v1076 = vpop.f32.mrf.mxu0
  %1077 = vmatprep.mubr.bf16.mxu0 %v566
  %1078 = vmatmul.mubr.bf16.gmra.mxu0 %v565
  %v1079 = vpop.f32.mrf.mxu0
  %v1080 = vadd.f32 0.0, %v1079
  %v1081 = vpop.f32.mrf.mxu0
  %v1082 = vpop.f32.mrf.mxu0
  %v1083 = vadd.f32 0.0, %v1082
  %v1084 = vpop.f32.mrf.mxu0
  %1085 = vmatprep.mubr.bf16.mxu0 %v569
  %1086 = vmatmul.mubr.bf16.gmra.mxu0 %v568
  %v1087 = vpop.f32.mrf.mxu0
  %v1088 = vadd.f32 0.0, %v1087
  %v1089 = vpop.f32.mrf.mxu0
  %v1090 = vpop.f32.mrf.mxu0
  %v1091 = vadd.f32 0.0, %v1090
  %v1092 = vpop.f32.mrf.mxu0
  %1093 = vmatprep.mubr.bf16.mxu0 %v572
  %1094 = vmatmul.mubr.bf16.gmra.mxu0 %v571
  %v1095 = vpop.f32.mrf.mxu0
  %v1096 = vadd.f32 0.0, %v1095
  %v1097 = vpop.f32.mrf.mxu0
  %v1098 = vpop.f32.mrf.mxu0
  %v1099 = vadd.f32 0.0, %v1098
  %v1100 = vpop.f32.mrf.mxu0
  %1101 = vmatprep.mubr.bf16.mxu0 %v575
  %1102 = vmatmul.mubr.bf16.gmra.mxu0 %v574
  %v1103 = vpop.f32.mrf.mxu0
  %v1104 = vadd.f32 0.0, %v1103
  %v1105 = vpop.f32.mrf.mxu0
  %v1106 = vpop.f32.mrf.mxu0
  %v1107 = vadd.f32 0.0, %v1106
  %v1108 = vpop.f32.mrf.mxu0
  %1109 = vmatprep.mubr.bf16.mxu0 %v578
  %1110 = vmatmul.mubr.bf16.gmra.mxu0 %v577
  %v1111 = vpop.f32.mrf.mxu0
  %v1112 = vadd.f32 0.0, %v1111
  %v1113 = vpop.f32.mrf.mxu0
  %v1114 = vpop.f32.mrf.mxu0
  %v1115 = vadd.f32 0.0, %v1114
  %v1116 = vpop.f32.mrf.mxu0
  %1117 = vmatprep.mubr.bf16.mxu0 %v581
  %1118 = vmatmul.mubr.bf16.gmra.mxu0 %v580
  %v1119 = vpop.f32.mrf.mxu0
  %v1120 = vadd.f32 0.0, %v1119
  %v1121 = vpop.f32.mrf.mxu0
  %v1122 = vpop.f32.mrf.mxu0
  %v1123 = vadd.f32 0.0, %v1122
  %v1124 = vpop.f32.mrf.mxu0
  %1125 = vmatprep.mubr.bf16.mxu0 %v584
  %1126 = vmatmul.mubr.bf16.gmra.mxu0 %v583
  %v1127 = vpop.f32.mrf.mxu0
  %v1128 = vadd.f32 0.0, %v1127
  %v1129 = vpop.f32.mrf.mxu0
  %v1130 = vpop.f32.mrf.mxu0
  %v1131 = vadd.f32 0.0, %v1130
  %v1132 = vpop.f32.mrf.mxu0
  %1133 = vmatprep.mubr.bf16.mxu0 %v587
  %1134 = vmatmul.mubr.bf16.gmra.mxu0 %v586
  %v1135 = vpop.f32.mrf.mxu0
  %v1136 = vadd.f32 0.0, %v1135
  %v1137 = vpop.f32.mrf.mxu0
  %v1138 = vpop.f32.mrf.mxu0
  %v1139 = vadd.f32 0.0, %v1138
  %v1140 = vpop.f32.mrf.mxu0
  %1141 = vmatprep.mubr.bf16.mxu0 %v590
  %1142 = vmatmul.mubr.bf16.gmra.mxu0 %v589
  %v1143 = vpop.f32.mrf.mxu0
  %v1144 = vadd.f32 0.0, %v1143
  %v1145 = vpop.f32.mrf.mxu0
  %v1146 = vpop.f32.mrf.mxu0
  %v1147 = vadd.f32 0.0, %v1146
  %v1148 = vpop.f32.mrf.mxu0
  %1149 = vdwg.mxu0
  %1150 = vmatprep.subr.bf16.mxu0 0
  %1151 = vmatpush1.bf16.msra.mxu0 0
  %1152 = vmatprep.subr.bf16.mxu0 0
  %1153 = vmatpush1.bf16.msra.mxu0 0
  %1154 = vmatprep.subr.bf16.mxu0 0
  %1155 = vmatpush1.bf16.msra.mxu0 0
  %1156 = vmatprep.subr.bf16.mxu0 0
  %1157 = vmatpush1.bf16.msra.mxu0 0
  %1158 = vmatprep.subr.bf16.mxu0 0
  %1159 = vmatpush1.bf16.msra.mxu0 0
  %1160 = vmatprep.subr.bf16.mxu0 0
  %1161 = vmatpush1.bf16.msra.mxu0 0
  %1162 = vmatprep.subr.bf16.mxu0 0
  %1163 = vmatpush1.bf16.msra.mxu0 %v745
  %1164 = vmatprep.subr.bf16.mxu0 0
  %1165 = vmatpush1.bf16.msra.mxu0 %v744
  %1166 = vmatprep.subr.bf16.mxu0 0
  %1167 = vmatpush2.bf16.msra.mxu0 0
  %1168 = vmatprep.subr.bf16.mxu0 0
  %1169 = vmatpush2.bf16.msra.mxu0 0
  %1170 = vmatprep.subr.bf16.mxu0 0
  %1171 = vmatpush2.bf16.msra.mxu0 0
  %1172 = vmatprep.subr.bf16.mxu0 0
  %1173 = vmatpush2.bf16.msra.mxu0 0
  %1174 = vmatprep.subr.bf16.mxu0 0
  %1175 = vmatpush2.bf16.msra.mxu0 0
  %1176 = vmatprep.subr.bf16.mxu0 0
  %1177 = vmatpush2.bf16.msra.mxu0 0
  %1178 = vmatprep.subr.bf16.mxu0 0
  %1179 = vmatpush2.bf16.msra.mxu0 0
  %1180 = vmatprep.subr.bf16.mxu0 0
  %1181 = vmatpush2.bf16.msra.mxu0 0
  %1182 = vmatprep.mubr.bf16.mxu0 0
  %1183 = vmatmul.mubr.bf16.gmra.mxu0 %v766
  %v1184 = vpop.f32.mrf.mxu0
  %v1185 = vadd.f32 %v896, %v1184
  %v1186 = vpop.f32.mrf.mxu0
  %v1187 = vpop.f32.mrf.mxu0
  %v1188 = vadd.f32 %v899, %v1187
  %v1189 = vpop.f32.mrf.mxu0
  %1190 = vmatprep.mubr.bf16.mxu0 0
  %1191 = vmatmul.mubr.bf16.gmra.mxu0 %v769
  %v1192 = vpop.f32.mrf.mxu0
  %v1193 = vadd.f32 %v904, %v1192
  %v1194 = vpop.f32.mrf.mxu0
  %v1195 = vpop.f32.mrf.mxu0
  %v1196 = vadd.f32 %v907, %v1195
  %v1197 = vpop.f32.mrf.mxu0
  %1198 = vmatprep.mubr.bf16.mxu0 0
  %1199 = vmatmul.mubr.bf16.gmra.mxu0 %v772
  %v1200 = vpop.f32.mrf.mxu0
  %v1201 = vadd.f32 %v912, %v1200
  %v1202 = vpop.f32.mrf.mxu0
  %v1203 = vpop.f32.mrf.mxu0
  %v1204 = vadd.f32 %v915, %v1203
  %v1205 = vpop.f32.mrf.mxu0
  %1206 = vmatprep.mubr.bf16.mxu0 0
  %1207 = vmatmul.mubr.bf16.gmra.mxu0 %v775
  %v1208 = vpop.f32.mrf.mxu0
  %v1209 = vadd.f32 %v920, %v1208
  %v1210 = vpop.f32.mrf.mxu0
  %v1211 = vpop.f32.mrf.mxu0
  %v1212 = vadd.f32 %v923, %v1211
  %v1213 = vpop.f32.mrf.mxu0
  %1214 = vmatprep.mubr.bf16.mxu0 0
  %1215 = vmatmul.mubr.bf16.gmra.mxu0 %v778
  %v1216 = vpop.f32.mrf.mxu0
  %v1217 = vadd.f32 %v928, %v1216
  %v1218 = vpop.f32.mrf.mxu0
  %v1219 = vpop.f32.mrf.mxu0
  %v1220 = vadd.f32 %v931, %v1219
  %v1221 = vpop.f32.mrf.mxu0
  %1222 = vmatprep.mubr.bf16.mxu0 0
  %1223 = vmatmul.mubr.bf16.gmra.mxu0 %v781
  %v1224 = vpop.f32.mrf.mxu0
  %v1225 = vadd.f32 %v936, %v1224
  %v1226 = vpop.f32.mrf.mxu0
  %v1227 = vpop.f32.mrf.mxu0
  %v1228 = vadd.f32 %v939, %v1227
  %v1229 = vpop.f32.mrf.mxu0
  %1230 = vmatprep.mubr.bf16.mxu0 0
  %1231 = vmatmul.mubr.bf16.gmra.mxu0 %v784
  %v1232 = vpop.f32.mrf.mxu0
  %v1233 = vadd.f32 %v944, %v1232
  %v1234 = vpop.f32.mrf.mxu0
  %v1235 = vpop.f32.mrf.mxu0
  %v1236 = vadd.f32 %v947, %v1235
  %v1237 = vpop.f32.mrf.mxu0
  %1238 = vmatprep.mubr.bf16.mxu0 0
  %1239 = vmatmul.mubr.bf16.gmra.mxu0 %v787
  %v1240 = vpop.f32.mrf.mxu0
  %v1241 = vadd.f32 %v952, %v1240
  %v1242 = vpop.f32.mrf.mxu0
  %v1243 = vpop.f32.mrf.mxu0
  %v1244 = vadd.f32 %v955, %v1243
  %v1245 = vpop.f32.mrf.mxu0
  %1246 = vmatprep.mubr.bf16.mxu0 0
  %1247 = vmatmul.mubr.bf16.gmra.mxu0 %v790
  %v1248 = vpop.f32.mrf.mxu0
  %v1249 = vadd.f32 %v960, %v1248
  %v1250 = vpop.f32.mrf.mxu0
  %v1251 = vpop.f32.mrf.mxu0
  %v1252 = vadd.f32 %v963, %v1251
  %v1253 = vpop.f32.mrf.mxu0
  %1254 = vmatprep.mubr.bf16.mxu0 0
  %1255 = vmatmul.mubr.bf16.gmra.mxu0 %v793
  %v1256 = vpop.f32.mrf.mxu0
  %v1257 = vadd.f32 %v968, %v1256
  %v1258 = vpop.f32.mrf.mxu0
  %v1259 = vpop.f32.mrf.mxu0
  %v1260 = vadd.f32 %v971, %v1259
  %v1261 = vpop.f32.mrf.mxu0
  %1262 = vmatprep.mubr.bf16.mxu0 0
  %1263 = vmatmul.mubr.bf16.gmra.mxu0 %v796
  %v1264 = vpop.f32.mrf.mxu0
  %v1265 = vadd.f32 %v976, %v1264
  %v1266 = vpop.f32.mrf.mxu0
  %v1267 = vpop.f32.mrf.mxu0
  %v1268 = vadd.f32 %v979, %v1267
  %v1269 = vpop.f32.mrf.mxu0
  %1270 = vmatprep.mubr.bf16.mxu0 0
  %1271 = vmatmul.mubr.bf16.gmra.mxu0 %v799
  %v1272 = vpop.f32.mrf.mxu0
  %v1273 = vadd.f32 %v984, %v1272
  %v1274 = vpop.f32.mrf.mxu0
  %v1275 = vpop.f32.mrf.mxu0
  %v1276 = vadd.f32 %v987, %v1275
  %v1277 = vpop.f32.mrf.mxu0
  %1278 = vmatprep.mubr.bf16.mxu0 0
  %1279 = vmatmul.mubr.bf16.gmra.mxu0 %v802
  %v1280 = vpop.f32.mrf.mxu0
  %v1281 = vadd.f32 %v992, %v1280
  %v1282 = vpop.f32.mrf.mxu0
  %v1283 = vpop.f32.mrf.mxu0
  %v1284 = vadd.f32 %v995, %v1283
  %v1285 = vpop.f32.mrf.mxu0
  %1286 = vmatprep.mubr.bf16.mxu0 0
  %1287 = vmatmul.mubr.bf16.gmra.mxu0 %v805
  %v1288 = vpop.f32.mrf.mxu0
  %v1289 = vadd.f32 %v1000, %v1288
  %v1290 = vpop.f32.mrf.mxu0
  %v1291 = vpop.f32.mrf.mxu0
  %v1292 = vadd.f32 %v1003, %v1291
  %v1293 = vpop.f32.mrf.mxu0
  %1294 = vmatprep.mubr.bf16.mxu0 0
  %1295 = vmatmul.mubr.bf16.gmra.mxu0 %v808
  %v1296 = vpop.f32.mrf.mxu0
  %v1297 = vadd.f32 %v1008, %v1296
  %v1298 = vpop.f32.mrf.mxu0
  %v1299 = vpop.f32.mrf.mxu0
  %v1300 = vadd.f32 %v1011, %v1299
  %v1301 = vpop.f32.mrf.mxu0
  %1302 = vmatprep.mubr.bf16.mxu0 0
  %1303 = vmatmul.mubr.bf16.gmra.mxu0 %v811
  %v1304 = vpop.f32.mrf.mxu0
  %v1305 = vadd.f32 %v1016, %v1304
  %v1306 = vpop.f32.mrf.mxu0
  %v1307 = vpop.f32.mrf.mxu0
  %v1308 = vadd.f32 %v1019, %v1307
  %v1309 = vpop.f32.mrf.mxu0
  %1310 = vmatprep.mubr.bf16.mxu0 0
  %1311 = vmatmul.mubr.bf16.gmra.mxu0 %v814
  %v1312 = vpop.f32.mrf.mxu0
  %v1313 = vadd.f32 %v1024, %v1312
  %v1314 = vpop.f32.mrf.mxu0
  %v1315 = vpop.f32.mrf.mxu0
  %v1316 = vadd.f32 %v1027, %v1315
  %v1317 = vpop.f32.mrf.mxu0
  %1318 = vmatprep.mubr.bf16.mxu0 0
  %1319 = vmatmul.mubr.bf16.gmra.mxu0 %v817
  %v1320 = vpop.f32.mrf.mxu0
  %v1321 = vadd.f32 %v1032, %v1320
  %v1322 = vpop.f32.mrf.mxu0
  %v1323 = vpop.f32.mrf.mxu0
  %v1324 = vadd.f32 %v1035, %v1323
  %v1325 = vpop.f32.mrf.mxu0
  %1326 = vmatprep.mubr.bf16.mxu0 0
  %1327 = vmatmul.mubr.bf16.gmra.mxu0 %v820
  %v1328 = vpop.f32.mrf.mxu0
  %v1329 = vadd.f32 %v1040, %v1328
  %v1330 = vpop.f32.mrf.mxu0
  %v1331 = vpop.f32.mrf.mxu0
  %v1332 = vadd.f32 %v1043, %v1331
  %v1333 = vpop.f32.mrf.mxu0
  %1334 = vmatprep.mubr.bf16.mxu0 0
  %1335 = vmatmul.mubr.bf16.gmra.mxu0 %v823
  %v1336 = vpop.f32.mrf.mxu0
  %v1337 = vadd.f32 %v1048, %v1336
  %v1338 = vpop.f32.mrf.mxu0
  %v1339 = vpop.f32.mrf.mxu0
  %v1340 = vadd.f32 %v1051, %v1339
  %v1341 = vpop.f32.mrf.mxu0
  %1342 = vmatprep.mubr.bf16.mxu0 0
  %1343 = vmatmul.mubr.bf16.gmra.mxu0 %v826
  %v1344 = vpop.f32.mrf.mxu0
  %v1345 = vadd.f32 %v1056, %v1344
  %v1346 = vpop.f32.mrf.mxu0
  %v1347 = vpop.f32.mrf.mxu0
  %v1348 = vadd.f32 %v1059, %v1347
  %v1349 = vpop.f32.mrf.mxu0
  %1350 = vmatprep.mubr.bf16.mxu0 0
  %1351 = vmatmul.mubr.bf16.gmra.mxu0 %v829
  %v1352 = vpop.f32.mrf.mxu0
  %v1353 = vadd.f32 %v1064, %v1352
  %v1354 = vpop.f32.mrf.mxu0
  %v1355 = vpop.f32.mrf.mxu0
  %v1356 = vadd.f32 %v1067, %v1355
  %v1357 = vpop.f32.mrf.mxu0
  %1358 = vmatprep.mubr.bf16.mxu0 0
  %1359 = vmatmul.mubr.bf16.gmra.mxu0 %v832
  %v1360 = vpop.f32.mrf.mxu0
  %v1361 = vadd.f32 %v1072, %v1360
  %v1362 = vpop.f32.mrf.mxu0
  %v1363 = vpop.f32.mrf.mxu0
  %v1364 = vadd.f32 %v1075, %v1363
  %v1365 = vpop.f32.mrf.mxu0
  %1366 = vmatprep.mubr.bf16.mxu0 0
  %1367 = vmatmul.mubr.bf16.gmra.mxu0 %v835
  %v1368 = vpop.f32.mrf.mxu0
  %v1369 = vadd.f32 %v1080, %v1368
  %v1370 = vpop.f32.mrf.mxu0
  %v1371 = vpop.f32.mrf.mxu0
  %v1372 = vadd.f32 %v1083, %v1371
  %v1373 = vpop.f32.mrf.mxu0
  %1374 = vmatprep.mubr.bf16.mxu0 0
  %1375 = vmatmul.mubr.bf16.gmra.mxu0 %v838
  %v1376 = vpop.f32.mrf.mxu0
  %v1377 = vadd.f32 %v1088, %v1376
  %v1378 = vpop.f32.mrf.mxu0
  %v1379 = vpop.f32.mrf.mxu0
  %v1380 = vadd.f32 %v1091, %v1379
  %v1381 = vpop.f32.mrf.mxu0
  %1382 = vmatprep.mubr.bf16.mxu0 0
  %1383 = vmatmul.mubr.bf16.gmra.mxu0 %v841
  %v1384 = vpop.f32.mrf.mxu0
  %v1385 = vadd.f32 %v1096, %v1384
  %v1386 = vpop.f32.mrf.mxu0
  %v1387 = vpop.f32.mrf.mxu0
  %v1388 = vadd.f32 %v1099, %v1387
  %v1389 = vpop.f32.mrf.mxu0
  %1390 = vmatprep.mubr.bf16.mxu0 0
  %1391 = vmatmul.mubr.bf16.gmra.mxu0 %v844
  %v1392 = vpop.f32.mrf.mxu0
  %v1393 = vadd.f32 %v1104, %v1392
  %v1394 = vpop.f32.mrf.mxu0
  %v1395 = vpop.f32.mrf.mxu0
  %v1396 = vadd.f32 %v1107, %v1395
  %v1397 = vpop.f32.mrf.mxu0
  %1398 = vmatprep.mubr.bf16.mxu0 0
  %1399 = vmatmul.mubr.bf16.gmra.mxu0 %v847
  %v1400 = vpop.f32.mrf.mxu0
  %v1401 = vadd.f32 %v1112, %v1400
  %v1402 = vpop.f32.mrf.mxu0
  %v1403 = vpop.f32.mrf.mxu0
  %v1404 = vadd.f32 %v1115, %v1403
  %v1405 = vpop.f32.mrf.mxu0
  %1406 = vmatprep.mubr.bf16.mxu0 0
  %1407 = vmatmul.mubr.bf16.gmra.mxu0 %v850
  %v1408 = vpop.f32.mrf.mxu0
  %v1409 = vadd.f32 %v1120, %v1408
  %v1410 = vpop.f32.mrf.mxu0
  %v1411 = vpop.f32.mrf.mxu0
  %v1412 = vadd.f32 %v1123, %v1411
  %v1413 = vpop.f32.mrf.mxu0
  %1414 = vmatprep.mubr.bf16.mxu0 0
  %1415 = vmatmul.mubr.bf16.gmra.mxu0 %v853
  %v1416 = vpop.f32.mrf.mxu0
  %v1417 = vadd.f32 %v1128, %v1416
  %v1418 = vpop.f32.mrf.mxu0
  %v1419 = vpop.f32.mrf.mxu0
  %v1420 = vadd.f32 %v1131, %v1419
  %v1421 = vpop.f32.mrf.mxu0
  %1422 = vmatprep.mubr.bf16.mxu0 0
  %1423 = vmatmul.mubr.bf16.gmra.mxu0 %v856
  %v1424 = vpop.f32.mrf.mxu0
  %v1425 = vadd.f32 %v1136, %v1424
  %v1426 = vpop.f32.mrf.mxu0
  %v1427 = vpop.f32.mrf.mxu0
  %v1428 = vadd.f32 %v1139, %v1427
  %v1429 = vpop.f32.mrf.mxu0
  %1430 = vmatprep.mubr.bf16.mxu0 0
  %1431 = vmatmul.mubr.bf16.gmra.mxu0 %v859
  %v1432 = vpop.f32.mrf.mxu0
  %v1433 = vadd.f32 %v1144, %v1432
  %v1434 = vpop.f32.mrf.mxu0
  %v1435 = vpop.f32.mrf.mxu0
  %v1436 = vadd.f32 %v1147, %v1435
  %v1437 = vpop.f32.mrf.mxu0
  %1438 = vdwg.mxu0
  %v1439 = vtanh.pop %v1185
  %v1440 = vtanh.pop %v1188
  %v1441 = vtanh.pop %v1193
  %v1442 = vtanh.pop %v1196
  %v1443 = vtanh.pop %v1201
  %v1444 = vtanh.pop %v1204
  %v1445 = vtanh.pop %v1209
  %v1446 = vtanh.pop %v1212
  %v1447 = vtanh.pop %v1217
  %v1448 = vtanh.pop %v1220
  %v1449 = vtanh.pop %v1225
  %v1450 = vtanh.pop %v1228
  %v1451 = vtanh.pop %v1233
  %v1452 = vtanh.pop %v1236
  %v1453 = vtanh.pop %v1241
  %v1454 = vtanh.pop %v1244
  %v1455 = vtanh.pop %v1249
  %v1456 = vtanh.pop %v1252
  %v1457 = vtanh.pop %v1257
  %v1458 = vtanh.pop %v1260
  %v1459 = vtanh.pop %v1265
  %v1460 = vtanh.pop %v1268
  %v1461 = vtanh.pop %v1273
  %v1462 = vtanh.pop %v1276
  %v1463 = vtanh.pop %v1281
  %v1464 = vtanh.pop %v1284
  %v1465 = vtanh.pop %v1289
  %v1466 = vtanh.pop %v1292
  %v1467 = vtanh.pop %v1297
  %v1468 = vtanh.pop %v1300
  %v1469 = vtanh.pop %v1305
  %v1470 = vtanh.pop %v1308
  %v1471 = vtanh.pop %v1313
  %v1472 = vtanh.pop %v1316
  %v1473 = vtanh.pop %v1321
  %v1474 = vtanh.pop %v1324
  %v1475 = vtanh.pop %v1329
  %v1476 = vtanh.pop %v1332
  %v1477 = vtanh.pop %v1337
  %v1478 = vtanh.pop %v1340
  %v1479 = vtanh.pop %v1345
  %v1480 = vtanh.pop %v1348
  %v1481 = vtanh.pop %v1353
  %v1482 = vtanh.pop %v1356
  %v1483 = vtanh.pop %v1361
  %v1484 = vtanh.pop %v1364
  %v1485 = vtanh.pop %v1369
  %v1486 = vtanh.pop %v1372
  %v1487 = vtanh.pop %v1377
  %v1488 = vtanh.pop %v1380
  %v1489 = vtanh.pop %v1385
  %v1490 = vtanh.pop %v1388
  %v1491 = vtanh.pop %v1393
  %v1492 = vtanh.pop %v1396
  %v1493 = vtanh.pop %v1401
  %v1494 = vtanh.pop %v1404
  %v1495 = vtanh.pop %v1409
  %v1496 = vtanh.pop %v1412
  %v1497 = vtanh.pop %v1417
  %v1498 = vtanh.pop %v1420
  %v1499 = vtanh.pop %v1425
  %v1500 = vtanh.pop %v1428
  %v1501 = vtanh.pop %v1433
  %v1502 = vtanh.pop %v1436
  %1503 = vst [vmem:[%s2] sm:$0xff] %v1439
  %1504 = vst [vmem:[%s2 + $0x8] sm:$0xff] %v1440
  %1505 = vst [vmem:[%s2 + $0x10] sm:$0xff] %v1441
  %1506 = vst [vmem:[%s2 + $0x18] sm:$0xff] %v1442
  %1507 = vst [vmem:[%s2 + $0x20] sm:$0xff] %v1443
  %1508 = vst [vmem:[%s2 + $0x28] sm:$0xff] %v1444
  %1509 = vst [vmem:[%s2 + $0x30] sm:$0xff] %v1445
  %1510 = vst [vmem:[%s2 + $0x38] sm:$0xff] %v1446
  %1511 = vst [vmem:[%s2 + $0x40] sm:$0xff] %v1447
  %1512 = vst [vmem:[%s2 + $0x48] sm:$0xff] %v1448
  %1513 = vst [vmem:[%s2 + $0x50] sm:$0xff] %v1449
  %1514 = vst [vmem:[%s2 + $0x58] sm:$0xff] %v1450
  %1515 = vst [vmem:[%s2 + $0x60] sm:$0xff] %v1451
  %1516 = vst [vmem:[%s2 + $0x68] sm:$0xff] %v1452
  %1517 = vst [vmem:[%s2 + $0x70] sm:$0xff] %v1453
  %1518 = vst [vmem:[%s2 + $0x78] sm:$0xff] %v1454
  %1519 = vst [vmem:[%s2 + $0x80] sm:$0xff] %v1455
  %1520 = vst [vmem:[%s2 + $0x88] sm:$0xff] %v1456
  %1521 = vst [vmem:[%s2 + $0x90] sm:$0xff] %v1457
  %1522 = vst [vmem:[%s2 + $0x98] sm:$0xff] %v1458
  %1523 = vst [vmem:[%s2 + $0xa0] sm:$0xff] %v1459
  %1524 = vst [vmem:[%s2 + $0xa8] sm:$0xff] %v1460
  %1525 = vst [vmem:[%s2 + $0xb0] sm:$0xff] %v1461
  %1526 = vst [vmem:[%s2 + $0xb8] sm:$0xff] %v1462
  %1527 = vst [vmem:[%s2 + $0xc0] sm:$0xff] %v1463
  %1528 = vst [vmem:[%s2 + $0xc8] sm:$0xff] %v1464
  %1529 = vst [vmem:[%s2 + $0xd0] sm:$0xff] %v1465
  %1530 = vst [vmem:[%s2 + $0xd8] sm:$0xff] %v1466
  %1531 = vst [vmem:[%s2 + $0xe0] sm:$0xff] %v1467
  %1532 = vst [vmem:[%s2 + $0xe8] sm:$0xff] %v1468
  %1533 = vst [vmem:[%s2 + $0xf0] sm:$0xff] %v1469
  %1534 = vst [vmem:[%s2 + $0xf8] sm:$0xff] %v1470
  %1535 = vst [vmem:[%s2 + $0x100] sm:$0xff] %v1471
  %1536 = vst [vmem:[%s2 + $0x108] sm:$0xff] %v1472
  %1537 = vst [vmem:[%s2 + $0x110] sm:$0xff] %v1473
  %1538 = vst [vmem:[%s2 + $0x118] sm:$0xff] %v1474
  %1539 = vst [vmem:[%s2 + $0x120] sm:$0xff] %v1475
  %1540 = vst [vmem:[%s2 + $0x128] sm:$0xff] %v1476
  %1541 = vst [vmem:[%s2 + $0x130] sm:$0xff] %v1477
  %1542 = vst [vmem:[%s2 + $0x138] sm:$0xff] %v1478
  %1543 = vst [vmem:[%s2 + $0x140] sm:$0xff] %v1479
  %1544 = vst [vmem:[%s2 + $0x148] sm:$0xff] %v1480
  %1545 = vst [vmem:[%s2 + $0x150] sm:$0xff] %v1481
  %1546 = vst [vmem:[%s2 + $0x158] sm:$0xff] %v1482
  %1547 = vst [vmem:[%s2 + $0x160] sm:$0xff] %v1483
  %1548 = vst [vmem:[%s2 + $0x168] sm:$0xff] %v1484
  %1549 = vst [vmem:[%s2 + $0x170] sm:$0xff] %v1485
  %1550 = vst [vmem:[%s2 + $0x178] sm:$0xff] %v1486
  %1551 = vst [vmem:[%s2 + $0x180] sm:$0xff] %v1487
  %1552 = vst [vmem:[%s2 + $0x188] sm:$0xff] %v1488
  %1553 = vst [vmem:[%s2 + $0x190] sm:$0xff] %v1489
  %1554 = vst [vmem:[%s2 + $0x198] sm:$0xff] %v1490
  %1555 = vst [vmem:[%s2 + $0x1a0] sm:$0xff] %v1491
  %1556 = vst [vmem:[%s2 + $0x1a8] sm:$0xff] %v1492
  %1557 = vst [vmem:[%s2 + $0x1b0] sm:$0xff] %v1493
  %1558 = vst [vmem:[%s2 + $0x1b8] sm:$0xff] %v1494
  %1559 = vst [vmem:[%s2 + $0x1c0] sm:$0xff] %v1495
  %1560 = vst [vmem:[%s2 + $0x1c8] sm:$0xff] %v1496
  %1561 = vst [vmem:[%s2 + $0x1d0] sm:$0xff] %v1497
  %1562 = vst [vmem:[%s2 + $0x1d8] sm:$0xff] %v1498
  %1563 = vst [vmem:[%s2 + $0x1e0] sm:$0xff] %v1499
  %1564 = vst [vmem:[%s2 + $0x1e8] sm:$0xff] %v1500
  %1565 = vst [vmem:[%s2 + $0x1f0] sm:$0xff] %v1501
  %1566 = vst [vmem:[%s2 + $0x1f8] sm:$0xff] %v1502
  // Predicated region
  $region10: #{cycle_generator_forward.7} parent=0 // pred_check
    _
  $region11: #{cycle_generator_forward.7} parent=0 // pred_check_branch
    %1568 = sbr.rel (0) target = $region13
  $region12: #{cycle_generator_forward.7} parent=0 // pred_region
    _
  $region13: #{cycle_generator_forward.7} parent=0 // pred_fallthru
    _
  // Predicated region
  $region14: #{cycle_generator_forward.7} parent=0 // pred_check
    _
  $region15: #{cycle_generator_forward.7} parent=0 // pred_check_branch
    %1570 = sbr.rel (0) target = $region17
  $region16: #{cycle_generator_forward.7} parent=0 // pred_region
    _
  $region17: #{cycle_generator_forward.7} parent=0 // pred_fallthru
    _

</llo_original>
